<compile_context>
chip_gen: v7x
topology: tpu7x:2x2x1
jax: 0.10.0
libtpu: 0.0.40
codegen_flags: <defaults>
</compile_context>

<pallas_src>
import jax
import jax.numpy as jnp
from jax.experimental import pallas as pl
from jax.experimental.pallas import tpu as pltpu

EPS = 1e-5
NEG_SLOPE = 0.2
LANE = 128


def _bn_lrelu(h, gamma, beta, inv_b):
    """Training-mode BatchNorm1d (batch stats, no pre-bias) + LeakyReLU(0.2).

    Single elementwise pass over `h`: stats via one sum / sum-of-squares sweep,
    then h*scale + shift.  Returns bf16 so the next matmul gets native MXU
    operands.  `h` is f32 (B, <=128-lane slab); gamma/beta are (1, slab) f32.
    """
    mean = jnp.sum(h, axis=0, keepdims=True) * inv_b
    ex2 = jnp.sum(h * h, axis=0, keepdims=True) * inv_b
    var = ex2 - mean * mean                      # f32 accumulation; mean ~ 0 here
    scale = gamma * jax.lax.rsqrt(var + EPS)     # (1, slab)
    shift = beta - mean * scale                  # (1, slab)
    a = h * scale + shift
    a = jnp.maximum(a, NEG_SLOPE * a)            # LeakyReLU, 0 < slope < 1
    return a.astype(jnp.bfloat16)


def generator_kernel(
    x_ref,
    w1_ref, g1_ref, be1_ref,
    w2_ref, g2_ref, be2_ref,
    w3_ref, g3_ref, be3_ref,
    w4_ref, b4_ref,
    o_ref,
):
    B = x_ref.shape[0]
    inv_b = 1.0 / B

    # Layer 1: 128 output features -> one slab, fits in-register.
    h1 = _bn_lrelu(
        jnp.dot(x_ref[...], w1_ref[...], preferred_element_type=jnp.float32),
        g1_ref[...], be1_ref[...], inv_b)

    # Layer 2: 256 features processed as 128-lane slabs, kept as a chunk list so
    # no (B, 256) f32 intermediate is ever live at once.
    n2 = w2_ref.shape[1]
    h2 = []
    for c in range(n2 // LANE):
        sl = slice(c * LANE, (c + 1) * LANE)
        h = jnp.dot(h1, w2_ref[:, sl], preferred_element_type=jnp.float32)
        h2.append(_bn_lrelu(h, g2_ref[:, sl], be2_ref[:, sl], inv_b))

    # Layers 3 + 4 fused: each 128-lane slab of layer 3 is normalized, activated
    # and immediately contracted with the matching 128-row slab of w4,
    # accumulating into the lane-dense f32 output block.
    o_ref[...] = jnp.broadcast_to(b4_ref[...], o_ref.shape)
    n3 = w3_ref.shape[1]
    for c in range(n3 // LANE):
        sl = slice(c * LANE, (c + 1) * LANE)
        parts = [
            jnp.dot(h2k, w3_ref[k * LANE:(k + 1) * LANE, sl],
                    preferred_element_type=jnp.float32)
            for k, h2k in enumerate(h2)
        ]
        h = parts[0]
        for p in parts[1:]:
            h = h + p
        a = _bn_lrelu(h, g3_ref[:, sl], be3_ref[:, sl], inv_b)
        o_ref[...] += jnp.dot(a, w4_ref[sl, :], preferred_element_type=jnp.float32)


def prepare_kernel_params(params):
    """One-time conversion of f32 params into kernel form.

    Casts Linear weights to bf16, drops the (mathematically redundant, given
    training-mode BN stats) pre-BN biases, pads w1's input rows to a lane-dense
    multiple of 128, and pads the final layer's output features likewise.
    """
    in_dim, h1 = params["w1"].shape
    pad_in = pl.cdiv(in_dim, LANE) * LANE
    w1 = jnp.zeros((pad_in, h1), jnp.float32).at[:in_dim, :].set(params["w1"])

    in4, out_dim = params["w4"].shape
    out_pad = pl.cdiv(out_dim, LANE) * LANE
    w4 = jnp.zeros((in4, out_pad), jnp.float32).at[:, :out_dim].set(params["w4"])
    b4 = jnp.zeros((1, out_pad), jnp.float32).at[:, :out_dim].set(params["b4"])

    # The in-kernel slab loops assume the hidden widths are multiples of 128,
    # which holds for this module (128 / 256 / 512).
    assert params["w2"].shape[1] % LANE == 0 and params["w3"].shape[1] % LANE == 0

    return {
        "w1": w1.astype(jnp.bfloat16),
        "g1": params["g1"], "be1": params["be1"],
        "w2": params["w2"].astype(jnp.bfloat16),
        "g2": params["g2"], "be2": params["be2"],
        "w3": params["w3"].astype(jnp.bfloat16),
        "g3": params["g3"], "be3": params["be3"],
        "w4": w4.astype(jnp.bfloat16),
        "b4": b4,
        "out_dim": out_dim,
        "in_dim": in_dim,
    }


def generator_forward(x, kparams, *, batch_tile=None):
    """x: (B, input_dim) f32.  kparams: output of prepare_kernel_params.

    If batch_tile divides B and is < B, the batch is processed as B//batch_tile
    independent tiles, each with its own BatchNorm batch statistics (equivalent
    to that many separate forward() calls); weights stay VMEM-resident across
    tiles.  With batch_tile=None (default) the whole batch is one tile and the
    result exactly matches full-batch training-mode BatchNorm.
    """
    B, in_dim = x.shape
    pad_in = kparams["w1"].shape[0]
    out_pad = kparams["w4"].shape[1]

    if batch_tile is None:
        batch_tile = B
    if B % batch_tile != 0:
        raise ValueError("batch must be a multiple of batch_tile")
    n_tiles = B // batch_tile

    # Lane-dense, bf16 MXU operand prepared once outside the kernel
    # (w1's extra rows are zero, so the padding is exact).
    if in_dim < pad_in:
        x = jnp.pad(x, ((0, 0), (0, pad_in - in_dim)))
    x = x.astype(jnp.bfloat16)

    weight_args = (
        kparams["w1"], kparams["g1"], kparams["be1"],
        kparams["w2"], kparams["g2"], kparams["be2"],
        kparams["w3"], kparams["g3"], kparams["be3"],
        kparams["w4"], kparams["b4"],
    )

    # Weights / BN params: constant index_map -> DMA'd into VMEM once, resident
    # across all batch tiles of the grid.
    resident = lambda shape: pl.BlockSpec(shape, lambda i: (0, 0))
    in_specs = [pl.BlockSpec((batch_tile, pad_in), lambda i: (i, 0))]
    in_specs += [resident(a.shape) for a in weight_args]

    flops = 2 * B * sum(
        int(kparams[f"w{i}"].shape[0]) * int(kparams[f"w{i}"].shape[1])
        for i in range(1, 5)
    )
    transcendentals = n_tiles * sum(int(kparams[f"w{i}"].shape[1]) for i in range(1, 4))
    w_bytes = sum(int(a.size) * a.dtype.itemsize for a in weight_args)
    bytes_accessed = int(x.size) * 2 + w_bytes + B * out_pad * 4

    out = pl.pallas_call(
        generator_kernel,
        out_shape=jax.ShapeDtypeStruct((B, out_pad), jnp.float32),
        grid_spec=pltpu.PrefetchScalarGridSpec(
            num_scalar_prefetch=0,
            grid=(n_tiles,),
            in_specs=in_specs,
            out_specs=pl.BlockSpec((batch_tile, out_pad), lambda i: (i, 0)),
        ),
        compiler_params=pltpu.CompilerParams(
            dimension_semantics=("parallel",),   # independent tiles -> both TCs on v7x
            vmem_limit_bytes=16 << 20,           # kernel needs ~2 MiB; safe on v5e/v6e/v7x
        ),
        cost_estimate=pl.CostEstimate(
            flops=flops, transcendentals=transcendentals, bytes_accessed=bytes_accessed),
    )(x, *weight_args)
    return out[:, : kparams["out_dim"]]


def init_params(key, input_dim, output_dim):
    """Deterministic synthetic f32 parameters matching the PyTorch module's shapes.

    Linear weights are stored transposed: (in_features, out_features).
    BatchNorm scale/shift are stored as (1, num_features) rows.
    """
    dims = [input_dim, 128, 256, 512, output_dim]
    params = {}
    keys = jax.random.split(key, 8)
    for i in range(4):
        fan_in, fan_out = dims[i], dims[i + 1]
        bound = 1.0 / jnp.sqrt(fan_in)
        w = jax.random.uniform(keys[2 * i], (fan_in, fan_out),
                               minval=-bound, maxval=bound, dtype=jnp.float32)
        b = jax.random.uniform(keys[2 * i + 1], (1, fan_out),
                               minval=-bound, maxval=bound, dtype=jnp.float32)
        params[f"w{i + 1}"] = w
        params[f"b{i + 1}"] = b
        if i < 3:  # BatchNorm1d after the first three Linear layers
            params[f"g{i + 1}"] = jnp.ones((1, fan_out), jnp.float32)    # gamma init = 1
            params[f"be{i + 1}"] = jnp.zeros((1, fan_out), jnp.float32)  # beta init = 0
    return params


def reference_forward(x, params):
    """Pure-JAX f32 reference mirroring the PyTorch module (biases included)."""
    h = x
    for i in range(1, 4):
        h = h @ params[f"w{i}"] + params[f"b{i}"]
        mean = jnp.mean(h, axis=0, keepdims=True)
        var = jnp.mean((h - mean) ** 2, axis=0, keepdims=True)
        h = (h - mean) / jnp.sqrt(var + EPS)
        h = h * params[f"g{i}"] + params[f"be{i}"]
        h = jnp.where(h > 0, h, NEG_SLOPE * h)
    return h @ params["w4"] + params["b4"]


if __name__ == "__main__":
    input_dim, output_dim = 32, 64
    tile_b = 256   # fills the 256-tall MXU on v6e/v7x; two clean 128-row passes on v5e

    key = jax.random.PRNGKey(0)
    kx, kp = jax.random.split(key)
    params = init_params(kp, input_dim, output_dim)
    kparams = prepare_kernel_params(params)

    # 1) Single tile: exact full-batch training-mode BatchNorm semantics.
    x = jax.random.normal(kx, (tile_b, input_dim), dtype=jnp.float32)
    out = jax.block_until_ready(generator_forward(x, kparams))
    ref = reference_forward(x, params)
    assert out.shape == (tile_b, output_dim)
    # bf16 matmul operands (f32 accumulation) vs the pure-f32 reference.
    assert jnp.allclose(out, ref, atol=5e-2, rtol=5e-2), "single-tile mismatch vs reference"

    # 2) Two independent batches stacked into one pallas_call (grid=2): weights
    # stay VMEM-resident across tiles; each tile uses its own batch statistics,
    # exactly like two separate forward() calls of the PyTorch module.
    x2 = jax.random.normal(kx, (2 * tile_b, input_dim), dtype=jnp.float32)
    out2 = jax.block_until_ready(generator_forward(x2, kparams, batch_tile=tile_b))
    ref2 = jnp.concatenate(
        [reference_forward(x2[:tile_b], params),
         reference_forward(x2[tile_b:], params)], axis=0)
    assert out2.shape == (2 * tile_b, output_dim)
    assert jnp.allclose(out2, ref2, atol=5e-2, rtol=5e-2), "tiled mismatch vs reference"

    print("KERNEL_OK")
</pallas_src>

<mosaic_0001>
module attributes {stable_mosaic.version = 11 : i64} {
  func.func @generator_kernel(%arg0: i32, %arg1: memref<256x128xbf16, #tpu.memory_space<vmem>>, %arg2: memref<128x128xbf16, #tpu.memory_space<vmem>>, %arg3: memref<1x128xf32, #tpu.memory_space<vmem>>, %arg4: memref<1x128xf32, #tpu.memory_space<vmem>>, %arg5: memref<128x256xbf16, #tpu.memory_space<vmem>>, %arg6: memref<1x256xf32, #tpu.memory_space<vmem>>, %arg7: memref<1x256xf32, #tpu.memory_space<vmem>>, %arg8: memref<256x512xbf16, #tpu.memory_space<vmem>>, %arg9: memref<1x512xf32, #tpu.memory_space<vmem>>, %arg10: memref<1x512xf32, #tpu.memory_space<vmem>>, %arg11: memref<512x128xbf16, #tpu.memory_space<vmem>>, %arg12: memref<1x128xf32, #tpu.memory_space<vmem>>, %arg13: memref<256x128xf32, #tpu.memory_space<vmem>>) attributes {dimension_semantics = [#tpu.dimension_semantics<parallel>], iteration_bounds = array<i64: 1>, scalar_prefetch = 0 : i64, scratch_operands = 0 : i64, tpu.core_type = #tpu.core_type<tc>, window_params = [{transform_indices = @transform_0, window_bounds = array<i64: 256, 128>}, {pipeline_mode = #tpu.pipeline_mode<synchronous>, transform_indices = @transform_1, window_bounds = array<i64: 128, 128>}, {pipeline_mode = #tpu.pipeline_mode<synchronous>, transform_indices = @transform_2, window_bounds = array<i64: 1, 128>}, {pipeline_mode = #tpu.pipeline_mode<synchronous>, transform_indices = @transform_3, window_bounds = array<i64: 1, 128>}, {pipeline_mode = #tpu.pipeline_mode<synchronous>, transform_indices = @transform_4, window_bounds = array<i64: 128, 256>}, {pipeline_mode = #tpu.pipeline_mode<synchronous>, transform_indices = @transform_5, window_bounds = array<i64: 1, 256>}, {pipeline_mode = #tpu.pipeline_mode<synchronous>, transform_indices = @transform_6, window_bounds = array<i64: 1, 256>}, {pipeline_mode = #tpu.pipeline_mode<synchronous>, transform_indices = @transform_7, window_bounds = array<i64: 256, 512>}, {pipeline_mode = #tpu.pipeline_mode<synchronous>, transform_indices = @transform_8, window_bounds = array<i64: 1, 512>}, {pipeline_mode = #tpu.pipeline_mode<synchronous>, transform_indices = @transform_9, window_bounds = array<i64: 1, 512>}, {pipeline_mode = #tpu.pipeline_mode<synchronous>, transform_indices = @transform_10, window_bounds = array<i64: 512, 128>}, {pipeline_mode = #tpu.pipeline_mode<synchronous>, transform_indices = @transform_11, window_bounds = array<i64: 1, 128>}, {transform_indices = @transform_12, window_bounds = array<i64: 256, 128>}]} {
    %c0 = arith.constant 0 : index
    %c0_0 = arith.constant 0 : index
    %0 = vector.load %arg1[%c0, %c0_0] : memref<256x128xbf16, #tpu.memory_space<vmem>>, vector<256x128xbf16>
    %c0_1 = arith.constant 0 : index
    %c0_2 = arith.constant 0 : index
    %1 = vector.load %arg2[%c0_1, %c0_2] : memref<128x128xbf16, #tpu.memory_space<vmem>>, vector<128x128xbf16>
    %cst = arith.constant dense<0.000000e+00> : vector<256x128xf32>
    %2 = tpu.matmul %0, %1, %cst {dimension_numbers = #tpu.dot_dimension_numbers<[1], [0], [0], [1], [0, 0, 1, 1], [], []>} : vector<256x128xbf16>, vector<128x128xbf16>, vector<256x128xf32> -> vector<256x128xf32>
    %c0_3 = arith.constant 0 : index
    %c0_4 = arith.constant 0 : index
    %3 = vector.load %arg3[%c0_3, %c0_4] : memref<1x128xf32, #tpu.memory_space<vmem>>, vector<1x128xf32>
    %c0_5 = arith.constant 0 : index
    %c0_6 = arith.constant 0 : index
    %4 = vector.load %arg4[%c0_5, %c0_6] : memref<1x128xf32, #tpu.memory_space<vmem>>, vector<1x128xf32>
    %cst_7 = arith.constant dense<0.000000e+00> : vector<128xf32>
    %5 = vector.multi_reduction <add>, %2, %cst_7 [0] : vector<256x128xf32> to vector<128xf32>
    %6 = vector.shape_cast %5 : vector<128xf32> to vector<1x128xf32>
    %cst_8 = arith.constant 3.906250e-03 : f32
    %7 = vector.broadcast %cst_8 : f32 to vector<1x128xf32>
    %8 = arith.mulf %6, %7 : vector<1x128xf32>
    %9 = arith.mulf %2, %2 : vector<256x128xf32>
    %cst_9 = arith.constant dense<0.000000e+00> : vector<128xf32>
    %10 = vector.multi_reduction <add>, %9, %cst_9 [0] : vector<256x128xf32> to vector<128xf32>
    %11 = vector.shape_cast %10 : vector<128xf32> to vector<1x128xf32>
    %cst_10 = arith.constant 3.906250e-03 : f32
    %12 = vector.broadcast %cst_10 : f32 to vector<1x128xf32>
    %13 = arith.mulf %11, %12 : vector<1x128xf32>
    %14 = arith.mulf %8, %8 : vector<1x128xf32>
    %15 = arith.subf %13, %14 : vector<1x128xf32>
    %cst_11 = arith.constant 9.99999974E-6 : f32
    %16 = vector.broadcast %cst_11 : f32 to vector<1x128xf32>
    %17 = arith.addf %15, %16 : vector<1x128xf32>
    %18 = math.rsqrt %17 : vector<1x128xf32>
    %19 = arith.mulf %3, %18 : vector<1x128xf32>
    %20 = arith.mulf %8, %19 : vector<1x128xf32>
    %21 = arith.subf %4, %20 : vector<1x128xf32>
    %22 = vector.broadcast %19 : vector<1x128xf32> to vector<256x128xf32>
    %23 = arith.mulf %2, %22 : vector<256x128xf32>
    %24 = vector.broadcast %21 : vector<1x128xf32> to vector<256x128xf32>
    %25 = arith.addf %23, %24 : vector<256x128xf32>
    %cst_12 = arith.constant 2.000000e-01 : f32
    %26 = vector.broadcast %cst_12 : f32 to vector<256x128xf32>
    %27 = arith.mulf %26, %25 : vector<256x128xf32>
    %28 = arith.maximumf %25, %27 : vector<256x128xf32>
    %29 = arith.truncf %28 : vector<256x128xf32> to vector<256x128xbf16>
    %c0_13 = arith.constant 0 : index
    %c0_14 = arith.constant 0 : index
    %30 = vector.load %arg5[%c0_13, %c0_14] : memref<128x256xbf16, #tpu.memory_space<vmem>>, vector<128x128xbf16>
    %cst_15 = arith.constant dense<0.000000e+00> : vector<256x128xf32>
    %31 = tpu.matmul %29, %30, %cst_15 {dimension_numbers = #tpu.dot_dimension_numbers<[1], [0], [0], [1], [0, 0, 1, 1], [], []>} : vector<256x128xbf16>, vector<128x128xbf16>, vector<256x128xf32> -> vector<256x128xf32>
    %c0_16 = arith.constant 0 : index
    %c0_17 = arith.constant 0 : index
    %32 = vector.load %arg6[%c0_16, %c0_17] : memref<1x256xf32, #tpu.memory_space<vmem>>, vector<1x128xf32>
    %c0_18 = arith.constant 0 : index
    %c0_19 = arith.constant 0 : index
    %33 = vector.load %arg7[%c0_18, %c0_19] : memref<1x256xf32, #tpu.memory_space<vmem>>, vector<1x128xf32>
    %cst_20 = arith.constant dense<0.000000e+00> : vector<128xf32>
    %34 = vector.multi_reduction <add>, %31, %cst_20 [0] : vector<256x128xf32> to vector<128xf32>
    %35 = vector.shape_cast %34 : vector<128xf32> to vector<1x128xf32>
    %cst_21 = arith.constant 3.906250e-03 : f32
    %36 = vector.broadcast %cst_21 : f32 to vector<1x128xf32>
    %37 = arith.mulf %35, %36 : vector<1x128xf32>
    %38 = arith.mulf %31, %31 : vector<256x128xf32>
    %cst_22 = arith.constant dense<0.000000e+00> : vector<128xf32>
    %39 = vector.multi_reduction <add>, %38, %cst_22 [0] : vector<256x128xf32> to vector<128xf32>
    %40 = vector.shape_cast %39 : vector<128xf32> to vector<1x128xf32>
    %cst_23 = arith.constant 3.906250e-03 : f32
    %41 = vector.broadcast %cst_23 : f32 to vector<1x128xf32>
    %42 = arith.mulf %40, %41 : vector<1x128xf32>
    %43 = arith.mulf %37, %37 : vector<1x128xf32>
    %44 = arith.subf %42, %43 : vector<1x128xf32>
    %cst_24 = arith.constant 9.99999974E-6 : f32
    %45 = vector.broadcast %cst_24 : f32 to vector<1x128xf32>
    %46 = arith.addf %44, %45 : vector<1x128xf32>
    %47 = math.rsqrt %46 : vector<1x128xf32>
    %48 = arith.mulf %32, %47 : vector<1x128xf32>
    %49 = arith.mulf %37, %48 : vector<1x128xf32>
    %50 = arith.subf %33, %49 : vector<1x128xf32>
    %51 = vector.broadcast %48 : vector<1x128xf32> to vector<256x128xf32>
    %52 = arith.mulf %31, %51 : vector<256x128xf32>
    %53 = vector.broadcast %50 : vector<1x128xf32> to vector<256x128xf32>
    %54 = arith.addf %52, %53 : vector<256x128xf32>
    %cst_25 = arith.constant 2.000000e-01 : f32
    %55 = vector.broadcast %cst_25 : f32 to vector<256x128xf32>
    %56 = arith.mulf %55, %54 : vector<256x128xf32>
    %57 = arith.maximumf %54, %56 : vector<256x128xf32>
    %58 = arith.truncf %57 : vector<256x128xf32> to vector<256x128xbf16>
    %c0_26 = arith.constant 0 : index
    %c128 = arith.constant 128 : index
    %59 = vector.load %arg5[%c0_26, %c128] : memref<128x256xbf16, #tpu.memory_space<vmem>>, vector<128x128xbf16>
    %cst_27 = arith.constant dense<0.000000e+00> : vector<256x128xf32>
    %60 = tpu.matmul %29, %59, %cst_27 {dimension_numbers = #tpu.dot_dimension_numbers<[1], [0], [0], [1], [0, 0, 1, 1], [], []>} : vector<256x128xbf16>, vector<128x128xbf16>, vector<256x128xf32> -> vector<256x128xf32>
    %c0_28 = arith.constant 0 : index
    %c128_29 = arith.constant 128 : index
    %61 = vector.load %arg6[%c0_28, %c128_29] : memref<1x256xf32, #tpu.memory_space<vmem>>, vector<1x128xf32>
    %c0_30 = arith.constant 0 : index
    %c128_31 = arith.constant 128 : index
    %62 = vector.load %arg7[%c0_30, %c128_31] : memref<1x256xf32, #tpu.memory_space<vmem>>, vector<1x128xf32>
    %cst_32 = arith.constant dense<0.000000e+00> : vector<128xf32>
    %63 = vector.multi_reduction <add>, %60, %cst_32 [0] : vector<256x128xf32> to vector<128xf32>
    %64 = vector.shape_cast %63 : vector<128xf32> to vector<1x128xf32>
    %cst_33 = arith.constant 3.906250e-03 : f32
    %65 = vector.broadcast %cst_33 : f32 to vector<1x128xf32>
    %66 = arith.mulf %64, %65 : vector<1x128xf32>
    %67 = arith.mulf %60, %60 : vector<256x128xf32>
    %cst_34 = arith.constant dense<0.000000e+00> : vector<128xf32>
    %68 = vector.multi_reduction <add>, %67, %cst_34 [0] : vector<256x128xf32> to vector<128xf32>
    %69 = vector.shape_cast %68 : vector<128xf32> to vector<1x128xf32>
    %cst_35 = arith.constant 3.906250e-03 : f32
    %70 = vector.broadcast %cst_35 : f32 to vector<1x128xf32>
    %71 = arith.mulf %69, %70 : vector<1x128xf32>
    %72 = arith.mulf %66, %66 : vector<1x128xf32>
    %73 = arith.subf %71, %72 : vector<1x128xf32>
    %cst_36 = arith.constant 9.99999974E-6 : f32
    %74 = vector.broadcast %cst_36 : f32 to vector<1x128xf32>
    %75 = arith.addf %73, %74 : vector<1x128xf32>
    %76 = math.rsqrt %75 : vector<1x128xf32>
    %77 = arith.mulf %61, %76 : vector<1x128xf32>
    %78 = arith.mulf %66, %77 : vector<1x128xf32>
    %79 = arith.subf %62, %78 : vector<1x128xf32>
    %80 = vector.broadcast %77 : vector<1x128xf32> to vector<256x128xf32>
    %81 = arith.mulf %60, %80 : vector<256x128xf32>
    %82 = vector.broadcast %79 : vector<1x128xf32> to vector<256x128xf32>
    %83 = arith.addf %81, %82 : vector<256x128xf32>
    %cst_37 = arith.constant 2.000000e-01 : f32
    %84 = vector.broadcast %cst_37 : f32 to vector<256x128xf32>
    %85 = arith.mulf %84, %83 : vector<256x128xf32>
    %86 = arith.maximumf %83, %85 : vector<256x128xf32>
    %87 = arith.truncf %86 : vector<256x128xf32> to vector<256x128xbf16>
    %c0_38 = arith.constant 0 : index
    %c0_39 = arith.constant 0 : index
    %88 = vector.load %arg12[%c0_38, %c0_39] : memref<1x128xf32, #tpu.memory_space<vmem>>, vector<1x128xf32>
    %89 = vector.shape_cast %88 : vector<1x128xf32> to vector<1x128xf32>
    %90 = vector.broadcast %89 : vector<1x128xf32> to vector<256x128xf32>
    %c0_40 = arith.constant 0 : index
    %c0_41 = arith.constant 0 : index
    %91 = vector.load %arg13[%c0_40, %c0_41] : memref<256x128xf32, #tpu.memory_space<vmem>>, vector<256x128xf32>
    tpu.vector_store %arg13[%c0_40, %c0_41], %90 {strides = array<i32>} : memref<256x128xf32, #tpu.memory_space<vmem>>, vector<256x128xf32>,
    %c0_42 = arith.constant 0 : index
    %c0_43 = arith.constant 0 : index
    %92 = vector.load %arg8[%c0_42, %c0_43] : memref<256x512xbf16, #tpu.memory_space<vmem>>, vector<128x128xbf16>
    %cst_44 = arith.constant dense<0.000000e+00> : vector<256x128xf32>
    %93 = tpu.matmul %58, %92, %cst_44 {dimension_numbers = #tpu.dot_dimension_numbers<[1], [0], [0], [1], [0, 0, 1, 1], [], []>} : vector<256x128xbf16>, vector<128x128xbf16>, vector<256x128xf32> -> vector<256x128xf32>
    %c128_45 = arith.constant 128 : index
    %c0_46 = arith.constant 0 : index
    %94 = vector.load %arg8[%c128_45, %c0_46] : memref<256x512xbf16, #tpu.memory_space<vmem>>, vector<128x128xbf16>
    %cst_47 = arith.constant dense<0.000000e+00> : vector<256x128xf32>
    %95 = tpu.matmul %87, %94, %cst_47 {dimension_numbers = #tpu.dot_dimension_numbers<[1], [0], [0], [1], [0, 0, 1, 1], [], []>} : vector<256x128xbf16>, vector<128x128xbf16>, vector<256x128xf32> -> vector<256x128xf32>
    %96 = arith.addf %93, %95 : vector<256x128xf32>
    %c0_48 = arith.constant 0 : index
    %c0_49 = arith.constant 0 : index
    %97 = vector.load %arg9[%c0_48, %c0_49] : memref<1x512xf32, #tpu.memory_space<vmem>>, vector<1x128xf32>
    %c0_50 = arith.constant 0 : index
    %c0_51 = arith.constant 0 : index
    %98 = vector.load %arg10[%c0_50, %c0_51] : memref<1x512xf32, #tpu.memory_space<vmem>>, vector<1x128xf32>
    %cst_52 = arith.constant dense<0.000000e+00> : vector<128xf32>
    %99 = vector.multi_reduction <add>, %96, %cst_52 [0] : vector<256x128xf32> to vector<128xf32>
    %100 = vector.shape_cast %99 : vector<128xf32> to vector<1x128xf32>
    %cst_53 = arith.constant 3.906250e-03 : f32
    %101 = vector.broadcast %cst_53 : f32 to vector<1x128xf32>
    %102 = arith.mulf %100, %101 : vector<1x128xf32>
    %103 = arith.mulf %96, %96 : vector<256x128xf32>
    %cst_54 = arith.constant dense<0.000000e+00> : vector<128xf32>
    %104 = vector.multi_reduction <add>, %103, %cst_54 [0] : vector<256x128xf32> to vector<128xf32>
    %105 = vector.shape_cast %104 : vector<128xf32> to vector<1x128xf32>
    %cst_55 = arith.constant 3.906250e-03 : f32
    %106 = vector.broadcast %cst_55 : f32 to vector<1x128xf32>
    %107 = arith.mulf %105, %106 : vector<1x128xf32>
    %108 = arith.mulf %102, %102 : vector<1x128xf32>
    %109 = arith.subf %107, %108 : vector<1x128xf32>
    %cst_56 = arith.constant 9.99999974E-6 : f32
    %110 = vector.broadcast %cst_56 : f32 to vector<1x128xf32>
    %111 = arith.addf %109, %110 : vector<1x128xf32>
    %112 = math.rsqrt %111 : vector<1x128xf32>
    %113 = arith.mulf %97, %112 : vector<1x128xf32>
    %114 = arith.mulf %102, %113 : vector<1x128xf32>
    %115 = arith.subf %98, %114 : vector<1x128xf32>
    %116 = vector.broadcast %113 : vector<1x128xf32> to vector<256x128xf32>
    %117 = arith.mulf %96, %116 : vector<256x128xf32>
    %118 = vector.broadcast %115 : vector<1x128xf32> to vector<256x128xf32>
    %119 = arith.addf %117, %118 : vector<256x128xf32>
    %cst_57 = arith.constant 2.000000e-01 : f32
    %120 = vector.broadcast %cst_57 : f32 to vector<256x128xf32>
    %121 = arith.mulf %120, %119 : vector<256x128xf32>
    %122 = arith.maximumf %119, %121 : vector<256x128xf32>
    %123 = arith.truncf %122 : vector<256x128xf32> to vector<256x128xbf16>
    %c0_58 = arith.constant 0 : index
    %c0_59 = arith.constant 0 : index
    %124 = vector.load %arg13[%c0_58, %c0_59] : memref<256x128xf32, #tpu.memory_space<vmem>>, vector<256x128xf32>
    %c0_60 = arith.constant 0 : index
    %c0_61 = arith.constant 0 : index
    %125 = vector.load %arg11[%c0_60, %c0_61] : memref<512x128xbf16, #tpu.memory_space<vmem>>, vector<128x128xbf16>
    %cst_62 = arith.constant dense<0.000000e+00> : vector<256x128xf32>
    %126 = tpu.matmul %123, %125, %cst_62 {dimension_numbers = #tpu.dot_dimension_numbers<[1], [0], [0], [1], [0, 0, 1, 1], [], []>} : vector<256x128xbf16>, vector<128x128xbf16>, vector<256x128xf32> -> vector<256x128xf32>
    %127 = arith.addf %124, %126 : vector<256x128xf32>
    %c0_63 = arith.constant 0 : index
    %c0_64 = arith.constant 0 : index
    %128 = vector.load %arg13[%c0_63, %c0_64] : memref<256x128xf32, #tpu.memory_space<vmem>>, vector<256x128xf32>
    tpu.vector_store %arg13[%c0_63, %c0_64], %127 {strides = array<i32>} : memref<256x128xf32, #tpu.memory_space<vmem>>, vector<256x128xf32>,
    %c0_65 = arith.constant 0 : index
    %c128_66 = arith.constant 128 : index
    %129 = vector.load %arg8[%c0_65, %c128_66] : memref<256x512xbf16, #tpu.memory_space<vmem>>, vector<128x128xbf16>
    %cst_67 = arith.constant dense<0.000000e+00> : vector<256x128xf32>
    %130 = tpu.matmul %58, %129, %cst_67 {dimension_numbers = #tpu.dot_dimension_numbers<[1], [0], [0], [1], [0, 0, 1, 1], [], []>} : vector<256x128xbf16>, vector<128x128xbf16>, vector<256x128xf32> -> vector<256x128xf32>
    %c128_68 = arith.constant 128 : index
    %c128_69 = arith.constant 128 : index
    %131 = vector.load %arg8[%c128_68, %c128_69] : memref<256x512xbf16, #tpu.memory_space<vmem>>, vector<128x128xbf16>
    %cst_70 = arith.constant dense<0.000000e+00> : vector<256x128xf32>
    %132 = tpu.matmul %87, %131, %cst_70 {dimension_numbers = #tpu.dot_dimension_numbers<[1], [0], [0], [1], [0, 0, 1, 1], [], []>} : vector<256x128xbf16>, vector<128x128xbf16>, vector<256x128xf32> -> vector<256x128xf32>
    %133 = arith.addf %130, %132 : vector<256x128xf32>
    %c0_71 = arith.constant 0 : index
    %c128_72 = arith.constant 128 : index
    %134 = vector.load %arg9[%c0_71, %c128_72] : memref<1x512xf32, #tpu.memory_space<vmem>>, vector<1x128xf32>
    %c0_73 = arith.constant 0 : index
    %c128_74 = arith.constant 128 : index
    %135 = vector.load %arg10[%c0_73, %c128_74] : memref<1x512xf32, #tpu.memory_space<vmem>>, vector<1x128xf32>
    %cst_75 = arith.constant dense<0.000000e+00> : vector<128xf32>
    %136 = vector.multi_reduction <add>, %133, %cst_75 [0] : vector<256x128xf32> to vector<128xf32>
    %137 = vector.shape_cast %136 : vector<128xf32> to vector<1x128xf32>
    %cst_76 = arith.constant 3.906250e-03 : f32
    %138 = vector.broadcast %cst_76 : f32 to vector<1x128xf32>
    %139 = arith.mulf %137, %138 : vector<1x128xf32>
    %140 = arith.mulf %133, %133 : vector<256x128xf32>
    %cst_77 = arith.constant dense<0.000000e+00> : vector<128xf32>
    %141 = vector.multi_reduction <add>, %140, %cst_77 [0] : vector<256x128xf32> to vector<128xf32>
    %142 = vector.shape_cast %141 : vector<128xf32> to vector<1x128xf32>
    %cst_78 = arith.constant 3.906250e-03 : f32
    %143 = vector.broadcast %cst_78 : f32 to vector<1x128xf32>
    %144 = arith.mulf %142, %143 : vector<1x128xf32>
    %145 = arith.mulf %139, %139 : vector<1x128xf32>
    %146 = arith.subf %144, %145 : vector<1x128xf32>
    %cst_79 = arith.constant 9.99999974E-6 : f32
    %147 = vector.broadcast %cst_79 : f32 to vector<1x128xf32>
    %148 = arith.addf %146, %147 : vector<1x128xf32>
    %149 = math.rsqrt %148 : vector<1x128xf32>
    %150 = arith.mulf %134, %149 : vector<1x128xf32>
    %151 = arith.mulf %139, %150 : vector<1x128xf32>
    %152 = arith.subf %135, %151 : vector<1x128xf32>
    %153 = vector.broadcast %150 : vector<1x128xf32> to vector<256x128xf32>
    %154 = arith.mulf %133, %153 : vector<256x128xf32>
    %155 = vector.broadcast %152 : vector<1x128xf32> to vector<256x128xf32>
    %156 = arith.addf %154, %155 : vector<256x128xf32>
    %cst_80 = arith.constant 2.000000e-01 : f32
    %157 = vector.broadcast %cst_80 : f32 to vector<256x128xf32>
    %158 = arith.mulf %157, %156 : vector<256x128xf32>
    %159 = arith.maximumf %156, %158 : vector<256x128xf32>
    %160 = arith.truncf %159 : vector<256x128xf32> to vector<256x128xbf16>
    %c0_81 = arith.constant 0 : index
    %c0_82 = arith.constant 0 : index
    %161 = vector.load %arg13[%c0_81, %c0_82] : memref<256x128xf32, #tpu.memory_space<vmem>>, vector<256x128xf32>
    %c128_83 = arith.constant 128 : index
    %c0_84 = arith.constant 0 : index
    %162 = vector.load %arg11[%c128_83, %c0_84] : memref<512x128xbf16, #tpu.memory_space<vmem>>, vector<128x128xbf16>
    %cst_85 = arith.constant dense<0.000000e+00> : vector<256x128xf32>
    %163 = tpu.matmul %160, %162, %cst_85 {dimension_numbers = #tpu.dot_dimension_numbers<[1], [0], [0], [1], [0, 0, 1, 1], [], []>} : vector<256x128xbf16>, vector<128x128xbf16>, vector<256x128xf32> -> vector<256x128xf32>
    %164 = arith.addf %161, %163 : vector<256x128xf32>
    %c0_86 = arith.constant 0 : index
    %c0_87 = arith.constant 0 : index
    %165 = vector.load %arg13[%c0_86, %c0_87] : memref<256x128xf32, #tpu.memory_space<vmem>>, vector<256x128xf32>
    tpu.vector_store %arg13[%c0_86, %c0_87], %164 {strides = array<i32>} : memref<256x128xf32, #tpu.memory_space<vmem>>, vector<256x128xf32>,
    %c0_88 = arith.constant 0 : index
    %c256 = arith.constant 256 : index
    %166 = vector.load %arg8[%c0_88, %c256] : memref<256x512xbf16, #tpu.memory_space<vmem>>, vector<128x128xbf16>
    %cst_89 = arith.constant dense<0.000000e+00> : vector<256x128xf32>
    %167 = tpu.matmul %58, %166, %cst_89 {dimension_numbers = #tpu.dot_dimension_numbers<[1], [0], [0], [1], [0, 0, 1, 1], [], []>} : vector<256x128xbf16>, vector<128x128xbf16>, vector<256x128xf32> -> vector<256x128xf32>
    %c128_90 = arith.constant 128 : index
    %c256_91 = arith.constant 256 : index
    %168 = vector.load %arg8[%c128_90, %c256_91] : memref<256x512xbf16, #tpu.memory_space<vmem>>, vector<128x128xbf16>
    %cst_92 = arith.constant dense<0.000000e+00> : vector<256x128xf32>
    %169 = tpu.matmul %87, %168, %cst_92 {dimension_numbers = #tpu.dot_dimension_numbers<[1], [0], [0], [1], [0, 0, 1, 1], [], []>} : vector<256x128xbf16>, vector<128x128xbf16>, vector<256x128xf32> -> vector<256x128xf32>
    %170 = arith.addf %167, %169 : vector<256x128xf32>
    %c0_93 = arith.constant 0 : index
    %c256_94 = arith.constant 256 : index
    %171 = vector.load %arg9[%c0_93, %c256_94] : memref<1x512xf32, #tpu.memory_space<vmem>>, vector<1x128xf32>
    %c0_95 = arith.constant 0 : index
    %c256_96 = arith.constant 256 : index
    %172 = vector.load %arg10[%c0_95, %c256_96] : memref<1x512xf32, #tpu.memory_space<vmem>>, vector<1x128xf32>
    %cst_97 = arith.constant dense<0.000000e+00> : vector<128xf32>
    %173 = vector.multi_reduction <add>, %170, %cst_97 [0] : vector<256x128xf32> to vector<128xf32>
    %174 = vector.shape_cast %173 : vector<128xf32> to vector<1x128xf32>
    %cst_98 = arith.constant 3.906250e-03 : f32
    %175 = vector.broadcast %cst_98 : f32 to vector<1x128xf32>
    %176 = arith.mulf %174, %175 : vector<1x128xf32>
    %177 = arith.mulf %170, %170 : vector<256x128xf32>
    %cst_99 = arith.constant dense<0.000000e+00> : vector<128xf32>
    %178 = vector.multi_reduction <add>, %177, %cst_99 [0] : vector<256x128xf32> to vector<128xf32>
    %179 = vector.shape_cast %178 : vector<128xf32> to vector<1x128xf32>
    %cst_100 = arith.constant 3.906250e-03 : f32
    %180 = vector.broadcast %cst_100 : f32 to vector<1x128xf32>
    %181 = arith.mulf %179, %180 : vector<1x128xf32>
    %182 = arith.mulf %176, %176 : vector<1x128xf32>
    %183 = arith.subf %181, %182 : vector<1x128xf32>
    %cst_101 = arith.constant 9.99999974E-6 : f32
    %184 = vector.broadcast %cst_101 : f32 to vector<1x128xf32>
    %185 = arith.addf %183, %184 : vector<1x128xf32>
    %186 = math.rsqrt %185 : vector<1x128xf32>
    %187 = arith.mulf %171, %186 : vector<1x128xf32>
    %188 = arith.mulf %176, %187 : vector<1x128xf32>
    %189 = arith.subf %172, %188 : vector<1x128xf32>
    %190 = vector.broadcast %187 : vector<1x128xf32> to vector<256x128xf32>
    %191 = arith.mulf %170, %190 : vector<256x128xf32>
    %192 = vector.broadcast %189 : vector<1x128xf32> to vector<256x128xf32>
    %193 = arith.addf %191, %192 : vector<256x128xf32>
    %cst_102 = arith.constant 2.000000e-01 : f32
    %194 = vector.broadcast %cst_102 : f32 to vector<256x128xf32>
    %195 = arith.mulf %194, %193 : vector<256x128xf32>
    %196 = arith.maximumf %193, %195 : vector<256x128xf32>
    %197 = arith.truncf %196 : vector<256x128xf32> to vector<256x128xbf16>
    %c0_103 = arith.constant 0 : index
    %c0_104 = arith.constant 0 : index
    %198 = vector.load %arg13[%c0_103, %c0_104] : memref<256x128xf32, #tpu.memory_space<vmem>>, vector<256x128xf32>
    %c256_105 = arith.constant 256 : index
    %c0_106 = arith.constant 0 : index
    %199 = vector.load %arg11[%c256_105, %c0_106] : memref<512x128xbf16, #tpu.memory_space<vmem>>, vector<128x128xbf16>
    %cst_107 = arith.constant dense<0.000000e+00> : vector<256x128xf32>
    %200 = tpu.matmul %197, %199, %cst_107 {dimension_numbers = #tpu.dot_dimension_numbers<[1], [0], [0], [1], [0, 0, 1, 1], [], []>} : vector<256x128xbf16>, vector<128x128xbf16>, vector<256x128xf32> -> vector<256x128xf32>
    %201 = arith.addf %198, %200 : vector<256x128xf32>
    %c0_108 = arith.constant 0 : index
    %c0_109 = arith.constant 0 : index
    %202 = vector.load %arg13[%c0_108, %c0_109] : memref<256x128xf32, #tpu.memory_space<vmem>>, vector<256x128xf32>
    tpu.vector_store %arg13[%c0_108, %c0_109], %201 {strides = array<i32>} : memref<256x128xf32, #tpu.memory_space<vmem>>, vector<256x128xf32>,
    %c0_110 = arith.constant 0 : index
    %c384 = arith.constant 384 : index
    %203 = vector.load %arg8[%c0_110, %c384] : memref<256x512xbf16, #tpu.memory_space<vmem>>, vector<128x128xbf16>
    %cst_111 = arith.constant dense<0.000000e+00> : vector<256x128xf32>
    %204 = tpu.matmul %58, %203, %cst_111 {dimension_numbers = #tpu.dot_dimension_numbers<[1], [0], [0], [1], [0, 0, 1, 1], [], []>} : vector<256x128xbf16>, vector<128x128xbf16>, vector<256x128xf32> -> vector<256x128xf32>
    %c128_112 = arith.constant 128 : index
    %c384_113 = arith.constant 384 : index
    %205 = vector.load %arg8[%c128_112, %c384_113] : memref<256x512xbf16, #tpu.memory_space<vmem>>, vector<128x128xbf16>
    %cst_114 = arith.constant dense<0.000000e+00> : vector<256x128xf32>
    %206 = tpu.matmul %87, %205, %cst_114 {dimension_numbers = #tpu.dot_dimension_numbers<[1], [0], [0], [1], [0, 0, 1, 1], [], []>} : vector<256x128xbf16>, vector<128x128xbf16>, vector<256x128xf32> -> vector<256x128xf32>
    %207 = arith.addf %204, %206 : vector<256x128xf32>
    %c0_115 = arith.constant 0 : index
    %c384_116 = arith.constant 384 : index
    %208 = vector.load %arg9[%c0_115, %c384_116] : memref<1x512xf32, #tpu.memory_space<vmem>>, vector<1x128xf32>
    %c0_117 = arith.constant 0 : index
    %c384_118 = arith.constant 384 : index
    %209 = vector.load %arg10[%c0_117, %c384_118] : memref<1x512xf32, #tpu.memory_space<vmem>>, vector<1x128xf32>
    %cst_119 = arith.constant dense<0.000000e+00> : vector<128xf32>
    %210 = vector.multi_reduction <add>, %207, %cst_119 [0] : vector<256x128xf32> to vector<128xf32>
    %211 = vector.shape_cast %210 : vector<128xf32> to vector<1x128xf32>
    %cst_120 = arith.constant 3.906250e-03 : f32
    %212 = vector.broadcast %cst_120 : f32 to vector<1x128xf32>
    %213 = arith.mulf %211, %212 : vector<1x128xf32>
    %214 = arith.mulf %207, %207 : vector<256x128xf32>
    %cst_121 = arith.constant dense<0.000000e+00> : vector<128xf32>
    %215 = vector.multi_reduction <add>, %214, %cst_121 [0] : vector<256x128xf32> to vector<128xf32>
    %216 = vector.shape_cast %215 : vector<128xf32> to vector<1x128xf32>
    %cst_122 = arith.constant 3.906250e-03 : f32
    %217 = vector.broadcast %cst_122 : f32 to vector<1x128xf32>
    %218 = arith.mulf %216, %217 : vector<1x128xf32>
    %219 = arith.mulf %213, %213 : vector<1x128xf32>
    %220 = arith.subf %218, %219 : vector<1x128xf32>
    %cst_123 = arith.constant 9.99999974E-6 : f32
    %221 = vector.broadcast %cst_123 : f32 to vector<1x128xf32>
    %222 = arith.addf %220, %221 : vector<1x128xf32>
    %223 = math.rsqrt %222 : vector<1x128xf32>
    %224 = arith.mulf %208, %223 : vector<1x128xf32>
    %225 = arith.mulf %213, %224 : vector<1x128xf32>
    %226 = arith.subf %209, %225 : vector<1x128xf32>
    %227 = vector.broadcast %224 : vector<1x128xf32> to vector<256x128xf32>
    %228 = arith.mulf %207, %227 : vector<256x128xf32>
    %229 = vector.broadcast %226 : vector<1x128xf32> to vector<256x128xf32>
    %230 = arith.addf %228, %229 : vector<256x128xf32>
    %cst_124 = arith.constant 2.000000e-01 : f32
    %231 = vector.broadcast %cst_124 : f32 to vector<256x128xf32>
    %232 = arith.mulf %231, %230 : vector<256x128xf32>
    %233 = arith.maximumf %230, %232 : vector<256x128xf32>
    %234 = arith.truncf %233 : vector<256x128xf32> to vector<256x128xbf16>
    %c0_125 = arith.constant 0 : index
    %c0_126 = arith.constant 0 : index
    %235 = vector.load %arg13[%c0_125, %c0_126] : memref<256x128xf32, #tpu.memory_space<vmem>>, vector<256x128xf32>
    %c384_127 = arith.constant 384 : index
    %c0_128 = arith.constant 0 : index
    %236 = vector.load %arg11[%c384_127, %c0_128] : memref<512x128xbf16, #tpu.memory_space<vmem>>, vector<128x128xbf16>
    %cst_129 = arith.constant dense<0.000000e+00> : vector<256x128xf32>
    %237 = tpu.matmul %234, %236, %cst_129 {dimension_numbers = #tpu.dot_dimension_numbers<[1], [0], [0], [1], [0, 0, 1, 1], [], []>} : vector<256x128xbf16>, vector<128x128xbf16>, vector<256x128xf32> -> vector<256x128xf32>
    %238 = arith.addf %235, %237 : vector<256x128xf32>
    %c0_130 = arith.constant 0 : index
    %c0_131 = arith.constant 0 : index
    %239 = vector.load %arg13[%c0_130, %c0_131] : memref<256x128xf32, #tpu.memory_space<vmem>>, vector<256x128xf32>
    tpu.vector_store %arg13[%c0_130, %c0_131], %238 {strides = array<i32>} : memref<256x128xf32, #tpu.memory_space<vmem>>, vector<256x128xf32>,
    return
  }
  func.func @transform_0(%arg0: i32) -> (i32, i32) {
    %c0_i32 = arith.constant 0 : i32
    %c0_i32_0 = arith.constant 0 : i32
    return %arg0, %c0_i32 : i32, i32
  }
  func.func @transform_1(%arg0: i32) -> (i32, i32) {
    %c0_i32 = arith.constant 0 : i32
    %c0_i32_0 = arith.constant 0 : i32
    %c0_i32_1 = arith.constant 0 : i32
    return %c0_i32, %c0_i32_0 : i32, i32
  }
  func.func @transform_2(%arg0: i32) -> (i32, i32) {
    %c0_i32 = arith.constant 0 : i32
    %c0_i32_0 = arith.constant 0 : i32
    %c0_i32_1 = arith.constant 0 : i32
    return %c0_i32, %c0_i32_0 : i32, i32
  }
  func.func @transform_3(%arg0: i32) -> (i32, i32) {
    %c0_i32 = arith.constant 0 : i32
    %c0_i32_0 = arith.constant 0 : i32
    %c0_i32_1 = arith.constant 0 : i32
    return %c0_i32, %c0_i32_0 : i32, i32
  }
  func.func @transform_4(%arg0: i32) -> (i32, i32) {
    %c0_i32 = arith.constant 0 : i32
    %c0_i32_0 = arith.constant 0 : i32
    %c0_i32_1 = arith.constant 0 : i32
    return %c0_i32, %c0_i32_0 : i32, i32
  }
  func.func @transform_5(%arg0: i32) -> (i32, i32) {
    %c0_i32 = arith.constant 0 : i32
    %c0_i32_0 = arith.constant 0 : i32
    %c0_i32_1 = arith.constant 0 : i32
    return %c0_i32, %c0_i32_0 : i32, i32
  }
  func.func @transform_6(%arg0: i32) -> (i32, i32) {
    %c0_i32 = arith.constant 0 : i32
    %c0_i32_0 = arith.constant 0 : i32
    %c0_i32_1 = arith.constant 0 : i32
    return %c0_i32, %c0_i32_0 : i32, i32
  }
  func.func @transform_7(%arg0: i32) -> (i32, i32) {
    %c0_i32 = arith.constant 0 : i32
    %c0_i32_0 = arith.constant 0 : i32
    %c0_i32_1 = arith.constant 0 : i32
    return %c0_i32, %c0_i32_0 : i32, i32
  }
  func.func @transform_8(%arg0: i32) -> (i32, i32) {
    %c0_i32 = arith.constant 0 : i32
    %c0_i32_0 = arith.constant 0 : i32
    %c0_i32_1 = arith.constant 0 : i32
    return %c0_i32, %c0_i32_0 : i32, i32
  }
  func.func @transform_9(%arg0: i32) -> (i32, i32) {
    %c0_i32 = arith.constant 0 : i32
    %c0_i32_0 = arith.constant 0 : i32
    %c0_i32_1 = arith.constant 0 : i32
    return %c0_i32, %c0_i32_0 : i32, i32
  }
  func.func @transform_10(%arg0: i32) -> (i32, i32) {
    %c0_i32 = arith.constant 0 : i32
    %c0_i32_0 = arith.constant 0 : i32
    %c0_i32_1 = arith.constant 0 : i32
    return %c0_i32, %c0_i32_0 : i32, i32
  }
  func.func @transform_11(%arg0: i32) -> (i32, i32) {
    %c0_i32 = arith.constant 0 : i32
    %c0_i32_0 = arith.constant 0 : i32
    %c0_i32_1 = arith.constant 0 : i32
    return %c0_i32, %c0_i32_0 : i32, i32
  }
  func.func @transform_12(%arg0: i32) -> (i32, i32) {
    %c0_i32 = arith.constant 0 : i32
    %c0_i32_0 = arith.constant 0 : i32
    return %arg0, %c0_i32 : i32, i32
  }
}

</mosaic_0001>

<llo_original>
// kernel: tpu_custom_call.1
$region0: #{tpu_custom_call.1}
  #allocation0 [shape = 'u32[]', space=smem, size = 0x4, offset = 0x4, fixed_abs, tag = 'smem constant byte address 0x4 - core index']
  #allocation1 [shape = 'u32[144,128]{1,0:T(1,128)}', space=vmem, size = 0x12000, scoped, tag = 'internal scratch']
  %s0 = inlined_call_operand.hbm [shape: bf16[256,128], index: 0, kind: input, shape index: {}]
  %s1 = inlined_call_operand.hbm [shape: bf16[128,128], index: 1, kind: input, shape index: {}]
  %s2 = inlined_call_operand.vmem [shape: f32[1,128], index: 2, kind: input, shape index: {}]
  %s3 = inlined_call_operand.hbm [shape: f32[1,128], index: 3, kind: input, shape index: {}]
  %s4 = inlined_call_operand.hbm [shape: bf16[128,256], index: 4, kind: input, shape index: {}]
  %s5 = inlined_call_operand.vmem [shape: f32[1,256], index: 5, kind: input, shape index: {}]
  %s6 = inlined_call_operand.vmem [shape: f32[1,256], index: 6, kind: input, shape index: {}]
  %s7 = inlined_call_operand.hbm [shape: bf16[256,512], index: 7, kind: input, shape index: {}]
  %s8 = inlined_call_operand.vmem [shape: f32[1,512], index: 8, kind: input, shape index: {}]
  %s9 = inlined_call_operand.vmem [shape: f32[1,512], index: 9, kind: input, shape index: {}]
  %s10 = inlined_call_operand.hbm [shape: bf16[512,128], index: 10, kind: input, shape index: {}]
  %s11 = inlined_call_operand.vmem [shape: f32[1,128], index: 11, kind: input, shape index: {}]
  %s12 = inlined_call_operand.hbm [shape: f32[256,128], index: 12, kind: output, shape index: {}]
  %s13 = sld [smem:[#allocation0]]
  $region82: #{tpu_custom_call.1} parent=0
    _
  %s15 = ssub.s32 1, %s13
  %s16 = scalar_select 0, %s15, %s13
  $region1: #{tpu_custom_call.1} parent=0
    #allocation2 [shape = 'u8[65536]{0}', space=vmem, size = 0x10000, scoped, tag = 'input window, operand 0, single buffered']
    #allocation3 [shape = 's32[1]{0}', space=sflag, size = 0x4, scoped, tag = 'scoped memory for tpu_custom_call.1']
    #allocation4 [shape = 's32[1]{0}', space=sflag, size = 0x4, scoped, tag = 'scoped memory for tpu_custom_call.1']
    #allocation5 [shape = 'u8[32768]{0}', space=vmem, size = 0x8000, scoped, tag = 'input window, operand 1, single buffered']
    #allocation6 [shape = 's32[1]{0}', space=sflag, size = 0x4, scoped, tag = 'scoped memory for tpu_custom_call.1']
    #allocation7 [shape = 'u8[512]{0}', space=vmem, size = 0x400, scoped, tag = 'input window, operand 3, single buffered']
    #allocation8 [shape = 'u8[65536]{0}', space=vmem, size = 0x10000, scoped, tag = 'input window, operand 4, single buffered']
    #allocation9 [shape = 's32[1]{0}', space=sflag, size = 0x4, scoped, tag = 'scoped memory for tpu_custom_call.1']
    #allocation10 [shape = 'u8[262144]{0}', space=vmem, size = 0x40000, scoped, tag = 'input window, operand 7, single buffered']
    #allocation11 [shape = 'u8[131072]{0}', space=vmem, size = 0x20000, scoped, tag = 'input window, operand 10, single buffered']
    #allocation12 [shape = 's32[1]{0}', space=sflag, size = 0x4, scoped, tag = 'scoped memory for tpu_custom_call.1']
    #allocation13 [shape = 'u8[131072]{0}', space=vmem, size = 0x20000, scoped, tag = 'output window, operand 0, single buffered']
    %17 = vsyncpa [#allocation3], 0
    %18 = vsyncpa [#allocation6], 0
    %19 = vsyncpa [#allocation9], 0
    %20 = vsyncpa [#allocation12], 0
    %21 = vsyncpa [#allocation4], 0
    // Predicated region
    $region2: #{tpu_custom_call.1} parent=1 // pred_check
      _
    $region3: #{tpu_custom_call.1} parent=1 // pred_check_branch
      %23 = sbr.rel (0) target = $region5
    $region4: #{tpu_custom_call.1} parent=1 // pred_region
      %s25 = ssub.s32 2048, 2048
      %26 = vsyncadd [#allocation3], %s25
      %s27 = sshll.u32 [#allocation2], 4
      %s28 = int_to_ptr.vmem [resolvable:$true] %s27
      %33 = dma.hbm_to_vmem [thread:$0]  %s0, 2048, %s28, [#allocation3], 64, 64, 4
    $region5: #{tpu_custom_call.1} parent=1 // pred_fallthru
      _
    // Predicated region
    $region6: #{tpu_custom_call.1} parent=1 // pred_check
      _
    $region7: #{tpu_custom_call.1} parent=1 // pred_check_branch
      %35 = sbr.rel (0) target = $region9
    $region8: #{tpu_custom_call.1} parent=1 // pred_region
      %s37 = ssub.s32 1024, 1024
      %38 = vsyncadd [#allocation6], %s37
      %s39 = sshll.u32 [#allocation5], 4
      %s40 = int_to_ptr.vmem [resolvable:$true] %s39
      %45 = dma.hbm_to_vmem [thread:$0]  %s1, 1024, %s40, [#allocation6], 64, 64, 4
    $region9: #{tpu_custom_call.1} parent=1 // pred_fallthru
      _
    // Predicated region
    $region10: #{tpu_custom_call.1} parent=1 // pred_check
      _
    $region11: #{tpu_custom_call.1} parent=1 // pred_check_branch
      %47 = sbr.rel (0) target = $region13
    $region12: #{tpu_custom_call.1} parent=1 // pred_region
      _
    $region13: #{tpu_custom_call.1} parent=1 // pred_fallthru
      _
    // Predicated region
    $region14: #{tpu_custom_call.1} parent=1 // pred_check
      _
    $region15: #{tpu_custom_call.1} parent=1 // pred_check_branch
      %49 = sbr.rel (0) target = $region17
    $region16: #{tpu_custom_call.1} parent=1 // pred_region
      %s51 = ssub.s32 16, 16
      %52 = vsyncadd [#allocation6], %s51
      %s54 = sshll.u32 [#allocation7], 4
      %s55 = int_to_ptr.vmem [resolvable:$true] %s54
      %57 = dma.hbm_to_vmem [thread:$0]  %s3, 16, %s55, [#allocation6]
    $region17: #{tpu_custom_call.1} parent=1 // pred_fallthru
      _
    // Predicated region
    $region18: #{tpu_custom_call.1} parent=1 // pred_check
      _
    $region19: #{tpu_custom_call.1} parent=1 // pred_check_branch
      %59 = sbr.rel (0) target = $region21
    $region20: #{tpu_custom_call.1} parent=1 // pred_region
      %s61 = ssub.s32 2048, 2048
      %62 = vsyncadd [#allocation9], %s61
      %s63 = sshll.u32 [#allocation8], 4
      %s64 = int_to_ptr.vmem [resolvable:$true] %s63
      %69 = dma.hbm_to_vmem [thread:$0]  %s4, 2048, %s64, [#allocation9], 128, 128, 8
    $region21: #{tpu_custom_call.1} parent=1 // pred_fallthru
      _
    // Predicated region
    $region22: #{tpu_custom_call.1} parent=1 // pred_check
      _
    $region23: #{tpu_custom_call.1} parent=1 // pred_check_branch
      %71 = sbr.rel (0) target = $region25
    $region24: #{tpu_custom_call.1} parent=1 // pred_region
      _
    $region25: #{tpu_custom_call.1} parent=1 // pred_fallthru
      _
    // Predicated region
    $region26: #{tpu_custom_call.1} parent=1 // pred_check
      _
    $region27: #{tpu_custom_call.1} parent=1 // pred_check_branch
      %73 = sbr.rel (0) target = $region29
    $region28: #{tpu_custom_call.1} parent=1 // pred_region
      _
    $region29: #{tpu_custom_call.1} parent=1 // pred_fallthru
      _
    // Predicated region
    $region30: #{tpu_custom_call.1} parent=1 // pred_check
      _
    $region31: #{tpu_custom_call.1} parent=1 // pred_check_branch
      %75 = sbr.rel (0) target = $region33
    $region32: #{tpu_custom_call.1} parent=1 // pred_region
      %s77 = ssub.s32 8192, 8192
      %78 = vsyncadd [#allocation9], %s77
      %s79 = sshll.u32 [#allocation10], 4
      %s80 = int_to_ptr.vmem [resolvable:$true] %s79
      %85 = dma.hbm_to_vmem [thread:$0]  %s7, 8192, %s80, [#allocation9], 256, 256, 16
    $region33: #{tpu_custom_call.1} parent=1 // pred_fallthru
      _
    // Predicated region
    $region34: #{tpu_custom_call.1} parent=1 // pred_check
      _
    $region35: #{tpu_custom_call.1} parent=1 // pred_check_branch
      %87 = sbr.rel (0) target = $region37
    $region36: #{tpu_custom_call.1} parent=1 // pred_region
      _
    $region37: #{tpu_custom_call.1} parent=1 // pred_fallthru
      _
    // Predicated region
    $region38: #{tpu_custom_call.1} parent=1 // pred_check
      _
    $region39: #{tpu_custom_call.1} parent=1 // pred_check_branch
      %89 = sbr.rel (0) target = $region41
    $region40: #{tpu_custom_call.1} parent=1 // pred_region
      _
    $region41: #{tpu_custom_call.1} parent=1 // pred_fallthru
      _
    // Predicated region
    $region42: #{tpu_custom_call.1} parent=1 // pred_check
      _
    $region43: #{tpu_custom_call.1} parent=1 // pred_check_branch
      %91 = sbr.rel (0) target = $region45
    $region44: #{tpu_custom_call.1} parent=1 // pred_region
      %s93 = ssub.s32 4096, 4096
      %94 = vsyncadd [#allocation12], %s93
      %s95 = sshll.u32 [#allocation11], 4
      %s96 = int_to_ptr.vmem [resolvable:$true] %s95
      %101 = dma.hbm_to_vmem [thread:$0]  %s10, 4096, %s96, [#allocation12], 64, 64, 4
    $region45: #{tpu_custom_call.1} parent=1 // pred_fallthru
      _
    // Predicated region
    $region46: #{tpu_custom_call.1} parent=1 // pred_check
      _
    $region47: #{tpu_custom_call.1} parent=1 // pred_check_branch
      %103 = sbr.rel (0) target = $region49
    $region48: #{tpu_custom_call.1} parent=1 // pred_region
      _
    $region49: #{tpu_custom_call.1} parent=1 // pred_fallthru
      _
    // Predicated region
    $region50: #{tpu_custom_call.1} parent=1 // pred_check
      _
    $region51: #{tpu_custom_call.1} parent=1 // pred_check_branch
      %105 = sbr.rel (0) target = $region53
    $region52: #{tpu_custom_call.1} parent=1 // pred_region
      %106 = dma.done [#allocation3], 2048
    $region53: #{tpu_custom_call.1} parent=1 // pred_fallthru
      _
    // Predicated region
    $region54: #{tpu_custom_call.1} parent=1 // pred_check
      _
    $region55: #{tpu_custom_call.1} parent=1 // pred_check_branch
      %108 = sbr.rel (0) target = $region57
    $region56: #{tpu_custom_call.1} parent=1 // pred_region
      %109 = dma.done [#allocation6], 1024
    $region57: #{tpu_custom_call.1} parent=1 // pred_fallthru
      _
    // Predicated region
    $region58: #{tpu_custom_call.1} parent=1 // pred_check
      _
    $region59: #{tpu_custom_call.1} parent=1 // pred_check_branch
      %111 = sbr.rel (0) target = $region61
    $region60: #{tpu_custom_call.1} parent=1 // pred_region
      %112 = dma.done [#allocation6], 16
    $region61: #{tpu_custom_call.1} parent=1 // pred_fallthru
      _
    // Predicated region
    $region62: #{tpu_custom_call.1} parent=1 // pred_check
      _
    $region63: #{tpu_custom_call.1} parent=1 // pred_check_branch
      %114 = sbr.rel (0) target = $region65
    $region64: #{tpu_custom_call.1} parent=1 // pred_region
      %115 = dma.done [#allocation9], 2048
    $region65: #{tpu_custom_call.1} parent=1 // pred_fallthru
      _
    // Predicated region
    $region66: #{tpu_custom_call.1} parent=1 // pred_check
      _
    $region67: #{tpu_custom_call.1} parent=1 // pred_check_branch
      %117 = sbr.rel (0) target = $region69
    $region68: #{tpu_custom_call.1} parent=1 // pred_region
      %118 = dma.done [#allocation9], 8192
    $region69: #{tpu_custom_call.1} parent=1 // pred_fallthru
      _
    // Predicated region
    $region70: #{tpu_custom_call.1} parent=1 // pred_check
      _
    $region71: #{tpu_custom_call.1} parent=1 // pred_check_branch
      %120 = sbr.rel (0) target = $region73
    $region72: #{tpu_custom_call.1} parent=1 // pred_region
      %121 = dma.done [#allocation12], 4096
    $region73: #{tpu_custom_call.1} parent=1 // pred_fallthru
      _
    %v123 = vld [vmem:[#allocation2] sm:$0xf]
    %v124 = vld [vmem:[#allocation2 + $0x4] sm:$0xf]
    %v125 = vld [vmem:[#allocation2 + $0x8] sm:$0xf]
    %v126 = vld [vmem:[#allocation2 + $0xc] sm:$0xf]
    %v127 = vld [vmem:[#allocation2 + $0x10] sm:$0xf]
    %v128 = vld [vmem:[#allocation2 + $0x14] sm:$0xf]
    %v129 = vld [vmem:[#allocation2 + $0x18] sm:$0xf]
    %v130 = vld [vmem:[#allocation2 + $0x1c] sm:$0xf]
    %v131 = vld [vmem:[#allocation2 + $0x20] sm:$0xf]
    %v132 = vld [vmem:[#allocation2 + $0x24] sm:$0xf]
    %v133 = vld [vmem:[#allocation2 + $0x28] sm:$0xf]
    %v134 = vld [vmem:[#allocation2 + $0x2c] sm:$0xf]
    %v135 = vld [vmem:[#allocation2 + $0x30] sm:$0xf]
    %v136 = vld [vmem:[#allocation2 + $0x34] sm:$0xf]
    %v137 = vld [vmem:[#allocation2 + $0x38] sm:$0xf]
    %v138 = vld [vmem:[#allocation2 + $0x3c] sm:$0xf]
    %v139 = vld [vmem:[#allocation2 + $0x40] sm:$0xf]
    %v140 = vld [vmem:[#allocation2 + $0x44] sm:$0xf]
    %v141 = vld [vmem:[#allocation2 + $0x48] sm:$0xf]
    %v142 = vld [vmem:[#allocation2 + $0x4c] sm:$0xf]
    %v143 = vld [vmem:[#allocation2 + $0x50] sm:$0xf]
    %v144 = vld [vmem:[#allocation2 + $0x54] sm:$0xf]
    %v145 = vld [vmem:[#allocation2 + $0x58] sm:$0xf]
    %v146 = vld [vmem:[#allocation2 + $0x5c] sm:$0xf]
    %v147 = vld [vmem:[#allocation2 + $0x60] sm:$0xf]
    %v148 = vld [vmem:[#allocation2 + $0x64] sm:$0xf]
    %v149 = vld [vmem:[#allocation2 + $0x68] sm:$0xf]
    %v150 = vld [vmem:[#allocation2 + $0x6c] sm:$0xf]
    %v151 = vld [vmem:[#allocation2 + $0x70] sm:$0xf]
    %v152 = vld [vmem:[#allocation2 + $0x74] sm:$0xf]
    %v153 = vld [vmem:[#allocation2 + $0x78] sm:$0xf]
    %v154 = vld [vmem:[#allocation2 + $0x7c] sm:$0xf]
    %v155 = vld [vmem:[#allocation5] sm:$0xf]
    %v156 = vld [vmem:[#allocation5 + $0x4] sm:$0xf]
    %v157 = vld [vmem:[#allocation5 + $0x8] sm:$0xf]
    %v158 = vld [vmem:[#allocation5 + $0xc] sm:$0xf]
    %v159 = vld [vmem:[#allocation5 + $0x10] sm:$0xf]
    %v160 = vld [vmem:[#allocation5 + $0x14] sm:$0xf]
    %v161 = vld [vmem:[#allocation5 + $0x18] sm:$0xf]
    %v162 = vld [vmem:[#allocation5 + $0x1c] sm:$0xf]
    %v163 = vld [vmem:[#allocation5 + $0x20] sm:$0xf]
    %v164 = vld [vmem:[#allocation5 + $0x24] sm:$0xf]
    %v165 = vld [vmem:[#allocation5 + $0x28] sm:$0xf]
    %v166 = vld [vmem:[#allocation5 + $0x2c] sm:$0xf]
    %v167 = vld [vmem:[#allocation5 + $0x30] sm:$0xf]
    %v168 = vld [vmem:[#allocation5 + $0x34] sm:$0xf]
    %v169 = vld [vmem:[#allocation5 + $0x38] sm:$0xf]
    %v170 = vld [vmem:[#allocation5 + $0x3c] sm:$0xf]
    %v203 = vunpack.c.l.b16 %v123
    %v204 = vunpack.c.l.b16 %v124
    %v205 = vunpack.c.l.b16 %v125
    %v206 = vunpack.c.l.b16 %v126
    %v207 = vunpack.c.l.b16 %v127
    %v208 = vunpack.c.l.b16 %v128
    %v209 = vunpack.c.l.b16 %v129
    %v210 = vunpack.c.l.b16 %v130
    %v211 = vunpack.c.l.b16 %v131
    %v212 = vunpack.c.l.b16 %v132
    %v213 = vunpack.c.l.b16 %v133
    %v214 = vunpack.c.l.b16 %v134
    %v215 = vunpack.c.l.b16 %v135
    %v216 = vunpack.c.l.b16 %v136
    %v217 = vunpack.c.l.b16 %v137
    %v218 = vunpack.c.l.b16 %v138
    %v219 = vunpack.c.l.b16 %v139
    %v220 = vunpack.c.l.b16 %v140
    %v221 = vunpack.c.l.b16 %v141
    %v222 = vunpack.c.l.b16 %v142
    %v223 = vunpack.c.l.b16 %v143
    %v224 = vunpack.c.l.b16 %v144
    %v225 = vunpack.c.l.b16 %v145
    %v226 = vunpack.c.l.b16 %v146
    %v227 = vunpack.c.l.b16 %v147
    %v228 = vunpack.c.l.b16 %v148
    %v229 = vunpack.c.l.b16 %v149
    %v230 = vunpack.c.l.b16 %v150
    %v231 = vunpack.c.l.b16 %v151
    %v232 = vunpack.c.l.b16 %v152
    %v233 = vunpack.c.l.b16 %v153
    %v234 = vunpack.c.l.b16 %v154
    %v235 = vpack.c.b16 %v204, %v203
    %v236 = vpack.c.b16 %v206, %v205
    %v237 = vpack.c.b16 %v208, %v207
    %v238 = vpack.c.b16 %v210, %v209
    %v239 = vpack.c.b16 %v212, %v211
    %v240 = vpack.c.b16 %v214, %v213
    %v241 = vpack.c.b16 %v216, %v215
    %v242 = vpack.c.b16 %v218, %v217
    %v243 = vpack.c.b16 %v220, %v219
    %v244 = vpack.c.b16 %v222, %v221
    %v245 = vpack.c.b16 %v224, %v223
    %v246 = vpack.c.b16 %v226, %v225
    %v247 = vpack.c.b16 %v228, %v227
    %v248 = vpack.c.b16 %v230, %v229
    %v249 = vpack.c.b16 %v232, %v231
    %v250 = vpack.c.b16 %v234, %v233
    %v283 = vunpack.c.l.b16 %v155
    %v284 = vunpack.c.l.b16 %v156
    %v285 = vunpack.c.l.b16 %v157
    %v286 = vunpack.c.l.b16 %v158
    %v287 = vunpack.c.l.b16 %v159
    %v288 = vunpack.c.l.b16 %v160
    %v289 = vunpack.c.l.b16 %v161
    %v290 = vunpack.c.l.b16 %v162
    %v291 = vunpack.c.l.b16 %v163
    %v292 = vunpack.c.l.b16 %v164
    %v293 = vunpack.c.l.b16 %v165
    %v294 = vunpack.c.l.b16 %v166
    %v295 = vunpack.c.l.b16 %v167
    %v296 = vunpack.c.l.b16 %v168
    %v297 = vunpack.c.l.b16 %v169
    %v298 = vunpack.c.l.b16 %v170
    %v299 = vpack.c.b16 %v284, %v283
    %v300 = vpack.c.b16 %v286, %v285
    %v301 = vpack.c.b16 %v288, %v287
    %v302 = vpack.c.b16 %v290, %v289
    %v303 = vpack.c.b16 %v292, %v291
    %v304 = vpack.c.b16 %v294, %v293
    %v305 = vpack.c.b16 %v296, %v295
    %v306 = vpack.c.b16 %v298, %v297
    %315 = vmatprep.subr.bf16.mxu0 0
    %316 = vmatpush1.bf16.msra.mxu0 %v299
    %317 = vmatprep.subr.bf16.mxu0 0
    %318 = vmatpush1.bf16.msra.mxu0 %v300
    %319 = vmatprep.subr.bf16.mxu0 0
    %320 = vmatpush1.bf16.msra.mxu0 %v301
    %321 = vmatprep.subr.bf16.mxu0 0
    %322 = vmatpush1.bf16.msra.mxu0 %v302
    %323 = vmatprep.subr.bf16.mxu0 0
    %324 = vmatpush1.bf16.msra.mxu0 %v303
    %325 = vmatprep.subr.bf16.mxu0 0
    %326 = vmatpush1.bf16.msra.mxu0 %v304
    %327 = vmatprep.subr.bf16.mxu0 0
    %328 = vmatpush1.bf16.msra.mxu0 %v305
    %329 = vmatprep.subr.bf16.mxu0 0
    %330 = vmatpush1.bf16.msra.mxu0 %v306
    %331 = vmatprep.subr.bf16.mxu0 0
    %332 = vmatpush1.bf16.msra.mxu0 0
    %333 = vmatprep.subr.bf16.mxu0 0
    %334 = vmatpush1.bf16.msra.mxu0 0
    %335 = vmatprep.subr.bf16.mxu0 0
    %336 = vmatpush1.bf16.msra.mxu0 0
    %337 = vmatprep.subr.bf16.mxu0 0
    %338 = vmatpush1.bf16.msra.mxu0 0
    %339 = vmatprep.subr.bf16.mxu0 0
    %340 = vmatpush1.bf16.msra.mxu0 0
    %341 = vmatprep.subr.bf16.mxu0 0
    %342 = vmatpush1.bf16.msra.mxu0 0
    %343 = vmatprep.subr.bf16.mxu0 0
    %344 = vmatpush1.bf16.msra.mxu0 0
    %345 = vmatprep.subr.bf16.mxu0 0
    %346 = vmatpush1.bf16.msra.mxu0 0
    %347 = vmatprep.mubr.bf16.mxu0 0
    %348 = vmatmul.mubr.bf16.gmra.mrb[0].mxu0 %v235
    %v349 = vpop.f32.mrb[0].mxu0
    %v350 = vadd.f32 0.0, %v349
    %v351 = vpop.f32.mrb[0].mxu0
    %v352 = vpop.f32.mrb[0].mxu0
    %v353 = vadd.f32 0.0, %v352
    %v354 = vpop.f32.mrb[0].mxu0
    %355 = vmatprep.mubr.bf16.mxu0 0
    %356 = vmatmul.mubr.bf16.gmra.mrb[0].mxu0 %v236
    %v357 = vpop.f32.mrb[0].mxu0
    %v358 = vadd.f32 0.0, %v357
    %v359 = vpop.f32.mrb[0].mxu0
    %v360 = vpop.f32.mrb[0].mxu0
    %v361 = vadd.f32 0.0, %v360
    %v362 = vpop.f32.mrb[0].mxu0
    %363 = vmatprep.mubr.bf16.mxu0 0
    %364 = vmatmul.mubr.bf16.gmra.mrb[0].mxu0 %v237
    %v365 = vpop.f32.mrb[0].mxu0
    %v366 = vadd.f32 0.0, %v365
    %v367 = vpop.f32.mrb[0].mxu0
    %v368 = vpop.f32.mrb[0].mxu0
    %v369 = vadd.f32 0.0, %v368
    %v370 = vpop.f32.mrb[0].mxu0
    %371 = vmatprep.mubr.bf16.mxu0 0
    %372 = vmatmul.mubr.bf16.gmra.mrb[0].mxu0 %v238
    %v373 = vpop.f32.mrb[0].mxu0
    %v374 = vadd.f32 0.0, %v373
    %v375 = vpop.f32.mrb[0].mxu0
    %v376 = vpop.f32.mrb[0].mxu0
    %v377 = vadd.f32 0.0, %v376
    %v378 = vpop.f32.mrb[0].mxu0
    %379 = vmatprep.mubr.bf16.mxu0 0
    %380 = vmatmul.mubr.bf16.gmra.mrb[0].mxu0 %v239
    %v381 = vpop.f32.mrb[0].mxu0
    %v382 = vadd.f32 0.0, %v381
    %v383 = vpop.f32.mrb[0].mxu0
    %v384 = vpop.f32.mrb[0].mxu0
    %v385 = vadd.f32 0.0, %v384
    %v386 = vpop.f32.mrb[0].mxu0
    %387 = vmatprep.mubr.bf16.mxu0 0
    %388 = vmatmul.mubr.bf16.gmra.mrb[0].mxu0 %v240
    %v389 = vpop.f32.mrb[0].mxu0
    %v390 = vadd.f32 0.0, %v389
    %v391 = vpop.f32.mrb[0].mxu0
    %v392 = vpop.f32.mrb[0].mxu0
    %v393 = vadd.f32 0.0, %v392
    %v394 = vpop.f32.mrb[0].mxu0
    %395 = vmatprep.mubr.bf16.mxu0 0
    %396 = vmatmul.mubr.bf16.gmra.mrb[0].mxu0 %v241
    %v397 = vpop.f32.mrb[0].mxu0
    %v398 = vadd.f32 0.0, %v397
    %v399 = vpop.f32.mrb[0].mxu0
    %v400 = vpop.f32.mrb[0].mxu0
    %v401 = vadd.f32 0.0, %v400
    %v402 = vpop.f32.mrb[0].mxu0
    %403 = vmatprep.mubr.bf16.mxu0 0
    %404 = vmatmul.mubr.bf16.gmra.mrb[0].mxu0 %v242
    %v405 = vpop.f32.mrb[0].mxu0
    %v406 = vadd.f32 0.0, %v405
    %v407 = vpop.f32.mrb[0].mxu0
    %v408 = vpop.f32.mrb[0].mxu0
    %v409 = vadd.f32 0.0, %v408
    %v410 = vpop.f32.mrb[0].mxu0
    %411 = vmatprep.mubr.bf16.mxu0 0
    %412 = vmatmul.mubr.bf16.gmra.mrb[0].mxu0 %v243
    %v413 = vpop.f32.mrb[0].mxu0
    %v414 = vadd.f32 0.0, %v413
    %v415 = vpop.f32.mrb[0].mxu0
    %v416 = vpop.f32.mrb[0].mxu0
    %v417 = vadd.f32 0.0, %v416
    %v418 = vpop.f32.mrb[0].mxu0
    %419 = vmatprep.mubr.bf16.mxu0 0
    %420 = vmatmul.mubr.bf16.gmra.mrb[0].mxu0 %v244
    %v421 = vpop.f32.mrb[0].mxu0
    %v422 = vadd.f32 0.0, %v421
    %v423 = vpop.f32.mrb[0].mxu0
    %v424 = vpop.f32.mrb[0].mxu0
    %v425 = vadd.f32 0.0, %v424
    %v426 = vpop.f32.mrb[0].mxu0
    %427 = vmatprep.mubr.bf16.mxu0 0
    %428 = vmatmul.mubr.bf16.gmra.mrb[0].mxu0 %v245
    %v429 = vpop.f32.mrb[0].mxu0
    %v430 = vadd.f32 0.0, %v429
    %v431 = vpop.f32.mrb[0].mxu0
    %v432 = vpop.f32.mrb[0].mxu0
    %v433 = vadd.f32 0.0, %v432
    %v434 = vpop.f32.mrb[0].mxu0
    %435 = vmatprep.mubr.bf16.mxu0 0
    %436 = vmatmul.mubr.bf16.gmra.mrb[0].mxu0 %v246
    %v437 = vpop.f32.mrb[0].mxu0
    %v438 = vadd.f32 0.0, %v437
    %v439 = vpop.f32.mrb[0].mxu0
    %v440 = vpop.f32.mrb[0].mxu0
    %v441 = vadd.f32 0.0, %v440
    %v442 = vpop.f32.mrb[0].mxu0
    %443 = vmatprep.mubr.bf16.mxu0 0
    %444 = vmatmul.mubr.bf16.gmra.mrb[0].mxu0 %v247
    %v445 = vpop.f32.mrb[0].mxu0
    %v446 = vadd.f32 0.0, %v445
    %v447 = vpop.f32.mrb[0].mxu0
    %v448 = vpop.f32.mrb[0].mxu0
    %v449 = vadd.f32 0.0, %v448
    %v450 = vpop.f32.mrb[0].mxu0
    %451 = vmatprep.mubr.bf16.mxu0 0
    %452 = vmatmul.mubr.bf16.gmra.mrb[0].mxu0 %v248
    %v453 = vpop.f32.mrb[0].mxu0
    %v454 = vadd.f32 0.0, %v453
    %v455 = vpop.f32.mrb[0].mxu0
    %v456 = vpop.f32.mrb[0].mxu0
    %v457 = vadd.f32 0.0, %v456
    %v458 = vpop.f32.mrb[0].mxu0
    %459 = vmatprep.mubr.bf16.mxu0 0
    %460 = vmatmul.mubr.bf16.gmra.mrb[0].mxu0 %v249
    %v461 = vpop.f32.mrb[0].mxu0
    %v462 = vadd.f32 0.0, %v461
    %v463 = vpop.f32.mrb[0].mxu0
    %v464 = vpop.f32.mrb[0].mxu0
    %v465 = vadd.f32 0.0, %v464
    %v466 = vpop.f32.mrb[0].mxu0
    %467 = vmatprep.mubr.bf16.mxu0 0
    %468 = vmatmul.mubr.bf16.gmra.mrb[0].mxu0 %v250
    %v469 = vpop.f32.mrb[0].mxu0
    %v470 = vadd.f32 0.0, %v469
    %v471 = vpop.f32.mrb[0].mxu0
    %v472 = vpop.f32.mrb[0].mxu0
    %v473 = vadd.f32 0.0, %v472
    %v474 = vpop.f32.mrb[0].mxu0
    %475 = vdwg.mxu0
    %v476 = vld [vmem:[%s2] sm:$0x1]
    %v477 = vld [vmem:[#allocation7] sm:$0x1]
    %v478 = vadd.f32 %v350, %v353
    %v479 = vadd.f32 %v478, %v358
    %v480 = vadd.f32 %v479, %v361
    %v481 = vadd.f32 %v480, %v366
    %v482 = vadd.f32 %v481, %v369
    %v483 = vadd.f32 %v482, %v374
    %v484 = vadd.f32 %v483, %v377
    %v485 = vadd.f32 %v484, %v382
    %v486 = vadd.f32 %v485, %v385
    %v487 = vadd.f32 %v486, %v390
    %v488 = vadd.f32 %v487, %v393
    %v489 = vadd.f32 %v488, %v398
    %v490 = vadd.f32 %v489, %v401
    %v491 = vadd.f32 %v490, %v406
    %v492 = vadd.f32 %v491, %v409
    %v493 = vadd.f32 %v492, %v414
    %v494 = vadd.f32 %v493, %v417
    %v495 = vadd.f32 %v494, %v422
    %v496 = vadd.f32 %v495, %v425
    %v497 = vadd.f32 %v496, %v430
    %v498 = vadd.f32 %v497, %v433
    %v499 = vadd.f32 %v498, %v438
    %v500 = vadd.f32 %v499, %v441
    %v501 = vadd.f32 %v500, %v446
    %v502 = vadd.f32 %v501, %v449
    %v503 = vadd.f32 %v502, %v454
    %v504 = vadd.f32 %v503, %v457
    %v505 = vadd.f32 %v504, %v462
    %v506 = vadd.f32 %v505, %v465
    %v507 = vadd.f32 %v506, %v470
    %v508 = vadd.f32 %v507, %v473
    %v509 = vrot.slane %v508, 4
    %v510 = vadd.f32 %v508, %v509
    %v511 = vrot.slane %v510, 2
    %v512 = vadd.f32 %v510, %v511
    %v513 = vrot.slane %v512, 1
    %v514 = vadd.f32 %v512, %v513
    %v515 = vmul.f32 %v514, 0.00390625
    %v516 = vmul.f32 %v350, %v350
    %v517 = vmul.f32 %v353, %v353
    %v518 = vmul.f32 %v358, %v358
    %v519 = vmul.f32 %v361, %v361
    %v520 = vmul.f32 %v366, %v366
    %v521 = vmul.f32 %v369, %v369
    %v522 = vmul.f32 %v374, %v374
    %v523 = vmul.f32 %v377, %v377
    %v524 = vmul.f32 %v382, %v382
    %v525 = vmul.f32 %v385, %v385
    %v526 = vmul.f32 %v390, %v390
    %v527 = vmul.f32 %v393, %v393
    %v528 = vmul.f32 %v398, %v398
    %v529 = vmul.f32 %v401, %v401
    %v530 = vmul.f32 %v406, %v406
    %v531 = vmul.f32 %v409, %v409
    %v532 = vmul.f32 %v414, %v414
    %v533 = vmul.f32 %v417, %v417
    %v534 = vmul.f32 %v422, %v422
    %v535 = vmul.f32 %v425, %v425
    %v536 = vmul.f32 %v430, %v430
    %v537 = vmul.f32 %v433, %v433
    %v538 = vmul.f32 %v438, %v438
    %v539 = vmul.f32 %v441, %v441
    %v540 = vmul.f32 %v446, %v446
    %v541 = vmul.f32 %v449, %v449
    %v542 = vmul.f32 %v454, %v454
    %v543 = vmul.f32 %v457, %v457
    %v544 = vmul.f32 %v462, %v462
    %v545 = vmul.f32 %v465, %v465
    %v546 = vmul.f32 %v470, %v470
    %v547 = vmul.f32 %v473, %v473
    %v548 = vadd.f32 %v516, %v517
    %v549 = vadd.f32 %v548, %v518
    %v550 = vadd.f32 %v549, %v519
    %v551 = vadd.f32 %v550, %v520
    %v552 = vadd.f32 %v551, %v521
    %v553 = vadd.f32 %v552, %v522
    %v554 = vadd.f32 %v553, %v523
    %v555 = vadd.f32 %v554, %v524
    %v556 = vadd.f32 %v555, %v525
    %v557 = vadd.f32 %v556, %v526
    %v558 = vadd.f32 %v557, %v527
    %v559 = vadd.f32 %v558, %v528
    %v560 = vadd.f32 %v559, %v529
    %v561 = vadd.f32 %v560, %v530
    %v562 = vadd.f32 %v561, %v531
    %v563 = vadd.f32 %v562, %v532
    %v564 = vadd.f32 %v563, %v533
    %v565 = vadd.f32 %v564, %v534
    %v566 = vadd.f32 %v565, %v535
    %v567 = vadd.f32 %v566, %v536
    %v568 = vadd.f32 %v567, %v537
    %v569 = vadd.f32 %v568, %v538
    %v570 = vadd.f32 %v569, %v539
    %v571 = vadd.f32 %v570, %v540
    %v572 = vadd.f32 %v571, %v541
    %v573 = vadd.f32 %v572, %v542
    %v574 = vadd.f32 %v573, %v543
    %v575 = vadd.f32 %v574, %v544
    %v576 = vadd.f32 %v575, %v545
    %v577 = vadd.f32 %v576, %v546
    %v578 = vadd.f32 %v577, %v547
    %v579 = vrot.slane %v578, 4
    %v580 = vadd.f32 %v578, %v579
    %v581 = vrot.slane %v580, 2
    %v582 = vadd.f32 %v580, %v581
    %v583 = vrot.slane %v582, 1
    %v584 = vadd.f32 %v582, %v583
    %v585 = vmul.f32 %v584, 0.00390625
    %v586 = vmul.f32 %v515, %v515
    %v587 = vsub.f32 %v585, %v586
    %v588 = vadd.f32 %v587, 1e-05
    %v589 = vrsqrt.pop %v588
    %v590 = vmul.f32 %v476, %v589
    %v591 = vmul.f32 %v515, %v590
    %v592 = vsub.f32 %v477, %v591
    %v594 = vlaneseq
    %v595 = vshrl.u32 %v594, 7
    %v596 = vsub.s32 0, %v595
    %v597 = vrot.slane %v590, %v596
    %v599 = vmul.f32 %v350, %v597
    %v600 = vmul.f32 %v353, %v597
    %v601 = vmul.f32 %v358, %v597
    %v602 = vmul.f32 %v361, %v597
    %v603 = vmul.f32 %v366, %v597
    %v604 = vmul.f32 %v369, %v597
    %v605 = vmul.f32 %v374, %v597
    %v606 = vmul.f32 %v377, %v597
    %v607 = vmul.f32 %v382, %v597
    %v608 = vmul.f32 %v385, %v597
    %v609 = vmul.f32 %v390, %v597
    %v610 = vmul.f32 %v393, %v597
    %v611 = vmul.f32 %v398, %v597
    %v612 = vmul.f32 %v401, %v597
    %v613 = vmul.f32 %v406, %v597
    %v614 = vmul.f32 %v409, %v597
    %v615 = vmul.f32 %v414, %v597
    %v616 = vmul.f32 %v417, %v597
    %v617 = vmul.f32 %v422, %v597
    %v618 = vmul.f32 %v425, %v597
    %v619 = vmul.f32 %v430, %v597
    %v620 = vmul.f32 %v433, %v597
    %v621 = vmul.f32 %v438, %v597
    %v622 = vmul.f32 %v441, %v597
    %v623 = vmul.f32 %v446, %v597
    %v624 = vmul.f32 %v449, %v597
    %v625 = vmul.f32 %v454, %v597
    %v626 = vmul.f32 %v457, %v597
    %v627 = vmul.f32 %v462, %v597
    %v628 = vmul.f32 %v465, %v597
    %v629 = vmul.f32 %v470, %v597
    %v630 = vmul.f32 %v473, %v597
    %v632 = vlaneseq
    %v633 = vshrl.u32 %v632, 7
    %v634 = vsub.s32 0, %v633
    %v635 = vrot.slane %v592, %v634
    %v637 = vadd.f32 %v599, %v635
    %v638 = vadd.f32 %v600, %v635
    %v639 = vadd.f32 %v601, %v635
    %v640 = vadd.f32 %v602, %v635
    %v641 = vadd.f32 %v603, %v635
    %v642 = vadd.f32 %v604, %v635
    %v643 = vadd.f32 %v605, %v635
    %v644 = vadd.f32 %v606, %v635
    %v645 = vadd.f32 %v607, %v635
    %v646 = vadd.f32 %v608, %v635
    %v647 = vadd.f32 %v609, %v635
    %v648 = vadd.f32 %v610, %v635
    %v649 = vadd.f32 %v611, %v635
    %v650 = vadd.f32 %v612, %v635
    %v651 = vadd.f32 %v613, %v635
    %v652 = vadd.f32 %v614, %v635
    %v653 = vadd.f32 %v615, %v635
    %v654 = vadd.f32 %v616, %v635
    %v655 = vadd.f32 %v617, %v635
    %v656 = vadd.f32 %v618, %v635
    %v657 = vadd.f32 %v619, %v635
    %v658 = vadd.f32 %v620, %v635
    %v659 = vadd.f32 %v621, %v635
    %v660 = vadd.f32 %v622, %v635
    %v661 = vadd.f32 %v623, %v635
    %v662 = vadd.f32 %v624, %v635
    %v663 = vadd.f32 %v625, %v635
    %v664 = vadd.f32 %v626, %v635
    %v665 = vadd.f32 %v627, %v635
    %v666 = vadd.f32 %v628, %v635
    %v667 = vadd.f32 %v629, %v635
    %v668 = vadd.f32 %v630, %v635
    %v669 = vmul.f32 %v637, 0.2
    %v670 = vmul.f32 %v638, 0.2
    %v671 = vmul.f32 %v639, 0.2
    %v672 = vmul.f32 %v640, 0.2
    %v673 = vmul.f32 %v641, 0.2
    %v674 = vmul.f32 %v642, 0.2
    %v675 = vmul.f32 %v643, 0.2
    %v676 = vmul.f32 %v644, 0.2
    %v677 = vmul.f32 %v645, 0.2
    %v678 = vmul.f32 %v646, 0.2
    %v679 = vmul.f32 %v647, 0.2
    %v680 = vmul.f32 %v648, 0.2
    %v681 = vmul.f32 %v649, 0.2
    %v682 = vmul.f32 %v650, 0.2
    %v683 = vmul.f32 %v651, 0.2
    %v684 = vmul.f32 %v652, 0.2
    %v685 = vmul.f32 %v653, 0.2
    %v686 = vmul.f32 %v654, 0.2
    %v687 = vmul.f32 %v655, 0.2
    %v688 = vmul.f32 %v656, 0.2
    %v689 = vmul.f32 %v657, 0.2
    %v690 = vmul.f32 %v658, 0.2
    %v691 = vmul.f32 %v659, 0.2
    %v692 = vmul.f32 %v660, 0.2
    %v693 = vmul.f32 %v661, 0.2
    %v694 = vmul.f32 %v662, 0.2
    %v695 = vmul.f32 %v663, 0.2
    %v696 = vmul.f32 %v664, 0.2
    %v697 = vmul.f32 %v665, 0.2
    %v698 = vmul.f32 %v666, 0.2
    %v699 = vmul.f32 %v667, 0.2
    %v700 = vmul.f32 %v668, 0.2
    %v701 = vmax.f32 %v637, %v669
    %v702 = vmax.f32 %v638, %v670
    %v703 = vmax.f32 %v639, %v671
    %v704 = vmax.f32 %v640, %v672
    %v705 = vmax.f32 %v641, %v673
    %v706 = vmax.f32 %v642, %v674
    %v707 = vmax.f32 %v643, %v675
    %v708 = vmax.f32 %v644, %v676
    %v709 = vmax.f32 %v645, %v677
    %v710 = vmax.f32 %v646, %v678
    %v711 = vmax.f32 %v647, %v679
    %v712 = vmax.f32 %v648, %v680
    %v713 = vmax.f32 %v649, %v681
    %v714 = vmax.f32 %v650, %v682
    %v715 = vmax.f32 %v651, %v683
    %v716 = vmax.f32 %v652, %v684
    %v717 = vmax.f32 %v653, %v685
    %v718 = vmax.f32 %v654, %v686
    %v719 = vmax.f32 %v655, %v687
    %v720 = vmax.f32 %v656, %v688
    %v721 = vmax.f32 %v657, %v689
    %v722 = vmax.f32 %v658, %v690
    %v723 = vmax.f32 %v659, %v691
    %v724 = vmax.f32 %v660, %v692
    %v725 = vmax.f32 %v661, %v693
    %v726 = vmax.f32 %v662, %v694
    %v727 = vmax.f32 %v663, %v695
    %v728 = vmax.f32 %v664, %v696
    %v729 = vmax.f32 %v665, %v697
    %v730 = vmax.f32 %v666, %v698
    %v731 = vmax.f32 %v667, %v699
    %v732 = vmax.f32 %v668, %v700
    %v733 = vpack.c.bf16 %v702, %v701
    %v734 = vpack.c.bf16 %v704, %v703
    %v735 = vpack.c.bf16 %v706, %v705
    %v736 = vpack.c.bf16 %v708, %v707
    %v737 = vpack.c.bf16 %v710, %v709
    %v738 = vpack.c.bf16 %v712, %v711
    %v739 = vpack.c.bf16 %v714, %v713
    %v740 = vpack.c.bf16 %v716, %v715
    %v741 = vpack.c.bf16 %v718, %v717
    %v742 = vpack.c.bf16 %v720, %v719
    %v743 = vpack.c.bf16 %v722, %v721
    %v744 = vpack.c.bf16 %v724, %v723
    %v745 = vpack.c.bf16 %v726, %v725
    %v746 = vpack.c.bf16 %v728, %v727
    %v747 = vpack.c.bf16 %v730, %v729
    %v748 = vpack.c.bf16 %v732, %v731
    %v749 = vld [vmem:[#allocation8] sm:$0xf]
    %v750 = vld [vmem:[#allocation8 + $0x8] sm:$0xf]
    %v751 = vld [vmem:[#allocation8 + $0x10] sm:$0xf]
    %v752 = vld [vmem:[#allocation8 + $0x18] sm:$0xf]
    %v753 = vld [vmem:[#allocation8 + $0x20] sm:$0xf]
    %v754 = vld [vmem:[#allocation8 + $0x28] sm:$0xf]
    %v755 = vld [vmem:[#allocation8 + $0x30] sm:$0xf]
    %v756 = vld [vmem:[#allocation8 + $0x38] sm:$0xf]
    %v757 = vld [vmem:[#allocation8 + $0x40] sm:$0xf]
    %v758 = vld [vmem:[#allocation8 + $0x48] sm:$0xf]
    %v759 = vld [vmem:[#allocation8 + $0x50] sm:$0xf]
    %v760 = vld [vmem:[#allocation8 + $0x58] sm:$0xf]
    %v761 = vld [vmem:[#allocation8 + $0x60] sm:$0xf]
    %v762 = vld [vmem:[#allocation8 + $0x68] sm:$0xf]
    %v763 = vld [vmem:[#allocation8 + $0x70] sm:$0xf]
    %v764 = vld [vmem:[#allocation8 + $0x78] sm:$0xf]
    %v781 = vunpack.c.l.b16 %v749
    %v782 = vunpack.c.l.b16 %v750
    %v783 = vunpack.c.l.b16 %v751
    %v784 = vunpack.c.l.b16 %v752
    %v785 = vunpack.c.l.b16 %v753
    %v786 = vunpack.c.l.b16 %v754
    %v787 = vunpack.c.l.b16 %v755
    %v788 = vunpack.c.l.b16 %v756
    %v789 = vunpack.c.l.b16 %v757
    %v790 = vunpack.c.l.b16 %v758
    %v791 = vunpack.c.l.b16 %v759
    %v792 = vunpack.c.l.b16 %v760
    %v793 = vunpack.c.l.b16 %v761
    %v794 = vunpack.c.l.b16 %v762
    %v795 = vunpack.c.l.b16 %v763
    %v796 = vunpack.c.l.b16 %v764
    %v797 = vpack.c.b16 %v782, %v781
    %v798 = vpack.c.b16 %v784, %v783
    %v799 = vpack.c.b16 %v786, %v785
    %v800 = vpack.c.b16 %v788, %v787
    %v801 = vpack.c.b16 %v790, %v789
    %v802 = vpack.c.b16 %v792, %v791
    %v803 = vpack.c.b16 %v794, %v793
    %v804 = vpack.c.b16 %v796, %v795
    %813 = vmatprep.subr.bf16.mxu0 0
    %814 = vmatpush1.bf16.msra.mxu0 %v797
    %815 = vmatprep.subr.bf16.mxu0 0
    %816 = vmatpush1.bf16.msra.mxu0 %v798
    %817 = vmatprep.subr.bf16.mxu0 0
    %818 = vmatpush1.bf16.msra.mxu0 %v799
    %819 = vmatprep.subr.bf16.mxu0 0
    %820 = vmatpush1.bf16.msra.mxu0 %v800
    %821 = vmatprep.subr.bf16.mxu0 0
    %822 = vmatpush1.bf16.msra.mxu0 %v801
    %823 = vmatprep.subr.bf16.mxu0 0
    %824 = vmatpush1.bf16.msra.mxu0 %v802
    %825 = vmatprep.subr.bf16.mxu0 0
    %826 = vmatpush1.bf16.msra.mxu0 %v803
    %827 = vmatprep.subr.bf16.mxu0 0
    %828 = vmatpush1.bf16.msra.mxu0 %v804
    %829 = vmatprep.subr.bf16.mxu0 0
    %830 = vmatpush1.bf16.msra.mxu0 0
    %831 = vmatprep.subr.bf16.mxu0 0
    %832 = vmatpush1.bf16.msra.mxu0 0
    %833 = vmatprep.subr.bf16.mxu0 0
    %834 = vmatpush1.bf16.msra.mxu0 0
    %835 = vmatprep.subr.bf16.mxu0 0
    %836 = vmatpush1.bf16.msra.mxu0 0
    %837 = vmatprep.subr.bf16.mxu0 0
    %838 = vmatpush1.bf16.msra.mxu0 0
    %839 = vmatprep.subr.bf16.mxu0 0
    %840 = vmatpush1.bf16.msra.mxu0 0
    %841 = vmatprep.subr.bf16.mxu0 0
    %842 = vmatpush1.bf16.msra.mxu0 0
    %843 = vmatprep.subr.bf16.mxu0 0
    %844 = vmatpush1.bf16.msra.mxu0 0
    %845 = vmatprep.mubr.bf16.mxu0 0
    %846 = vmatmul.mubr.bf16.gmra.mrb[0].mxu0 %v733
    %v847 = vpop.f32.mrb[0].mxu0
    %v848 = vadd.f32 0.0, %v847
    %v849 = vpop.f32.mrb[0].mxu0
    %v850 = vpop.f32.mrb[0].mxu0
    %v851 = vadd.f32 0.0, %v850
    %v852 = vpop.f32.mrb[0].mxu0
    %853 = vmatprep.mubr.bf16.mxu0 0
    %854 = vmatmul.mubr.bf16.gmra.mrb[0].mxu0 %v734
    %v855 = vpop.f32.mrb[0].mxu0
    %v856 = vadd.f32 0.0, %v855
    %v857 = vpop.f32.mrb[0].mxu0
    %v858 = vpop.f32.mrb[0].mxu0
    %v859 = vadd.f32 0.0, %v858
    %v860 = vpop.f32.mrb[0].mxu0
    %861 = vmatprep.mubr.bf16.mxu0 0
    %862 = vmatmul.mubr.bf16.gmra.mrb[0].mxu0 %v735
    %v863 = vpop.f32.mrb[0].mxu0
    %v864 = vadd.f32 0.0, %v863
    %v865 = vpop.f32.mrb[0].mxu0
    %v866 = vpop.f32.mrb[0].mxu0
    %v867 = vadd.f32 0.0, %v866
    %v868 = vpop.f32.mrb[0].mxu0
    %869 = vmatprep.mubr.bf16.mxu0 0
    %870 = vmatmul.mubr.bf16.gmra.mrb[0].mxu0 %v736
    %v871 = vpop.f32.mrb[0].mxu0
    %v872 = vadd.f32 0.0, %v871
    %v873 = vpop.f32.mrb[0].mxu0
    %v874 = vpop.f32.mrb[0].mxu0
    %v875 = vadd.f32 0.0, %v874
    %v876 = vpop.f32.mrb[0].mxu0
    %877 = vmatprep.mubr.bf16.mxu0 0
    %878 = vmatmul.mubr.bf16.gmra.mrb[0].mxu0 %v737
    %v879 = vpop.f32.mrb[0].mxu0
    %v880 = vadd.f32 0.0, %v879
    %v881 = vpop.f32.mrb[0].mxu0
    %v882 = vpop.f32.mrb[0].mxu0
    %v883 = vadd.f32 0.0, %v882
    %v884 = vpop.f32.mrb[0].mxu0
    %885 = vmatprep.mubr.bf16.mxu0 0
    %886 = vmatmul.mubr.bf16.gmra.mrb[0].mxu0 %v738
    %v887 = vpop.f32.mrb[0].mxu0
    %v888 = vadd.f32 0.0, %v887
    %v889 = vpop.f32.mrb[0].mxu0
    %v890 = vpop.f32.mrb[0].mxu0
    %v891 = vadd.f32 0.0, %v890
    %v892 = vpop.f32.mrb[0].mxu0
    %893 = vmatprep.mubr.bf16.mxu0 0
    %894 = vmatmul.mubr.bf16.gmra.mrb[0].mxu0 %v739
    %v895 = vpop.f32.mrb[0].mxu0
    %v896 = vadd.f32 0.0, %v895
    %v897 = vpop.f32.mrb[0].mxu0
    %v898 = vpop.f32.mrb[0].mxu0
    %v899 = vadd.f32 0.0, %v898
    %v900 = vpop.f32.mrb[0].mxu0
    %901 = vmatprep.mubr.bf16.mxu0 0
    %902 = vmatmul.mubr.bf16.gmra.mrb[0].mxu0 %v740
    %v903 = vpop.f32.mrb[0].mxu0
    %v904 = vadd.f32 0.0, %v903
    %v905 = vpop.f32.mrb[0].mxu0
    %v906 = vpop.f32.mrb[0].mxu0
    %v907 = vadd.f32 0.0, %v906
    %v908 = vpop.f32.mrb[0].mxu0
    %909 = vmatprep.mubr.bf16.mxu0 0
    %910 = vmatmul.mubr.bf16.gmra.mrb[0].mxu0 %v741
    %v911 = vpop.f32.mrb[0].mxu0
    %v912 = vadd.f32 0.0, %v911
    %v913 = vpop.f32.mrb[0].mxu0
    %v914 = vpop.f32.mrb[0].mxu0
    %v915 = vadd.f32 0.0, %v914
    %v916 = vpop.f32.mrb[0].mxu0
    %917 = vmatprep.mubr.bf16.mxu0 0
    %918 = vmatmul.mubr.bf16.gmra.mrb[0].mxu0 %v742
    %v919 = vpop.f32.mrb[0].mxu0
    %v920 = vadd.f32 0.0, %v919
    %v921 = vpop.f32.mrb[0].mxu0
    %v922 = vpop.f32.mrb[0].mxu0
    %v923 = vadd.f32 0.0, %v922
    %v924 = vpop.f32.mrb[0].mxu0
    %925 = vmatprep.mubr.bf16.mxu0 0
    %926 = vmatmul.mubr.bf16.gmra.mrb[0].mxu0 %v743
    %v927 = vpop.f32.mrb[0].mxu0
    %v928 = vadd.f32 0.0, %v927
    %v929 = vpop.f32.mrb[0].mxu0
    %v930 = vpop.f32.mrb[0].mxu0
    %v931 = vadd.f32 0.0, %v930
    %v932 = vpop.f32.mrb[0].mxu0
    %933 = vmatprep.mubr.bf16.mxu0 0
    %934 = vmatmul.mubr.bf16.gmra.mrb[0].mxu0 %v744
    %v935 = vpop.f32.mrb[0].mxu0
    %v936 = vadd.f32 0.0, %v935
    %v937 = vpop.f32.mrb[0].mxu0
    %v938 = vpop.f32.mrb[0].mxu0
    %v939 = vadd.f32 0.0, %v938
    %v940 = vpop.f32.mrb[0].mxu0
    %941 = vmatprep.mubr.bf16.mxu0 0
    %942 = vmatmul.mubr.bf16.gmra.mrb[0].mxu0 %v745
    %v943 = vpop.f32.mrb[0].mxu0
    %v944 = vadd.f32 0.0, %v943
    %v945 = vpop.f32.mrb[0].mxu0
    %v946 = vpop.f32.mrb[0].mxu0
    %v947 = vadd.f32 0.0, %v946
    %v948 = vpop.f32.mrb[0].mxu0
    %949 = vmatprep.mubr.bf16.mxu0 0
    %950 = vmatmul.mubr.bf16.gmra.mrb[0].mxu0 %v746
    %v951 = vpop.f32.mrb[0].mxu0
    %v952 = vadd.f32 0.0, %v951
    %v953 = vpop.f32.mrb[0].mxu0
    %v954 = vpop.f32.mrb[0].mxu0
    %v955 = vadd.f32 0.0, %v954
    %v956 = vpop.f32.mrb[0].mxu0
    %957 = vmatprep.mubr.bf16.mxu0 0
    %958 = vmatmul.mubr.bf16.gmra.mrb[0].mxu0 %v747
    %v959 = vpop.f32.mrb[0].mxu0
    %v960 = vadd.f32 0.0, %v959
    %v961 = vpop.f32.mrb[0].mxu0
    %v962 = vpop.f32.mrb[0].mxu0
    %v963 = vadd.f32 0.0, %v962
    %v964 = vpop.f32.mrb[0].mxu0
    %965 = vmatprep.mubr.bf16.mxu0 0
    %966 = vmatmul.mubr.bf16.gmra.mrb[0].mxu0 %v748
    %v967 = vpop.f32.mrb[0].mxu0
    %v968 = vadd.f32 0.0, %v967
    %v969 = vpop.f32.mrb[0].mxu0
    %v970 = vpop.f32.mrb[0].mxu0
    %v971 = vadd.f32 0.0, %v970
    %v972 = vpop.f32.mrb[0].mxu0
    %973 = vdwg.mxu0
    %v974 = vld [vmem:[%s5] sm:$0x1]
    %v975 = vld [vmem:[%s6] sm:$0x1]
    %v976 = vadd.f32 %v848, %v851
    %v977 = vadd.f32 %v976, %v856
    %v978 = vadd.f32 %v977, %v859
    %v979 = vadd.f32 %v978, %v864
    %v980 = vadd.f32 %v979, %v867
    %v981 = vadd.f32 %v980, %v872
    %v982 = vadd.f32 %v981, %v875
    %v983 = vadd.f32 %v982, %v880
    %v984 = vadd.f32 %v983, %v883
    %v985 = vadd.f32 %v984, %v888
    %v986 = vadd.f32 %v985, %v891
    %v987 = vadd.f32 %v986, %v896
    %v988 = vadd.f32 %v987, %v899
    %v989 = vadd.f32 %v988, %v904
    %v990 = vadd.f32 %v989, %v907
    %v991 = vadd.f32 %v990, %v912
    %v992 = vadd.f32 %v991, %v915
    %v993 = vadd.f32 %v992, %v920
    %v994 = vadd.f32 %v993, %v923
    %v995 = vadd.f32 %v994, %v928
    %v996 = vadd.f32 %v995, %v931
    %v997 = vadd.f32 %v996, %v936
    %v998 = vadd.f32 %v997, %v939
    %v999 = vadd.f32 %v998, %v944
    %v1000 = vadd.f32 %v999, %v947
    %v1001 = vadd.f32 %v1000, %v952
    %v1002 = vadd.f32 %v1001, %v955
    %v1003 = vadd.f32 %v1002, %v960
    %v1004 = vadd.f32 %v1003, %v963
    %v1005 = vadd.f32 %v1004, %v968
    %v1006 = vadd.f32 %v1005, %v971
    %v1007 = vrot.slane %v1006, 4
    %v1008 = vadd.f32 %v1006, %v1007
    %v1009 = vrot.slane %v1008, 2
    %v1010 = vadd.f32 %v1008, %v1009
    %v1011 = vrot.slane %v1010, 1
    %v1012 = vadd.f32 %v1010, %v1011
    %v1013 = vmul.f32 %v1012, 0.00390625
    %v1014 = vmul.f32 %v848, %v848
    %v1015 = vmul.f32 %v851, %v851
    %v1016 = vmul.f32 %v856, %v856
    %v1017 = vmul.f32 %v859, %v859
    %v1018 = vmul.f32 %v864, %v864
    %v1019 = vmul.f32 %v867, %v867
    %v1020 = vmul.f32 %v872, %v872
    %v1021 = vmul.f32 %v875, %v875
    %v1022 = vmul.f32 %v880, %v880
    %v1023 = vmul.f32 %v883, %v883
    %v1024 = vmul.f32 %v888, %v888
    %v1025 = vmul.f32 %v891, %v891
    %v1026 = vmul.f32 %v896, %v896
    %v1027 = vmul.f32 %v899, %v899
    %v1028 = vmul.f32 %v904, %v904
    %v1029 = vmul.f32 %v907, %v907
    %v1030 = vmul.f32 %v912, %v912
    %v1031 = vmul.f32 %v915, %v915
    %v1032 = vmul.f32 %v920, %v920
    %v1033 = vmul.f32 %v923, %v923
    %v1034 = vmul.f32 %v928, %v928
    %v1035 = vmul.f32 %v931, %v931
    %v1036 = vmul.f32 %v936, %v936
    %v1037 = vmul.f32 %v939, %v939
    %v1038 = vmul.f32 %v944, %v944
    %v1039 = vmul.f32 %v947, %v947
    %v1040 = vmul.f32 %v952, %v952
    %v1041 = vmul.f32 %v955, %v955
    %v1042 = vmul.f32 %v960, %v960
    %v1043 = vmul.f32 %v963, %v963
    %v1044 = vmul.f32 %v968, %v968
    %v1045 = vmul.f32 %v971, %v971
    %v1046 = vadd.f32 %v1014, %v1015
    %v1047 = vadd.f32 %v1046, %v1016
    %v1048 = vadd.f32 %v1047, %v1017
    %v1049 = vadd.f32 %v1048, %v1018
    %v1050 = vadd.f32 %v1049, %v1019
    %v1051 = vadd.f32 %v1050, %v1020
    %v1052 = vadd.f32 %v1051, %v1021
    %v1053 = vadd.f32 %v1052, %v1022
    %v1054 = vadd.f32 %v1053, %v1023
    %v1055 = vadd.f32 %v1054, %v1024
    %v1056 = vadd.f32 %v1055, %v1025
    %v1057 = vadd.f32 %v1056, %v1026
    %v1058 = vadd.f32 %v1057, %v1027
    %v1059 = vadd.f32 %v1058, %v1028
    %v1060 = vadd.f32 %v1059, %v1029
    %v1061 = vadd.f32 %v1060, %v1030
    %v1062 = vadd.f32 %v1061, %v1031
    %v1063 = vadd.f32 %v1062, %v1032
    %v1064 = vadd.f32 %v1063, %v1033
    %v1065 = vadd.f32 %v1064, %v1034
    %v1066 = vadd.f32 %v1065, %v1035
    %v1067 = vadd.f32 %v1066, %v1036
    %v1068 = vadd.f32 %v1067, %v1037
    %v1069 = vadd.f32 %v1068, %v1038
    %v1070 = vadd.f32 %v1069, %v1039
    %v1071 = vadd.f32 %v1070, %v1040
    %v1072 = vadd.f32 %v1071, %v1041
    %v1073 = vadd.f32 %v1072, %v1042
    %v1074 = vadd.f32 %v1073, %v1043
    %v1075 = vadd.f32 %v1074, %v1044
    %v1076 = vadd.f32 %v1075, %v1045
    %v1077 = vrot.slane %v1076, 4
    %v1078 = vadd.f32 %v1076, %v1077
    %v1079 = vrot.slane %v1078, 2
    %v1080 = vadd.f32 %v1078, %v1079
    %v1081 = vrot.slane %v1080, 1
    %v1082 = vadd.f32 %v1080, %v1081
    %v1083 = vmul.f32 %v1082, 0.00390625
    %v1084 = vmul.f32 %v1013, %v1013
    %v1085 = vsub.f32 %v1083, %v1084
    %v1086 = vadd.f32 %v1085, 1e-05
    %v1087 = vrsqrt.pop %v1086
    %v1088 = vmul.f32 %v974, %v1087
    %v1089 = vmul.f32 %v1013, %v1088
    %v1090 = vsub.f32 %v975, %v1089
    %v1092 = vlaneseq
    %v1093 = vshrl.u32 %v1092, 7
    %v1094 = vsub.s32 0, %v1093
    %v1095 = vrot.slane %v1088, %v1094
    %v1097 = vmul.f32 %v848, %v1095
    %v1098 = vmul.f32 %v851, %v1095
    %v1099 = vmul.f32 %v856, %v1095
    %v1100 = vmul.f32 %v859, %v1095
    %v1101 = vmul.f32 %v864, %v1095
    %v1102 = vmul.f32 %v867, %v1095
    %v1103 = vmul.f32 %v872, %v1095
    %v1104 = vmul.f32 %v875, %v1095
    %v1105 = vmul.f32 %v880, %v1095
    %v1106 = vmul.f32 %v883, %v1095
    %v1107 = vmul.f32 %v888, %v1095
    %v1108 = vmul.f32 %v891, %v1095
    %v1109 = vmul.f32 %v896, %v1095
    %v1110 = vmul.f32 %v899, %v1095
    %v1111 = vmul.f32 %v904, %v1095
    %v1112 = vmul.f32 %v907, %v1095
    %v1113 = vmul.f32 %v912, %v1095
    %v1114 = vmul.f32 %v915, %v1095
    %v1115 = vmul.f32 %v920, %v1095
    %v1116 = vmul.f32 %v923, %v1095
    %v1117 = vmul.f32 %v928, %v1095
    %v1118 = vmul.f32 %v931, %v1095
    %v1119 = vmul.f32 %v936, %v1095
    %v1120 = vmul.f32 %v939, %v1095
    %v1121 = vmul.f32 %v944, %v1095
    %v1122 = vmul.f32 %v947, %v1095
    %v1123 = vmul.f32 %v952, %v1095
    %v1124 = vmul.f32 %v955, %v1095
    %v1125 = vmul.f32 %v960, %v1095
    %v1126 = vmul.f32 %v963, %v1095
    %v1127 = vmul.f32 %v968, %v1095
    %v1128 = vmul.f32 %v971, %v1095
    %v1130 = vlaneseq
    %v1131 = vshrl.u32 %v1130, 7
    %v1132 = vsub.s32 0, %v1131
    %v1133 = vrot.slane %v1090, %v1132
    %v1135 = vadd.f32 %v1097, %v1133
    %v1136 = vadd.f32 %v1098, %v1133
    %v1137 = vadd.f32 %v1099, %v1133
    %v1138 = vadd.f32 %v1100, %v1133
    %v1139 = vadd.f32 %v1101, %v1133
    %v1140 = vadd.f32 %v1102, %v1133
    %v1141 = vadd.f32 %v1103, %v1133
    %v1142 = vadd.f32 %v1104, %v1133
    %v1143 = vadd.f32 %v1105, %v1133
    %v1144 = vadd.f32 %v1106, %v1133
    %v1145 = vadd.f32 %v1107, %v1133
    %v1146 = vadd.f32 %v1108, %v1133
    %v1147 = vadd.f32 %v1109, %v1133
    %v1148 = vadd.f32 %v1110, %v1133
    %v1149 = vadd.f32 %v1111, %v1133
    %v1150 = vadd.f32 %v1112, %v1133
    %v1151 = vadd.f32 %v1113, %v1133
    %v1152 = vadd.f32 %v1114, %v1133
    %v1153 = vadd.f32 %v1115, %v1133
    %v1154 = vadd.f32 %v1116, %v1133
    %v1155 = vadd.f32 %v1117, %v1133
    %v1156 = vadd.f32 %v1118, %v1133
    %v1157 = vadd.f32 %v1119, %v1133
    %v1158 = vadd.f32 %v1120, %v1133
    %v1159 = vadd.f32 %v1121, %v1133
    %v1160 = vadd.f32 %v1122, %v1133
    %v1161 = vadd.f32 %v1123, %v1133
    %v1162 = vadd.f32 %v1124, %v1133
    %v1163 = vadd.f32 %v1125, %v1133
    %v1164 = vadd.f32 %v1126, %v1133
    %v1165 = vadd.f32 %v1127, %v1133
    %v1166 = vadd.f32 %v1128, %v1133
    %v1167 = vmul.f32 %v1135, 0.2
    %v1168 = vmul.f32 %v1136, 0.2
    %v1169 = vmul.f32 %v1137, 0.2
    %v1170 = vmul.f32 %v1138, 0.2
    %v1171 = vmul.f32 %v1139, 0.2
    %v1172 = vmul.f32 %v1140, 0.2
    %v1173 = vmul.f32 %v1141, 0.2
    %v1174 = vmul.f32 %v1142, 0.2
    %v1175 = vmul.f32 %v1143, 0.2
    %v1176 = vmul.f32 %v1144, 0.2
    %v1177 = vmul.f32 %v1145, 0.2
    %v1178 = vmul.f32 %v1146, 0.2
    %v1179 = vmul.f32 %v1147, 0.2
    %v1180 = vmul.f32 %v1148, 0.2
    %v1181 = vmul.f32 %v1149, 0.2
    %v1182 = vmul.f32 %v1150, 0.2
    %v1183 = vmul.f32 %v1151, 0.2
    %v1184 = vmul.f32 %v1152, 0.2
    %v1185 = vmul.f32 %v1153, 0.2
    %v1186 = vmul.f32 %v1154, 0.2
    %v1187 = vmul.f32 %v1155, 0.2
    %v1188 = vmul.f32 %v1156, 0.2
    %v1189 = vmul.f32 %v1157, 0.2
    %v1190 = vmul.f32 %v1158, 0.2
    %v1191 = vmul.f32 %v1159, 0.2
    %v1192 = vmul.f32 %v1160, 0.2
    %v1193 = vmul.f32 %v1161, 0.2
    %v1194 = vmul.f32 %v1162, 0.2
    %v1195 = vmul.f32 %v1163, 0.2
    %v1196 = vmul.f32 %v1164, 0.2
    %v1197 = vmul.f32 %v1165, 0.2
    %v1198 = vmul.f32 %v1166, 0.2
    %v1199 = vmax.f32 %v1135, %v1167
    %v1200 = vmax.f32 %v1136, %v1168
    %v1201 = vmax.f32 %v1137, %v1169
    %v1202 = vmax.f32 %v1138, %v1170
    %v1203 = vmax.f32 %v1139, %v1171
    %v1204 = vmax.f32 %v1140, %v1172
    %v1205 = vmax.f32 %v1141, %v1173
    %v1206 = vmax.f32 %v1142, %v1174
    %v1207 = vmax.f32 %v1143, %v1175
    %v1208 = vmax.f32 %v1144, %v1176
    %v1209 = vmax.f32 %v1145, %v1177
    %v1210 = vmax.f32 %v1146, %v1178
    %v1211 = vmax.f32 %v1147, %v1179
    %v1212 = vmax.f32 %v1148, %v1180
    %v1213 = vmax.f32 %v1149, %v1181
    %v1214 = vmax.f32 %v1150, %v1182
    %v1215 = vmax.f32 %v1151, %v1183
    %v1216 = vmax.f32 %v1152, %v1184
    %v1217 = vmax.f32 %v1153, %v1185
    %v1218 = vmax.f32 %v1154, %v1186
    %v1219 = vmax.f32 %v1155, %v1187
    %v1220 = vmax.f32 %v1156, %v1188
    %v1221 = vmax.f32 %v1157, %v1189
    %v1222 = vmax.f32 %v1158, %v1190
    %v1223 = vmax.f32 %v1159, %v1191
    %v1224 = vmax.f32 %v1160, %v1192
    %v1225 = vmax.f32 %v1161, %v1193
    %v1226 = vmax.f32 %v1162, %v1194
    %v1227 = vmax.f32 %v1163, %v1195
    %v1228 = vmax.f32 %v1164, %v1196
    %v1229 = vmax.f32 %v1165, %v1197
    %v1230 = vmax.f32 %v1166, %v1198
    %v1231 = vpack.c.bf16 %v1200, %v1199
    %v1232 = vpack.c.bf16 %v1202, %v1201
    %v1233 = vpack.c.bf16 %v1204, %v1203
    %v1234 = vpack.c.bf16 %v1206, %v1205
    %v1235 = vpack.c.bf16 %v1208, %v1207
    %v1236 = vpack.c.bf16 %v1210, %v1209
    %v1237 = vpack.c.bf16 %v1212, %v1211
    %v1238 = vpack.c.bf16 %v1214, %v1213
    %v1239 = vpack.c.bf16 %v1216, %v1215
    %v1240 = vpack.c.bf16 %v1218, %v1217
    %v1241 = vpack.c.bf16 %v1220, %v1219
    %v1242 = vpack.c.bf16 %v1222, %v1221
    %v1243 = vpack.c.bf16 %v1224, %v1223
    %v1244 = vpack.c.bf16 %v1226, %v1225
    %v1245 = vpack.c.bf16 %v1228, %v1227
    %v1246 = vpack.c.bf16 %v1230, %v1229
    %v1247 = vld [vmem:[#allocation8 + $0x4] sm:$0xf]
    %v1248 = vld [vmem:[#allocation8 + $0xc] sm:$0xf]
    %v1249 = vld [vmem:[#allocation8 + $0x14] sm:$0xf]
    %v1250 = vld [vmem:[#allocation8 + $0x1c] sm:$0xf]
    %v1251 = vld [vmem:[#allocation8 + $0x24] sm:$0xf]
    %v1252 = vld [vmem:[#allocation8 + $0x2c] sm:$0xf]
    %v1253 = vld [vmem:[#allocation8 + $0x34] sm:$0xf]
    %v1254 = vld [vmem:[#allocation8 + $0x3c] sm:$0xf]
    %v1255 = vld [vmem:[#allocation8 + $0x44] sm:$0xf]
    %v1256 = vld [vmem:[#allocation8 + $0x4c] sm:$0xf]
    %v1257 = vld [vmem:[#allocation8 + $0x54] sm:$0xf]
    %v1258 = vld [vmem:[#allocation8 + $0x5c] sm:$0xf]
    %v1259 = vld [vmem:[#allocation8 + $0x64] sm:$0xf]
    %v1260 = vld [vmem:[#allocation8 + $0x6c] sm:$0xf]
    %v1261 = vld [vmem:[#allocation8 + $0x74] sm:$0xf]
    %v1262 = vld [vmem:[#allocation8 + $0x7c] sm:$0xf]
    %v1279 = vunpack.c.l.b16 %v1247
    %v1280 = vunpack.c.l.b16 %v1248
    %v1281 = vunpack.c.l.b16 %v1249
    %v1282 = vunpack.c.l.b16 %v1250
    %v1283 = vunpack.c.l.b16 %v1251
    %v1284 = vunpack.c.l.b16 %v1252
    %v1285 = vunpack.c.l.b16 %v1253
    %v1286 = vunpack.c.l.b16 %v1254
    %v1287 = vunpack.c.l.b16 %v1255
    %v1288 = vunpack.c.l.b16 %v1256
    %v1289 = vunpack.c.l.b16 %v1257
    %v1290 = vunpack.c.l.b16 %v1258
    %v1291 = vunpack.c.l.b16 %v1259
    %v1292 = vunpack.c.l.b16 %v1260
    %v1293 = vunpack.c.l.b16 %v1261
    %v1294 = vunpack.c.l.b16 %v1262
    %v1295 = vpack.c.b16 %v1280, %v1279
    %v1296 = vpack.c.b16 %v1282, %v1281
    %v1297 = vpack.c.b16 %v1284, %v1283
    %v1298 = vpack.c.b16 %v1286, %v1285
    %v1299 = vpack.c.b16 %v1288, %v1287
    %v1300 = vpack.c.b16 %v1290, %v1289
    %v1301 = vpack.c.b16 %v1292, %v1291
    %v1302 = vpack.c.b16 %v1294, %v1293
    %1311 = vmatprep.subr.bf16.mxu0 0
    %1312 = vmatpush1.bf16.msra.mxu0 %v1295
    %1313 = vmatprep.subr.bf16.mxu0 0
    %1314 = vmatpush1.bf16.msra.mxu0 %v1296
    %1315 = vmatprep.subr.bf16.mxu0 0
    %1316 = vmatpush1.bf16.msra.mxu0 %v1297
    %1317 = vmatprep.subr.bf16.mxu0 0
    %1318 = vmatpush1.bf16.msra.mxu0 %v1298
    %1319 = vmatprep.subr.bf16.mxu0 0
    %1320 = vmatpush1.bf16.msra.mxu0 %v1299
    %1321 = vmatprep.subr.bf16.mxu0 0
    %1322 = vmatpush1.bf16.msra.mxu0 %v1300
    %1323 = vmatprep.subr.bf16.mxu0 0
    %1324 = vmatpush1.bf16.msra.mxu0 %v1301
    %1325 = vmatprep.subr.bf16.mxu0 0
    %1326 = vmatpush1.bf16.msra.mxu0 %v1302
    %1327 = vmatprep.subr.bf16.mxu0 0
    %1328 = vmatpush1.bf16.msra.mxu0 0
    %1329 = vmatprep.subr.bf16.mxu0 0
    %1330 = vmatpush1.bf16.msra.mxu0 0
    %1331 = vmatprep.subr.bf16.mxu0 0
    %1332 = vmatpush1.bf16.msra.mxu0 0
    %1333 = vmatprep.subr.bf16.mxu0 0
    %1334 = vmatpush1.bf16.msra.mxu0 0
    %1335 = vmatprep.subr.bf16.mxu0 0
    %1336 = vmatpush1.bf16.msra.mxu0 0
    %1337 = vmatprep.subr.bf16.mxu0 0
    %1338 = vmatpush1.bf16.msra.mxu0 0
    %1339 = vmatprep.subr.bf16.mxu0 0
    %1340 = vmatpush1.bf16.msra.mxu0 0
    %1341 = vmatprep.subr.bf16.mxu0 0
    %1342 = vmatpush1.bf16.msra.mxu0 0
    %1343 = vmatprep.mubr.bf16.mxu0 0
    %1344 = vmatmul.mubr.bf16.gmra.mrb[0].mxu0 %v733
    %v1345 = vpop.f32.mrb[0].mxu0
    %v1346 = vadd.f32 0.0, %v1345
    %v1347 = vpop.f32.mrb[0].mxu0
    %v1348 = vpop.f32.mrb[0].mxu0
    %v1349 = vadd.f32 0.0, %v1348
    %v1350 = vpop.f32.mrb[0].mxu0
    %1351 = vmatprep.mubr.bf16.mxu0 0
    %1352 = vmatmul.mubr.bf16.gmra.mrb[0].mxu0 %v734
    %v1353 = vpop.f32.mrb[0].mxu0
    %v1354 = vadd.f32 0.0, %v1353
    %v1355 = vpop.f32.mrb[0].mxu0
    %v1356 = vpop.f32.mrb[0].mxu0
    %v1357 = vadd.f32 0.0, %v1356
    %v1358 = vpop.f32.mrb[0].mxu0
    %1359 = vmatprep.mubr.bf16.mxu0 0
    %1360 = vmatmul.mubr.bf16.gmra.mrb[0].mxu0 %v735
    %v1361 = vpop.f32.mrb[0].mxu0
    %v1362 = vadd.f32 0.0, %v1361
    %v1363 = vpop.f32.mrb[0].mxu0
    %v1364 = vpop.f32.mrb[0].mxu0
    %v1365 = vadd.f32 0.0, %v1364
    %v1366 = vpop.f32.mrb[0].mxu0
    %1367 = vmatprep.mubr.bf16.mxu0 0
    %1368 = vmatmul.mubr.bf16.gmra.mrb[0].mxu0 %v736
    %v1369 = vpop.f32.mrb[0].mxu0
    %v1370 = vadd.f32 0.0, %v1369
    %v1371 = vpop.f32.mrb[0].mxu0
    %v1372 = vpop.f32.mrb[0].mxu0
    %v1373 = vadd.f32 0.0, %v1372
    %v1374 = vpop.f32.mrb[0].mxu0
    %1375 = vmatprep.mubr.bf16.mxu0 0
    %1376 = vmatmul.mubr.bf16.gmra.mrb[0].mxu0 %v737
    %v1377 = vpop.f32.mrb[0].mxu0
    %v1378 = vadd.f32 0.0, %v1377
    %v1379 = vpop.f32.mrb[0].mxu0
    %v1380 = vpop.f32.mrb[0].mxu0
    %v1381 = vadd.f32 0.0, %v1380
    %v1382 = vpop.f32.mrb[0].mxu0
    %1383 = vmatprep.mubr.bf16.mxu0 0
    %1384 = vmatmul.mubr.bf16.gmra.mrb[0].mxu0 %v738
    %v1385 = vpop.f32.mrb[0].mxu0
    %v1386 = vadd.f32 0.0, %v1385
    %v1387 = vpop.f32.mrb[0].mxu0
    %v1388 = vpop.f32.mrb[0].mxu0
    %v1389 = vadd.f32 0.0, %v1388
    %v1390 = vpop.f32.mrb[0].mxu0
    %1391 = vmatprep.mubr.bf16.mxu0 0
    %1392 = vmatmul.mubr.bf16.gmra.mrb[0].mxu0 %v739
    %v1393 = vpop.f32.mrb[0].mxu0
    %v1394 = vadd.f32 0.0, %v1393
    %v1395 = vpop.f32.mrb[0].mxu0
    %v1396 = vpop.f32.mrb[0].mxu0
    %v1397 = vadd.f32 0.0, %v1396
    %v1398 = vpop.f32.mrb[0].mxu0
    %1399 = vmatprep.mubr.bf16.mxu0 0
    %1400 = vmatmul.mubr.bf16.gmra.mrb[0].mxu0 %v740
    %v1401 = vpop.f32.mrb[0].mxu0
    %v1402 = vadd.f32 0.0, %v1401
    %v1403 = vpop.f32.mrb[0].mxu0
    %v1404 = vpop.f32.mrb[0].mxu0
    %v1405 = vadd.f32 0.0, %v1404
    %v1406 = vpop.f32.mrb[0].mxu0
    %1407 = vmatprep.mubr.bf16.mxu0 0
    %1408 = vmatmul.mubr.bf16.gmra.mrb[0].mxu0 %v741
    %v1409 = vpop.f32.mrb[0].mxu0
    %v1410 = vadd.f32 0.0, %v1409
    %v1411 = vpop.f32.mrb[0].mxu0
    %v1412 = vpop.f32.mrb[0].mxu0
    %v1413 = vadd.f32 0.0, %v1412
    %v1414 = vpop.f32.mrb[0].mxu0
    %1415 = vmatprep.mubr.bf16.mxu0 0
    %1416 = vmatmul.mubr.bf16.gmra.mrb[0].mxu0 %v742
    %v1417 = vpop.f32.mrb[0].mxu0
    %v1418 = vadd.f32 0.0, %v1417
    %v1419 = vpop.f32.mrb[0].mxu0
    %v1420 = vpop.f32.mrb[0].mxu0
    %v1421 = vadd.f32 0.0, %v1420
    %v1422 = vpop.f32.mrb[0].mxu0
    %1423 = vmatprep.mubr.bf16.mxu0 0
    %1424 = vmatmul.mubr.bf16.gmra.mrb[0].mxu0 %v743
    %v1425 = vpop.f32.mrb[0].mxu0
    %v1426 = vadd.f32 0.0, %v1425
    %v1427 = vpop.f32.mrb[0].mxu0
    %v1428 = vpop.f32.mrb[0].mxu0
    %v1429 = vadd.f32 0.0, %v1428
    %v1430 = vpop.f32.mrb[0].mxu0
    %1431 = vmatprep.mubr.bf16.mxu0 0
    %1432 = vmatmul.mubr.bf16.gmra.mrb[0].mxu0 %v744
    %v1433 = vpop.f32.mrb[0].mxu0
    %v1434 = vadd.f32 0.0, %v1433
    %v1435 = vpop.f32.mrb[0].mxu0
    %v1436 = vpop.f32.mrb[0].mxu0
    %v1437 = vadd.f32 0.0, %v1436
    %v1438 = vpop.f32.mrb[0].mxu0
    %1439 = vmatprep.mubr.bf16.mxu0 0
    %1440 = vmatmul.mubr.bf16.gmra.mrb[0].mxu0 %v745
    %v1441 = vpop.f32.mrb[0].mxu0
    %v1442 = vadd.f32 0.0, %v1441
    %v1443 = vpop.f32.mrb[0].mxu0
    %v1444 = vpop.f32.mrb[0].mxu0
    %v1445 = vadd.f32 0.0, %v1444
    %v1446 = vpop.f32.mrb[0].mxu0
    %1447 = vmatprep.mubr.bf16.mxu0 0
    %1448 = vmatmul.mubr.bf16.gmra.mrb[0].mxu0 %v746
    %v1449 = vpop.f32.mrb[0].mxu0
    %v1450 = vadd.f32 0.0, %v1449
    %v1451 = vpop.f32.mrb[0].mxu0
    %v1452 = vpop.f32.mrb[0].mxu0
    %v1453 = vadd.f32 0.0, %v1452
    %v1454 = vpop.f32.mrb[0].mxu0
    %1455 = vmatprep.mubr.bf16.mxu0 0
    %1456 = vmatmul.mubr.bf16.gmra.mrb[0].mxu0 %v747
    %v1457 = vpop.f32.mrb[0].mxu0
    %v1458 = vadd.f32 0.0, %v1457
    %v1459 = vpop.f32.mrb[0].mxu0
    %v1460 = vpop.f32.mrb[0].mxu0
    %v1461 = vadd.f32 0.0, %v1460
    %v1462 = vpop.f32.mrb[0].mxu0
    %1463 = vmatprep.mubr.bf16.mxu0 0
    %1464 = vmatmul.mubr.bf16.gmra.mrb[0].mxu0 %v748
    %v1465 = vpop.f32.mrb[0].mxu0
    %v1466 = vadd.f32 0.0, %v1465
    %v1467 = vpop.f32.mrb[0].mxu0
    %v1468 = vpop.f32.mrb[0].mxu0
    %v1469 = vadd.f32 0.0, %v1468
    %v1470 = vpop.f32.mrb[0].mxu0
    %1471 = vdwg.mxu0
    %v1472 = vld [vmem:[%s5 + $0x1] sm:$0x1]
    %v1473 = vld [vmem:[%s6 + $0x1] sm:$0x1]
    %v1474 = vadd.f32 %v1346, %v1349
    %v1475 = vadd.f32 %v1474, %v1354
    %v1476 = vadd.f32 %v1475, %v1357
    %v1477 = vadd.f32 %v1476, %v1362
    %v1478 = vadd.f32 %v1477, %v1365
    %v1479 = vadd.f32 %v1478, %v1370
    %v1480 = vadd.f32 %v1479, %v1373
    %v1481 = vadd.f32 %v1480, %v1378
    %v1482 = vadd.f32 %v1481, %v1381
    %v1483 = vadd.f32 %v1482, %v1386
    %v1484 = vadd.f32 %v1483, %v1389
    %v1485 = vadd.f32 %v1484, %v1394
    %v1486 = vadd.f32 %v1485, %v1397
    %v1487 = vadd.f32 %v1486, %v1402
    %v1488 = vadd.f32 %v1487, %v1405
    %v1489 = vadd.f32 %v1488, %v1410
    %v1490 = vadd.f32 %v1489, %v1413
    %v1491 = vadd.f32 %v1490, %v1418
    %v1492 = vadd.f32 %v1491, %v1421
    %v1493 = vadd.f32 %v1492, %v1426
    %v1494 = vadd.f32 %v1493, %v1429
    %v1495 = vadd.f32 %v1494, %v1434
    %v1496 = vadd.f32 %v1495, %v1437
    %v1497 = vadd.f32 %v1496, %v1442
    %v1498 = vadd.f32 %v1497, %v1445
    %v1499 = vadd.f32 %v1498, %v1450
    %v1500 = vadd.f32 %v1499, %v1453
    %v1501 = vadd.f32 %v1500, %v1458
    %v1502 = vadd.f32 %v1501, %v1461
    %v1503 = vadd.f32 %v1502, %v1466
    %v1504 = vadd.f32 %v1503, %v1469
    %v1505 = vrot.slane %v1504, 4
    %v1506 = vadd.f32 %v1504, %v1505
    %v1507 = vrot.slane %v1506, 2
    %v1508 = vadd.f32 %v1506, %v1507
    %v1509 = vrot.slane %v1508, 1
    %v1510 = vadd.f32 %v1508, %v1509
    %v1511 = vmul.f32 %v1510, 0.00390625
    %v1512 = vmul.f32 %v1346, %v1346
    %v1513 = vmul.f32 %v1349, %v1349
    %v1514 = vmul.f32 %v1354, %v1354
    %v1515 = vmul.f32 %v1357, %v1357
    %v1516 = vmul.f32 %v1362, %v1362
    %v1517 = vmul.f32 %v1365, %v1365
    %v1518 = vmul.f32 %v1370, %v1370
    %v1519 = vmul.f32 %v1373, %v1373
    %v1520 = vmul.f32 %v1378, %v1378
    %v1521 = vmul.f32 %v1381, %v1381
    %v1522 = vmul.f32 %v1386, %v1386
    %v1523 = vmul.f32 %v1389, %v1389
    %v1524 = vmul.f32 %v1394, %v1394
    %v1525 = vmul.f32 %v1397, %v1397
    %v1526 = vmul.f32 %v1402, %v1402
    %v1527 = vmul.f32 %v1405, %v1405
    %v1528 = vmul.f32 %v1410, %v1410
    %v1529 = vmul.f32 %v1413, %v1413
    %v1530 = vmul.f32 %v1418, %v1418
    %v1531 = vmul.f32 %v1421, %v1421
    %v1532 = vmul.f32 %v1426, %v1426
    %v1533 = vmul.f32 %v1429, %v1429
    %v1534 = vmul.f32 %v1434, %v1434
    %v1535 = vmul.f32 %v1437, %v1437
    %v1536 = vmul.f32 %v1442, %v1442
    %v1537 = vmul.f32 %v1445, %v1445
    %v1538 = vmul.f32 %v1450, %v1450
    %v1539 = vmul.f32 %v1453, %v1453
    %v1540 = vmul.f32 %v1458, %v1458
    %v1541 = vmul.f32 %v1461, %v1461
    %v1542 = vmul.f32 %v1466, %v1466
    %v1543 = vmul.f32 %v1469, %v1469
    %v1544 = vadd.f32 %v1512, %v1513
    %v1545 = vadd.f32 %v1544, %v1514
    %v1546 = vadd.f32 %v1545, %v1515
    %v1547 = vadd.f32 %v1546, %v1516
    %v1548 = vadd.f32 %v1547, %v1517
    %v1549 = vadd.f32 %v1548, %v1518
    %v1550 = vadd.f32 %v1549, %v1519
    %v1551 = vadd.f32 %v1550, %v1520
    %v1552 = vadd.f32 %v1551, %v1521
    %v1553 = vadd.f32 %v1552, %v1522
    %v1554 = vadd.f32 %v1553, %v1523
    %v1555 = vadd.f32 %v1554, %v1524
    %v1556 = vadd.f32 %v1555, %v1525
    %v1557 = vadd.f32 %v1556, %v1526
    %v1558 = vadd.f32 %v1557, %v1527
    %v1559 = vadd.f32 %v1558, %v1528
    %v1560 = vadd.f32 %v1559, %v1529
    %v1561 = vadd.f32 %v1560, %v1530
    %v1562 = vadd.f32 %v1561, %v1531
    %v1563 = vadd.f32 %v1562, %v1532
    %v1564 = vadd.f32 %v1563, %v1533
    %v1565 = vadd.f32 %v1564, %v1534
    %v1566 = vadd.f32 %v1565, %v1535
    %v1567 = vadd.f32 %v1566, %v1536
    %v1568 = vadd.f32 %v1567, %v1537
    %v1569 = vadd.f32 %v1568, %v1538
    %v1570 = vadd.f32 %v1569, %v1539
    %v1571 = vadd.f32 %v1570, %v1540
    %v1572 = vadd.f32 %v1571, %v1541
    %v1573 = vadd.f32 %v1572, %v1542
    %v1574 = vadd.f32 %v1573, %v1543
    %v1575 = vrot.slane %v1574, 4
    %v1576 = vadd.f32 %v1574, %v1575
    %v1577 = vrot.slane %v1576, 2
    %v1578 = vadd.f32 %v1576, %v1577
    %v1579 = vrot.slane %v1578, 1
    %v1580 = vadd.f32 %v1578, %v1579
    %v1581 = vmul.f32 %v1580, 0.00390625
    %v1582 = vmul.f32 %v1511, %v1511
    %v1583 = vsub.f32 %v1581, %v1582
    %v1584 = vadd.f32 %v1583, 1e-05
    %v1585 = vrsqrt.pop %v1584
    %v1586 = vmul.f32 %v1472, %v1585
    %v1587 = vmul.f32 %v1511, %v1586
    %v1588 = vsub.f32 %v1473, %v1587
    %v1590 = vlaneseq
    %v1591 = vshrl.u32 %v1590, 7
    %v1592 = vsub.s32 0, %v1591
    %v1593 = vrot.slane %v1586, %v1592
    %v1595 = vmul.f32 %v1346, %v1593
    %v1596 = vmul.f32 %v1349, %v1593
    %v1597 = vmul.f32 %v1354, %v1593
    %v1598 = vmul.f32 %v1357, %v1593
    %v1599 = vmul.f32 %v1362, %v1593
    %v1600 = vmul.f32 %v1365, %v1593
    %v1601 = vmul.f32 %v1370, %v1593
    %v1602 = vmul.f32 %v1373, %v1593
    %v1603 = vmul.f32 %v1378, %v1593
    %v1604 = vmul.f32 %v1381, %v1593
    %v1605 = vmul.f32 %v1386, %v1593
    %v1606 = vmul.f32 %v1389, %v1593
    %v1607 = vmul.f32 %v1394, %v1593
    %v1608 = vmul.f32 %v1397, %v1593
    %v1609 = vmul.f32 %v1402, %v1593
    %v1610 = vmul.f32 %v1405, %v1593
    %v1611 = vmul.f32 %v1410, %v1593
    %v1612 = vmul.f32 %v1413, %v1593
    %v1613 = vmul.f32 %v1418, %v1593
    %v1614 = vmul.f32 %v1421, %v1593
    %v1615 = vmul.f32 %v1426, %v1593
    %v1616 = vmul.f32 %v1429, %v1593
    %v1617 = vmul.f32 %v1434, %v1593
    %v1618 = vmul.f32 %v1437, %v1593
    %v1619 = vmul.f32 %v1442, %v1593
    %v1620 = vmul.f32 %v1445, %v1593
    %v1621 = vmul.f32 %v1450, %v1593
    %v1622 = vmul.f32 %v1453, %v1593
    %v1623 = vmul.f32 %v1458, %v1593
    %v1624 = vmul.f32 %v1461, %v1593
    %v1625 = vmul.f32 %v1466, %v1593
    %v1626 = vmul.f32 %v1469, %v1593
    %v1628 = vlaneseq
    %v1629 = vshrl.u32 %v1628, 7
    %v1630 = vsub.s32 0, %v1629
    %v1631 = vrot.slane %v1588, %v1630
    %v1633 = vadd.f32 %v1595, %v1631
    %v1634 = vadd.f32 %v1596, %v1631
    %v1635 = vadd.f32 %v1597, %v1631
    %v1636 = vadd.f32 %v1598, %v1631
    %v1637 = vadd.f32 %v1599, %v1631
    %v1638 = vadd.f32 %v1600, %v1631
    %v1639 = vadd.f32 %v1601, %v1631
    %v1640 = vadd.f32 %v1602, %v1631
    %v1641 = vadd.f32 %v1603, %v1631
    %v1642 = vadd.f32 %v1604, %v1631
    %v1643 = vadd.f32 %v1605, %v1631
    %v1644 = vadd.f32 %v1606, %v1631
    %v1645 = vadd.f32 %v1607, %v1631
    %v1646 = vadd.f32 %v1608, %v1631
    %v1647 = vadd.f32 %v1609, %v1631
    %v1648 = vadd.f32 %v1610, %v1631
    %v1649 = vadd.f32 %v1611, %v1631
    %v1650 = vadd.f32 %v1612, %v1631
    %v1651 = vadd.f32 %v1613, %v1631
    %v1652 = vadd.f32 %v1614, %v1631
    %v1653 = vadd.f32 %v1615, %v1631
    %v1654 = vadd.f32 %v1616, %v1631
    %v1655 = vadd.f32 %v1617, %v1631
    %v1656 = vadd.f32 %v1618, %v1631
    %v1657 = vadd.f32 %v1619, %v1631
    %v1658 = vadd.f32 %v1620, %v1631
    %v1659 = vadd.f32 %v1621, %v1631
    %v1660 = vadd.f32 %v1622, %v1631
    %v1661 = vadd.f32 %v1623, %v1631
    %v1662 = vadd.f32 %v1624, %v1631
    %v1663 = vadd.f32 %v1625, %v1631
    %v1664 = vadd.f32 %v1626, %v1631
    %v1665 = vmul.f32 %v1633, 0.2
    %v1666 = vmul.f32 %v1634, 0.2
    %v1667 = vmul.f32 %v1635, 0.2
    %v1668 = vmul.f32 %v1636, 0.2
    %v1669 = vmul.f32 %v1637, 0.2
    %v1670 = vmul.f32 %v1638, 0.2
    %v1671 = vmul.f32 %v1639, 0.2
    %v1672 = vmul.f32 %v1640, 0.2
    %v1673 = vmul.f32 %v1641, 0.2
    %v1674 = vmul.f32 %v1642, 0.2
    %v1675 = vmul.f32 %v1643, 0.2
    %v1676 = vmul.f32 %v1644, 0.2
    %v1677 = vmul.f32 %v1645, 0.2
    %v1678 = vmul.f32 %v1646, 0.2
    %v1679 = vmul.f32 %v1647, 0.2
    %v1680 = vmul.f32 %v1648, 0.2
    %v1681 = vmul.f32 %v1649, 0.2
    %v1682 = vmul.f32 %v1650, 0.2
    %v1683 = vmul.f32 %v1651, 0.2
    %v1684 = vmul.f32 %v1652, 0.2
    %v1685 = vmul.f32 %v1653, 0.2
    %v1686 = vmul.f32 %v1654, 0.2
    %v1687 = vmul.f32 %v1655, 0.2
    %v1688 = vmul.f32 %v1656, 0.2
    %v1689 = vmul.f32 %v1657, 0.2
    %v1690 = vmul.f32 %v1658, 0.2
    %v1691 = vmul.f32 %v1659, 0.2
    %v1692 = vmul.f32 %v1660, 0.2
    %v1693 = vmul.f32 %v1661, 0.2
    %v1694 = vmul.f32 %v1662, 0.2
    %v1695 = vmul.f32 %v1663, 0.2
    %v1696 = vmul.f32 %v1664, 0.2
    %v1697 = vmax.f32 %v1633, %v1665
    %v1698 = vmax.f32 %v1634, %v1666
    %v1699 = vmax.f32 %v1635, %v1667
    %v1700 = vmax.f32 %v1636, %v1668
    %v1701 = vmax.f32 %v1637, %v1669
    %v1702 = vmax.f32 %v1638, %v1670
    %v1703 = vmax.f32 %v1639, %v1671
    %v1704 = vmax.f32 %v1640, %v1672
    %v1705 = vmax.f32 %v1641, %v1673
    %v1706 = vmax.f32 %v1642, %v1674
    %v1707 = vmax.f32 %v1643, %v1675
    %v1708 = vmax.f32 %v1644, %v1676
    %v1709 = vmax.f32 %v1645, %v1677
    %v1710 = vmax.f32 %v1646, %v1678
    %v1711 = vmax.f32 %v1647, %v1679
    %v1712 = vmax.f32 %v1648, %v1680
    %v1713 = vmax.f32 %v1649, %v1681
    %v1714 = vmax.f32 %v1650, %v1682
    %v1715 = vmax.f32 %v1651, %v1683
    %v1716 = vmax.f32 %v1652, %v1684
    %v1717 = vmax.f32 %v1653, %v1685
    %v1718 = vmax.f32 %v1654, %v1686
    %v1719 = vmax.f32 %v1655, %v1687
    %v1720 = vmax.f32 %v1656, %v1688
    %v1721 = vmax.f32 %v1657, %v1689
    %v1722 = vmax.f32 %v1658, %v1690
    %v1723 = vmax.f32 %v1659, %v1691
    %v1724 = vmax.f32 %v1660, %v1692
    %v1725 = vmax.f32 %v1661, %v1693
    %v1726 = vmax.f32 %v1662, %v1694
    %v1727 = vmax.f32 %v1663, %v1695
    %v1728 = vmax.f32 %v1664, %v1696
    %v1729 = vpack.c.bf16 %v1698, %v1697
    %v1730 = vpack.c.bf16 %v1700, %v1699
    %v1731 = vpack.c.bf16 %v1702, %v1701
    %v1732 = vpack.c.bf16 %v1704, %v1703
    %v1733 = vpack.c.bf16 %v1706, %v1705
    %v1734 = vpack.c.bf16 %v1708, %v1707
    %v1735 = vpack.c.bf16 %v1710, %v1709
    %v1736 = vpack.c.bf16 %v1712, %v1711
    %v1737 = vpack.c.bf16 %v1714, %v1713
    %v1738 = vpack.c.bf16 %v1716, %v1715
    %v1739 = vpack.c.bf16 %v1718, %v1717
    %v1740 = vpack.c.bf16 %v1720, %v1719
    %v1741 = vpack.c.bf16 %v1722, %v1721
    %v1742 = vpack.c.bf16 %v1724, %v1723
    %v1743 = vpack.c.bf16 %v1726, %v1725
    %v1744 = vpack.c.bf16 %v1728, %v1727
    %v1745 = vld [vmem:[%s11] sm:$0x1]
    %v1747 = vlaneseq
    %v1748 = vshrl.u32 %v1747, 7
    %v1749 = vsub.s32 0, %v1748
    %v1750 = vrot.slane %v1745, %v1749
    %1752 = vst [vmem:[#allocation13] sm:$0xff] %v1750
    %1753 = vst [vmem:[#allocation13 + $0x8] sm:$0xff] %v1750
    %1754 = vst [vmem:[#allocation13 + $0x10] sm:$0xff] %v1750
    %1755 = vst [vmem:[#allocation13 + $0x18] sm:$0xff] %v1750
    %1756 = vst [vmem:[#allocation13 + $0x20] sm:$0xff] %v1750
    %1757 = vst [vmem:[#allocation13 + $0x28] sm:$0xff] %v1750
    %1758 = vst [vmem:[#allocation13 + $0x30] sm:$0xff] %v1750
    %1759 = vst [vmem:[#allocation13 + $0x38] sm:$0xff] %v1750
    %1760 = vst [vmem:[#allocation13 + $0x40] sm:$0xff] %v1750
    %1761 = vst [vmem:[#allocation13 + $0x48] sm:$0xff] %v1750
    %1762 = vst [vmem:[#allocation13 + $0x50] sm:$0xff] %v1750
    %1763 = vst [vmem:[#allocation13 + $0x58] sm:$0xff] %v1750
    %1764 = vst [vmem:[#allocation13 + $0x60] sm:$0xff] %v1750
    %1765 = vst [vmem:[#allocation13 + $0x68] sm:$0xff] %v1750
    %1766 = vst [vmem:[#allocation13 + $0x70] sm:$0xff] %v1750
    %1767 = vst [vmem:[#allocation13 + $0x78] sm:$0xff] %v1750
    %1768 = vst [vmem:[#allocation13 + $0x80] sm:$0xff] %v1750
    %1769 = vst [vmem:[#allocation13 + $0x88] sm:$0xff] %v1750
    %1770 = vst [vmem:[#allocation13 + $0x90] sm:$0xff] %v1750
    %1771 = vst [vmem:[#allocation13 + $0x98] sm:$0xff] %v1750
    %1772 = vst [vmem:[#allocation13 + $0xa0] sm:$0xff] %v1750
    %1773 = vst [vmem:[#allocation13 + $0xa8] sm:$0xff] %v1750
    %1774 = vst [vmem:[#allocation13 + $0xb0] sm:$0xff] %v1750
    %1775 = vst [vmem:[#allocation13 + $0xb8] sm:$0xff] %v1750
    %1776 = vst [vmem:[#allocation13 + $0xc0] sm:$0xff] %v1750
    %1777 = vst [vmem:[#allocation13 + $0xc8] sm:$0xff] %v1750
    %1778 = vst [vmem:[#allocation13 + $0xd0] sm:$0xff] %v1750
    %1779 = vst [vmem:[#allocation13 + $0xd8] sm:$0xff] %v1750
    %1780 = vst [vmem:[#allocation13 + $0xe0] sm:$0xff] %v1750
    %1781 = vst [vmem:[#allocation13 + $0xe8] sm:$0xff] %v1750
    %1782 = vst [vmem:[#allocation13 + $0xf0] sm:$0xff] %v1750
    %1783 = vst [vmem:[#allocation13 + $0xf8] sm:$0xff] %v1750
    %v1784 = vld [vmem:[#allocation10] sm:$0xf]
    %v1785 = vld [vmem:[#allocation10 + $0x10] sm:$0xf]
    %v1786 = vld [vmem:[#allocation10 + $0x20] sm:$0xf]
    %v1787 = vld [vmem:[#allocation10 + $0x30] sm:$0xf]
    %v1788 = vld [vmem:[#allocation10 + $0x40] sm:$0xf]
    %v1789 = vld [vmem:[#allocation10 + $0x50] sm:$0xf]
    %v1790 = vld [vmem:[#allocation10 + $0x60] sm:$0xf]
    %v1791 = vld [vmem:[#allocation10 + $0x70] sm:$0xf]
    %v1792 = vld [vmem:[#allocation10 + $0x80] sm:$0xf]
    %v1793 = vld [vmem:[#allocation10 + $0x90] sm:$0xf]
    %v1794 = vld [vmem:[#allocation10 + $0xa0] sm:$0xf]
    %v1795 = vld [vmem:[#allocation10 + $0xb0] sm:$0xf]
    %v1796 = vld [vmem:[#allocation10 + $0xc0] sm:$0xf]
    %v1797 = vld [vmem:[#allocation10 + $0xd0] sm:$0xf]
    %v1798 = vld [vmem:[#allocation10 + $0xe0] sm:$0xf]
    %v1799 = vld [vmem:[#allocation10 + $0xf0] sm:$0xf]
    %v1800 = vld [vmem:[#allocation10 + $0x100] sm:$0xf]
    %v1801 = vld [vmem:[#allocation10 + $0x110] sm:$0xf]
    %v1802 = vld [vmem:[#allocation10 + $0x120] sm:$0xf]
    %v1803 = vld [vmem:[#allocation10 + $0x130] sm:$0xf]
    %v1804 = vld [vmem:[#allocation10 + $0x140] sm:$0xf]
    %v1805 = vld [vmem:[#allocation10 + $0x150] sm:$0xf]
    %v1806 = vld [vmem:[#allocation10 + $0x160] sm:$0xf]
    %v1807 = vld [vmem:[#allocation10 + $0x170] sm:$0xf]
    %v1808 = vld [vmem:[#allocation10 + $0x180] sm:$0xf]
    %v1809 = vld [vmem:[#allocation10 + $0x190] sm:$0xf]
    %v1810 = vld [vmem:[#allocation10 + $0x1a0] sm:$0xf]
    %v1811 = vld [vmem:[#allocation10 + $0x1b0] sm:$0xf]
    %v1812 = vld [vmem:[#allocation10 + $0x1c0] sm:$0xf]
    %v1813 = vld [vmem:[#allocation10 + $0x1d0] sm:$0xf]
    %v1814 = vld [vmem:[#allocation10 + $0x1e0] sm:$0xf]
    %v1815 = vld [vmem:[#allocation10 + $0x1f0] sm:$0xf]
    %v1832 = vunpack.c.l.b16 %v1800
    %v1833 = vunpack.c.l.b16 %v1801
    %v1834 = vunpack.c.l.b16 %v1802
    %v1835 = vunpack.c.l.b16 %v1803
    %v1836 = vunpack.c.l.b16 %v1804
    %v1837 = vunpack.c.l.b16 %v1805
    %v1838 = vunpack.c.l.b16 %v1806
    %v1839 = vunpack.c.l.b16 %v1807
    %v1840 = vunpack.c.l.b16 %v1808
    %v1841 = vunpack.c.l.b16 %v1809
    %v1842 = vunpack.c.l.b16 %v1810
    %v1843 = vunpack.c.l.b16 %v1811
    %v1844 = vunpack.c.l.b16 %v1812
    %v1845 = vunpack.c.l.b16 %v1813
    %v1846 = vunpack.c.l.b16 %v1814
    %v1847 = vunpack.c.l.b16 %v1815
    %v1848 = vpack.c.b16 %v1833, %v1832
    %v1849 = vpack.c.b16 %v1835, %v1834
    %v1850 = vpack.c.b16 %v1837, %v1836
    %v1851 = vpack.c.b16 %v1839, %v1838
    %v1852 = vpack.c.b16 %v1841, %v1840
    %v1853 = vpack.c.b16 %v1843, %v1842
    %v1854 = vpack.c.b16 %v1845, %v1844
    %v1855 = vpack.c.b16 %v1847, %v1846
    %1864 = vmatprep.subr.bf16.mxu0 0
    %1865 = vmatpush1.bf16.msra.mxu0 %v1848
    %1866 = vmatprep.subr.bf16.mxu0 0
    %1867 = vmatpush1.bf16.msra.mxu0 %v1849
    %1868 = vmatprep.subr.bf16.mxu0 0
    %1869 = vmatpush1.bf16.msra.mxu0 %v1850
    %1870 = vmatprep.subr.bf16.mxu0 0
    %1871 = vmatpush1.bf16.msra.mxu0 %v1851
    %1872 = vmatprep.subr.bf16.mxu0 0
    %1873 = vmatpush1.bf16.msra.mxu0 %v1852
    %1874 = vmatprep.subr.bf16.mxu0 0
    %1875 = vmatpush1.bf16.msra.mxu0 %v1853
    %1876 = vmatprep.subr.bf16.mxu0 0
    %1877 = vmatpush1.bf16.msra.mxu0 %v1854
    %1878 = vmatprep.subr.bf16.mxu0 0
    %1879 = vmatpush1.bf16.msra.mxu0 %v1855
    %1880 = vmatprep.subr.bf16.mxu0 0
    %1881 = vmatpush1.bf16.msra.mxu0 0
    %1882 = vmatprep.subr.bf16.mxu0 0
    %1883 = vmatpush1.bf16.msra.mxu0 0
    %1884 = vmatprep.subr.bf16.mxu0 0
    %1885 = vmatpush1.bf16.msra.mxu0 0
    %1886 = vmatprep.subr.bf16.mxu0 0
    %1887 = vmatpush1.bf16.msra.mxu0 0
    %1888 = vmatprep.subr.bf16.mxu0 0
    %1889 = vmatpush1.bf16.msra.mxu0 0
    %1890 = vmatprep.subr.bf16.mxu0 0
    %1891 = vmatpush1.bf16.msra.mxu0 0
    %1892 = vmatprep.subr.bf16.mxu0 0
    %1893 = vmatpush1.bf16.msra.mxu0 0
    %1894 = vmatprep.subr.bf16.mxu0 0
    %1895 = vmatpush1.bf16.msra.mxu0 0
    %1896 = vmatprep.mubr.bf16.mxu0 0
    %1897 = vmatmul.mubr.bf16.gmra.mrb[0].mxu0 %v1729
    %v1898 = vpop.f32.mrb[0].mxu0
    %v1899 = vadd.f32 0.0, %v1898
    %v1900 = vpop.f32.mrb[0].mxu0
    %v1901 = vpop.f32.mrb[0].mxu0
    %v1902 = vadd.f32 0.0, %v1901
    %v1903 = vpop.f32.mrb[0].mxu0
    %1904 = vmatprep.mubr.bf16.mxu0 0
    %1905 = vmatmul.mubr.bf16.gmra.mrb[0].mxu0 %v1730
    %v1906 = vpop.f32.mrb[0].mxu0
    %v1907 = vadd.f32 0.0, %v1906
    %v1908 = vpop.f32.mrb[0].mxu0
    %v1909 = vpop.f32.mrb[0].mxu0
    %v1910 = vadd.f32 0.0, %v1909
    %v1911 = vpop.f32.mrb[0].mxu0
    %1912 = vmatprep.mubr.bf16.mxu0 0
    %1913 = vmatmul.mubr.bf16.gmra.mrb[0].mxu0 %v1731
    %v1914 = vpop.f32.mrb[0].mxu0
    %v1915 = vadd.f32 0.0, %v1914
    %v1916 = vpop.f32.mrb[0].mxu0
    %v1917 = vpop.f32.mrb[0].mxu0
    %v1918 = vadd.f32 0.0, %v1917
    %v1919 = vpop.f32.mrb[0].mxu0
    %1920 = vmatprep.mubr.bf16.mxu0 0
    %1921 = vmatmul.mubr.bf16.gmra.mrb[0].mxu0 %v1732
    %v1922 = vpop.f32.mrb[0].mxu0
    %v1923 = vadd.f32 0.0, %v1922
    %v1924 = vpop.f32.mrb[0].mxu0
    %v1925 = vpop.f32.mrb[0].mxu0
    %v1926 = vadd.f32 0.0, %v1925
    %v1927 = vpop.f32.mrb[0].mxu0
    %1928 = vmatprep.mubr.bf16.mxu0 0
    %1929 = vmatmul.mubr.bf16.gmra.mrb[0].mxu0 %v1733
    %v1930 = vpop.f32.mrb[0].mxu0
    %v1931 = vadd.f32 0.0, %v1930
    %v1932 = vpop.f32.mrb[0].mxu0
    %v1933 = vpop.f32.mrb[0].mxu0
    %v1934 = vadd.f32 0.0, %v1933
    %v1935 = vpop.f32.mrb[0].mxu0
    %1936 = vmatprep.mubr.bf16.mxu0 0
    %1937 = vmatmul.mubr.bf16.gmra.mrb[0].mxu0 %v1734
    %v1938 = vpop.f32.mrb[0].mxu0
    %v1939 = vadd.f32 0.0, %v1938
    %v1940 = vpop.f32.mrb[0].mxu0
    %v1941 = vpop.f32.mrb[0].mxu0
    %v1942 = vadd.f32 0.0, %v1941
    %v1943 = vpop.f32.mrb[0].mxu0
    %1944 = vmatprep.mubr.bf16.mxu0 0
    %1945 = vmatmul.mubr.bf16.gmra.mrb[0].mxu0 %v1735
    %v1946 = vpop.f32.mrb[0].mxu0
    %v1947 = vadd.f32 0.0, %v1946
    %v1948 = vpop.f32.mrb[0].mxu0
    %v1949 = vpop.f32.mrb[0].mxu0
    %v1950 = vadd.f32 0.0, %v1949
    %v1951 = vpop.f32.mrb[0].mxu0
    %1952 = vmatprep.mubr.bf16.mxu0 0
    %1953 = vmatmul.mubr.bf16.gmra.mrb[0].mxu0 %v1736
    %v1954 = vpop.f32.mrb[0].mxu0
    %v1955 = vadd.f32 0.0, %v1954
    %v1956 = vpop.f32.mrb[0].mxu0
    %v1957 = vpop.f32.mrb[0].mxu0
    %v1958 = vadd.f32 0.0, %v1957
    %v1959 = vpop.f32.mrb[0].mxu0
    %1960 = vmatprep.mubr.bf16.mxu0 0
    %1961 = vmatmul.mubr.bf16.gmra.mrb[0].mxu0 %v1737
    %v1962 = vpop.f32.mrb[0].mxu0
    %v1963 = vadd.f32 0.0, %v1962
    %v1964 = vpop.f32.mrb[0].mxu0
    %v1965 = vpop.f32.mrb[0].mxu0
    %v1966 = vadd.f32 0.0, %v1965
    %v1967 = vpop.f32.mrb[0].mxu0
    %1968 = vmatprep.mubr.bf16.mxu0 0
    %1969 = vmatmul.mubr.bf16.gmra.mrb[0].mxu0 %v1738
    %v1970 = vpop.f32.mrb[0].mxu0
    %v1971 = vadd.f32 0.0, %v1970
    %v1972 = vpop.f32.mrb[0].mxu0
    %v1973 = vpop.f32.mrb[0].mxu0
    %v1974 = vadd.f32 0.0, %v1973
    %v1975 = vpop.f32.mrb[0].mxu0
    %1976 = vmatprep.mubr.bf16.mxu0 0
    %1977 = vmatmul.mubr.bf16.gmra.mrb[0].mxu0 %v1739
    %v1978 = vpop.f32.mrb[0].mxu0
    %v1979 = vadd.f32 0.0, %v1978
    %v1980 = vpop.f32.mrb[0].mxu0
    %v1981 = vpop.f32.mrb[0].mxu0
    %v1982 = vadd.f32 0.0, %v1981
    %v1983 = vpop.f32.mrb[0].mxu0
    %1984 = vmatprep.mubr.bf16.mxu0 0
    %1985 = vmatmul.mubr.bf16.gmra.mrb[0].mxu0 %v1740
    %v1986 = vpop.f32.mrb[0].mxu0
    %v1987 = vadd.f32 0.0, %v1986
    %v1988 = vpop.f32.mrb[0].mxu0
    %v1989 = vpop.f32.mrb[0].mxu0
    %v1990 = vadd.f32 0.0, %v1989
    %v1991 = vpop.f32.mrb[0].mxu0
    %1992 = vmatprep.mubr.bf16.mxu0 0
    %1993 = vmatmul.mubr.bf16.gmra.mrb[0].mxu0 %v1741
    %v1994 = vpop.f32.mrb[0].mxu0
    %v1995 = vadd.f32 0.0, %v1994
    %v1996 = vpop.f32.mrb[0].mxu0
    %v1997 = vpop.f32.mrb[0].mxu0
    %v1998 = vadd.f32 0.0, %v1997
    %v1999 = vpop.f32.mrb[0].mxu0
    %2000 = vmatprep.mubr.bf16.mxu0 0
    %2001 = vmatmul.mubr.bf16.gmra.mrb[0].mxu0 %v1742
    %v2002 = vpop.f32.mrb[0].mxu0
    %v2003 = vadd.f32 0.0, %v2002
    %v2004 = vpop.f32.mrb[0].mxu0
    %v2005 = vpop.f32.mrb[0].mxu0
    %v2006 = vadd.f32 0.0, %v2005
    %v2007 = vpop.f32.mrb[0].mxu0
    %2008 = vmatprep.mubr.bf16.mxu0 0
    %2009 = vmatmul.mubr.bf16.gmra.mrb[0].mxu0 %v1743
    %v2010 = vpop.f32.mrb[0].mxu0
    %v2011 = vadd.f32 0.0, %v2010
    %v2012 = vpop.f32.mrb[0].mxu0
    %v2013 = vpop.f32.mrb[0].mxu0
    %v2014 = vadd.f32 0.0, %v2013
    %v2015 = vpop.f32.mrb[0].mxu0
    %2016 = vmatprep.mubr.bf16.mxu0 0
    %2017 = vmatmul.mubr.bf16.gmra.mrb[0].mxu0 %v1744
    %v2018 = vpop.f32.mrb[0].mxu0
    %v2019 = vadd.f32 0.0, %v2018
    %v2020 = vpop.f32.mrb[0].mxu0
    %v2021 = vpop.f32.mrb[0].mxu0
    %v2022 = vadd.f32 0.0, %v2021
    %v2023 = vpop.f32.mrb[0].mxu0
    %2024 = vdwg.mxu0
    %v2041 = vunpack.c.l.b16 %v1784
    %v2042 = vunpack.c.l.b16 %v1785
    %v2043 = vunpack.c.l.b16 %v1786
    %v2044 = vunpack.c.l.b16 %v1787
    %v2045 = vunpack.c.l.b16 %v1788
    %v2046 = vunpack.c.l.b16 %v1789
    %v2047 = vunpack.c.l.b16 %v1790
    %v2048 = vunpack.c.l.b16 %v1791
    %v2049 = vunpack.c.l.b16 %v1792
    %v2050 = vunpack.c.l.b16 %v1793
    %v2051 = vunpack.c.l.b16 %v1794
    %v2052 = vunpack.c.l.b16 %v1795
    %v2053 = vunpack.c.l.b16 %v1796
    %v2054 = vunpack.c.l.b16 %v1797
    %v2055 = vunpack.c.l.b16 %v1798
    %v2056 = vunpack.c.l.b16 %v1799
    %v2057 = vpack.c.b16 %v2042, %v2041
    %v2058 = vpack.c.b16 %v2044, %v2043
    %v2059 = vpack.c.b16 %v2046, %v2045
    %v2060 = vpack.c.b16 %v2048, %v2047
    %v2061 = vpack.c.b16 %v2050, %v2049
    %v2062 = vpack.c.b16 %v2052, %v2051
    %v2063 = vpack.c.b16 %v2054, %v2053
    %v2064 = vpack.c.b16 %v2056, %v2055
    %2073 = vmatprep.subr.bf16.mxu0 0
    %2074 = vmatpush1.bf16.msra.mxu0 %v2057
    %2075 = vmatprep.subr.bf16.mxu0 0
    %2076 = vmatpush1.bf16.msra.mxu0 %v2058
    %2077 = vmatprep.subr.bf16.mxu0 0
    %2078 = vmatpush1.bf16.msra.mxu0 %v2059
    %2079 = vmatprep.subr.bf16.mxu0 0
    %2080 = vmatpush1.bf16.msra.mxu0 %v2060
    %2081 = vmatprep.subr.bf16.mxu0 0
    %2082 = vmatpush1.bf16.msra.mxu0 %v2061
    %2083 = vmatprep.subr.bf16.mxu0 0
    %2084 = vmatpush1.bf16.msra.mxu0 %v2062
    %2085 = vmatprep.subr.bf16.mxu0 0
    %2086 = vmatpush1.bf16.msra.mxu0 %v2063
    %2087 = vmatprep.subr.bf16.mxu0 0
    %2088 = vmatpush1.bf16.msra.mxu0 %v2064
    %2089 = vmatprep.subr.bf16.mxu0 0
    %2090 = vmatpush1.bf16.msra.mxu0 0
    %2091 = vmatprep.subr.bf16.mxu0 0
    %2092 = vmatpush1.bf16.msra.mxu0 0
    %2093 = vmatprep.subr.bf16.mxu0 0
    %2094 = vmatpush1.bf16.msra.mxu0 0
    %2095 = vmatprep.subr.bf16.mxu0 0
    %2096 = vmatpush1.bf16.msra.mxu0 0
    %2097 = vmatprep.subr.bf16.mxu0 0
    %2098 = vmatpush1.bf16.msra.mxu0 0
    %2099 = vmatprep.subr.bf16.mxu0 0
    %2100 = vmatpush1.bf16.msra.mxu0 0
    %2101 = vmatprep.subr.bf16.mxu0 0
    %2102 = vmatpush1.bf16.msra.mxu0 0
    %2103 = vmatprep.subr.bf16.mxu0 0
    %2104 = vmatpush1.bf16.msra.mxu0 0
    %2105 = vmatprep.mubr.bf16.mxu0 0
    %2106 = vmatmul.mubr.bf16.gmra.mrb[0].mxu0 %v1231
    %v2107 = vpop.f32.mrb[0].mxu0
    %v2108 = vadd.f32 %v1899, %v2107
    %v2109 = vpop.f32.mrb[0].mxu0
    %v2110 = vpop.f32.mrb[0].mxu0
    %v2111 = vadd.f32 %v1902, %v2110
    %v2112 = vpop.f32.mrb[0].mxu0
    %2113 = vmatprep.mubr.bf16.mxu0 0
    %2114 = vmatmul.mubr.bf16.gmra.mrb[0].mxu0 %v1232
    %v2115 = vpop.f32.mrb[0].mxu0
    %v2116 = vadd.f32 %v1907, %v2115
    %v2117 = vpop.f32.mrb[0].mxu0
    %v2118 = vpop.f32.mrb[0].mxu0
    %v2119 = vadd.f32 %v1910, %v2118
    %v2120 = vpop.f32.mrb[0].mxu0
    %2121 = vmatprep.mubr.bf16.mxu0 0
    %2122 = vmatmul.mubr.bf16.gmra.mrb[0].mxu0 %v1233
    %v2123 = vpop.f32.mrb[0].mxu0
    %v2124 = vadd.f32 %v1915, %v2123
    %v2125 = vpop.f32.mrb[0].mxu0
    %v2126 = vpop.f32.mrb[0].mxu0
    %v2127 = vadd.f32 %v1918, %v2126
    %v2128 = vpop.f32.mrb[0].mxu0
    %2129 = vmatprep.mubr.bf16.mxu0 0
    %2130 = vmatmul.mubr.bf16.gmra.mrb[0].mxu0 %v1234
    %v2131 = vpop.f32.mrb[0].mxu0
    %v2132 = vadd.f32 %v1923, %v2131
    %v2133 = vpop.f32.mrb[0].mxu0
    %v2134 = vpop.f32.mrb[0].mxu0
    %v2135 = vadd.f32 %v1926, %v2134
    %v2136 = vpop.f32.mrb[0].mxu0
    %2137 = vmatprep.mubr.bf16.mxu0 0
    %2138 = vmatmul.mubr.bf16.gmra.mrb[0].mxu0 %v1235
    %v2139 = vpop.f32.mrb[0].mxu0
    %v2140 = vadd.f32 %v1931, %v2139
    %v2141 = vpop.f32.mrb[0].mxu0
    %v2142 = vpop.f32.mrb[0].mxu0
    %v2143 = vadd.f32 %v1934, %v2142
    %v2144 = vpop.f32.mrb[0].mxu0
    %2145 = vmatprep.mubr.bf16.mxu0 0
    %2146 = vmatmul.mubr.bf16.gmra.mrb[0].mxu0 %v1236
    %v2147 = vpop.f32.mrb[0].mxu0
    %v2148 = vadd.f32 %v1939, %v2147
    %v2149 = vpop.f32.mrb[0].mxu0
    %v2150 = vpop.f32.mrb[0].mxu0
    %v2151 = vadd.f32 %v1942, %v2150
    %v2152 = vpop.f32.mrb[0].mxu0
    %2153 = vmatprep.mubr.bf16.mxu0 0
    %2154 = vmatmul.mubr.bf16.gmra.mrb[0].mxu0 %v1237
    %v2155 = vpop.f32.mrb[0].mxu0
    %v2156 = vadd.f32 %v1947, %v2155
    %v2157 = vpop.f32.mrb[0].mxu0
    %v2158 = vpop.f32.mrb[0].mxu0
    %v2159 = vadd.f32 %v1950, %v2158
    %v2160 = vpop.f32.mrb[0].mxu0
    %2161 = vmatprep.mubr.bf16.mxu0 0
    %2162 = vmatmul.mubr.bf16.gmra.mrb[0].mxu0 %v1238
    %v2163 = vpop.f32.mrb[0].mxu0
    %v2164 = vadd.f32 %v1955, %v2163
    %v2165 = vpop.f32.mrb[0].mxu0
    %v2166 = vpop.f32.mrb[0].mxu0
    %v2167 = vadd.f32 %v1958, %v2166
    %v2168 = vpop.f32.mrb[0].mxu0
    %2169 = vmatprep.mubr.bf16.mxu0 0
    %2170 = vmatmul.mubr.bf16.gmra.mrb[0].mxu0 %v1239
    %v2171 = vpop.f32.mrb[0].mxu0
    %v2172 = vadd.f32 %v1963, %v2171
    %v2173 = vpop.f32.mrb[0].mxu0
    %v2174 = vpop.f32.mrb[0].mxu0
    %v2175 = vadd.f32 %v1966, %v2174
    %v2176 = vpop.f32.mrb[0].mxu0
    %2177 = vmatprep.mubr.bf16.mxu0 0
    %2178 = vmatmul.mubr.bf16.gmra.mrb[0].mxu0 %v1240
    %v2179 = vpop.f32.mrb[0].mxu0
    %v2180 = vadd.f32 %v1971, %v2179
    %v2181 = vpop.f32.mrb[0].mxu0
    %v2182 = vpop.f32.mrb[0].mxu0
    %v2183 = vadd.f32 %v1974, %v2182
    %v2184 = vpop.f32.mrb[0].mxu0
    %2185 = vmatprep.mubr.bf16.mxu0 0
    %2186 = vmatmul.mubr.bf16.gmra.mrb[0].mxu0 %v1241
    %v2187 = vpop.f32.mrb[0].mxu0
    %v2188 = vadd.f32 %v1979, %v2187
    %v2189 = vpop.f32.mrb[0].mxu0
    %v2190 = vpop.f32.mrb[0].mxu0
    %v2191 = vadd.f32 %v1982, %v2190
    %v2192 = vpop.f32.mrb[0].mxu0
    %2193 = vmatprep.mubr.bf16.mxu0 0
    %2194 = vmatmul.mubr.bf16.gmra.mrb[0].mxu0 %v1242
    %v2195 = vpop.f32.mrb[0].mxu0
    %v2196 = vadd.f32 %v1987, %v2195
    %v2197 = vpop.f32.mrb[0].mxu0
    %v2198 = vpop.f32.mrb[0].mxu0
    %v2199 = vadd.f32 %v1990, %v2198
    %v2200 = vpop.f32.mrb[0].mxu0
    %2201 = vmatprep.mubr.bf16.mxu0 0
    %2202 = vmatmul.mubr.bf16.gmra.mrb[0].mxu0 %v1243
    %v2203 = vpop.f32.mrb[0].mxu0
    %v2204 = vadd.f32 %v1995, %v2203
    %v2205 = vpop.f32.mrb[0].mxu0
    %v2206 = vpop.f32.mrb[0].mxu0
    %v2207 = vadd.f32 %v1998, %v2206
    %v2208 = vpop.f32.mrb[0].mxu0
    %2209 = vmatprep.mubr.bf16.mxu0 0
    %2210 = vmatmul.mubr.bf16.gmra.mrb[0].mxu0 %v1244
    %v2211 = vpop.f32.mrb[0].mxu0
    %v2212 = vadd.f32 %v2003, %v2211
    %v2213 = vpop.f32.mrb[0].mxu0
    %v2214 = vpop.f32.mrb[0].mxu0
    %v2215 = vadd.f32 %v2006, %v2214
    %v2216 = vpop.f32.mrb[0].mxu0
    %2217 = vmatprep.mubr.bf16.mxu0 0
    %2218 = vmatmul.mubr.bf16.gmra.mrb[0].mxu0 %v1245
    %v2219 = vpop.f32.mrb[0].mxu0
    %v2220 = vadd.f32 %v2011, %v2219
    %v2221 = vpop.f32.mrb[0].mxu0
    %v2222 = vpop.f32.mrb[0].mxu0
    %v2223 = vadd.f32 %v2014, %v2222
    %v2224 = vpop.f32.mrb[0].mxu0
    %2225 = vmatprep.mubr.bf16.mxu0 0
    %2226 = vmatmul.mubr.bf16.gmra.mrb[0].mxu0 %v1246
    %v2227 = vpop.f32.mrb[0].mxu0
    %v2228 = vadd.f32 %v2019, %v2227
    %v2229 = vpop.f32.mrb[0].mxu0
    %v2230 = vpop.f32.mrb[0].mxu0
    %v2231 = vadd.f32 %v2022, %v2230
    %v2232 = vpop.f32.mrb[0].mxu0
    %2233 = vdwg.mxu0
    %v2234 = vld [vmem:[%s8] sm:$0x1]
    %v2235 = vld [vmem:[%s9] sm:$0x1]
    %v2236 = vadd.f32 %v2108, %v2111
    %v2237 = vadd.f32 %v2236, %v2116
    %v2238 = vadd.f32 %v2237, %v2119
    %v2239 = vadd.f32 %v2238, %v2124
    %v2240 = vadd.f32 %v2239, %v2127
    %v2241 = vadd.f32 %v2240, %v2132
    %v2242 = vadd.f32 %v2241, %v2135
    %v2243 = vadd.f32 %v2242, %v2140
    %v2244 = vadd.f32 %v2243, %v2143
    %v2245 = vadd.f32 %v2244, %v2148
    %v2246 = vadd.f32 %v2245, %v2151
    %v2247 = vadd.f32 %v2246, %v2156
    %v2248 = vadd.f32 %v2247, %v2159
    %v2249 = vadd.f32 %v2248, %v2164
    %v2250 = vadd.f32 %v2249, %v2167
    %v2251 = vadd.f32 %v2250, %v2172
    %v2252 = vadd.f32 %v2251, %v2175
    %v2253 = vadd.f32 %v2252, %v2180
    %v2254 = vadd.f32 %v2253, %v2183
    %v2255 = vadd.f32 %v2254, %v2188
    %v2256 = vadd.f32 %v2255, %v2191
    %v2257 = vadd.f32 %v2256, %v2196
    %v2258 = vadd.f32 %v2257, %v2199
    %v2259 = vadd.f32 %v2258, %v2204
    %v2260 = vadd.f32 %v2259, %v2207
    %v2261 = vadd.f32 %v2260, %v2212
    %v2262 = vadd.f32 %v2261, %v2215
    %v2263 = vadd.f32 %v2262, %v2220
    %v2264 = vadd.f32 %v2263, %v2223
    %v2265 = vadd.f32 %v2264, %v2228
    %v2266 = vadd.f32 %v2265, %v2231
    %v2267 = vrot.slane %v2266, 4
    %v2268 = vadd.f32 %v2266, %v2267
    %v2269 = vrot.slane %v2268, 2
    %v2270 = vadd.f32 %v2268, %v2269
    %v2271 = vrot.slane %v2270, 1
    %v2272 = vadd.f32 %v2270, %v2271
    %v2273 = vmul.f32 %v2272, 0.00390625
    %v2274 = vmul.f32 %v2108, %v2108
    %v2275 = vmul.f32 %v2111, %v2111
    %v2276 = vmul.f32 %v2116, %v2116
    %v2277 = vmul.f32 %v2119, %v2119
    %v2278 = vmul.f32 %v2124, %v2124
    %v2279 = vmul.f32 %v2127, %v2127
    %v2280 = vmul.f32 %v2132, %v2132
    %v2281 = vmul.f32 %v2135, %v2135
    %v2282 = vmul.f32 %v2140, %v2140
    %v2283 = vmul.f32 %v2143, %v2143
    %v2284 = vmul.f32 %v2148, %v2148
    %v2285 = vmul.f32 %v2151, %v2151
    %v2286 = vmul.f32 %v2156, %v2156
    %v2287 = vmul.f32 %v2159, %v2159
    %v2288 = vmul.f32 %v2164, %v2164
    %v2289 = vmul.f32 %v2167, %v2167
    %v2290 = vmul.f32 %v2172, %v2172
    %v2291 = vmul.f32 %v2175, %v2175
    %v2292 = vmul.f32 %v2180, %v2180
    %v2293 = vmul.f32 %v2183, %v2183
    %v2294 = vmul.f32 %v2188, %v2188
    %v2295 = vmul.f32 %v2191, %v2191
    %v2296 = vmul.f32 %v2196, %v2196
    %v2297 = vmul.f32 %v2199, %v2199
    %v2298 = vmul.f32 %v2204, %v2204
    %v2299 = vmul.f32 %v2207, %v2207
    %v2300 = vmul.f32 %v2212, %v2212
    %v2301 = vmul.f32 %v2215, %v2215
    %v2302 = vmul.f32 %v2220, %v2220
    %v2303 = vmul.f32 %v2223, %v2223
    %v2304 = vmul.f32 %v2228, %v2228
    %v2305 = vmul.f32 %v2231, %v2231
    %v2306 = vadd.f32 %v2274, %v2275
    %v2307 = vadd.f32 %v2306, %v2276
    %v2308 = vadd.f32 %v2307, %v2277
    %v2309 = vadd.f32 %v2308, %v2278
    %v2310 = vadd.f32 %v2309, %v2279
    %v2311 = vadd.f32 %v2310, %v2280
    %v2312 = vadd.f32 %v2311, %v2281
    %v2313 = vadd.f32 %v2312, %v2282
    %v2314 = vadd.f32 %v2313, %v2283
    %v2315 = vadd.f32 %v2314, %v2284
    %v2316 = vadd.f32 %v2315, %v2285
    %v2317 = vadd.f32 %v2316, %v2286
    %v2318 = vadd.f32 %v2317, %v2287
    %v2319 = vadd.f32 %v2318, %v2288
    %v2320 = vadd.f32 %v2319, %v2289
    %v2321 = vadd.f32 %v2320, %v2290
    %v2322 = vadd.f32 %v2321, %v2291
    %v2323 = vadd.f32 %v2322, %v2292
    %v2324 = vadd.f32 %v2323, %v2293
    %v2325 = vadd.f32 %v2324, %v2294
    %v2326 = vadd.f32 %v2325, %v2295
    %v2327 = vadd.f32 %v2326, %v2296
    %v2328 = vadd.f32 %v2327, %v2297
    %v2329 = vadd.f32 %v2328, %v2298
    %v2330 = vadd.f32 %v2329, %v2299
    %v2331 = vadd.f32 %v2330, %v2300
    %v2332 = vadd.f32 %v2331, %v2301
    %v2333 = vadd.f32 %v2332, %v2302
    %v2334 = vadd.f32 %v2333, %v2303
    %v2335 = vadd.f32 %v2334, %v2304
    %v2336 = vadd.f32 %v2335, %v2305
    %v2337 = vrot.slane %v2336, 4
    %v2338 = vadd.f32 %v2336, %v2337
    %v2339 = vrot.slane %v2338, 2
    %v2340 = vadd.f32 %v2338, %v2339
    %v2341 = vrot.slane %v2340, 1
    %v2342 = vadd.f32 %v2340, %v2341
    %v2343 = vmul.f32 %v2342, 0.00390625
    %v2344 = vmul.f32 %v2273, %v2273
    %v2345 = vsub.f32 %v2343, %v2344
    %v2346 = vadd.f32 %v2345, 1e-05
    %v2347 = vrsqrt.pop %v2346
    %v2348 = vmul.f32 %v2234, %v2347
    %v2349 = vmul.f32 %v2273, %v2348
    %v2350 = vsub.f32 %v2235, %v2349
    %v2352 = vlaneseq
    %v2353 = vshrl.u32 %v2352, 7
    %v2354 = vsub.s32 0, %v2353
    %v2355 = vrot.slane %v2348, %v2354
    %v2357 = vmul.f32 %v2108, %v2355
    %v2358 = vmul.f32 %v2111, %v2355
    %v2359 = vmul.f32 %v2116, %v2355
    %v2360 = vmul.f32 %v2119, %v2355
    %v2361 = vmul.f32 %v2124, %v2355
    %v2362 = vmul.f32 %v2127, %v2355
    %v2363 = vmul.f32 %v2132, %v2355
    %v2364 = vmul.f32 %v2135, %v2355
    %v2365 = vmul.f32 %v2140, %v2355
    %v2366 = vmul.f32 %v2143, %v2355
    %v2367 = vmul.f32 %v2148, %v2355
    %v2368 = vmul.f32 %v2151, %v2355
    %v2369 = vmul.f32 %v2156, %v2355
    %v2370 = vmul.f32 %v2159, %v2355
    %v2371 = vmul.f32 %v2164, %v2355
    %v2372 = vmul.f32 %v2167, %v2355
    %v2373 = vmul.f32 %v2172, %v2355
    %v2374 = vmul.f32 %v2175, %v2355
    %v2375 = vmul.f32 %v2180, %v2355
    %v2376 = vmul.f32 %v2183, %v2355
    %v2377 = vmul.f32 %v2188, %v2355
    %v2378 = vmul.f32 %v2191, %v2355
    %v2379 = vmul.f32 %v2196, %v2355
    %v2380 = vmul.f32 %v2199, %v2355
    %v2381 = vmul.f32 %v2204, %v2355
    %v2382 = vmul.f32 %v2207, %v2355
    %v2383 = vmul.f32 %v2212, %v2355
    %v2384 = vmul.f32 %v2215, %v2355
    %v2385 = vmul.f32 %v2220, %v2355
    %v2386 = vmul.f32 %v2223, %v2355
    %v2387 = vmul.f32 %v2228, %v2355
    %v2388 = vmul.f32 %v2231, %v2355
    %v2390 = vlaneseq
    %v2391 = vshrl.u32 %v2390, 7
    %v2392 = vsub.s32 0, %v2391
    %v2393 = vrot.slane %v2350, %v2392
    %v2395 = vadd.f32 %v2357, %v2393
    %v2396 = vadd.f32 %v2358, %v2393
    %v2397 = vadd.f32 %v2359, %v2393
    %v2398 = vadd.f32 %v2360, %v2393
    %v2399 = vadd.f32 %v2361, %v2393
    %v2400 = vadd.f32 %v2362, %v2393
    %v2401 = vadd.f32 %v2363, %v2393
    %v2402 = vadd.f32 %v2364, %v2393
    %v2403 = vadd.f32 %v2365, %v2393
    %v2404 = vadd.f32 %v2366, %v2393
    %v2405 = vadd.f32 %v2367, %v2393
    %v2406 = vadd.f32 %v2368, %v2393
    %v2407 = vadd.f32 %v2369, %v2393
    %v2408 = vadd.f32 %v2370, %v2393
    %v2409 = vadd.f32 %v2371, %v2393
    %v2410 = vadd.f32 %v2372, %v2393
    %v2411 = vadd.f32 %v2373, %v2393
    %v2412 = vadd.f32 %v2374, %v2393
    %v2413 = vadd.f32 %v2375, %v2393
    %v2414 = vadd.f32 %v2376, %v2393
    %v2415 = vadd.f32 %v2377, %v2393
    %v2416 = vadd.f32 %v2378, %v2393
    %v2417 = vadd.f32 %v2379, %v2393
    %v2418 = vadd.f32 %v2380, %v2393
    %v2419 = vadd.f32 %v2381, %v2393
    %v2420 = vadd.f32 %v2382, %v2393
    %v2421 = vadd.f32 %v2383, %v2393
    %v2422 = vadd.f32 %v2384, %v2393
    %v2423 = vadd.f32 %v2385, %v2393
    %v2424 = vadd.f32 %v2386, %v2393
    %v2425 = vadd.f32 %v2387, %v2393
    %v2426 = vadd.f32 %v2388, %v2393
    %v2427 = vmul.f32 %v2395, 0.2
    %v2428 = vmul.f32 %v2396, 0.2
    %v2429 = vmul.f32 %v2397, 0.2
    %v2430 = vmul.f32 %v2398, 0.2
    %v2431 = vmul.f32 %v2399, 0.2
    %v2432 = vmul.f32 %v2400, 0.2
    %v2433 = vmul.f32 %v2401, 0.2
    %v2434 = vmul.f32 %v2402, 0.2
    %v2435 = vmul.f32 %v2403, 0.2
    %v2436 = vmul.f32 %v2404, 0.2
    %v2437 = vmul.f32 %v2405, 0.2
    %v2438 = vmul.f32 %v2406, 0.2
    %v2439 = vmul.f32 %v2407, 0.2
    %v2440 = vmul.f32 %v2408, 0.2
    %v2441 = vmul.f32 %v2409, 0.2
    %v2442 = vmul.f32 %v2410, 0.2
    %v2443 = vmul.f32 %v2411, 0.2
    %v2444 = vmul.f32 %v2412, 0.2
    %v2445 = vmul.f32 %v2413, 0.2
    %v2446 = vmul.f32 %v2414, 0.2
    %v2447 = vmul.f32 %v2415, 0.2
    %v2448 = vmul.f32 %v2416, 0.2
    %v2449 = vmul.f32 %v2417, 0.2
    %v2450 = vmul.f32 %v2418, 0.2
    %v2451 = vmul.f32 %v2419, 0.2
    %v2452 = vmul.f32 %v2420, 0.2
    %v2453 = vmul.f32 %v2421, 0.2
    %v2454 = vmul.f32 %v2422, 0.2
    %v2455 = vmul.f32 %v2423, 0.2
    %v2456 = vmul.f32 %v2424, 0.2
    %v2457 = vmul.f32 %v2425, 0.2
    %v2458 = vmul.f32 %v2426, 0.2
    %v2459 = vmax.f32 %v2395, %v2427
    %v2460 = vmax.f32 %v2396, %v2428
    %v2461 = vmax.f32 %v2397, %v2429
    %v2462 = vmax.f32 %v2398, %v2430
    %v2463 = vmax.f32 %v2399, %v2431
    %v2464 = vmax.f32 %v2400, %v2432
    %v2465 = vmax.f32 %v2401, %v2433
    %v2466 = vmax.f32 %v2402, %v2434
    %v2467 = vmax.f32 %v2403, %v2435
    %v2468 = vmax.f32 %v2404, %v2436
    %v2469 = vmax.f32 %v2405, %v2437
    %v2470 = vmax.f32 %v2406, %v2438
    %v2471 = vmax.f32 %v2407, %v2439
    %v2472 = vmax.f32 %v2408, %v2440
    %v2473 = vmax.f32 %v2409, %v2441
    %v2474 = vmax.f32 %v2410, %v2442
    %v2475 = vmax.f32 %v2411, %v2443
    %v2476 = vmax.f32 %v2412, %v2444
    %v2477 = vmax.f32 %v2413, %v2445
    %v2478 = vmax.f32 %v2414, %v2446
    %v2479 = vmax.f32 %v2415, %v2447
    %v2480 = vmax.f32 %v2416, %v2448
    %v2481 = vmax.f32 %v2417, %v2449
    %v2482 = vmax.f32 %v2418, %v2450
    %v2483 = vmax.f32 %v2419, %v2451
    %v2484 = vmax.f32 %v2420, %v2452
    %v2485 = vmax.f32 %v2421, %v2453
    %v2486 = vmax.f32 %v2422, %v2454
    %v2487 = vmax.f32 %v2423, %v2455
    %v2488 = vmax.f32 %v2424, %v2456
    %v2489 = vmax.f32 %v2425, %v2457
    %v2490 = vmax.f32 %v2426, %v2458
    %v2491 = vpack.c.bf16 %v2460, %v2459
    %v2492 = vpack.c.bf16 %v2462, %v2461
    %v2493 = vpack.c.bf16 %v2464, %v2463
    %v2494 = vpack.c.bf16 %v2466, %v2465
    %v2495 = vpack.c.bf16 %v2468, %v2467
    %v2496 = vpack.c.bf16 %v2470, %v2469
    %v2497 = vpack.c.bf16 %v2472, %v2471
    %v2498 = vpack.c.bf16 %v2474, %v2473
    %v2499 = vpack.c.bf16 %v2476, %v2475
    %v2500 = vpack.c.bf16 %v2478, %v2477
    %v2501 = vpack.c.bf16 %v2480, %v2479
    %v2502 = vpack.c.bf16 %v2482, %v2481
    %v2503 = vpack.c.bf16 %v2484, %v2483
    %v2504 = vpack.c.bf16 %v2486, %v2485
    %v2505 = vpack.c.bf16 %v2488, %v2487
    %v2506 = vpack.c.bf16 %v2490, %v2489
    %v2507 = vld [vmem:[#allocation13] sm:$0xff]
    %v2508 = vld [vmem:[#allocation13 + $0x8] sm:$0xff]
    %v2509 = vld [vmem:[#allocation13 + $0x10] sm:$0xff]
    %v2510 = vld [vmem:[#allocation13 + $0x18] sm:$0xff]
    %v2511 = vld [vmem:[#allocation13 + $0x20] sm:$0xff]
    %v2512 = vld [vmem:[#allocation13 + $0x28] sm:$0xff]
    %v2513 = vld [vmem:[#allocation13 + $0x30] sm:$0xff]
    %v2514 = vld [vmem:[#allocation13 + $0x38] sm:$0xff]
    %v2515 = vld [vmem:[#allocation13 + $0x40] sm:$0xff]
    %v2516 = vld [vmem:[#allocation13 + $0x48] sm:$0xff]
    %v2517 = vld [vmem:[#allocation13 + $0x50] sm:$0xff]
    %v2518 = vld [vmem:[#allocation13 + $0x58] sm:$0xff]
    %v2519 = vld [vmem:[#allocation13 + $0x60] sm:$0xff]
    %v2520 = vld [vmem:[#allocation13 + $0x68] sm:$0xff]
    %v2521 = vld [vmem:[#allocation13 + $0x70] sm:$0xff]
    %v2522 = vld [vmem:[#allocation13 + $0x78] sm:$0xff]
    %v2523 = vld [vmem:[#allocation13 + $0x80] sm:$0xff]
    %v2524 = vld [vmem:[#allocation13 + $0x88] sm:$0xff]
    %v2525 = vld [vmem:[#allocation13 + $0x90] sm:$0xff]
    %v2526 = vld [vmem:[#allocation13 + $0x98] sm:$0xff]
    %v2527 = vld [vmem:[#allocation13 + $0xa0] sm:$0xff]
    %v2528 = vld [vmem:[#allocation13 + $0xa8] sm:$0xff]
    %v2529 = vld [vmem:[#allocation13 + $0xb0] sm:$0xff]
    %v2530 = vld [vmem:[#allocation13 + $0xb8] sm:$0xff]
    %v2531 = vld [vmem:[#allocation13 + $0xc0] sm:$0xff]
    %v2532 = vld [vmem:[#allocation13 + $0xc8] sm:$0xff]
    %v2533 = vld [vmem:[#allocation13 + $0xd0] sm:$0xff]
    %v2534 = vld [vmem:[#allocation13 + $0xd8] sm:$0xff]
    %v2535 = vld [vmem:[#allocation13 + $0xe0] sm:$0xff]
    %v2536 = vld [vmem:[#allocation13 + $0xe8] sm:$0xff]
    %v2537 = vld [vmem:[#allocation13 + $0xf0] sm:$0xff]
    %v2538 = vld [vmem:[#allocation13 + $0xf8] sm:$0xff]
    %v2539 = vld [vmem:[#allocation11] sm:$0xf]
    %v2540 = vld [vmem:[#allocation11 + $0x4] sm:$0xf]
    %v2541 = vld [vmem:[#allocation11 + $0x8] sm:$0xf]
    %v2542 = vld [vmem:[#allocation11 + $0xc] sm:$0xf]
    %v2543 = vld [vmem:[#allocation11 + $0x10] sm:$0xf]
    %v2544 = vld [vmem:[#allocation11 + $0x14] sm:$0xf]
    %v2545 = vld [vmem:[#allocation11 + $0x18] sm:$0xf]
    %v2546 = vld [vmem:[#allocation11 + $0x1c] sm:$0xf]
    %v2547 = vld [vmem:[#allocation11 + $0x20] sm:$0xf]
    %v2548 = vld [vmem:[#allocation11 + $0x24] sm:$0xf]
    %v2549 = vld [vmem:[#allocation11 + $0x28] sm:$0xf]
    %v2550 = vld [vmem:[#allocation11 + $0x2c] sm:$0xf]
    %v2551 = vld [vmem:[#allocation11 + $0x30] sm:$0xf]
    %v2552 = vld [vmem:[#allocation11 + $0x34] sm:$0xf]
    %v2553 = vld [vmem:[#allocation11 + $0x38] sm:$0xf]
    %v2554 = vld [vmem:[#allocation11 + $0x3c] sm:$0xf]
    %v2571 = vunpack.c.l.b16 %v2539
    %v2572 = vunpack.c.l.b16 %v2540
    %v2573 = vunpack.c.l.b16 %v2541
    %v2574 = vunpack.c.l.b16 %v2542
    %v2575 = vunpack.c.l.b16 %v2543
    %v2576 = vunpack.c.l.b16 %v2544
    %v2577 = vunpack.c.l.b16 %v2545
    %v2578 = vunpack.c.l.b16 %v2546
    %v2579 = vunpack.c.l.b16 %v2547
    %v2580 = vunpack.c.l.b16 %v2548
    %v2581 = vunpack.c.l.b16 %v2549
    %v2582 = vunpack.c.l.b16 %v2550
    %v2583 = vunpack.c.l.b16 %v2551
    %v2584 = vunpack.c.l.b16 %v2552
    %v2585 = vunpack.c.l.b16 %v2553
    %v2586 = vunpack.c.l.b16 %v2554
    %v2587 = vpack.c.b16 %v2572, %v2571
    %v2588 = vpack.c.b16 %v2574, %v2573
    %v2589 = vpack.c.b16 %v2576, %v2575
    %v2590 = vpack.c.b16 %v2578, %v2577
    %v2591 = vpack.c.b16 %v2580, %v2579
    %v2592 = vpack.c.b16 %v2582, %v2581
    %v2593 = vpack.c.b16 %v2584, %v2583
    %v2594 = vpack.c.b16 %v2586, %v2585
    %2603 = vmatprep.subr.bf16.mxu0 0
    %2604 = vmatpush1.bf16.msra.mxu0 %v2587
    %2605 = vmatprep.subr.bf16.mxu0 0
    %2606 = vmatpush1.bf16.msra.mxu0 %v2588
    %2607 = vmatprep.subr.bf16.mxu0 0
    %2608 = vmatpush1.bf16.msra.mxu0 %v2589
    %2609 = vmatprep.subr.bf16.mxu0 0
    %2610 = vmatpush1.bf16.msra.mxu0 %v2590
    %2611 = vmatprep.subr.bf16.mxu0 0
    %2612 = vmatpush1.bf16.msra.mxu0 %v2591
    %2613 = vmatprep.subr.bf16.mxu0 0
    %2614 = vmatpush1.bf16.msra.mxu0 %v2592
    %2615 = vmatprep.subr.bf16.mxu0 0
    %2616 = vmatpush1.bf16.msra.mxu0 %v2593
    %2617 = vmatprep.subr.bf16.mxu0 0
    %2618 = vmatpush1.bf16.msra.mxu0 %v2594
    %2619 = vmatprep.subr.bf16.mxu0 0
    %2620 = vmatpush1.bf16.msra.mxu0 0
    %2621 = vmatprep.subr.bf16.mxu0 0
    %2622 = vmatpush1.bf16.msra.mxu0 0
    %2623 = vmatprep.subr.bf16.mxu0 0
    %2624 = vmatpush1.bf16.msra.mxu0 0
    %2625 = vmatprep.subr.bf16.mxu0 0
    %2626 = vmatpush1.bf16.msra.mxu0 0
    %2627 = vmatprep.subr.bf16.mxu0 0
    %2628 = vmatpush1.bf16.msra.mxu0 0
    %2629 = vmatprep.subr.bf16.mxu0 0
    %2630 = vmatpush1.bf16.msra.mxu0 0
    %2631 = vmatprep.subr.bf16.mxu0 0
    %2632 = vmatpush1.bf16.msra.mxu0 0
    %2633 = vmatprep.subr.bf16.mxu0 0
    %2634 = vmatpush1.bf16.msra.mxu0 0
    %2635 = vmatprep.mubr.bf16.mxu0 0
    %2636 = vmatmul.mubr.bf16.gmra.mrb[0].mxu0 %v2491
    %v2637 = vpop.f32.mrb[0].mxu0
    %v2638 = vadd.f32 0.0, %v2637
    %v2639 = vpop.f32.mrb[0].mxu0
    %v2640 = vpop.f32.mrb[0].mxu0
    %v2641 = vadd.f32 0.0, %v2640
    %v2642 = vpop.f32.mrb[0].mxu0
    %2643 = vmatprep.mubr.bf16.mxu0 0
    %2644 = vmatmul.mubr.bf16.gmra.mrb[0].mxu0 %v2492
    %v2645 = vpop.f32.mrb[0].mxu0
    %v2646 = vadd.f32 0.0, %v2645
    %v2647 = vpop.f32.mrb[0].mxu0
    %v2648 = vpop.f32.mrb[0].mxu0
    %v2649 = vadd.f32 0.0, %v2648
    %v2650 = vpop.f32.mrb[0].mxu0
    %2651 = vmatprep.mubr.bf16.mxu0 0
    %2652 = vmatmul.mubr.bf16.gmra.mrb[0].mxu0 %v2493
    %v2653 = vpop.f32.mrb[0].mxu0
    %v2654 = vadd.f32 0.0, %v2653
    %v2655 = vpop.f32.mrb[0].mxu0
    %v2656 = vpop.f32.mrb[0].mxu0
    %v2657 = vadd.f32 0.0, %v2656
    %v2658 = vpop.f32.mrb[0].mxu0
    %2659 = vmatprep.mubr.bf16.mxu0 0
    %2660 = vmatmul.mubr.bf16.gmra.mrb[0].mxu0 %v2494
    %v2661 = vpop.f32.mrb[0].mxu0
    %v2662 = vadd.f32 0.0, %v2661
    %v2663 = vpop.f32.mrb[0].mxu0
    %v2664 = vpop.f32.mrb[0].mxu0
    %v2665 = vadd.f32 0.0, %v2664
    %v2666 = vpop.f32.mrb[0].mxu0
    %2667 = vmatprep.mubr.bf16.mxu0 0
    %2668 = vmatmul.mubr.bf16.gmra.mrb[0].mxu0 %v2495
    %v2669 = vpop.f32.mrb[0].mxu0
    %v2670 = vadd.f32 0.0, %v2669
    %v2671 = vpop.f32.mrb[0].mxu0
    %v2672 = vpop.f32.mrb[0].mxu0
    %v2673 = vadd.f32 0.0, %v2672
    %v2674 = vpop.f32.mrb[0].mxu0
    %2675 = vmatprep.mubr.bf16.mxu0 0
    %2676 = vmatmul.mubr.bf16.gmra.mrb[0].mxu0 %v2496
    %v2677 = vpop.f32.mrb[0].mxu0
    %v2678 = vadd.f32 0.0, %v2677
    %v2679 = vpop.f32.mrb[0].mxu0
    %v2680 = vpop.f32.mrb[0].mxu0
    %v2681 = vadd.f32 0.0, %v2680
    %v2682 = vpop.f32.mrb[0].mxu0
    %2683 = vmatprep.mubr.bf16.mxu0 0
    %2684 = vmatmul.mubr.bf16.gmra.mrb[0].mxu0 %v2497
    %v2685 = vpop.f32.mrb[0].mxu0
    %v2686 = vadd.f32 0.0, %v2685
    %v2687 = vpop.f32.mrb[0].mxu0
    %v2688 = vpop.f32.mrb[0].mxu0
    %v2689 = vadd.f32 0.0, %v2688
    %v2690 = vpop.f32.mrb[0].mxu0
    %2691 = vmatprep.mubr.bf16.mxu0 0
    %2692 = vmatmul.mubr.bf16.gmra.mrb[0].mxu0 %v2498
    %v2693 = vpop.f32.mrb[0].mxu0
    %v2694 = vadd.f32 0.0, %v2693
    %v2695 = vpop.f32.mrb[0].mxu0
    %v2696 = vpop.f32.mrb[0].mxu0
    %v2697 = vadd.f32 0.0, %v2696
    %v2698 = vpop.f32.mrb[0].mxu0
    %2699 = vmatprep.mubr.bf16.mxu0 0
    %2700 = vmatmul.mubr.bf16.gmra.mrb[0].mxu0 %v2499
    %v2701 = vpop.f32.mrb[0].mxu0
    %v2702 = vadd.f32 0.0, %v2701
    %v2703 = vpop.f32.mrb[0].mxu0
    %v2704 = vpop.f32.mrb[0].mxu0
    %v2705 = vadd.f32 0.0, %v2704
    %v2706 = vpop.f32.mrb[0].mxu0
    %2707 = vmatprep.mubr.bf16.mxu0 0
    %2708 = vmatmul.mubr.bf16.gmra.mrb[0].mxu0 %v2500
    %v2709 = vpop.f32.mrb[0].mxu0
    %v2710 = vadd.f32 0.0, %v2709
    %v2711 = vpop.f32.mrb[0].mxu0
    %v2712 = vpop.f32.mrb[0].mxu0
    %v2713 = vadd.f32 0.0, %v2712
    %v2714 = vpop.f32.mrb[0].mxu0
    %2715 = vmatprep.mubr.bf16.mxu0 0
    %2716 = vmatmul.mubr.bf16.gmra.mrb[0].mxu0 %v2501
    %v2717 = vpop.f32.mrb[0].mxu0
    %v2718 = vadd.f32 0.0, %v2717
    %v2719 = vpop.f32.mrb[0].mxu0
    %v2720 = vpop.f32.mrb[0].mxu0
    %v2721 = vadd.f32 0.0, %v2720
    %v2722 = vpop.f32.mrb[0].mxu0
    %2723 = vmatprep.mubr.bf16.mxu0 0
    %2724 = vmatmul.mubr.bf16.gmra.mrb[0].mxu0 %v2502
    %v2725 = vpop.f32.mrb[0].mxu0
    %v2726 = vadd.f32 0.0, %v2725
    %v2727 = vpop.f32.mrb[0].mxu0
    %v2728 = vpop.f32.mrb[0].mxu0
    %v2729 = vadd.f32 0.0, %v2728
    %v2730 = vpop.f32.mrb[0].mxu0
    %2731 = vmatprep.mubr.bf16.mxu0 0
    %2732 = vmatmul.mubr.bf16.gmra.mrb[0].mxu0 %v2503
    %v2733 = vpop.f32.mrb[0].mxu0
    %v2734 = vadd.f32 0.0, %v2733
    %v2735 = vpop.f32.mrb[0].mxu0
    %v2736 = vpop.f32.mrb[0].mxu0
    %v2737 = vadd.f32 0.0, %v2736
    %v2738 = vpop.f32.mrb[0].mxu0
    %2739 = vmatprep.mubr.bf16.mxu0 0
    %2740 = vmatmul.mubr.bf16.gmra.mrb[0].mxu0 %v2504
    %v2741 = vpop.f32.mrb[0].mxu0
    %v2742 = vadd.f32 0.0, %v2741
    %v2743 = vpop.f32.mrb[0].mxu0
    %v2744 = vpop.f32.mrb[0].mxu0
    %v2745 = vadd.f32 0.0, %v2744
    %v2746 = vpop.f32.mrb[0].mxu0
    %2747 = vmatprep.mubr.bf16.mxu0 0
    %2748 = vmatmul.mubr.bf16.gmra.mrb[0].mxu0 %v2505
    %v2749 = vpop.f32.mrb[0].mxu0
    %v2750 = vadd.f32 0.0, %v2749
    %v2751 = vpop.f32.mrb[0].mxu0
    %v2752 = vpop.f32.mrb[0].mxu0
    %v2753 = vadd.f32 0.0, %v2752
    %v2754 = vpop.f32.mrb[0].mxu0
    %2755 = vmatprep.mubr.bf16.mxu0 0
    %2756 = vmatmul.mubr.bf16.gmra.mrb[0].mxu0 %v2506
    %v2757 = vpop.f32.mrb[0].mxu0
    %v2758 = vadd.f32 0.0, %v2757
    %v2759 = vpop.f32.mrb[0].mxu0
    %v2760 = vpop.f32.mrb[0].mxu0
    %v2761 = vadd.f32 0.0, %v2760
    %v2762 = vpop.f32.mrb[0].mxu0
    %2763 = vdwg.mxu0
    %v2764 = vadd.f32 %v2507, %v2638
    %v2765 = vadd.f32 %v2508, %v2641
    %v2766 = vadd.f32 %v2509, %v2646
    %v2767 = vadd.f32 %v2510, %v2649
    %v2768 = vadd.f32 %v2511, %v2654
    %v2769 = vadd.f32 %v2512, %v2657
    %v2770 = vadd.f32 %v2513, %v2662
    %v2771 = vadd.f32 %v2514, %v2665
    %v2772 = vadd.f32 %v2515, %v2670
    %v2773 = vadd.f32 %v2516, %v2673
    %v2774 = vadd.f32 %v2517, %v2678
    %v2775 = vadd.f32 %v2518, %v2681
    %v2776 = vadd.f32 %v2519, %v2686
    %v2777 = vadd.f32 %v2520, %v2689
    %v2778 = vadd.f32 %v2521, %v2694
    %v2779 = vadd.f32 %v2522, %v2697
    %v2780 = vadd.f32 %v2523, %v2702
    %v2781 = vadd.f32 %v2524, %v2705
    %v2782 = vadd.f32 %v2525, %v2710
    %v2783 = vadd.f32 %v2526, %v2713
    %v2784 = vadd.f32 %v2527, %v2718
    %v2785 = vadd.f32 %v2528, %v2721
    %v2786 = vadd.f32 %v2529, %v2726
    %v2787 = vadd.f32 %v2530, %v2729
    %v2788 = vadd.f32 %v2531, %v2734
    %v2789 = vadd.f32 %v2532, %v2737
    %v2790 = vadd.f32 %v2533, %v2742
    %v2791 = vadd.f32 %v2534, %v2745
    %v2792 = vadd.f32 %v2535, %v2750
    %v2793 = vadd.f32 %v2536, %v2753
    %v2794 = vadd.f32 %v2537, %v2758
    %v2795 = vadd.f32 %v2538, %v2761
    %2796 = vst [vmem:[#allocation13] sm:$0xff] %v2764
    %2797 = vst [vmem:[#allocation13 + $0x8] sm:$0xff] %v2765
    %2798 = vst [vmem:[#allocation13 + $0x10] sm:$0xff] %v2766
    %2799 = vst [vmem:[#allocation13 + $0x18] sm:$0xff] %v2767
    %2800 = vst [vmem:[#allocation13 + $0x20] sm:$0xff] %v2768
    %2801 = vst [vmem:[#allocation13 + $0x28] sm:$0xff] %v2769
    %2802 = vst [vmem:[#allocation13 + $0x30] sm:$0xff] %v2770
    %2803 = vst [vmem:[#allocation13 + $0x38] sm:$0xff] %v2771
    %2804 = vst [vmem:[#allocation13 + $0x40] sm:$0xff] %v2772
    %2805 = vst [vmem:[#allocation13 + $0x48] sm:$0xff] %v2773
    %2806 = vst [vmem:[#allocation13 + $0x50] sm:$0xff] %v2774
    %2807 = vst [vmem:[#allocation13 + $0x58] sm:$0xff] %v2775
    %2808 = vst [vmem:[#allocation13 + $0x60] sm:$0xff] %v2776
    %2809 = vst [vmem:[#allocation13 + $0x68] sm:$0xff] %v2777
    %2810 = vst [vmem:[#allocation13 + $0x70] sm:$0xff] %v2778
    %2811 = vst [vmem:[#allocation13 + $0x78] sm:$0xff] %v2779
    %2812 = vst [vmem:[#allocation13 + $0x80] sm:$0xff] %v2780
    %2813 = vst [vmem:[#allocation13 + $0x88] sm:$0xff] %v2781
    %2814 = vst [vmem:[#allocation13 + $0x90] sm:$0xff] %v2782
    %2815 = vst [vmem:[#allocation13 + $0x98] sm:$0xff] %v2783
    %2816 = vst [vmem:[#allocation13 + $0xa0] sm:$0xff] %v2784
    %2817 = vst [vmem:[#allocation13 + $0xa8] sm:$0xff] %v2785
    %2818 = vst [vmem:[#allocation13 + $0xb0] sm:$0xff] %v2786
    %2819 = vst [vmem:[#allocation13 + $0xb8] sm:$0xff] %v2787
    %2820 = vst [vmem:[#allocation13 + $0xc0] sm:$0xff] %v2788
    %2821 = vst [vmem:[#allocation13 + $0xc8] sm:$0xff] %v2789
    %2822 = vst [vmem:[#allocation13 + $0xd0] sm:$0xff] %v2790
    %2823 = vst [vmem:[#allocation13 + $0xd8] sm:$0xff] %v2791
    %2824 = vst [vmem:[#allocation13 + $0xe0] sm:$0xff] %v2792
    %2825 = vst [vmem:[#allocation13 + $0xe8] sm:$0xff] %v2793
    %2826 = vst [vmem:[#allocation13 + $0xf0] sm:$0xff] %v2794
    %2827 = vst [vmem:[#allocation13 + $0xf8] sm:$0xff] %v2795
    %v2828 = vld [vmem:[#allocation10 + $0x4] sm:$0xf]
    %v2829 = vld [vmem:[#allocation10 + $0x14] sm:$0xf]
    %v2830 = vld [vmem:[#allocation10 + $0x24] sm:$0xf]
    %v2831 = vld [vmem:[#allocation10 + $0x34] sm:$0xf]
    %v2832 = vld [vmem:[#allocation10 + $0x44] sm:$0xf]
    %v2833 = vld [vmem:[#allocation10 + $0x54] sm:$0xf]
    %v2834 = vld [vmem:[#allocation10 + $0x64] sm:$0xf]
    %v2835 = vld [vmem:[#allocation10 + $0x74] sm:$0xf]
    %v2836 = vld [vmem:[#allocation10 + $0x84] sm:$0xf]
    %v2837 = vld [vmem:[#allocation10 + $0x94] sm:$0xf]
    %v2838 = vld [vmem:[#allocation10 + $0xa4] sm:$0xf]
    %v2839 = vld [vmem:[#allocation10 + $0xb4] sm:$0xf]
    %v2840 = vld [vmem:[#allocation10 + $0xc4] sm:$0xf]
    %v2841 = vld [vmem:[#allocation10 + $0xd4] sm:$0xf]
    %v2842 = vld [vmem:[#allocation10 + $0xe4] sm:$0xf]
    %v2843 = vld [vmem:[#allocation10 + $0xf4] sm:$0xf]
    %v2844 = vld [vmem:[#allocation10 + $0x104] sm:$0xf]
    %v2845 = vld [vmem:[#allocation10 + $0x114] sm:$0xf]
    %v2846 = vld [vmem:[#allocation10 + $0x124] sm:$0xf]
    %v2847 = vld [vmem:[#allocation10 + $0x134] sm:$0xf]
    %v2848 = vld [vmem:[#allocation10 + $0x144] sm:$0xf]
    %v2849 = vld [vmem:[#allocation10 + $0x154] sm:$0xf]
    %v2850 = vld [vmem:[#allocation10 + $0x164] sm:$0xf]
    %v2851 = vld [vmem:[#allocation10 + $0x174] sm:$0xf]
    %v2852 = vld [vmem:[#allocation10 + $0x184] sm:$0xf]
    %v2853 = vld [vmem:[#allocation10 + $0x194] sm:$0xf]
    %v2854 = vld [vmem:[#allocation10 + $0x1a4] sm:$0xf]
    %v2855 = vld [vmem:[#allocation10 + $0x1b4] sm:$0xf]
    %v2856 = vld [vmem:[#allocation10 + $0x1c4] sm:$0xf]
    %v2857 = vld [vmem:[#allocation10 + $0x1d4] sm:$0xf]
    %v2858 = vld [vmem:[#allocation10 + $0x1e4] sm:$0xf]
    %v2859 = vld [vmem:[#allocation10 + $0x1f4] sm:$0xf]
    %v2876 = vunpack.c.l.b16 %v2844
    %v2877 = vunpack.c.l.b16 %v2845
    %v2878 = vunpack.c.l.b16 %v2846
    %v2879 = vunpack.c.l.b16 %v2847
    %v2880 = vunpack.c.l.b16 %v2848
    %v2881 = vunpack.c.l.b16 %v2849
    %v2882 = vunpack.c.l.b16 %v2850
    %v2883 = vunpack.c.l.b16 %v2851
    %v2884 = vunpack.c.l.b16 %v2852
    %v2885 = vunpack.c.l.b16 %v2853
    %v2886 = vunpack.c.l.b16 %v2854
    %v2887 = vunpack.c.l.b16 %v2855
    %v2888 = vunpack.c.l.b16 %v2856
    %v2889 = vunpack.c.l.b16 %v2857
    %v2890 = vunpack.c.l.b16 %v2858
    %v2891 = vunpack.c.l.b16 %v2859
    %v2892 = vpack.c.b16 %v2877, %v2876
    %v2893 = vpack.c.b16 %v2879, %v2878
    %v2894 = vpack.c.b16 %v2881, %v2880
    %v2895 = vpack.c.b16 %v2883, %v2882
    %v2896 = vpack.c.b16 %v2885, %v2884
    %v2897 = vpack.c.b16 %v2887, %v2886
    %v2898 = vpack.c.b16 %v2889, %v2888
    %v2899 = vpack.c.b16 %v2891, %v2890
    %2908 = vmatprep.subr.bf16.mxu0 0
    %2909 = vmatpush1.bf16.msra.mxu0 %v2892
    %2910 = vmatprep.subr.bf16.mxu0 0
    %2911 = vmatpush1.bf16.msra.mxu0 %v2893
    %2912 = vmatprep.subr.bf16.mxu0 0
    %2913 = vmatpush1.bf16.msra.mxu0 %v2894
    %2914 = vmatprep.subr.bf16.mxu0 0
    %2915 = vmatpush1.bf16.msra.mxu0 %v2895
    %2916 = vmatprep.subr.bf16.mxu0 0
    %2917 = vmatpush1.bf16.msra.mxu0 %v2896
    %2918 = vmatprep.subr.bf16.mxu0 0
    %2919 = vmatpush1.bf16.msra.mxu0 %v2897
    %2920 = vmatprep.subr.bf16.mxu0 0
    %2921 = vmatpush1.bf16.msra.mxu0 %v2898
    %2922 = vmatprep.subr.bf16.mxu0 0
    %2923 = vmatpush1.bf16.msra.mxu0 %v2899
    %2924 = vmatprep.subr.bf16.mxu0 0
    %2925 = vmatpush1.bf16.msra.mxu0 0
    %2926 = vmatprep.subr.bf16.mxu0 0
    %2927 = vmatpush1.bf16.msra.mxu0 0
    %2928 = vmatprep.subr.bf16.mxu0 0
    %2929 = vmatpush1.bf16.msra.mxu0 0
    %2930 = vmatprep.subr.bf16.mxu0 0
    %2931 = vmatpush1.bf16.msra.mxu0 0
    %2932 = vmatprep.subr.bf16.mxu0 0
    %2933 = vmatpush1.bf16.msra.mxu0 0
    %2934 = vmatprep.subr.bf16.mxu0 0
    %2935 = vmatpush1.bf16.msra.mxu0 0
    %2936 = vmatprep.subr.bf16.mxu0 0
    %2937 = vmatpush1.bf16.msra.mxu0 0
    %2938 = vmatprep.subr.bf16.mxu0 0
    %2939 = vmatpush1.bf16.msra.mxu0 0
    %2940 = vmatprep.mubr.bf16.mxu0 0
    %2941 = vmatmul.mubr.bf16.gmra.mrb[0].mxu0 %v1729
    %v2942 = vpop.f32.mrb[0].mxu0
    %v2943 = vadd.f32 0.0, %v2942
    %v2944 = vpop.f32.mrb[0].mxu0
    %v2945 = vpop.f32.mrb[0].mxu0
    %v2946 = vadd.f32 0.0, %v2945
    %v2947 = vpop.f32.mrb[0].mxu0
    %2948 = vmatprep.mubr.bf16.mxu0 0
    %2949 = vmatmul.mubr.bf16.gmra.mrb[0].mxu0 %v1730
    %v2950 = vpop.f32.mrb[0].mxu0
    %v2951 = vadd.f32 0.0, %v2950
    %v2952 = vpop.f32.mrb[0].mxu0
    %v2953 = vpop.f32.mrb[0].mxu0
    %v2954 = vadd.f32 0.0, %v2953
    %v2955 = vpop.f32.mrb[0].mxu0
    %2956 = vmatprep.mubr.bf16.mxu0 0
    %2957 = vmatmul.mubr.bf16.gmra.mrb[0].mxu0 %v1731
    %v2958 = vpop.f32.mrb[0].mxu0
    %v2959 = vadd.f32 0.0, %v2958
    %v2960 = vpop.f32.mrb[0].mxu0
    %v2961 = vpop.f32.mrb[0].mxu0
    %v2962 = vadd.f32 0.0, %v2961
    %v2963 = vpop.f32.mrb[0].mxu0
    %2964 = vmatprep.mubr.bf16.mxu0 0
    %2965 = vmatmul.mubr.bf16.gmra.mrb[0].mxu0 %v1732
    %v2966 = vpop.f32.mrb[0].mxu0
    %v2967 = vadd.f32 0.0, %v2966
    %v2968 = vpop.f32.mrb[0].mxu0
    %v2969 = vpop.f32.mrb[0].mxu0
    %v2970 = vadd.f32 0.0, %v2969
    %v2971 = vpop.f32.mrb[0].mxu0
    %2972 = vmatprep.mubr.bf16.mxu0 0
    %2973 = vmatmul.mubr.bf16.gmra.mrb[0].mxu0 %v1733
    %v2974 = vpop.f32.mrb[0].mxu0
    %v2975 = vadd.f32 0.0, %v2974
    %v2976 = vpop.f32.mrb[0].mxu0
    %v2977 = vpop.f32.mrb[0].mxu0
    %v2978 = vadd.f32 0.0, %v2977
    %v2979 = vpop.f32.mrb[0].mxu0
    %2980 = vmatprep.mubr.bf16.mxu0 0
    %2981 = vmatmul.mubr.bf16.gmra.mrb[0].mxu0 %v1734
    %v2982 = vpop.f32.mrb[0].mxu0
    %v2983 = vadd.f32 0.0, %v2982
    %v2984 = vpop.f32.mrb[0].mxu0
    %v2985 = vpop.f32.mrb[0].mxu0
    %v2986 = vadd.f32 0.0, %v2985
    %v2987 = vpop.f32.mrb[0].mxu0
    %2988 = vmatprep.mubr.bf16.mxu0 0
    %2989 = vmatmul.mubr.bf16.gmra.mrb[0].mxu0 %v1735
    %v2990 = vpop.f32.mrb[0].mxu0
    %v2991 = vadd.f32 0.0, %v2990
    %v2992 = vpop.f32.mrb[0].mxu0
    %v2993 = vpop.f32.mrb[0].mxu0
    %v2994 = vadd.f32 0.0, %v2993
    %v2995 = vpop.f32.mrb[0].mxu0
    %2996 = vmatprep.mubr.bf16.mxu0 0
    %2997 = vmatmul.mubr.bf16.gmra.mrb[0].mxu0 %v1736
    %v2998 = vpop.f32.mrb[0].mxu0
    %v2999 = vadd.f32 0.0, %v2998
    %v3000 = vpop.f32.mrb[0].mxu0
    %v3001 = vpop.f32.mrb[0].mxu0
    %v3002 = vadd.f32 0.0, %v3001
    %v3003 = vpop.f32.mrb[0].mxu0
    %3004 = vmatprep.mubr.bf16.mxu0 0
    %3005 = vmatmul.mubr.bf16.gmra.mrb[0].mxu0 %v1737
    %v3006 = vpop.f32.mrb[0].mxu0
    %v3007 = vadd.f32 0.0, %v3006
    %v3008 = vpop.f32.mrb[0].mxu0
    %v3009 = vpop.f32.mrb[0].mxu0
    %v3010 = vadd.f32 0.0, %v3009
    %v3011 = vpop.f32.mrb[0].mxu0
    %3012 = vmatprep.mubr.bf16.mxu0 0
    %3013 = vmatmul.mubr.bf16.gmra.mrb[0].mxu0 %v1738
    %v3014 = vpop.f32.mrb[0].mxu0
    %v3015 = vadd.f32 0.0, %v3014
    %v3016 = vpop.f32.mrb[0].mxu0
    %v3017 = vpop.f32.mrb[0].mxu0
    %v3018 = vadd.f32 0.0, %v3017
    %v3019 = vpop.f32.mrb[0].mxu0
    %3020 = vmatprep.mubr.bf16.mxu0 0
    %3021 = vmatmul.mubr.bf16.gmra.mrb[0].mxu0 %v1739
    %v3022 = vpop.f32.mrb[0].mxu0
    %v3023 = vadd.f32 0.0, %v3022
    %v3024 = vpop.f32.mrb[0].mxu0
    %v3025 = vpop.f32.mrb[0].mxu0
    %v3026 = vadd.f32 0.0, %v3025
    %v3027 = vpop.f32.mrb[0].mxu0
    %3028 = vmatprep.mubr.bf16.mxu0 0
    %3029 = vmatmul.mubr.bf16.gmra.mrb[0].mxu0 %v1740
    %v3030 = vpop.f32.mrb[0].mxu0
    %v3031 = vadd.f32 0.0, %v3030
    %v3032 = vpop.f32.mrb[0].mxu0
    %v3033 = vpop.f32.mrb[0].mxu0
    %v3034 = vadd.f32 0.0, %v3033
    %v3035 = vpop.f32.mrb[0].mxu0
    %3036 = vmatprep.mubr.bf16.mxu0 0
    %3037 = vmatmul.mubr.bf16.gmra.mrb[0].mxu0 %v1741
    %v3038 = vpop.f32.mrb[0].mxu0
    %v3039 = vadd.f32 0.0, %v3038
    %v3040 = vpop.f32.mrb[0].mxu0
    %v3041 = vpop.f32.mrb[0].mxu0
    %v3042 = vadd.f32 0.0, %v3041
    %v3043 = vpop.f32.mrb[0].mxu0
    %3044 = vmatprep.mubr.bf16.mxu0 0
    %3045 = vmatmul.mubr.bf16.gmra.mrb[0].mxu0 %v1742
    %v3046 = vpop.f32.mrb[0].mxu0
    %v3047 = vadd.f32 0.0, %v3046
    %v3048 = vpop.f32.mrb[0].mxu0
    %v3049 = vpop.f32.mrb[0].mxu0
    %v3050 = vadd.f32 0.0, %v3049
    %v3051 = vpop.f32.mrb[0].mxu0
    %3052 = vmatprep.mubr.bf16.mxu0 0
    %3053 = vmatmul.mubr.bf16.gmra.mrb[0].mxu0 %v1743
    %v3054 = vpop.f32.mrb[0].mxu0
    %v3055 = vadd.f32 0.0, %v3054
    %v3056 = vpop.f32.mrb[0].mxu0
    %v3057 = vpop.f32.mrb[0].mxu0
    %v3058 = vadd.f32 0.0, %v3057
    %v3059 = vpop.f32.mrb[0].mxu0
    %3060 = vmatprep.mubr.bf16.mxu0 0
    %3061 = vmatmul.mubr.bf16.gmra.mrb[0].mxu0 %v1744
    %v3062 = vpop.f32.mrb[0].mxu0
    %v3063 = vadd.f32 0.0, %v3062
    %v3064 = vpop.f32.mrb[0].mxu0
    %v3065 = vpop.f32.mrb[0].mxu0
    %v3066 = vadd.f32 0.0, %v3065
    %v3067 = vpop.f32.mrb[0].mxu0
    %3068 = vdwg.mxu0
    %v3085 = vunpack.c.l.b16 %v2828
    %v3086 = vunpack.c.l.b16 %v2829
    %v3087 = vunpack.c.l.b16 %v2830
    %v3088 = vunpack.c.l.b16 %v2831
    %v3089 = vunpack.c.l.b16 %v2832
    %v3090 = vunpack.c.l.b16 %v2833
    %v3091 = vunpack.c.l.b16 %v2834
    %v3092 = vunpack.c.l.b16 %v2835
    %v3093 = vunpack.c.l.b16 %v2836
    %v3094 = vunpack.c.l.b16 %v2837
    %v3095 = vunpack.c.l.b16 %v2838
    %v3096 = vunpack.c.l.b16 %v2839
    %v3097 = vunpack.c.l.b16 %v2840
    %v3098 = vunpack.c.l.b16 %v2841
    %v3099 = vunpack.c.l.b16 %v2842
    %v3100 = vunpack.c.l.b16 %v2843
    %v3101 = vpack.c.b16 %v3086, %v3085
    %v3102 = vpack.c.b16 %v3088, %v3087
    %v3103 = vpack.c.b16 %v3090, %v3089
    %v3104 = vpack.c.b16 %v3092, %v3091
    %v3105 = vpack.c.b16 %v3094, %v3093
    %v3106 = vpack.c.b16 %v3096, %v3095
    %v3107 = vpack.c.b16 %v3098, %v3097
    %v3108 = vpack.c.b16 %v3100, %v3099
    %3117 = vmatprep.subr.bf16.mxu0 0
    %3118 = vmatpush1.bf16.msra.mxu0 %v3101
    %3119 = vmatprep.subr.bf16.mxu0 0
    %3120 = vmatpush1.bf16.msra.mxu0 %v3102
    %3121 = vmatprep.subr.bf16.mxu0 0
    %3122 = vmatpush1.bf16.msra.mxu0 %v3103
    %3123 = vmatprep.subr.bf16.mxu0 0
    %3124 = vmatpush1.bf16.msra.mxu0 %v3104
    %3125 = vmatprep.subr.bf16.mxu0 0
    %3126 = vmatpush1.bf16.msra.mxu0 %v3105
    %3127 = vmatprep.subr.bf16.mxu0 0
    %3128 = vmatpush1.bf16.msra.mxu0 %v3106
    %3129 = vmatprep.subr.bf16.mxu0 0
    %3130 = vmatpush1.bf16.msra.mxu0 %v3107
    %3131 = vmatprep.subr.bf16.mxu0 0
    %3132 = vmatpush1.bf16.msra.mxu0 %v3108
    %3133 = vmatprep.subr.bf16.mxu0 0
    %3134 = vmatpush1.bf16.msra.mxu0 0
    %3135 = vmatprep.subr.bf16.mxu0 0
    %3136 = vmatpush1.bf16.msra.mxu0 0
    %3137 = vmatprep.subr.bf16.mxu0 0
    %3138 = vmatpush1.bf16.msra.mxu0 0
    %3139 = vmatprep.subr.bf16.mxu0 0
    %3140 = vmatpush1.bf16.msra.mxu0 0
    %3141 = vmatprep.subr.bf16.mxu0 0
    %3142 = vmatpush1.bf16.msra.mxu0 0
    %3143 = vmatprep.subr.bf16.mxu0 0
    %3144 = vmatpush1.bf16.msra.mxu0 0
    %3145 = vmatprep.subr.bf16.mxu0 0
    %3146 = vmatpush1.bf16.msra.mxu0 0
    %3147 = vmatprep.subr.bf16.mxu0 0
    %3148 = vmatpush1.bf16.msra.mxu0 0
    %3149 = vmatprep.mubr.bf16.mxu0 0
    %3150 = vmatmul.mubr.bf16.gmra.mrb[0].mxu0 %v1231
    %v3151 = vpop.f32.mrb[0].mxu0
    %v3152 = vadd.f32 %v2943, %v3151
    %v3153 = vpop.f32.mrb[0].mxu0
    %v3154 = vpop.f32.mrb[0].mxu0
    %v3155 = vadd.f32 %v2946, %v3154
    %v3156 = vpop.f32.mrb[0].mxu0
    %3157 = vmatprep.mubr.bf16.mxu0 0
    %3158 = vmatmul.mubr.bf16.gmra.mrb[0].mxu0 %v1232
    %v3159 = vpop.f32.mrb[0].mxu0
    %v3160 = vadd.f32 %v2951, %v3159
    %v3161 = vpop.f32.mrb[0].mxu0
    %v3162 = vpop.f32.mrb[0].mxu0
    %v3163 = vadd.f32 %v2954, %v3162
    %v3164 = vpop.f32.mrb[0].mxu0
    %3165 = vmatprep.mubr.bf16.mxu0 0
    %3166 = vmatmul.mubr.bf16.gmra.mrb[0].mxu0 %v1233
    %v3167 = vpop.f32.mrb[0].mxu0
    %v3168 = vadd.f32 %v2959, %v3167
    %v3169 = vpop.f32.mrb[0].mxu0
    %v3170 = vpop.f32.mrb[0].mxu0
    %v3171 = vadd.f32 %v2962, %v3170
    %v3172 = vpop.f32.mrb[0].mxu0
    %3173 = vmatprep.mubr.bf16.mxu0 0
    %3174 = vmatmul.mubr.bf16.gmra.mrb[0].mxu0 %v1234
    %v3175 = vpop.f32.mrb[0].mxu0
    %v3176 = vadd.f32 %v2967, %v3175
    %v3177 = vpop.f32.mrb[0].mxu0
    %v3178 = vpop.f32.mrb[0].mxu0
    %v3179 = vadd.f32 %v2970, %v3178
    %v3180 = vpop.f32.mrb[0].mxu0
    %3181 = vmatprep.mubr.bf16.mxu0 0
    %3182 = vmatmul.mubr.bf16.gmra.mrb[0].mxu0 %v1235
    %v3183 = vpop.f32.mrb[0].mxu0
    %v3184 = vadd.f32 %v2975, %v3183
    %v3185 = vpop.f32.mrb[0].mxu0
    %v3186 = vpop.f32.mrb[0].mxu0
    %v3187 = vadd.f32 %v2978, %v3186
    %v3188 = vpop.f32.mrb[0].mxu0
    %3189 = vmatprep.mubr.bf16.mxu0 0
    %3190 = vmatmul.mubr.bf16.gmra.mrb[0].mxu0 %v1236
    %v3191 = vpop.f32.mrb[0].mxu0
    %v3192 = vadd.f32 %v2983, %v3191
    %v3193 = vpop.f32.mrb[0].mxu0
    %v3194 = vpop.f32.mrb[0].mxu0
    %v3195 = vadd.f32 %v2986, %v3194
    %v3196 = vpop.f32.mrb[0].mxu0
    %3197 = vmatprep.mubr.bf16.mxu0 0
    %3198 = vmatmul.mubr.bf16.gmra.mrb[0].mxu0 %v1237
    %v3199 = vpop.f32.mrb[0].mxu0
    %v3200 = vadd.f32 %v2991, %v3199
    %v3201 = vpop.f32.mrb[0].mxu0
    %v3202 = vpop.f32.mrb[0].mxu0
    %v3203 = vadd.f32 %v2994, %v3202
    %v3204 = vpop.f32.mrb[0].mxu0
    %3205 = vmatprep.mubr.bf16.mxu0 0
    %3206 = vmatmul.mubr.bf16.gmra.mrb[0].mxu0 %v1238
    %v3207 = vpop.f32.mrb[0].mxu0
    %v3208 = vadd.f32 %v2999, %v3207
    %v3209 = vpop.f32.mrb[0].mxu0
    %v3210 = vpop.f32.mrb[0].mxu0
    %v3211 = vadd.f32 %v3002, %v3210
    %v3212 = vpop.f32.mrb[0].mxu0
    %3213 = vmatprep.mubr.bf16.mxu0 0
    %3214 = vmatmul.mubr.bf16.gmra.mrb[0].mxu0 %v1239
    %v3215 = vpop.f32.mrb[0].mxu0
    %v3216 = vadd.f32 %v3007, %v3215
    %v3217 = vpop.f32.mrb[0].mxu0
    %v3218 = vpop.f32.mrb[0].mxu0
    %v3219 = vadd.f32 %v3010, %v3218
    %v3220 = vpop.f32.mrb[0].mxu0
    %3221 = vmatprep.mubr.bf16.mxu0 0
    %3222 = vmatmul.mubr.bf16.gmra.mrb[0].mxu0 %v1240
    %v3223 = vpop.f32.mrb[0].mxu0
    %v3224 = vadd.f32 %v3015, %v3223
    %v3225 = vpop.f32.mrb[0].mxu0
    %v3226 = vpop.f32.mrb[0].mxu0
    %v3227 = vadd.f32 %v3018, %v3226
    %v3228 = vpop.f32.mrb[0].mxu0
    %3229 = vmatprep.mubr.bf16.mxu0 0
    %3230 = vmatmul.mubr.bf16.gmra.mrb[0].mxu0 %v1241
    %v3231 = vpop.f32.mrb[0].mxu0
    %v3232 = vadd.f32 %v3023, %v3231
    %v3233 = vpop.f32.mrb[0].mxu0
    %v3234 = vpop.f32.mrb[0].mxu0
    %v3235 = vadd.f32 %v3026, %v3234
    %v3236 = vpop.f32.mrb[0].mxu0
    %3237 = vmatprep.mubr.bf16.mxu0 0
    %3238 = vmatmul.mubr.bf16.gmra.mrb[0].mxu0 %v1242
    %v3239 = vpop.f32.mrb[0].mxu0
    %v3240 = vadd.f32 %v3031, %v3239
    %v3241 = vpop.f32.mrb[0].mxu0
    %v3242 = vpop.f32.mrb[0].mxu0
    %v3243 = vadd.f32 %v3034, %v3242
    %v3244 = vpop.f32.mrb[0].mxu0
    %3245 = vmatprep.mubr.bf16.mxu0 0
    %3246 = vmatmul.mubr.bf16.gmra.mrb[0].mxu0 %v1243
    %v3247 = vpop.f32.mrb[0].mxu0
    %v3248 = vadd.f32 %v3039, %v3247
    %v3249 = vpop.f32.mrb[0].mxu0
    %v3250 = vpop.f32.mrb[0].mxu0
    %v3251 = vadd.f32 %v3042, %v3250
    %v3252 = vpop.f32.mrb[0].mxu0
    %3253 = vmatprep.mubr.bf16.mxu0 0
    %3254 = vmatmul.mubr.bf16.gmra.mrb[0].mxu0 %v1244
    %v3255 = vpop.f32.mrb[0].mxu0
    %v3256 = vadd.f32 %v3047, %v3255
    %v3257 = vpop.f32.mrb[0].mxu0
    %v3258 = vpop.f32.mrb[0].mxu0
    %v3259 = vadd.f32 %v3050, %v3258
    %v3260 = vpop.f32.mrb[0].mxu0
    %3261 = vmatprep.mubr.bf16.mxu0 0
    %3262 = vmatmul.mubr.bf16.gmra.mrb[0].mxu0 %v1245
    %v3263 = vpop.f32.mrb[0].mxu0
    %v3264 = vadd.f32 %v3055, %v3263
    %v3265 = vpop.f32.mrb[0].mxu0
    %v3266 = vpop.f32.mrb[0].mxu0
    %v3267 = vadd.f32 %v3058, %v3266
    %v3268 = vpop.f32.mrb[0].mxu0
    %3269 = vmatprep.mubr.bf16.mxu0 0
    %3270 = vmatmul.mubr.bf16.gmra.mrb[0].mxu0 %v1246
    %v3271 = vpop.f32.mrb[0].mxu0
    %v3272 = vadd.f32 %v3063, %v3271
    %v3273 = vpop.f32.mrb[0].mxu0
    %v3274 = vpop.f32.mrb[0].mxu0
    %v3275 = vadd.f32 %v3066, %v3274
    %v3276 = vpop.f32.mrb[0].mxu0
    %3277 = vdwg.mxu0
    %v3278 = vld [vmem:[%s8 + $0x1] sm:$0x1]
    %v3279 = vld [vmem:[%s9 + $0x1] sm:$0x1]
    %v3280 = vadd.f32 %v3152, %v3155
    %v3281 = vadd.f32 %v3280, %v3160
    %v3282 = vadd.f32 %v3281, %v3163
    %v3283 = vadd.f32 %v3282, %v3168
    %v3284 = vadd.f32 %v3283, %v3171
    %v3285 = vadd.f32 %v3284, %v3176
    %v3286 = vadd.f32 %v3285, %v3179
    %v3287 = vadd.f32 %v3286, %v3184
    %v3288 = vadd.f32 %v3287, %v3187
    %v3289 = vadd.f32 %v3288, %v3192
    %v3290 = vadd.f32 %v3289, %v3195
    %v3291 = vadd.f32 %v3290, %v3200
    %v3292 = vadd.f32 %v3291, %v3203
    %v3293 = vadd.f32 %v3292, %v3208
    %v3294 = vadd.f32 %v3293, %v3211
    %v3295 = vadd.f32 %v3294, %v3216
    %v3296 = vadd.f32 %v3295, %v3219
    %v3297 = vadd.f32 %v3296, %v3224
    %v3298 = vadd.f32 %v3297, %v3227
    %v3299 = vadd.f32 %v3298, %v3232
    %v3300 = vadd.f32 %v3299, %v3235
    %v3301 = vadd.f32 %v3300, %v3240
    %v3302 = vadd.f32 %v3301, %v3243
    %v3303 = vadd.f32 %v3302, %v3248
    %v3304 = vadd.f32 %v3303, %v3251
    %v3305 = vadd.f32 %v3304, %v3256
    %v3306 = vadd.f32 %v3305, %v3259
    %v3307 = vadd.f32 %v3306, %v3264
    %v3308 = vadd.f32 %v3307, %v3267
    %v3309 = vadd.f32 %v3308, %v3272
    %v3310 = vadd.f32 %v3309, %v3275
    %v3311 = vrot.slane %v3310, 4
    %v3312 = vadd.f32 %v3310, %v3311
    %v3313 = vrot.slane %v3312, 2
    %v3314 = vadd.f32 %v3312, %v3313
    %v3315 = vrot.slane %v3314, 1
    %v3316 = vadd.f32 %v3314, %v3315
    %v3317 = vmul.f32 %v3316, 0.00390625
    %v3318 = vmul.f32 %v3152, %v3152
    %v3319 = vmul.f32 %v3155, %v3155
    %v3320 = vmul.f32 %v3160, %v3160
    %v3321 = vmul.f32 %v3163, %v3163
    %v3322 = vmul.f32 %v3168, %v3168
    %v3323 = vmul.f32 %v3171, %v3171
    %v3324 = vmul.f32 %v3176, %v3176
    %v3325 = vmul.f32 %v3179, %v3179
    %v3326 = vmul.f32 %v3184, %v3184
    %v3327 = vmul.f32 %v3187, %v3187
    %v3328 = vmul.f32 %v3192, %v3192
    %v3329 = vmul.f32 %v3195, %v3195
    %v3330 = vmul.f32 %v3200, %v3200
    %v3331 = vmul.f32 %v3203, %v3203
    %v3332 = vmul.f32 %v3208, %v3208
    %v3333 = vmul.f32 %v3211, %v3211
    %v3334 = vmul.f32 %v3216, %v3216
    %v3335 = vmul.f32 %v3219, %v3219
    %v3336 = vmul.f32 %v3224, %v3224
    %v3337 = vmul.f32 %v3227, %v3227
    %v3338 = vmul.f32 %v3232, %v3232
    %v3339 = vmul.f32 %v3235, %v3235
    %v3340 = vmul.f32 %v3240, %v3240
    %v3341 = vmul.f32 %v3243, %v3243
    %v3342 = vmul.f32 %v3248, %v3248
    %v3343 = vmul.f32 %v3251, %v3251
    %v3344 = vmul.f32 %v3256, %v3256
    %v3345 = vmul.f32 %v3259, %v3259
    %v3346 = vmul.f32 %v3264, %v3264
    %v3347 = vmul.f32 %v3267, %v3267
    %v3348 = vmul.f32 %v3272, %v3272
    %v3349 = vmul.f32 %v3275, %v3275
    %v3350 = vadd.f32 %v3318, %v3319
    %v3351 = vadd.f32 %v3350, %v3320
    %v3352 = vadd.f32 %v3351, %v3321
    %v3353 = vadd.f32 %v3352, %v3322
    %v3354 = vadd.f32 %v3353, %v3323
    %v3355 = vadd.f32 %v3354, %v3324
    %v3356 = vadd.f32 %v3355, %v3325
    %v3357 = vadd.f32 %v3356, %v3326
    %v3358 = vadd.f32 %v3357, %v3327
    %v3359 = vadd.f32 %v3358, %v3328
    %v3360 = vadd.f32 %v3359, %v3329
    %v3361 = vadd.f32 %v3360, %v3330
    %v3362 = vadd.f32 %v3361, %v3331
    %v3363 = vadd.f32 %v3362, %v3332
    %v3364 = vadd.f32 %v3363, %v3333
    %v3365 = vadd.f32 %v3364, %v3334
    %v3366 = vadd.f32 %v3365, %v3335
    %v3367 = vadd.f32 %v3366, %v3336
    %v3368 = vadd.f32 %v3367, %v3337
    %v3369 = vadd.f32 %v3368, %v3338
    %v3370 = vadd.f32 %v3369, %v3339
    %v3371 = vadd.f32 %v3370, %v3340
    %v3372 = vadd.f32 %v3371, %v3341
    %v3373 = vadd.f32 %v3372, %v3342
    %v3374 = vadd.f32 %v3373, %v3343
    %v3375 = vadd.f32 %v3374, %v3344
    %v3376 = vadd.f32 %v3375, %v3345
    %v3377 = vadd.f32 %v3376, %v3346
    %v3378 = vadd.f32 %v3377, %v3347
    %v3379 = vadd.f32 %v3378, %v3348
    %v3380 = vadd.f32 %v3379, %v3349
    %v3381 = vrot.slane %v3380, 4
    %v3382 = vadd.f32 %v3380, %v3381
    %v3383 = vrot.slane %v3382, 2
    %v3384 = vadd.f32 %v3382, %v3383
    %v3385 = vrot.slane %v3384, 1
    %v3386 = vadd.f32 %v3384, %v3385
    %v3387 = vmul.f32 %v3386, 0.00390625
    %v3388 = vmul.f32 %v3317, %v3317
    %v3389 = vsub.f32 %v3387, %v3388
    %v3390 = vadd.f32 %v3389, 1e-05
    %v3391 = vrsqrt.pop %v3390
    %v3392 = vmul.f32 %v3278, %v3391
    %v3393 = vmul.f32 %v3317, %v3392
    %v3394 = vsub.f32 %v3279, %v3393
    %v3396 = vlaneseq
    %v3397 = vshrl.u32 %v3396, 7
    %v3398 = vsub.s32 0, %v3397
    %v3399 = vrot.slane %v3392, %v3398
    %v3401 = vmul.f32 %v3152, %v3399
    %v3402 = vmul.f32 %v3155, %v3399
    %v3403 = vmul.f32 %v3160, %v3399
    %v3404 = vmul.f32 %v3163, %v3399
    %v3405 = vmul.f32 %v3168, %v3399
    %v3406 = vmul.f32 %v3171, %v3399
    %v3407 = vmul.f32 %v3176, %v3399
    %v3408 = vmul.f32 %v3179, %v3399
    %v3409 = vmul.f32 %v3184, %v3399
    %v3410 = vmul.f32 %v3187, %v3399
    %v3411 = vmul.f32 %v3192, %v3399
    %v3412 = vmul.f32 %v3195, %v3399
    %v3413 = vmul.f32 %v3200, %v3399
    %v3414 = vmul.f32 %v3203, %v3399
    %v3415 = vmul.f32 %v3208, %v3399
    %v3416 = vmul.f32 %v3211, %v3399
    %v3417 = vmul.f32 %v3216, %v3399
    %v3418 = vmul.f32 %v3219, %v3399
    %v3419 = vmul.f32 %v3224, %v3399
    %v3420 = vmul.f32 %v3227, %v3399
    %v3421 = vmul.f32 %v3232, %v3399
    %v3422 = vmul.f32 %v3235, %v3399
    %v3423 = vmul.f32 %v3240, %v3399
    %v3424 = vmul.f32 %v3243, %v3399
    %v3425 = vmul.f32 %v3248, %v3399
    %v3426 = vmul.f32 %v3251, %v3399
    %v3427 = vmul.f32 %v3256, %v3399
    %v3428 = vmul.f32 %v3259, %v3399
    %v3429 = vmul.f32 %v3264, %v3399
    %v3430 = vmul.f32 %v3267, %v3399
    %v3431 = vmul.f32 %v3272, %v3399
    %v3432 = vmul.f32 %v3275, %v3399
    %v3434 = vlaneseq
    %v3435 = vshrl.u32 %v3434, 7
    %v3436 = vsub.s32 0, %v3435
    %v3437 = vrot.slane %v3394, %v3436
    %v3439 = vadd.f32 %v3401, %v3437
    %v3440 = vadd.f32 %v3402, %v3437
    %v3441 = vadd.f32 %v3403, %v3437
    %v3442 = vadd.f32 %v3404, %v3437
    %v3443 = vadd.f32 %v3405, %v3437
    %v3444 = vadd.f32 %v3406, %v3437
    %v3445 = vadd.f32 %v3407, %v3437
    %v3446 = vadd.f32 %v3408, %v3437
    %v3447 = vadd.f32 %v3409, %v3437
    %v3448 = vadd.f32 %v3410, %v3437
    %v3449 = vadd.f32 %v3411, %v3437
    %v3450 = vadd.f32 %v3412, %v3437
    %v3451 = vadd.f32 %v3413, %v3437
    %v3452 = vadd.f32 %v3414, %v3437
    %v3453 = vadd.f32 %v3415, %v3437
    %v3454 = vadd.f32 %v3416, %v3437
    %v3455 = vadd.f32 %v3417, %v3437
    %v3456 = vadd.f32 %v3418, %v3437
    %v3457 = vadd.f32 %v3419, %v3437
    %v3458 = vadd.f32 %v3420, %v3437
    %v3459 = vadd.f32 %v3421, %v3437
    %v3460 = vadd.f32 %v3422, %v3437
    %v3461 = vadd.f32 %v3423, %v3437
    %v3462 = vadd.f32 %v3424, %v3437
    %v3463 = vadd.f32 %v3425, %v3437
    %v3464 = vadd.f32 %v3426, %v3437
    %v3465 = vadd.f32 %v3427, %v3437
    %v3466 = vadd.f32 %v3428, %v3437
    %v3467 = vadd.f32 %v3429, %v3437
    %v3468 = vadd.f32 %v3430, %v3437
    %v3469 = vadd.f32 %v3431, %v3437
    %v3470 = vadd.f32 %v3432, %v3437
    %v3471 = vmul.f32 %v3439, 0.2
    %v3472 = vmul.f32 %v3440, 0.2
    %v3473 = vmul.f32 %v3441, 0.2
    %v3474 = vmul.f32 %v3442, 0.2
    %v3475 = vmul.f32 %v3443, 0.2
    %v3476 = vmul.f32 %v3444, 0.2
    %v3477 = vmul.f32 %v3445, 0.2
    %v3478 = vmul.f32 %v3446, 0.2
    %v3479 = vmul.f32 %v3447, 0.2
    %v3480 = vmul.f32 %v3448, 0.2
    %v3481 = vmul.f32 %v3449, 0.2
    %v3482 = vmul.f32 %v3450, 0.2
    %v3483 = vmul.f32 %v3451, 0.2
    %v3484 = vmul.f32 %v3452, 0.2
    %v3485 = vmul.f32 %v3453, 0.2
    %v3486 = vmul.f32 %v3454, 0.2
    %v3487 = vmul.f32 %v3455, 0.2
    %v3488 = vmul.f32 %v3456, 0.2
    %v3489 = vmul.f32 %v3457, 0.2
    %v3490 = vmul.f32 %v3458, 0.2
    %v3491 = vmul.f32 %v3459, 0.2
    %v3492 = vmul.f32 %v3460, 0.2
    %v3493 = vmul.f32 %v3461, 0.2
    %v3494 = vmul.f32 %v3462, 0.2
    %v3495 = vmul.f32 %v3463, 0.2
    %v3496 = vmul.f32 %v3464, 0.2
    %v3497 = vmul.f32 %v3465, 0.2
    %v3498 = vmul.f32 %v3466, 0.2
    %v3499 = vmul.f32 %v3467, 0.2
    %v3500 = vmul.f32 %v3468, 0.2
    %v3501 = vmul.f32 %v3469, 0.2
    %v3502 = vmul.f32 %v3470, 0.2
    %v3503 = vmax.f32 %v3439, %v3471
    %v3504 = vmax.f32 %v3440, %v3472
    %v3505 = vmax.f32 %v3441, %v3473
    %v3506 = vmax.f32 %v3442, %v3474
    %v3507 = vmax.f32 %v3443, %v3475
    %v3508 = vmax.f32 %v3444, %v3476
    %v3509 = vmax.f32 %v3445, %v3477
    %v3510 = vmax.f32 %v3446, %v3478
    %v3511 = vmax.f32 %v3447, %v3479
    %v3512 = vmax.f32 %v3448, %v3480
    %v3513 = vmax.f32 %v3449, %v3481
    %v3514 = vmax.f32 %v3450, %v3482
    %v3515 = vmax.f32 %v3451, %v3483
    %v3516 = vmax.f32 %v3452, %v3484
    %v3517 = vmax.f32 %v3453, %v3485
    %v3518 = vmax.f32 %v3454, %v3486
    %v3519 = vmax.f32 %v3455, %v3487
    %v3520 = vmax.f32 %v3456, %v3488
    %v3521 = vmax.f32 %v3457, %v3489
    %v3522 = vmax.f32 %v3458, %v3490
    %v3523 = vmax.f32 %v3459, %v3491
    %v3524 = vmax.f32 %v3460, %v3492
    %v3525 = vmax.f32 %v3461, %v3493
    %v3526 = vmax.f32 %v3462, %v3494
    %v3527 = vmax.f32 %v3463, %v3495
    %v3528 = vmax.f32 %v3464, %v3496
    %v3529 = vmax.f32 %v3465, %v3497
    %v3530 = vmax.f32 %v3466, %v3498
    %v3531 = vmax.f32 %v3467, %v3499
    %v3532 = vmax.f32 %v3468, %v3500
    %v3533 = vmax.f32 %v3469, %v3501
    %v3534 = vmax.f32 %v3470, %v3502
    %v3535 = vpack.c.bf16 %v3504, %v3503
    %v3536 = vpack.c.bf16 %v3506, %v3505
    %v3537 = vpack.c.bf16 %v3508, %v3507
    %v3538 = vpack.c.bf16 %v3510, %v3509
    %v3539 = vpack.c.bf16 %v3512, %v3511
    %v3540 = vpack.c.bf16 %v3514, %v3513
    %v3541 = vpack.c.bf16 %v3516, %v3515
    %v3542 = vpack.c.bf16 %v3518, %v3517
    %v3543 = vpack.c.bf16 %v3520, %v3519
    %v3544 = vpack.c.bf16 %v3522, %v3521
    %v3545 = vpack.c.bf16 %v3524, %v3523
    %v3546 = vpack.c.bf16 %v3526, %v3525
    %v3547 = vpack.c.bf16 %v3528, %v3527
    %v3548 = vpack.c.bf16 %v3530, %v3529
    %v3549 = vpack.c.bf16 %v3532, %v3531
    %v3550 = vpack.c.bf16 %v3534, %v3533
    %v3551 = vld [vmem:[#allocation13] sm:$0xff]
    %v3552 = vld [vmem:[#allocation13 + $0x8] sm:$0xff]
    %v3553 = vld [vmem:[#allocation13 + $0x10] sm:$0xff]
    %v3554 = vld [vmem:[#allocation13 + $0x18] sm:$0xff]
    %v3555 = vld [vmem:[#allocation13 + $0x20] sm:$0xff]
    %v3556 = vld [vmem:[#allocation13 + $0x28] sm:$0xff]
    %v3557 = vld [vmem:[#allocation13 + $0x30] sm:$0xff]
    %v3558 = vld [vmem:[#allocation13 + $0x38] sm:$0xff]
    %v3559 = vld [vmem:[#allocation13 + $0x40] sm:$0xff]
    %v3560 = vld [vmem:[#allocation13 + $0x48] sm:$0xff]
    %v3561 = vld [vmem:[#allocation13 + $0x50] sm:$0xff]
    %v3562 = vld [vmem:[#allocation13 + $0x58] sm:$0xff]
    %v3563 = vld [vmem:[#allocation13 + $0x60] sm:$0xff]
    %v3564 = vld [vmem:[#allocation13 + $0x68] sm:$0xff]
    %v3565 = vld [vmem:[#allocation13 + $0x70] sm:$0xff]
    %v3566 = vld [vmem:[#allocation13 + $0x78] sm:$0xff]
    %v3567 = vld [vmem:[#allocation13 + $0x80] sm:$0xff]
    %v3568 = vld [vmem:[#allocation13 + $0x88] sm:$0xff]
    %v3569 = vld [vmem:[#allocation13 + $0x90] sm:$0xff]
    %v3570 = vld [vmem:[#allocation13 + $0x98] sm:$0xff]
    %v3571 = vld [vmem:[#allocation13 + $0xa0] sm:$0xff]
    %v3572 = vld [vmem:[#allocation13 + $0xa8] sm:$0xff]
    %v3573 = vld [vmem:[#allocation13 + $0xb0] sm:$0xff]
    %v3574 = vld [vmem:[#allocation13 + $0xb8] sm:$0xff]
    %v3575 = vld [vmem:[#allocation13 + $0xc0] sm:$0xff]
    %v3576 = vld [vmem:[#allocation13 + $0xc8] sm:$0xff]
    %v3577 = vld [vmem:[#allocation13 + $0xd0] sm:$0xff]
    %v3578 = vld [vmem:[#allocation13 + $0xd8] sm:$0xff]
    %v3579 = vld [vmem:[#allocation13 + $0xe0] sm:$0xff]
    %v3580 = vld [vmem:[#allocation13 + $0xe8] sm:$0xff]
    %v3581 = vld [vmem:[#allocation13 + $0xf0] sm:$0xff]
    %v3582 = vld [vmem:[#allocation13 + $0xf8] sm:$0xff]
    %v3583 = vld [vmem:[#allocation11 + $0x40] sm:$0xf]
    %v3584 = vld [vmem:[#allocation11 + $0x44] sm:$0xf]
    %v3585 = vld [vmem:[#allocation11 + $0x48] sm:$0xf]
    %v3586 = vld [vmem:[#allocation11 + $0x4c] sm:$0xf]
    %v3587 = vld [vmem:[#allocation11 + $0x50] sm:$0xf]
    %v3588 = vld [vmem:[#allocation11 + $0x54] sm:$0xf]
    %v3589 = vld [vmem:[#allocation11 + $0x58] sm:$0xf]
    %v3590 = vld [vmem:[#allocation11 + $0x5c] sm:$0xf]
    %v3591 = vld [vmem:[#allocation11 + $0x60] sm:$0xf]
    %v3592 = vld [vmem:[#allocation11 + $0x64] sm:$0xf]
    %v3593 = vld [vmem:[#allocation11 + $0x68] sm:$0xf]
    %v3594 = vld [vmem:[#allocation11 + $0x6c] sm:$0xf]
    %v3595 = vld [vmem:[#allocation11 + $0x70] sm:$0xf]
    %v3596 = vld [vmem:[#allocation11 + $0x74] sm:$0xf]
    %v3597 = vld [vmem:[#allocation11 + $0x78] sm:$0xf]
    %v3598 = vld [vmem:[#allocation11 + $0x7c] sm:$0xf]
    %v3615 = vunpack.c.l.b16 %v3583
    %v3616 = vunpack.c.l.b16 %v3584
    %v3617 = vunpack.c.l.b16 %v3585
    %v3618 = vunpack.c.l.b16 %v3586
    %v3619 = vunpack.c.l.b16 %v3587
    %v3620 = vunpack.c.l.b16 %v3588
    %v3621 = vunpack.c.l.b16 %v3589
    %v3622 = vunpack.c.l.b16 %v3590
    %v3623 = vunpack.c.l.b16 %v3591
    %v3624 = vunpack.c.l.b16 %v3592
    %v3625 = vunpack.c.l.b16 %v3593
    %v3626 = vunpack.c.l.b16 %v3594
    %v3627 = vunpack.c.l.b16 %v3595
    %v3628 = vunpack.c.l.b16 %v3596
    %v3629 = vunpack.c.l.b16 %v3597
    %v3630 = vunpack.c.l.b16 %v3598
    %v3631 = vpack.c.b16 %v3616, %v3615
    %v3632 = vpack.c.b16 %v3618, %v3617
    %v3633 = vpack.c.b16 %v3620, %v3619
    %v3634 = vpack.c.b16 %v3622, %v3621
    %v3635 = vpack.c.b16 %v3624, %v3623
    %v3636 = vpack.c.b16 %v3626, %v3625
    %v3637 = vpack.c.b16 %v3628, %v3627
    %v3638 = vpack.c.b16 %v3630, %v3629
    %3647 = vmatprep.subr.bf16.mxu0 0
    %3648 = vmatpush1.bf16.msra.mxu0 %v3631
    %3649 = vmatprep.subr.bf16.mxu0 0
    %3650 = vmatpush1.bf16.msra.mxu0 %v3632
    %3651 = vmatprep.subr.bf16.mxu0 0
    %3652 = vmatpush1.bf16.msra.mxu0 %v3633
    %3653 = vmatprep.subr.bf16.mxu0 0
    %3654 = vmatpush1.bf16.msra.mxu0 %v3634
    %3655 = vmatprep.subr.bf16.mxu0 0
    %3656 = vmatpush1.bf16.msra.mxu0 %v3635
    %3657 = vmatprep.subr.bf16.mxu0 0
    %3658 = vmatpush1.bf16.msra.mxu0 %v3636
    %3659 = vmatprep.subr.bf16.mxu0 0
    %3660 = vmatpush1.bf16.msra.mxu0 %v3637
    %3661 = vmatprep.subr.bf16.mxu0 0
    %3662 = vmatpush1.bf16.msra.mxu0 %v3638
    %3663 = vmatprep.subr.bf16.mxu0 0
    %3664 = vmatpush1.bf16.msra.mxu0 0
    %3665 = vmatprep.subr.bf16.mxu0 0
    %3666 = vmatpush1.bf16.msra.mxu0 0
    %3667 = vmatprep.subr.bf16.mxu0 0
    %3668 = vmatpush1.bf16.msra.mxu0 0
    %3669 = vmatprep.subr.bf16.mxu0 0
    %3670 = vmatpush1.bf16.msra.mxu0 0
    %3671 = vmatprep.subr.bf16.mxu0 0
    %3672 = vmatpush1.bf16.msra.mxu0 0
    %3673 = vmatprep.subr.bf16.mxu0 0
    %3674 = vmatpush1.bf16.msra.mxu0 0
    %3675 = vmatprep.subr.bf16.mxu0 0
    %3676 = vmatpush1.bf16.msra.mxu0 0
    %3677 = vmatprep.subr.bf16.mxu0 0
    %3678 = vmatpush1.bf16.msra.mxu0 0
    %3679 = vmatprep.mubr.bf16.mxu0 0
    %3680 = vmatmul.mubr.bf16.gmra.mrb[0].mxu0 %v3535
    %v3681 = vpop.f32.mrb[0].mxu0
    %v3682 = vadd.f32 0.0, %v3681
    %v3683 = vpop.f32.mrb[0].mxu0
    %v3684 = vpop.f32.mrb[0].mxu0
    %v3685 = vadd.f32 0.0, %v3684
    %v3686 = vpop.f32.mrb[0].mxu0
    %3687 = vmatprep.mubr.bf16.mxu0 0
    %3688 = vmatmul.mubr.bf16.gmra.mrb[0].mxu0 %v3536
    %v3689 = vpop.f32.mrb[0].mxu0
    %v3690 = vadd.f32 0.0, %v3689
    %v3691 = vpop.f32.mrb[0].mxu0
    %v3692 = vpop.f32.mrb[0].mxu0
    %v3693 = vadd.f32 0.0, %v3692
    %v3694 = vpop.f32.mrb[0].mxu0
    %3695 = vmatprep.mubr.bf16.mxu0 0
    %3696 = vmatmul.mubr.bf16.gmra.mrb[0].mxu0 %v3537
    %v3697 = vpop.f32.mrb[0].mxu0
    %v3698 = vadd.f32 0.0, %v3697
    %v3699 = vpop.f32.mrb[0].mxu0
    %v3700 = vpop.f32.mrb[0].mxu0
    %v3701 = vadd.f32 0.0, %v3700
    %v3702 = vpop.f32.mrb[0].mxu0
    %3703 = vmatprep.mubr.bf16.mxu0 0
    %3704 = vmatmul.mubr.bf16.gmra.mrb[0].mxu0 %v3538
    %v3705 = vpop.f32.mrb[0].mxu0
    %v3706 = vadd.f32 0.0, %v3705
    %v3707 = vpop.f32.mrb[0].mxu0
    %v3708 = vpop.f32.mrb[0].mxu0
    %v3709 = vadd.f32 0.0, %v3708
    %v3710 = vpop.f32.mrb[0].mxu0
    %3711 = vmatprep.mubr.bf16.mxu0 0
    %3712 = vmatmul.mubr.bf16.gmra.mrb[0].mxu0 %v3539
    %v3713 = vpop.f32.mrb[0].mxu0
    %v3714 = vadd.f32 0.0, %v3713
    %v3715 = vpop.f32.mrb[0].mxu0
    %v3716 = vpop.f32.mrb[0].mxu0
    %v3717 = vadd.f32 0.0, %v3716
    %v3718 = vpop.f32.mrb[0].mxu0
    %3719 = vmatprep.mubr.bf16.mxu0 0
    %3720 = vmatmul.mubr.bf16.gmra.mrb[0].mxu0 %v3540
    %v3721 = vpop.f32.mrb[0].mxu0
    %v3722 = vadd.f32 0.0, %v3721
    %v3723 = vpop.f32.mrb[0].mxu0
    %v3724 = vpop.f32.mrb[0].mxu0
    %v3725 = vadd.f32 0.0, %v3724
    %v3726 = vpop.f32.mrb[0].mxu0
    %3727 = vmatprep.mubr.bf16.mxu0 0
    %3728 = vmatmul.mubr.bf16.gmra.mrb[0].mxu0 %v3541
    %v3729 = vpop.f32.mrb[0].mxu0
    %v3730 = vadd.f32 0.0, %v3729
    %v3731 = vpop.f32.mrb[0].mxu0
    %v3732 = vpop.f32.mrb[0].mxu0
    %v3733 = vadd.f32 0.0, %v3732
    %v3734 = vpop.f32.mrb[0].mxu0
    %3735 = vmatprep.mubr.bf16.mxu0 0
    %3736 = vmatmul.mubr.bf16.gmra.mrb[0].mxu0 %v3542
    %v3737 = vpop.f32.mrb[0].mxu0
    %v3738 = vadd.f32 0.0, %v3737
    %v3739 = vpop.f32.mrb[0].mxu0
    %v3740 = vpop.f32.mrb[0].mxu0
    %v3741 = vadd.f32 0.0, %v3740
    %v3742 = vpop.f32.mrb[0].mxu0
    %3743 = vmatprep.mubr.bf16.mxu0 0
    %3744 = vmatmul.mubr.bf16.gmra.mrb[0].mxu0 %v3543
    %v3745 = vpop.f32.mrb[0].mxu0
    %v3746 = vadd.f32 0.0, %v3745
    %v3747 = vpop.f32.mrb[0].mxu0
    %v3748 = vpop.f32.mrb[0].mxu0
    %v3749 = vadd.f32 0.0, %v3748
    %v3750 = vpop.f32.mrb[0].mxu0
    %3751 = vmatprep.mubr.bf16.mxu0 0
    %3752 = vmatmul.mubr.bf16.gmra.mrb[0].mxu0 %v3544
    %v3753 = vpop.f32.mrb[0].mxu0
    %v3754 = vadd.f32 0.0, %v3753
    %v3755 = vpop.f32.mrb[0].mxu0
    %v3756 = vpop.f32.mrb[0].mxu0
    %v3757 = vadd.f32 0.0, %v3756
    %v3758 = vpop.f32.mrb[0].mxu0
    %3759 = vmatprep.mubr.bf16.mxu0 0
    %3760 = vmatmul.mubr.bf16.gmra.mrb[0].mxu0 %v3545
    %v3761 = vpop.f32.mrb[0].mxu0
    %v3762 = vadd.f32 0.0, %v3761
    %v3763 = vpop.f32.mrb[0].mxu0
    %v3764 = vpop.f32.mrb[0].mxu0
    %v3765 = vadd.f32 0.0, %v3764
    %v3766 = vpop.f32.mrb[0].mxu0
    %3767 = vmatprep.mubr.bf16.mxu0 0
    %3768 = vmatmul.mubr.bf16.gmra.mrb[0].mxu0 %v3546
    %v3769 = vpop.f32.mrb[0].mxu0
    %v3770 = vadd.f32 0.0, %v3769
    %v3771 = vpop.f32.mrb[0].mxu0
    %v3772 = vpop.f32.mrb[0].mxu0
    %v3773 = vadd.f32 0.0, %v3772
    %v3774 = vpop.f32.mrb[0].mxu0
    %3775 = vmatprep.mubr.bf16.mxu0 0
    %3776 = vmatmul.mubr.bf16.gmra.mrb[0].mxu0 %v3547
    %v3777 = vpop.f32.mrb[0].mxu0
    %v3778 = vadd.f32 0.0, %v3777
    %v3779 = vpop.f32.mrb[0].mxu0
    %v3780 = vpop.f32.mrb[0].mxu0
    %v3781 = vadd.f32 0.0, %v3780
    %v3782 = vpop.f32.mrb[0].mxu0
    %3783 = vmatprep.mubr.bf16.mxu0 0
    %3784 = vmatmul.mubr.bf16.gmra.mrb[0].mxu0 %v3548
    %v3785 = vpop.f32.mrb[0].mxu0
    %v3786 = vadd.f32 0.0, %v3785
    %v3787 = vpop.f32.mrb[0].mxu0
    %v3788 = vpop.f32.mrb[0].mxu0
    %v3789 = vadd.f32 0.0, %v3788
    %v3790 = vpop.f32.mrb[0].mxu0
    %3791 = vmatprep.mubr.bf16.mxu0 0
    %3792 = vmatmul.mubr.bf16.gmra.mrb[0].mxu0 %v3549
    %v3793 = vpop.f32.mrb[0].mxu0
    %v3794 = vadd.f32 0.0, %v3793
    %v3795 = vpop.f32.mrb[0].mxu0
    %v3796 = vpop.f32.mrb[0].mxu0
    %v3797 = vadd.f32 0.0, %v3796
    %v3798 = vpop.f32.mrb[0].mxu0
    %3799 = vmatprep.mubr.bf16.mxu0 0
    %3800 = vmatmul.mubr.bf16.gmra.mrb[0].mxu0 %v3550
    %v3801 = vpop.f32.mrb[0].mxu0
    %v3802 = vadd.f32 0.0, %v3801
    %v3803 = vpop.f32.mrb[0].mxu0
    %v3804 = vpop.f32.mrb[0].mxu0
    %v3805 = vadd.f32 0.0, %v3804
    %v3806 = vpop.f32.mrb[0].mxu0
    %3807 = vdwg.mxu0
    %v3808 = vadd.f32 %v3551, %v3682
    %v3809 = vadd.f32 %v3552, %v3685
    %v3810 = vadd.f32 %v3553, %v3690
    %v3811 = vadd.f32 %v3554, %v3693
    %v3812 = vadd.f32 %v3555, %v3698
    %v3813 = vadd.f32 %v3556, %v3701
    %v3814 = vadd.f32 %v3557, %v3706
    %v3815 = vadd.f32 %v3558, %v3709
    %v3816 = vadd.f32 %v3559, %v3714
    %v3817 = vadd.f32 %v3560, %v3717
    %v3818 = vadd.f32 %v3561, %v3722
    %v3819 = vadd.f32 %v3562, %v3725
    %v3820 = vadd.f32 %v3563, %v3730
    %v3821 = vadd.f32 %v3564, %v3733
    %v3822 = vadd.f32 %v3565, %v3738
    %v3823 = vadd.f32 %v3566, %v3741
    %v3824 = vadd.f32 %v3567, %v3746
    %v3825 = vadd.f32 %v3568, %v3749
    %v3826 = vadd.f32 %v3569, %v3754
    %v3827 = vadd.f32 %v3570, %v3757
    %v3828 = vadd.f32 %v3571, %v3762
    %v3829 = vadd.f32 %v3572, %v3765
    %v3830 = vadd.f32 %v3573, %v3770
    %v3831 = vadd.f32 %v3574, %v3773
    %v3832 = vadd.f32 %v3575, %v3778
    %v3833 = vadd.f32 %v3576, %v3781
    %v3834 = vadd.f32 %v3577, %v3786
    %v3835 = vadd.f32 %v3578, %v3789
    %v3836 = vadd.f32 %v3579, %v3794
    %v3837 = vadd.f32 %v3580, %v3797
    %v3838 = vadd.f32 %v3581, %v3802
    %v3839 = vadd.f32 %v3582, %v3805
    %3840 = vst [vmem:[#allocation13] sm:$0xff] %v3808
    %3841 = vst [vmem:[#allocation13 + $0x8] sm:$0xff] %v3809
    %3842 = vst [vmem:[#allocation13 + $0x10] sm:$0xff] %v3810
    %3843 = vst [vmem:[#allocation13 + $0x18] sm:$0xff] %v3811
    %3844 = vst [vmem:[#allocation13 + $0x20] sm:$0xff] %v3812
    %3845 = vst [vmem:[#allocation13 + $0x28] sm:$0xff] %v3813
    %3846 = vst [vmem:[#allocation13 + $0x30] sm:$0xff] %v3814
    %3847 = vst [vmem:[#allocation13 + $0x38] sm:$0xff] %v3815
    %3848 = vst [vmem:[#allocation13 + $0x40] sm:$0xff] %v3816
    %3849 = vst [vmem:[#allocation13 + $0x48] sm:$0xff] %v3817
    %3850 = vst [vmem:[#allocation13 + $0x50] sm:$0xff] %v3818
    %3851 = vst [vmem:[#allocation13 + $0x58] sm:$0xff] %v3819
    %3852 = vst [vmem:[#allocation13 + $0x60] sm:$0xff] %v3820
    %3853 = vst [vmem:[#allocation13 + $0x68] sm:$0xff] %v3821
    %3854 = vst [vmem:[#allocation13 + $0x70] sm:$0xff] %v3822
    %3855 = vst [vmem:[#allocation13 + $0x78] sm:$0xff] %v3823
    %3856 = vst [vmem:[#allocation13 + $0x80] sm:$0xff] %v3824
    %3857 = vst [vmem:[#allocation13 + $0x88] sm:$0xff] %v3825
    %3858 = vst [vmem:[#allocation13 + $0x90] sm:$0xff] %v3826
    %3859 = vst [vmem:[#allocation13 + $0x98] sm:$0xff] %v3827
    %3860 = vst [vmem:[#allocation13 + $0xa0] sm:$0xff] %v3828
    %3861 = vst [vmem:[#allocation13 + $0xa8] sm:$0xff] %v3829
    %3862 = vst [vmem:[#allocation13 + $0xb0] sm:$0xff] %v3830
    %3863 = vst [vmem:[#allocation13 + $0xb8] sm:$0xff] %v3831
    %3864 = vst [vmem:[#allocation13 + $0xc0] sm:$0xff] %v3832
    %3865 = vst [vmem:[#allocation13 + $0xc8] sm:$0xff] %v3833
    %3866 = vst [vmem:[#allocation13 + $0xd0] sm:$0xff] %v3834
    %3867 = vst [vmem:[#allocation13 + $0xd8] sm:$0xff] %v3835
    %3868 = vst [vmem:[#allocation13 + $0xe0] sm:$0xff] %v3836
    %3869 = vst [vmem:[#allocation13 + $0xe8] sm:$0xff] %v3837
    %3870 = vst [vmem:[#allocation13 + $0xf0] sm:$0xff] %v3838
    %3871 = vst [vmem:[#allocation13 + $0xf8] sm:$0xff] %v3839
    %v3872 = vld [vmem:[#allocation10 + $0x8] sm:$0xf]
    %v3873 = vld [vmem:[#allocation10 + $0x18] sm:$0xf]
    %v3874 = vld [vmem:[#allocation10 + $0x28] sm:$0xf]
    %v3875 = vld [vmem:[#allocation10 + $0x38] sm:$0xf]
    %v3876 = vld [vmem:[#allocation10 + $0x48] sm:$0xf]
    %v3877 = vld [vmem:[#allocation10 + $0x58] sm:$0xf]
    %v3878 = vld [vmem:[#allocation10 + $0x68] sm:$0xf]
    %v3879 = vld [vmem:[#allocation10 + $0x78] sm:$0xf]
    %v3880 = vld [vmem:[#allocation10 + $0x88] sm:$0xf]
    %v3881 = vld [vmem:[#allocation10 + $0x98] sm:$0xf]
    %v3882 = vld [vmem:[#allocation10 + $0xa8] sm:$0xf]
    %v3883 = vld [vmem:[#allocation10 + $0xb8] sm:$0xf]
    %v3884 = vld [vmem:[#allocation10 + $0xc8] sm:$0xf]
    %v3885 = vld [vmem:[#allocation10 + $0xd8] sm:$0xf]
    %v3886 = vld [vmem:[#allocation10 + $0xe8] sm:$0xf]
    %v3887 = vld [vmem:[#allocation10 + $0xf8] sm:$0xf]
    %v3888 = vld [vmem:[#allocation10 + $0x108] sm:$0xf]
    %v3889 = vld [vmem:[#allocation10 + $0x118] sm:$0xf]
    %v3890 = vld [vmem:[#allocation10 + $0x128] sm:$0xf]
    %v3891 = vld [vmem:[#allocation10 + $0x138] sm:$0xf]
    %v3892 = vld [vmem:[#allocation10 + $0x148] sm:$0xf]
    %v3893 = vld [vmem:[#allocation10 + $0x158] sm:$0xf]
    %v3894 = vld [vmem:[#allocation10 + $0x168] sm:$0xf]
    %v3895 = vld [vmem:[#allocation10 + $0x178] sm:$0xf]
    %v3896 = vld [vmem:[#allocation10 + $0x188] sm:$0xf]
    %v3897 = vld [vmem:[#allocation10 + $0x198] sm:$0xf]
    %v3898 = vld [vmem:[#allocation10 + $0x1a8] sm:$0xf]
    %v3899 = vld [vmem:[#allocation10 + $0x1b8] sm:$0xf]
    %v3900 = vld [vmem:[#allocation10 + $0x1c8] sm:$0xf]
    %v3901 = vld [vmem:[#allocation10 + $0x1d8] sm:$0xf]
    %v3902 = vld [vmem:[#allocation10 + $0x1e8] sm:$0xf]
    %v3903 = vld [vmem:[#allocation10 + $0x1f8] sm:$0xf]
    %v3920 = vunpack.c.l.b16 %v3888
    %v3921 = vunpack.c.l.b16 %v3889
    %v3922 = vunpack.c.l.b16 %v3890
    %v3923 = vunpack.c.l.b16 %v3891
    %v3924 = vunpack.c.l.b16 %v3892
    %v3925 = vunpack.c.l.b16 %v3893
    %v3926 = vunpack.c.l.b16 %v3894
    %v3927 = vunpack.c.l.b16 %v3895
    %v3928 = vunpack.c.l.b16 %v3896
    %v3929 = vunpack.c.l.b16 %v3897
    %v3930 = vunpack.c.l.b16 %v3898
    %v3931 = vunpack.c.l.b16 %v3899
    %v3932 = vunpack.c.l.b16 %v3900
    %v3933 = vunpack.c.l.b16 %v3901
    %v3934 = vunpack.c.l.b16 %v3902
    %v3935 = vunpack.c.l.b16 %v3903
    %v3936 = vpack.c.b16 %v3921, %v3920
    %v3937 = vpack.c.b16 %v3923, %v3922
    %v3938 = vpack.c.b16 %v3925, %v3924
    %v3939 = vpack.c.b16 %v3927, %v3926
    %v3940 = vpack.c.b16 %v3929, %v3928
    %v3941 = vpack.c.b16 %v3931, %v3930
    %v3942 = vpack.c.b16 %v3933, %v3932
    %v3943 = vpack.c.b16 %v3935, %v3934
    %3952 = vmatprep.subr.bf16.mxu0 0
    %3953 = vmatpush1.bf16.msra.mxu0 %v3936
    %3954 = vmatprep.subr.bf16.mxu0 0
    %3955 = vmatpush1.bf16.msra.mxu0 %v3937
    %3956 = vmatprep.subr.bf16.mxu0 0
    %3957 = vmatpush1.bf16.msra.mxu0 %v3938
    %3958 = vmatprep.subr.bf16.mxu0 0
    %3959 = vmatpush1.bf16.msra.mxu0 %v3939
    %3960 = vmatprep.subr.bf16.mxu0 0
    %3961 = vmatpush1.bf16.msra.mxu0 %v3940
    %3962 = vmatprep.subr.bf16.mxu0 0
    %3963 = vmatpush1.bf16.msra.mxu0 %v3941
    %3964 = vmatprep.subr.bf16.mxu0 0
    %3965 = vmatpush1.bf16.msra.mxu0 %v3942
    %3966 = vmatprep.subr.bf16.mxu0 0
    %3967 = vmatpush1.bf16.msra.mxu0 %v3943
    %3968 = vmatprep.subr.bf16.mxu0 0
    %3969 = vmatpush1.bf16.msra.mxu0 0
    %3970 = vmatprep.subr.bf16.mxu0 0
    %3971 = vmatpush1.bf16.msra.mxu0 0
    %3972 = vmatprep.subr.bf16.mxu0 0
    %3973 = vmatpush1.bf16.msra.mxu0 0
    %3974 = vmatprep.subr.bf16.mxu0 0
    %3975 = vmatpush1.bf16.msra.mxu0 0
    %3976 = vmatprep.subr.bf16.mxu0 0
    %3977 = vmatpush1.bf16.msra.mxu0 0
    %3978 = vmatprep.subr.bf16.mxu0 0
    %3979 = vmatpush1.bf16.msra.mxu0 0
    %3980 = vmatprep.subr.bf16.mxu0 0
    %3981 = vmatpush1.bf16.msra.mxu0 0
    %3982 = vmatprep.subr.bf16.mxu0 0
    %3983 = vmatpush1.bf16.msra.mxu0 0
    %3984 = vmatprep.mubr.bf16.mxu0 0
    %3985 = vmatmul.mubr.bf16.gmra.mrb[0].mxu0 %v1729
    %v3986 = vpop.f32.mrb[0].mxu0
    %v3987 = vadd.f32 0.0, %v3986
    %v3988 = vpop.f32.mrb[0].mxu0
    %v3989 = vpop.f32.mrb[0].mxu0
    %v3990 = vadd.f32 0.0, %v3989
    %v3991 = vpop.f32.mrb[0].mxu0
    %3992 = vmatprep.mubr.bf16.mxu0 0
    %3993 = vmatmul.mubr.bf16.gmra.mrb[0].mxu0 %v1730
    %v3994 = vpop.f32.mrb[0].mxu0
    %v3995 = vadd.f32 0.0, %v3994
    %v3996 = vpop.f32.mrb[0].mxu0
    %v3997 = vpop.f32.mrb[0].mxu0
    %v3998 = vadd.f32 0.0, %v3997
    %v3999 = vpop.f32.mrb[0].mxu0
    %4000 = vmatprep.mubr.bf16.mxu0 0
    %4001 = vmatmul.mubr.bf16.gmra.mrb[0].mxu0 %v1731
    %v4002 = vpop.f32.mrb[0].mxu0
    %v4003 = vadd.f32 0.0, %v4002
    %v4004 = vpop.f32.mrb[0].mxu0
    %v4005 = vpop.f32.mrb[0].mxu0
    %v4006 = vadd.f32 0.0, %v4005
    %v4007 = vpop.f32.mrb[0].mxu0
    %4008 = vmatprep.mubr.bf16.mxu0 0
    %4009 = vmatmul.mubr.bf16.gmra.mrb[0].mxu0 %v1732
    %v4010 = vpop.f32.mrb[0].mxu0
    %v4011 = vadd.f32 0.0, %v4010
    %v4012 = vpop.f32.mrb[0].mxu0
    %v4013 = vpop.f32.mrb[0].mxu0
    %v4014 = vadd.f32 0.0, %v4013
    %v4015 = vpop.f32.mrb[0].mxu0
    %4016 = vmatprep.mubr.bf16.mxu0 0
    %4017 = vmatmul.mubr.bf16.gmra.mrb[0].mxu0 %v1733
    %v4018 = vpop.f32.mrb[0].mxu0
    %v4019 = vadd.f32 0.0, %v4018
    %v4020 = vpop.f32.mrb[0].mxu0
    %v4021 = vpop.f32.mrb[0].mxu0
    %v4022 = vadd.f32 0.0, %v4021
    %v4023 = vpop.f32.mrb[0].mxu0
    %4024 = vmatprep.mubr.bf16.mxu0 0
    %4025 = vmatmul.mubr.bf16.gmra.mrb[0].mxu0 %v1734
    %v4026 = vpop.f32.mrb[0].mxu0
    %v4027 = vadd.f32 0.0, %v4026
    %v4028 = vpop.f32.mrb[0].mxu0
    %v4029 = vpop.f32.mrb[0].mxu0
    %v4030 = vadd.f32 0.0, %v4029
    %v4031 = vpop.f32.mrb[0].mxu0
    %4032 = vmatprep.mubr.bf16.mxu0 0
    %4033 = vmatmul.mubr.bf16.gmra.mrb[0].mxu0 %v1735
    %v4034 = vpop.f32.mrb[0].mxu0
    %v4035 = vadd.f32 0.0, %v4034
    %v4036 = vpop.f32.mrb[0].mxu0
    %v4037 = vpop.f32.mrb[0].mxu0
    %v4038 = vadd.f32 0.0, %v4037
    %v4039 = vpop.f32.mrb[0].mxu0
    %4040 = vmatprep.mubr.bf16.mxu0 0
    %4041 = vmatmul.mubr.bf16.gmra.mrb[0].mxu0 %v1736
    %v4042 = vpop.f32.mrb[0].mxu0
    %v4043 = vadd.f32 0.0, %v4042
    %v4044 = vpop.f32.mrb[0].mxu0
    %v4045 = vpop.f32.mrb[0].mxu0
    %v4046 = vadd.f32 0.0, %v4045
    %v4047 = vpop.f32.mrb[0].mxu0
    %4048 = vmatprep.mubr.bf16.mxu0 0
    %4049 = vmatmul.mubr.bf16.gmra.mrb[0].mxu0 %v1737
    %v4050 = vpop.f32.mrb[0].mxu0
    %v4051 = vadd.f32 0.0, %v4050
    %v4052 = vpop.f32.mrb[0].mxu0
    %v4053 = vpop.f32.mrb[0].mxu0
    %v4054 = vadd.f32 0.0, %v4053
    %v4055 = vpop.f32.mrb[0].mxu0
    %4056 = vmatprep.mubr.bf16.mxu0 0
    %4057 = vmatmul.mubr.bf16.gmra.mrb[0].mxu0 %v1738
    %v4058 = vpop.f32.mrb[0].mxu0
    %v4059 = vadd.f32 0.0, %v4058
    %v4060 = vpop.f32.mrb[0].mxu0
    %v4061 = vpop.f32.mrb[0].mxu0
    %v4062 = vadd.f32 0.0, %v4061
    %v4063 = vpop.f32.mrb[0].mxu0
    %4064 = vmatprep.mubr.bf16.mxu0 0
    %4065 = vmatmul.mubr.bf16.gmra.mrb[0].mxu0 %v1739
    %v4066 = vpop.f32.mrb[0].mxu0
    %v4067 = vadd.f32 0.0, %v4066
    %v4068 = vpop.f32.mrb[0].mxu0
    %v4069 = vpop.f32.mrb[0].mxu0
    %v4070 = vadd.f32 0.0, %v4069
    %v4071 = vpop.f32.mrb[0].mxu0
    %4072 = vmatprep.mubr.bf16.mxu0 0
    %4073 = vmatmul.mubr.bf16.gmra.mrb[0].mxu0 %v1740
    %v4074 = vpop.f32.mrb[0].mxu0
    %v4075 = vadd.f32 0.0, %v4074
    %v4076 = vpop.f32.mrb[0].mxu0
    %v4077 = vpop.f32.mrb[0].mxu0
    %v4078 = vadd.f32 0.0, %v4077
    %v4079 = vpop.f32.mrb[0].mxu0
    %4080 = vmatprep.mubr.bf16.mxu0 0
    %4081 = vmatmul.mubr.bf16.gmra.mrb[0].mxu0 %v1741
    %v4082 = vpop.f32.mrb[0].mxu0
    %v4083 = vadd.f32 0.0, %v4082
    %v4084 = vpop.f32.mrb[0].mxu0
    %v4085 = vpop.f32.mrb[0].mxu0
    %v4086 = vadd.f32 0.0, %v4085
    %v4087 = vpop.f32.mrb[0].mxu0
    %4088 = vmatprep.mubr.bf16.mxu0 0
    %4089 = vmatmul.mubr.bf16.gmra.mrb[0].mxu0 %v1742
    %v4090 = vpop.f32.mrb[0].mxu0
    %v4091 = vadd.f32 0.0, %v4090
    %v4092 = vpop.f32.mrb[0].mxu0
    %v4093 = vpop.f32.mrb[0].mxu0
    %v4094 = vadd.f32 0.0, %v4093
    %v4095 = vpop.f32.mrb[0].mxu0
    %4096 = vmatprep.mubr.bf16.mxu0 0
    %4097 = vmatmul.mubr.bf16.gmra.mrb[0].mxu0 %v1743
    %v4098 = vpop.f32.mrb[0].mxu0
    %v4099 = vadd.f32 0.0, %v4098
    %v4100 = vpop.f32.mrb[0].mxu0
    %v4101 = vpop.f32.mrb[0].mxu0
    %v4102 = vadd.f32 0.0, %v4101
    %v4103 = vpop.f32.mrb[0].mxu0
    %4104 = vmatprep.mubr.bf16.mxu0 0
    %4105 = vmatmul.mubr.bf16.gmra.mrb[0].mxu0 %v1744
    %v4106 = vpop.f32.mrb[0].mxu0
    %v4107 = vadd.f32 0.0, %v4106
    %v4108 = vpop.f32.mrb[0].mxu0
    %v4109 = vpop.f32.mrb[0].mxu0
    %v4110 = vadd.f32 0.0, %v4109
    %v4111 = vpop.f32.mrb[0].mxu0
    %4112 = vdwg.mxu0
    %v4129 = vunpack.c.l.b16 %v3872
    %v4130 = vunpack.c.l.b16 %v3873
    %v4131 = vunpack.c.l.b16 %v3874
    %v4132 = vunpack.c.l.b16 %v3875
    %v4133 = vunpack.c.l.b16 %v3876
    %v4134 = vunpack.c.l.b16 %v3877
    %v4135 = vunpack.c.l.b16 %v3878
    %v4136 = vunpack.c.l.b16 %v3879
    %v4137 = vunpack.c.l.b16 %v3880
    %v4138 = vunpack.c.l.b16 %v3881
    %v4139 = vunpack.c.l.b16 %v3882
    %v4140 = vunpack.c.l.b16 %v3883
    %v4141 = vunpack.c.l.b16 %v3884
    %v4142 = vunpack.c.l.b16 %v3885
    %v4143 = vunpack.c.l.b16 %v3886
    %v4144 = vunpack.c.l.b16 %v3887
    %v4145 = vpack.c.b16 %v4130, %v4129
    %v4146 = vpack.c.b16 %v4132, %v4131
    %v4147 = vpack.c.b16 %v4134, %v4133
    %v4148 = vpack.c.b16 %v4136, %v4135
    %v4149 = vpack.c.b16 %v4138, %v4137
    %v4150 = vpack.c.b16 %v4140, %v4139
    %v4151 = vpack.c.b16 %v4142, %v4141
    %v4152 = vpack.c.b16 %v4144, %v4143
    %4161 = vmatprep.subr.bf16.mxu0 0
    %4162 = vmatpush1.bf16.msra.mxu0 %v4145
    %4163 = vmatprep.subr.bf16.mxu0 0
    %4164 = vmatpush1.bf16.msra.mxu0 %v4146
    %4165 = vmatprep.subr.bf16.mxu0 0
    %4166 = vmatpush1.bf16.msra.mxu0 %v4147
    %4167 = vmatprep.subr.bf16.mxu0 0
    %4168 = vmatpush1.bf16.msra.mxu0 %v4148
    %4169 = vmatprep.subr.bf16.mxu0 0
    %4170 = vmatpush1.bf16.msra.mxu0 %v4149
    %4171 = vmatprep.subr.bf16.mxu0 0
    %4172 = vmatpush1.bf16.msra.mxu0 %v4150
    %4173 = vmatprep.subr.bf16.mxu0 0
    %4174 = vmatpush1.bf16.msra.mxu0 %v4151
    %4175 = vmatprep.subr.bf16.mxu0 0
    %4176 = vmatpush1.bf16.msra.mxu0 %v4152
    %4177 = vmatprep.subr.bf16.mxu0 0
    %4178 = vmatpush1.bf16.msra.mxu0 0
    %4179 = vmatprep.subr.bf16.mxu0 0
    %4180 = vmatpush1.bf16.msra.mxu0 0
    %4181 = vmatprep.subr.bf16.mxu0 0
    %4182 = vmatpush1.bf16.msra.mxu0 0
    %4183 = vmatprep.subr.bf16.mxu0 0
    %4184 = vmatpush1.bf16.msra.mxu0 0
    %4185 = vmatprep.subr.bf16.mxu0 0
    %4186 = vmatpush1.bf16.msra.mxu0 0
    %4187 = vmatprep.subr.bf16.mxu0 0
    %4188 = vmatpush1.bf16.msra.mxu0 0
    %4189 = vmatprep.subr.bf16.mxu0 0
    %4190 = vmatpush1.bf16.msra.mxu0 0
    %4191 = vmatprep.subr.bf16.mxu0 0
    %4192 = vmatpush1.bf16.msra.mxu0 0
    %4193 = vmatprep.mubr.bf16.mxu0 0
    %4194 = vmatmul.mubr.bf16.gmra.mrb[0].mxu0 %v1231
    %v4195 = vpop.f32.mrb[0].mxu0
    %v4196 = vadd.f32 %v3987, %v4195
    %v4197 = vpop.f32.mrb[0].mxu0
    %v4198 = vpop.f32.mrb[0].mxu0
    %v4199 = vadd.f32 %v3990, %v4198
    %v4200 = vpop.f32.mrb[0].mxu0
    %4201 = vmatprep.mubr.bf16.mxu0 0
    %4202 = vmatmul.mubr.bf16.gmra.mrb[0].mxu0 %v1232
    %v4203 = vpop.f32.mrb[0].mxu0
    %v4204 = vadd.f32 %v3995, %v4203
    %v4205 = vpop.f32.mrb[0].mxu0
    %v4206 = vpop.f32.mrb[0].mxu0
    %v4207 = vadd.f32 %v3998, %v4206
    %v4208 = vpop.f32.mrb[0].mxu0
    %4209 = vmatprep.mubr.bf16.mxu0 0
    %4210 = vmatmul.mubr.bf16.gmra.mrb[0].mxu0 %v1233
    %v4211 = vpop.f32.mrb[0].mxu0
    %v4212 = vadd.f32 %v4003, %v4211
    %v4213 = vpop.f32.mrb[0].mxu0
    %v4214 = vpop.f32.mrb[0].mxu0
    %v4215 = vadd.f32 %v4006, %v4214
    %v4216 = vpop.f32.mrb[0].mxu0
    %4217 = vmatprep.mubr.bf16.mxu0 0
    %4218 = vmatmul.mubr.bf16.gmra.mrb[0].mxu0 %v1234
    %v4219 = vpop.f32.mrb[0].mxu0
    %v4220 = vadd.f32 %v4011, %v4219
    %v4221 = vpop.f32.mrb[0].mxu0
    %v4222 = vpop.f32.mrb[0].mxu0
    %v4223 = vadd.f32 %v4014, %v4222
    %v4224 = vpop.f32.mrb[0].mxu0
    %4225 = vmatprep.mubr.bf16.mxu0 0
    %4226 = vmatmul.mubr.bf16.gmra.mrb[0].mxu0 %v1235
    %v4227 = vpop.f32.mrb[0].mxu0
    %v4228 = vadd.f32 %v4019, %v4227
    %v4229 = vpop.f32.mrb[0].mxu0
    %v4230 = vpop.f32.mrb[0].mxu0
    %v4231 = vadd.f32 %v4022, %v4230
    %v4232 = vpop.f32.mrb[0].mxu0
    %4233 = vmatprep.mubr.bf16.mxu0 0
    %4234 = vmatmul.mubr.bf16.gmra.mrb[0].mxu0 %v1236
    %v4235 = vpop.f32.mrb[0].mxu0
    %v4236 = vadd.f32 %v4027, %v4235
    %v4237 = vpop.f32.mrb[0].mxu0
    %v4238 = vpop.f32.mrb[0].mxu0
    %v4239 = vadd.f32 %v4030, %v4238
    %v4240 = vpop.f32.mrb[0].mxu0
    %4241 = vmatprep.mubr.bf16.mxu0 0
    %4242 = vmatmul.mubr.bf16.gmra.mrb[0].mxu0 %v1237
    %v4243 = vpop.f32.mrb[0].mxu0
    %v4244 = vadd.f32 %v4035, %v4243
    %v4245 = vpop.f32.mrb[0].mxu0
    %v4246 = vpop.f32.mrb[0].mxu0
    %v4247 = vadd.f32 %v4038, %v4246
    %v4248 = vpop.f32.mrb[0].mxu0
    %4249 = vmatprep.mubr.bf16.mxu0 0
    %4250 = vmatmul.mubr.bf16.gmra.mrb[0].mxu0 %v1238
    %v4251 = vpop.f32.mrb[0].mxu0
    %v4252 = vadd.f32 %v4043, %v4251
    %v4253 = vpop.f32.mrb[0].mxu0
    %v4254 = vpop.f32.mrb[0].mxu0
    %v4255 = vadd.f32 %v4046, %v4254
    %v4256 = vpop.f32.mrb[0].mxu0
    %4257 = vmatprep.mubr.bf16.mxu0 0
    %4258 = vmatmul.mubr.bf16.gmra.mrb[0].mxu0 %v1239
    %v4259 = vpop.f32.mrb[0].mxu0
    %v4260 = vadd.f32 %v4051, %v4259
    %v4261 = vpop.f32.mrb[0].mxu0
    %v4262 = vpop.f32.mrb[0].mxu0
    %v4263 = vadd.f32 %v4054, %v4262
    %v4264 = vpop.f32.mrb[0].mxu0
    %4265 = vmatprep.mubr.bf16.mxu0 0
    %4266 = vmatmul.mubr.bf16.gmra.mrb[0].mxu0 %v1240
    %v4267 = vpop.f32.mrb[0].mxu0
    %v4268 = vadd.f32 %v4059, %v4267
    %v4269 = vpop.f32.mrb[0].mxu0
    %v4270 = vpop.f32.mrb[0].mxu0
    %v4271 = vadd.f32 %v4062, %v4270
    %v4272 = vpop.f32.mrb[0].mxu0
    %4273 = vmatprep.mubr.bf16.mxu0 0
    %4274 = vmatmul.mubr.bf16.gmra.mrb[0].mxu0 %v1241
    %v4275 = vpop.f32.mrb[0].mxu0
    %v4276 = vadd.f32 %v4067, %v4275
    %v4277 = vpop.f32.mrb[0].mxu0
    %v4278 = vpop.f32.mrb[0].mxu0
    %v4279 = vadd.f32 %v4070, %v4278
    %v4280 = vpop.f32.mrb[0].mxu0
    %4281 = vmatprep.mubr.bf16.mxu0 0
    %4282 = vmatmul.mubr.bf16.gmra.mrb[0].mxu0 %v1242
    %v4283 = vpop.f32.mrb[0].mxu0
    %v4284 = vadd.f32 %v4075, %v4283
    %v4285 = vpop.f32.mrb[0].mxu0
    %v4286 = vpop.f32.mrb[0].mxu0
    %v4287 = vadd.f32 %v4078, %v4286
    %v4288 = vpop.f32.mrb[0].mxu0
    %4289 = vmatprep.mubr.bf16.mxu0 0
    %4290 = vmatmul.mubr.bf16.gmra.mrb[0].mxu0 %v1243
    %v4291 = vpop.f32.mrb[0].mxu0
    %v4292 = vadd.f32 %v4083, %v4291
    %v4293 = vpop.f32.mrb[0].mxu0
    %v4294 = vpop.f32.mrb[0].mxu0
    %v4295 = vadd.f32 %v4086, %v4294
    %v4296 = vpop.f32.mrb[0].mxu0
    %4297 = vmatprep.mubr.bf16.mxu0 0
    %4298 = vmatmul.mubr.bf16.gmra.mrb[0].mxu0 %v1244
    %v4299 = vpop.f32.mrb[0].mxu0
    %v4300 = vadd.f32 %v4091, %v4299
    %v4301 = vpop.f32.mrb[0].mxu0
    %v4302 = vpop.f32.mrb[0].mxu0
    %v4303 = vadd.f32 %v4094, %v4302
    %v4304 = vpop.f32.mrb[0].mxu0
    %4305 = vmatprep.mubr.bf16.mxu0 0
    %4306 = vmatmul.mubr.bf16.gmra.mrb[0].mxu0 %v1245
    %v4307 = vpop.f32.mrb[0].mxu0
    %v4308 = vadd.f32 %v4099, %v4307
    %v4309 = vpop.f32.mrb[0].mxu0
    %v4310 = vpop.f32.mrb[0].mxu0
    %v4311 = vadd.f32 %v4102, %v4310
    %v4312 = vpop.f32.mrb[0].mxu0
    %4313 = vmatprep.mubr.bf16.mxu0 0
    %4314 = vmatmul.mubr.bf16.gmra.mrb[0].mxu0 %v1246
    %v4315 = vpop.f32.mrb[0].mxu0
    %v4316 = vadd.f32 %v4107, %v4315
    %v4317 = vpop.f32.mrb[0].mxu0
    %v4318 = vpop.f32.mrb[0].mxu0
    %v4319 = vadd.f32 %v4110, %v4318
    %v4320 = vpop.f32.mrb[0].mxu0
    %4321 = vdwg.mxu0
    %v4322 = vld [vmem:[%s8 + $0x2] sm:$0x1]
    %v4323 = vld [vmem:[%s9 + $0x2] sm:$0x1]
    %v4324 = vadd.f32 %v4196, %v4199
    %v4325 = vadd.f32 %v4324, %v4204
    %v4326 = vadd.f32 %v4325, %v4207
    %v4327 = vadd.f32 %v4326, %v4212
    %v4328 = vadd.f32 %v4327, %v4215
    %v4329 = vadd.f32 %v4328, %v4220
    %v4330 = vadd.f32 %v4329, %v4223
    %v4331 = vadd.f32 %v4330, %v4228
    %v4332 = vadd.f32 %v4331, %v4231
    %v4333 = vadd.f32 %v4332, %v4236
    %v4334 = vadd.f32 %v4333, %v4239
    %v4335 = vadd.f32 %v4334, %v4244
    %v4336 = vadd.f32 %v4335, %v4247
    %v4337 = vadd.f32 %v4336, %v4252
    %v4338 = vadd.f32 %v4337, %v4255
    %v4339 = vadd.f32 %v4338, %v4260
    %v4340 = vadd.f32 %v4339, %v4263
    %v4341 = vadd.f32 %v4340, %v4268
    %v4342 = vadd.f32 %v4341, %v4271
    %v4343 = vadd.f32 %v4342, %v4276
    %v4344 = vadd.f32 %v4343, %v4279
    %v4345 = vadd.f32 %v4344, %v4284
    %v4346 = vadd.f32 %v4345, %v4287
    %v4347 = vadd.f32 %v4346, %v4292
    %v4348 = vadd.f32 %v4347, %v4295
    %v4349 = vadd.f32 %v4348, %v4300
    %v4350 = vadd.f32 %v4349, %v4303
    %v4351 = vadd.f32 %v4350, %v4308
    %v4352 = vadd.f32 %v4351, %v4311
    %v4353 = vadd.f32 %v4352, %v4316
    %v4354 = vadd.f32 %v4353, %v4319
    %v4355 = vrot.slane %v4354, 4
    %v4356 = vadd.f32 %v4354, %v4355
    %v4357 = vrot.slane %v4356, 2
    %v4358 = vadd.f32 %v4356, %v4357
    %v4359 = vrot.slane %v4358, 1
    %v4360 = vadd.f32 %v4358, %v4359
    %v4361 = vmul.f32 %v4360, 0.00390625
    %v4362 = vmul.f32 %v4196, %v4196
    %v4363 = vmul.f32 %v4199, %v4199
    %v4364 = vmul.f32 %v4204, %v4204
    %v4365 = vmul.f32 %v4207, %v4207
    %v4366 = vmul.f32 %v4212, %v4212
    %v4367 = vmul.f32 %v4215, %v4215
    %v4368 = vmul.f32 %v4220, %v4220
    %v4369 = vmul.f32 %v4223, %v4223
    %v4370 = vmul.f32 %v4228, %v4228
    %v4371 = vmul.f32 %v4231, %v4231
    %v4372 = vmul.f32 %v4236, %v4236
    %v4373 = vmul.f32 %v4239, %v4239
    %v4374 = vmul.f32 %v4244, %v4244
    %v4375 = vmul.f32 %v4247, %v4247
    %v4376 = vmul.f32 %v4252, %v4252
    %v4377 = vmul.f32 %v4255, %v4255
    %v4378 = vmul.f32 %v4260, %v4260
    %v4379 = vmul.f32 %v4263, %v4263
    %v4380 = vmul.f32 %v4268, %v4268
    %v4381 = vmul.f32 %v4271, %v4271
    %v4382 = vmul.f32 %v4276, %v4276
    %v4383 = vmul.f32 %v4279, %v4279
    %v4384 = vmul.f32 %v4284, %v4284
    %v4385 = vmul.f32 %v4287, %v4287
    %v4386 = vmul.f32 %v4292, %v4292
    %v4387 = vmul.f32 %v4295, %v4295
    %v4388 = vmul.f32 %v4300, %v4300
    %v4389 = vmul.f32 %v4303, %v4303
    %v4390 = vmul.f32 %v4308, %v4308
    %v4391 = vmul.f32 %v4311, %v4311
    %v4392 = vmul.f32 %v4316, %v4316
    %v4393 = vmul.f32 %v4319, %v4319
    %v4394 = vadd.f32 %v4362, %v4363
    %v4395 = vadd.f32 %v4394, %v4364
    %v4396 = vadd.f32 %v4395, %v4365
    %v4397 = vadd.f32 %v4396, %v4366
    %v4398 = vadd.f32 %v4397, %v4367
    %v4399 = vadd.f32 %v4398, %v4368
    %v4400 = vadd.f32 %v4399, %v4369
    %v4401 = vadd.f32 %v4400, %v4370
    %v4402 = vadd.f32 %v4401, %v4371
    %v4403 = vadd.f32 %v4402, %v4372
    %v4404 = vadd.f32 %v4403, %v4373
    %v4405 = vadd.f32 %v4404, %v4374
    %v4406 = vadd.f32 %v4405, %v4375
    %v4407 = vadd.f32 %v4406, %v4376
    %v4408 = vadd.f32 %v4407, %v4377
    %v4409 = vadd.f32 %v4408, %v4378
    %v4410 = vadd.f32 %v4409, %v4379
    %v4411 = vadd.f32 %v4410, %v4380
    %v4412 = vadd.f32 %v4411, %v4381
    %v4413 = vadd.f32 %v4412, %v4382
    %v4414 = vadd.f32 %v4413, %v4383
    %v4415 = vadd.f32 %v4414, %v4384
    %v4416 = vadd.f32 %v4415, %v4385
    %v4417 = vadd.f32 %v4416, %v4386
    %v4418 = vadd.f32 %v4417, %v4387
    %v4419 = vadd.f32 %v4418, %v4388
    %v4420 = vadd.f32 %v4419, %v4389
    %v4421 = vadd.f32 %v4420, %v4390
    %v4422 = vadd.f32 %v4421, %v4391
    %v4423 = vadd.f32 %v4422, %v4392
    %v4424 = vadd.f32 %v4423, %v4393
    %v4425 = vrot.slane %v4424, 4
    %v4426 = vadd.f32 %v4424, %v4425
    %v4427 = vrot.slane %v4426, 2
    %v4428 = vadd.f32 %v4426, %v4427
    %v4429 = vrot.slane %v4428, 1
    %v4430 = vadd.f32 %v4428, %v4429
    %v4431 = vmul.f32 %v4430, 0.00390625
    %v4432 = vmul.f32 %v4361, %v4361
    %v4433 = vsub.f32 %v4431, %v4432
    %v4434 = vadd.f32 %v4433, 1e-05
    %v4435 = vrsqrt.pop %v4434
    %v4436 = vmul.f32 %v4322, %v4435
    %v4437 = vmul.f32 %v4361, %v4436
    %v4438 = vsub.f32 %v4323, %v4437
    %v4440 = vlaneseq
    %v4441 = vshrl.u32 %v4440, 7
    %v4442 = vsub.s32 0, %v4441
    %v4443 = vrot.slane %v4436, %v4442
    %v4445 = vmul.f32 %v4196, %v4443
    %v4446 = vmul.f32 %v4199, %v4443
    %v4447 = vmul.f32 %v4204, %v4443
    %v4448 = vmul.f32 %v4207, %v4443
    %v4449 = vmul.f32 %v4212, %v4443
    %v4450 = vmul.f32 %v4215, %v4443
    %v4451 = vmul.f32 %v4220, %v4443
    %v4452 = vmul.f32 %v4223, %v4443
    %v4453 = vmul.f32 %v4228, %v4443
    %v4454 = vmul.f32 %v4231, %v4443
    %v4455 = vmul.f32 %v4236, %v4443
    %v4456 = vmul.f32 %v4239, %v4443
    %v4457 = vmul.f32 %v4244, %v4443
    %v4458 = vmul.f32 %v4247, %v4443
    %v4459 = vmul.f32 %v4252, %v4443
    %v4460 = vmul.f32 %v4255, %v4443
    %v4461 = vmul.f32 %v4260, %v4443
    %v4462 = vmul.f32 %v4263, %v4443
    %v4463 = vmul.f32 %v4268, %v4443
    %v4464 = vmul.f32 %v4271, %v4443
    %v4465 = vmul.f32 %v4276, %v4443
    %v4466 = vmul.f32 %v4279, %v4443
    %v4467 = vmul.f32 %v4284, %v4443
    %v4468 = vmul.f32 %v4287, %v4443
    %v4469 = vmul.f32 %v4292, %v4443
    %v4470 = vmul.f32 %v4295, %v4443
    %v4471 = vmul.f32 %v4300, %v4443
    %v4472 = vmul.f32 %v4303, %v4443
    %v4473 = vmul.f32 %v4308, %v4443
    %v4474 = vmul.f32 %v4311, %v4443
    %v4475 = vmul.f32 %v4316, %v4443
    %v4476 = vmul.f32 %v4319, %v4443
    %v4478 = vlaneseq
    %v4479 = vshrl.u32 %v4478, 7
    %v4480 = vsub.s32 0, %v4479
    %v4481 = vrot.slane %v4438, %v4480
    %v4483 = vadd.f32 %v4445, %v4481
    %v4484 = vadd.f32 %v4446, %v4481
    %v4485 = vadd.f32 %v4447, %v4481
    %v4486 = vadd.f32 %v4448, %v4481
    %v4487 = vadd.f32 %v4449, %v4481
    %v4488 = vadd.f32 %v4450, %v4481
    %v4489 = vadd.f32 %v4451, %v4481
    %v4490 = vadd.f32 %v4452, %v4481
    %v4491 = vadd.f32 %v4453, %v4481
    %v4492 = vadd.f32 %v4454, %v4481
    %v4493 = vadd.f32 %v4455, %v4481
    %v4494 = vadd.f32 %v4456, %v4481
    %v4495 = vadd.f32 %v4457, %v4481
    %v4496 = vadd.f32 %v4458, %v4481
    %v4497 = vadd.f32 %v4459, %v4481
    %v4498 = vadd.f32 %v4460, %v4481
    %v4499 = vadd.f32 %v4461, %v4481
    %v4500 = vadd.f32 %v4462, %v4481
    %v4501 = vadd.f32 %v4463, %v4481
    %v4502 = vadd.f32 %v4464, %v4481
    %v4503 = vadd.f32 %v4465, %v4481
    %v4504 = vadd.f32 %v4466, %v4481
    %v4505 = vadd.f32 %v4467, %v4481
    %v4506 = vadd.f32 %v4468, %v4481
    %v4507 = vadd.f32 %v4469, %v4481
    %v4508 = vadd.f32 %v4470, %v4481
    %v4509 = vadd.f32 %v4471, %v4481
    %v4510 = vadd.f32 %v4472, %v4481
    %v4511 = vadd.f32 %v4473, %v4481
    %v4512 = vadd.f32 %v4474, %v4481
    %v4513 = vadd.f32 %v4475, %v4481
    %v4514 = vadd.f32 %v4476, %v4481
    %v4515 = vmul.f32 %v4483, 0.2
    %v4516 = vmul.f32 %v4484, 0.2
    %v4517 = vmul.f32 %v4485, 0.2
    %v4518 = vmul.f32 %v4486, 0.2
    %v4519 = vmul.f32 %v4487, 0.2
    %v4520 = vmul.f32 %v4488, 0.2
    %v4521 = vmul.f32 %v4489, 0.2
    %v4522 = vmul.f32 %v4490, 0.2
    %v4523 = vmul.f32 %v4491, 0.2
    %v4524 = vmul.f32 %v4492, 0.2
    %v4525 = vmul.f32 %v4493, 0.2
    %v4526 = vmul.f32 %v4494, 0.2
    %v4527 = vmul.f32 %v4495, 0.2
    %v4528 = vmul.f32 %v4496, 0.2
    %v4529 = vmul.f32 %v4497, 0.2
    %v4530 = vmul.f32 %v4498, 0.2
    %v4531 = vmul.f32 %v4499, 0.2
    %v4532 = vmul.f32 %v4500, 0.2
    %v4533 = vmul.f32 %v4501, 0.2
    %v4534 = vmul.f32 %v4502, 0.2
    %v4535 = vmul.f32 %v4503, 0.2
    %v4536 = vmul.f32 %v4504, 0.2
    %v4537 = vmul.f32 %v4505, 0.2
    %v4538 = vmul.f32 %v4506, 0.2
    %v4539 = vmul.f32 %v4507, 0.2
    %v4540 = vmul.f32 %v4508, 0.2
    %v4541 = vmul.f32 %v4509, 0.2
    %v4542 = vmul.f32 %v4510, 0.2
    %v4543 = vmul.f32 %v4511, 0.2
    %v4544 = vmul.f32 %v4512, 0.2
    %v4545 = vmul.f32 %v4513, 0.2
    %v4546 = vmul.f32 %v4514, 0.2
    %v4547 = vmax.f32 %v4483, %v4515
    %v4548 = vmax.f32 %v4484, %v4516
    %v4549 = vmax.f32 %v4485, %v4517
    %v4550 = vmax.f32 %v4486, %v4518
    %v4551 = vmax.f32 %v4487, %v4519
    %v4552 = vmax.f32 %v4488, %v4520
    %v4553 = vmax.f32 %v4489, %v4521
    %v4554 = vmax.f32 %v4490, %v4522
    %v4555 = vmax.f32 %v4491, %v4523
    %v4556 = vmax.f32 %v4492, %v4524
    %v4557 = vmax.f32 %v4493, %v4525
    %v4558 = vmax.f32 %v4494, %v4526
    %v4559 = vmax.f32 %v4495, %v4527
    %v4560 = vmax.f32 %v4496, %v4528
    %v4561 = vmax.f32 %v4497, %v4529
    %v4562 = vmax.f32 %v4498, %v4530
    %v4563 = vmax.f32 %v4499, %v4531
    %v4564 = vmax.f32 %v4500, %v4532
    %v4565 = vmax.f32 %v4501, %v4533
    %v4566 = vmax.f32 %v4502, %v4534
    %v4567 = vmax.f32 %v4503, %v4535
    %v4568 = vmax.f32 %v4504, %v4536
    %v4569 = vmax.f32 %v4505, %v4537
    %v4570 = vmax.f32 %v4506, %v4538
    %v4571 = vmax.f32 %v4507, %v4539
    %v4572 = vmax.f32 %v4508, %v4540
    %v4573 = vmax.f32 %v4509, %v4541
    %v4574 = vmax.f32 %v4510, %v4542
    %v4575 = vmax.f32 %v4511, %v4543
    %v4576 = vmax.f32 %v4512, %v4544
    %v4577 = vmax.f32 %v4513, %v4545
    %v4578 = vmax.f32 %v4514, %v4546
    %v4579 = vpack.c.bf16 %v4548, %v4547
    %v4580 = vpack.c.bf16 %v4550, %v4549
    %v4581 = vpack.c.bf16 %v4552, %v4551
    %v4582 = vpack.c.bf16 %v4554, %v4553
    %v4583 = vpack.c.bf16 %v4556, %v4555
    %v4584 = vpack.c.bf16 %v4558, %v4557
    %v4585 = vpack.c.bf16 %v4560, %v4559
    %v4586 = vpack.c.bf16 %v4562, %v4561
    %v4587 = vpack.c.bf16 %v4564, %v4563
    %v4588 = vpack.c.bf16 %v4566, %v4565
    %v4589 = vpack.c.bf16 %v4568, %v4567
    %v4590 = vpack.c.bf16 %v4570, %v4569
    %v4591 = vpack.c.bf16 %v4572, %v4571
    %v4592 = vpack.c.bf16 %v4574, %v4573
    %v4593 = vpack.c.bf16 %v4576, %v4575
    %v4594 = vpack.c.bf16 %v4578, %v4577
    %v4595 = vld [vmem:[#allocation13] sm:$0xff]
    %v4596 = vld [vmem:[#allocation13 + $0x8] sm:$0xff]
    %v4597 = vld [vmem:[#allocation13 + $0x10] sm:$0xff]
    %v4598 = vld [vmem:[#allocation13 + $0x18] sm:$0xff]
    %v4599 = vld [vmem:[#allocation13 + $0x20] sm:$0xff]
    %v4600 = vld [vmem:[#allocation13 + $0x28] sm:$0xff]
    %v4601 = vld [vmem:[#allocation13 + $0x30] sm:$0xff]
    %v4602 = vld [vmem:[#allocation13 + $0x38] sm:$0xff]
    %v4603 = vld [vmem:[#allocation13 + $0x40] sm:$0xff]
    %v4604 = vld [vmem:[#allocation13 + $0x48] sm:$0xff]
    %v4605 = vld [vmem:[#allocation13 + $0x50] sm:$0xff]
    %v4606 = vld [vmem:[#allocation13 + $0x58] sm:$0xff]
    %v4607 = vld [vmem:[#allocation13 + $0x60] sm:$0xff]
    %v4608 = vld [vmem:[#allocation13 + $0x68] sm:$0xff]
    %v4609 = vld [vmem:[#allocation13 + $0x70] sm:$0xff]
    %v4610 = vld [vmem:[#allocation13 + $0x78] sm:$0xff]
    %v4611 = vld [vmem:[#allocation13 + $0x80] sm:$0xff]
    %v4612 = vld [vmem:[#allocation13 + $0x88] sm:$0xff]
    %v4613 = vld [vmem:[#allocation13 + $0x90] sm:$0xff]
    %v4614 = vld [vmem:[#allocation13 + $0x98] sm:$0xff]
    %v4615 = vld [vmem:[#allocation13 + $0xa0] sm:$0xff]
    %v4616 = vld [vmem:[#allocation13 + $0xa8] sm:$0xff]
    %v4617 = vld [vmem:[#allocation13 + $0xb0] sm:$0xff]
    %v4618 = vld [vmem:[#allocation13 + $0xb8] sm:$0xff]
    %v4619 = vld [vmem:[#allocation13 + $0xc0] sm:$0xff]
    %v4620 = vld [vmem:[#allocation13 + $0xc8] sm:$0xff]
    %v4621 = vld [vmem:[#allocation13 + $0xd0] sm:$0xff]
    %v4622 = vld [vmem:[#allocation13 + $0xd8] sm:$0xff]
    %v4623 = vld [vmem:[#allocation13 + $0xe0] sm:$0xff]
    %v4624 = vld [vmem:[#allocation13 + $0xe8] sm:$0xff]
    %v4625 = vld [vmem:[#allocation13 + $0xf0] sm:$0xff]
    %v4626 = vld [vmem:[#allocation13 + $0xf8] sm:$0xff]
    %v4627 = vld [vmem:[#allocation11 + $0x80] sm:$0xf]
    %v4628 = vld [vmem:[#allocation11 + $0x84] sm:$0xf]
    %v4629 = vld [vmem:[#allocation11 + $0x88] sm:$0xf]
    %v4630 = vld [vmem:[#allocation11 + $0x8c] sm:$0xf]
    %v4631 = vld [vmem:[#allocation11 + $0x90] sm:$0xf]
    %v4632 = vld [vmem:[#allocation11 + $0x94] sm:$0xf]
    %v4633 = vld [vmem:[#allocation11 + $0x98] sm:$0xf]
    %v4634 = vld [vmem:[#allocation11 + $0x9c] sm:$0xf]
    %v4635 = vld [vmem:[#allocation11 + $0xa0] sm:$0xf]
    %v4636 = vld [vmem:[#allocation11 + $0xa4] sm:$0xf]
    %v4637 = vld [vmem:[#allocation11 + $0xa8] sm:$0xf]
    %v4638 = vld [vmem:[#allocation11 + $0xac] sm:$0xf]
    %v4639 = vld [vmem:[#allocation11 + $0xb0] sm:$0xf]
    %v4640 = vld [vmem:[#allocation11 + $0xb4] sm:$0xf]
    %v4641 = vld [vmem:[#allocation11 + $0xb8] sm:$0xf]
    %v4642 = vld [vmem:[#allocation11 + $0xbc] sm:$0xf]
    %v4659 = vunpack.c.l.b16 %v4627
    %v4660 = vunpack.c.l.b16 %v4628
    %v4661 = vunpack.c.l.b16 %v4629
    %v4662 = vunpack.c.l.b16 %v4630
    %v4663 = vunpack.c.l.b16 %v4631
    %v4664 = vunpack.c.l.b16 %v4632
    %v4665 = vunpack.c.l.b16 %v4633
    %v4666 = vunpack.c.l.b16 %v4634
    %v4667 = vunpack.c.l.b16 %v4635
    %v4668 = vunpack.c.l.b16 %v4636
    %v4669 = vunpack.c.l.b16 %v4637
    %v4670 = vunpack.c.l.b16 %v4638
    %v4671 = vunpack.c.l.b16 %v4639
    %v4672 = vunpack.c.l.b16 %v4640
    %v4673 = vunpack.c.l.b16 %v4641
    %v4674 = vunpack.c.l.b16 %v4642
    %v4675 = vpack.c.b16 %v4660, %v4659
    %v4676 = vpack.c.b16 %v4662, %v4661
    %v4677 = vpack.c.b16 %v4664, %v4663
    %v4678 = vpack.c.b16 %v4666, %v4665
    %v4679 = vpack.c.b16 %v4668, %v4667
    %v4680 = vpack.c.b16 %v4670, %v4669
    %v4681 = vpack.c.b16 %v4672, %v4671
    %v4682 = vpack.c.b16 %v4674, %v4673
    %4691 = vmatprep.subr.bf16.mxu0 0
    %4692 = vmatpush1.bf16.msra.mxu0 %v4675
    %4693 = vmatprep.subr.bf16.mxu0 0
    %4694 = vmatpush1.bf16.msra.mxu0 %v4676
    %4695 = vmatprep.subr.bf16.mxu0 0
    %4696 = vmatpush1.bf16.msra.mxu0 %v4677
    %4697 = vmatprep.subr.bf16.mxu0 0
    %4698 = vmatpush1.bf16.msra.mxu0 %v4678
    %4699 = vmatprep.subr.bf16.mxu0 0
    %4700 = vmatpush1.bf16.msra.mxu0 %v4679
    %4701 = vmatprep.subr.bf16.mxu0 0
    %4702 = vmatpush1.bf16.msra.mxu0 %v4680
    %4703 = vmatprep.subr.bf16.mxu0 0
    %4704 = vmatpush1.bf16.msra.mxu0 %v4681
    %4705 = vmatprep.subr.bf16.mxu0 0
    %4706 = vmatpush1.bf16.msra.mxu0 %v4682
    %4707 = vmatprep.subr.bf16.mxu0 0
    %4708 = vmatpush1.bf16.msra.mxu0 0
    %4709 = vmatprep.subr.bf16.mxu0 0
    %4710 = vmatpush1.bf16.msra.mxu0 0
    %4711 = vmatprep.subr.bf16.mxu0 0
    %4712 = vmatpush1.bf16.msra.mxu0 0
    %4713 = vmatprep.subr.bf16.mxu0 0
    %4714 = vmatpush1.bf16.msra.mxu0 0
    %4715 = vmatprep.subr.bf16.mxu0 0
    %4716 = vmatpush1.bf16.msra.mxu0 0
    %4717 = vmatprep.subr.bf16.mxu0 0
    %4718 = vmatpush1.bf16.msra.mxu0 0
    %4719 = vmatprep.subr.bf16.mxu0 0
    %4720 = vmatpush1.bf16.msra.mxu0 0
    %4721 = vmatprep.subr.bf16.mxu0 0
    %4722 = vmatpush1.bf16.msra.mxu0 0
    %4723 = vmatprep.mubr.bf16.mxu0 0
    %4724 = vmatmul.mubr.bf16.gmra.mrb[0].mxu0 %v4579
    %v4725 = vpop.f32.mrb[0].mxu0
    %v4726 = vadd.f32 0.0, %v4725
    %v4727 = vpop.f32.mrb[0].mxu0
    %v4728 = vpop.f32.mrb[0].mxu0
    %v4729 = vadd.f32 0.0, %v4728
    %v4730 = vpop.f32.mrb[0].mxu0
    %4731 = vmatprep.mubr.bf16.mxu0 0
    %4732 = vmatmul.mubr.bf16.gmra.mrb[0].mxu0 %v4580
    %v4733 = vpop.f32.mrb[0].mxu0
    %v4734 = vadd.f32 0.0, %v4733
    %v4735 = vpop.f32.mrb[0].mxu0
    %v4736 = vpop.f32.mrb[0].mxu0
    %v4737 = vadd.f32 0.0, %v4736
    %v4738 = vpop.f32.mrb[0].mxu0
    %4739 = vmatprep.mubr.bf16.mxu0 0
    %4740 = vmatmul.mubr.bf16.gmra.mrb[0].mxu0 %v4581
    %v4741 = vpop.f32.mrb[0].mxu0
    %v4742 = vadd.f32 0.0, %v4741
    %v4743 = vpop.f32.mrb[0].mxu0
    %v4744 = vpop.f32.mrb[0].mxu0
    %v4745 = vadd.f32 0.0, %v4744
    %v4746 = vpop.f32.mrb[0].mxu0
    %4747 = vmatprep.mubr.bf16.mxu0 0
    %4748 = vmatmul.mubr.bf16.gmra.mrb[0].mxu0 %v4582
    %v4749 = vpop.f32.mrb[0].mxu0
    %v4750 = vadd.f32 0.0, %v4749
    %v4751 = vpop.f32.mrb[0].mxu0
    %v4752 = vpop.f32.mrb[0].mxu0
    %v4753 = vadd.f32 0.0, %v4752
    %v4754 = vpop.f32.mrb[0].mxu0
    %4755 = vmatprep.mubr.bf16.mxu0 0
    %4756 = vmatmul.mubr.bf16.gmra.mrb[0].mxu0 %v4583
    %v4757 = vpop.f32.mrb[0].mxu0
    %v4758 = vadd.f32 0.0, %v4757
    %v4759 = vpop.f32.mrb[0].mxu0
    %v4760 = vpop.f32.mrb[0].mxu0
    %v4761 = vadd.f32 0.0, %v4760
    %v4762 = vpop.f32.mrb[0].mxu0
    %4763 = vmatprep.mubr.bf16.mxu0 0
    %4764 = vmatmul.mubr.bf16.gmra.mrb[0].mxu0 %v4584
    %v4765 = vpop.f32.mrb[0].mxu0
    %v4766 = vadd.f32 0.0, %v4765
    %v4767 = vpop.f32.mrb[0].mxu0
    %v4768 = vpop.f32.mrb[0].mxu0
    %v4769 = vadd.f32 0.0, %v4768
    %v4770 = vpop.f32.mrb[0].mxu0
    %4771 = vmatprep.mubr.bf16.mxu0 0
    %4772 = vmatmul.mubr.bf16.gmra.mrb[0].mxu0 %v4585
    %v4773 = vpop.f32.mrb[0].mxu0
    %v4774 = vadd.f32 0.0, %v4773
    %v4775 = vpop.f32.mrb[0].mxu0
    %v4776 = vpop.f32.mrb[0].mxu0
    %v4777 = vadd.f32 0.0, %v4776
    %v4778 = vpop.f32.mrb[0].mxu0
    %4779 = vmatprep.mubr.bf16.mxu0 0
    %4780 = vmatmul.mubr.bf16.gmra.mrb[0].mxu0 %v4586
    %v4781 = vpop.f32.mrb[0].mxu0
    %v4782 = vadd.f32 0.0, %v4781
    %v4783 = vpop.f32.mrb[0].mxu0
    %v4784 = vpop.f32.mrb[0].mxu0
    %v4785 = vadd.f32 0.0, %v4784
    %v4786 = vpop.f32.mrb[0].mxu0
    %4787 = vmatprep.mubr.bf16.mxu0 0
    %4788 = vmatmul.mubr.bf16.gmra.mrb[0].mxu0 %v4587
    %v4789 = vpop.f32.mrb[0].mxu0
    %v4790 = vadd.f32 0.0, %v4789
    %v4791 = vpop.f32.mrb[0].mxu0
    %v4792 = vpop.f32.mrb[0].mxu0
    %v4793 = vadd.f32 0.0, %v4792
    %v4794 = vpop.f32.mrb[0].mxu0
    %4795 = vmatprep.mubr.bf16.mxu0 0
    %4796 = vmatmul.mubr.bf16.gmra.mrb[0].mxu0 %v4588
    %v4797 = vpop.f32.mrb[0].mxu0
    %v4798 = vadd.f32 0.0, %v4797
    %v4799 = vpop.f32.mrb[0].mxu0
    %v4800 = vpop.f32.mrb[0].mxu0
    %v4801 = vadd.f32 0.0, %v4800
    %v4802 = vpop.f32.mrb[0].mxu0
    %4803 = vmatprep.mubr.bf16.mxu0 0
    %4804 = vmatmul.mubr.bf16.gmra.mrb[0].mxu0 %v4589
    %v4805 = vpop.f32.mrb[0].mxu0
    %v4806 = vadd.f32 0.0, %v4805
    %v4807 = vpop.f32.mrb[0].mxu0
    %v4808 = vpop.f32.mrb[0].mxu0
    %v4809 = vadd.f32 0.0, %v4808
    %v4810 = vpop.f32.mrb[0].mxu0
    %4811 = vmatprep.mubr.bf16.mxu0 0
    %4812 = vmatmul.mubr.bf16.gmra.mrb[0].mxu0 %v4590
    %v4813 = vpop.f32.mrb[0].mxu0
    %v4814 = vadd.f32 0.0, %v4813
    %v4815 = vpop.f32.mrb[0].mxu0
    %v4816 = vpop.f32.mrb[0].mxu0
    %v4817 = vadd.f32 0.0, %v4816
    %v4818 = vpop.f32.mrb[0].mxu0
    %4819 = vmatprep.mubr.bf16.mxu0 0
    %4820 = vmatmul.mubr.bf16.gmra.mrb[0].mxu0 %v4591
    %v4821 = vpop.f32.mrb[0].mxu0
    %v4822 = vadd.f32 0.0, %v4821
    %v4823 = vpop.f32.mrb[0].mxu0
    %v4824 = vpop.f32.mrb[0].mxu0
    %v4825 = vadd.f32 0.0, %v4824
    %v4826 = vpop.f32.mrb[0].mxu0
    %4827 = vmatprep.mubr.bf16.mxu0 0
    %4828 = vmatmul.mubr.bf16.gmra.mrb[0].mxu0 %v4592
    %v4829 = vpop.f32.mrb[0].mxu0
    %v4830 = vadd.f32 0.0, %v4829
    %v4831 = vpop.f32.mrb[0].mxu0
    %v4832 = vpop.f32.mrb[0].mxu0
    %v4833 = vadd.f32 0.0, %v4832
    %v4834 = vpop.f32.mrb[0].mxu0
    %4835 = vmatprep.mubr.bf16.mxu0 0
    %4836 = vmatmul.mubr.bf16.gmra.mrb[0].mxu0 %v4593
    %v4837 = vpop.f32.mrb[0].mxu0
    %v4838 = vadd.f32 0.0, %v4837
    %v4839 = vpop.f32.mrb[0].mxu0
    %v4840 = vpop.f32.mrb[0].mxu0
    %v4841 = vadd.f32 0.0, %v4840
    %v4842 = vpop.f32.mrb[0].mxu0
    %4843 = vmatprep.mubr.bf16.mxu0 0
    %4844 = vmatmul.mubr.bf16.gmra.mrb[0].mxu0 %v4594
    %v4845 = vpop.f32.mrb[0].mxu0
    %v4846 = vadd.f32 0.0, %v4845
    %v4847 = vpop.f32.mrb[0].mxu0
    %v4848 = vpop.f32.mrb[0].mxu0
    %v4849 = vadd.f32 0.0, %v4848
    %v4850 = vpop.f32.mrb[0].mxu0
    %4851 = vdwg.mxu0
    %v4852 = vadd.f32 %v4595, %v4726
    %v4853 = vadd.f32 %v4596, %v4729
    %v4854 = vadd.f32 %v4597, %v4734
    %v4855 = vadd.f32 %v4598, %v4737
    %v4856 = vadd.f32 %v4599, %v4742
    %v4857 = vadd.f32 %v4600, %v4745
    %v4858 = vadd.f32 %v4601, %v4750
    %v4859 = vadd.f32 %v4602, %v4753
    %v4860 = vadd.f32 %v4603, %v4758
    %v4861 = vadd.f32 %v4604, %v4761
    %v4862 = vadd.f32 %v4605, %v4766
    %v4863 = vadd.f32 %v4606, %v4769
    %v4864 = vadd.f32 %v4607, %v4774
    %v4865 = vadd.f32 %v4608, %v4777
    %v4866 = vadd.f32 %v4609, %v4782
    %v4867 = vadd.f32 %v4610, %v4785
    %v4868 = vadd.f32 %v4611, %v4790
    %v4869 = vadd.f32 %v4612, %v4793
    %v4870 = vadd.f32 %v4613, %v4798
    %v4871 = vadd.f32 %v4614, %v4801
    %v4872 = vadd.f32 %v4615, %v4806
    %v4873 = vadd.f32 %v4616, %v4809
    %v4874 = vadd.f32 %v4617, %v4814
    %v4875 = vadd.f32 %v4618, %v4817
    %v4876 = vadd.f32 %v4619, %v4822
    %v4877 = vadd.f32 %v4620, %v4825
    %v4878 = vadd.f32 %v4621, %v4830
    %v4879 = vadd.f32 %v4622, %v4833
    %v4880 = vadd.f32 %v4623, %v4838
    %v4881 = vadd.f32 %v4624, %v4841
    %v4882 = vadd.f32 %v4625, %v4846
    %v4883 = vadd.f32 %v4626, %v4849
    %4884 = vst [vmem:[#allocation13] sm:$0xff] %v4852
    %4885 = vst [vmem:[#allocation13 + $0x8] sm:$0xff] %v4853
    %4886 = vst [vmem:[#allocation13 + $0x10] sm:$0xff] %v4854
    %4887 = vst [vmem:[#allocation13 + $0x18] sm:$0xff] %v4855
    %4888 = vst [vmem:[#allocation13 + $0x20] sm:$0xff] %v4856
    %4889 = vst [vmem:[#allocation13 + $0x28] sm:$0xff] %v4857
    %4890 = vst [vmem:[#allocation13 + $0x30] sm:$0xff] %v4858
    %4891 = vst [vmem:[#allocation13 + $0x38] sm:$0xff] %v4859
    %4892 = vst [vmem:[#allocation13 + $0x40] sm:$0xff] %v4860
    %4893 = vst [vmem:[#allocation13 + $0x48] sm:$0xff] %v4861
    %4894 = vst [vmem:[#allocation13 + $0x50] sm:$0xff] %v4862
    %4895 = vst [vmem:[#allocation13 + $0x58] sm:$0xff] %v4863
    %4896 = vst [vmem:[#allocation13 + $0x60] sm:$0xff] %v4864
    %4897 = vst [vmem:[#allocation13 + $0x68] sm:$0xff] %v4865
    %4898 = vst [vmem:[#allocation13 + $0x70] sm:$0xff] %v4866
    %4899 = vst [vmem:[#allocation13 + $0x78] sm:$0xff] %v4867
    %4900 = vst [vmem:[#allocation13 + $0x80] sm:$0xff] %v4868
    %4901 = vst [vmem:[#allocation13 + $0x88] sm:$0xff] %v4869
    %4902 = vst [vmem:[#allocation13 + $0x90] sm:$0xff] %v4870
    %4903 = vst [vmem:[#allocation13 + $0x98] sm:$0xff] %v4871
    %4904 = vst [vmem:[#allocation13 + $0xa0] sm:$0xff] %v4872
    %4905 = vst [vmem:[#allocation13 + $0xa8] sm:$0xff] %v4873
    %4906 = vst [vmem:[#allocation13 + $0xb0] sm:$0xff] %v4874
    %4907 = vst [vmem:[#allocation13 + $0xb8] sm:$0xff] %v4875
    %4908 = vst [vmem:[#allocation13 + $0xc0] sm:$0xff] %v4876
    %4909 = vst [vmem:[#allocation13 + $0xc8] sm:$0xff] %v4877
    %4910 = vst [vmem:[#allocation13 + $0xd0] sm:$0xff] %v4878
    %4911 = vst [vmem:[#allocation13 + $0xd8] sm:$0xff] %v4879
    %4912 = vst [vmem:[#allocation13 + $0xe0] sm:$0xff] %v4880
    %4913 = vst [vmem:[#allocation13 + $0xe8] sm:$0xff] %v4881
    %4914 = vst [vmem:[#allocation13 + $0xf0] sm:$0xff] %v4882
    %4915 = vst [vmem:[#allocation13 + $0xf8] sm:$0xff] %v4883
    %v4916 = vld [vmem:[#allocation10 + $0xc] sm:$0xf]
    %v4917 = vld [vmem:[#allocation10 + $0x1c] sm:$0xf]
    %v4918 = vld [vmem:[#allocation10 + $0x2c] sm:$0xf]
    %v4919 = vld [vmem:[#allocation10 + $0x3c] sm:$0xf]
    %v4920 = vld [vmem:[#allocation10 + $0x4c] sm:$0xf]
    %v4921 = vld [vmem:[#allocation10 + $0x5c] sm:$0xf]
    %v4922 = vld [vmem:[#allocation10 + $0x6c] sm:$0xf]
    %v4923 = vld [vmem:[#allocation10 + $0x7c] sm:$0xf]
    %v4924 = vld [vmem:[#allocation10 + $0x8c] sm:$0xf]
    %v4925 = vld [vmem:[#allocation10 + $0x9c] sm:$0xf]
    %v4926 = vld [vmem:[#allocation10 + $0xac] sm:$0xf]
    %v4927 = vld [vmem:[#allocation10 + $0xbc] sm:$0xf]
    %v4928 = vld [vmem:[#allocation10 + $0xcc] sm:$0xf]
    %v4929 = vld [vmem:[#allocation10 + $0xdc] sm:$0xf]
    %v4930 = vld [vmem:[#allocation10 + $0xec] sm:$0xf]
    %v4931 = vld [vmem:[#allocation10 + $0xfc] sm:$0xf]
    %v4932 = vld [vmem:[#allocation10 + $0x10c] sm:$0xf]
    %v4933 = vld [vmem:[#allocation10 + $0x11c] sm:$0xf]
    %v4934 = vld [vmem:[#allocation10 + $0x12c] sm:$0xf]
    %v4935 = vld [vmem:[#allocation10 + $0x13c] sm:$0xf]
    %v4936 = vld [vmem:[#allocation10 + $0x14c] sm:$0xf]
    %v4937 = vld [vmem:[#allocation10 + $0x15c] sm:$0xf]
    %v4938 = vld [vmem:[#allocation10 + $0x16c] sm:$0xf]
    %v4939 = vld [vmem:[#allocation10 + $0x17c] sm:$0xf]
    %v4940 = vld [vmem:[#allocation10 + $0x18c] sm:$0xf]
    %v4941 = vld [vmem:[#allocation10 + $0x19c] sm:$0xf]
    %v4942 = vld [vmem:[#allocation10 + $0x1ac] sm:$0xf]
    %v4943 = vld [vmem:[#allocation10 + $0x1bc] sm:$0xf]
    %v4944 = vld [vmem:[#allocation10 + $0x1cc] sm:$0xf]
    %v4945 = vld [vmem:[#allocation10 + $0x1dc] sm:$0xf]
    %v4946 = vld [vmem:[#allocation10 + $0x1ec] sm:$0xf]
    %v4947 = vld [vmem:[#allocation10 + $0x1fc] sm:$0xf]
    %v4964 = vunpack.c.l.b16 %v4932
    %v4965 = vunpack.c.l.b16 %v4933
    %v4966 = vunpack.c.l.b16 %v4934
    %v4967 = vunpack.c.l.b16 %v4935
    %v4968 = vunpack.c.l.b16 %v4936
    %v4969 = vunpack.c.l.b16 %v4937
    %v4970 = vunpack.c.l.b16 %v4938
    %v4971 = vunpack.c.l.b16 %v4939
    %v4972 = vunpack.c.l.b16 %v4940
    %v4973 = vunpack.c.l.b16 %v4941
    %v4974 = vunpack.c.l.b16 %v4942
    %v4975 = vunpack.c.l.b16 %v4943
    %v4976 = vunpack.c.l.b16 %v4944
    %v4977 = vunpack.c.l.b16 %v4945
    %v4978 = vunpack.c.l.b16 %v4946
    %v4979 = vunpack.c.l.b16 %v4947
    %v4980 = vpack.c.b16 %v4965, %v4964
    %v4981 = vpack.c.b16 %v4967, %v4966
    %v4982 = vpack.c.b16 %v4969, %v4968
    %v4983 = vpack.c.b16 %v4971, %v4970
    %v4984 = vpack.c.b16 %v4973, %v4972
    %v4985 = vpack.c.b16 %v4975, %v4974
    %v4986 = vpack.c.b16 %v4977, %v4976
    %v4987 = vpack.c.b16 %v4979, %v4978
    %4996 = vmatprep.subr.bf16.mxu0 0
    %4997 = vmatpush1.bf16.msra.mxu0 %v4980
    %4998 = vmatprep.subr.bf16.mxu0 0
    %4999 = vmatpush1.bf16.msra.mxu0 %v4981
    %5000 = vmatprep.subr.bf16.mxu0 0
    %5001 = vmatpush1.bf16.msra.mxu0 %v4982
    %5002 = vmatprep.subr.bf16.mxu0 0
    %5003 = vmatpush1.bf16.msra.mxu0 %v4983
    %5004 = vmatprep.subr.bf16.mxu0 0
    %5005 = vmatpush1.bf16.msra.mxu0 %v4984
    %5006 = vmatprep.subr.bf16.mxu0 0
    %5007 = vmatpush1.bf16.msra.mxu0 %v4985
    %5008 = vmatprep.subr.bf16.mxu0 0
    %5009 = vmatpush1.bf16.msra.mxu0 %v4986
    %5010 = vmatprep.subr.bf16.mxu0 0
    %5011 = vmatpush1.bf16.msra.mxu0 %v4987
    %5012 = vmatprep.subr.bf16.mxu0 0
    %5013 = vmatpush1.bf16.msra.mxu0 0
    %5014 = vmatprep.subr.bf16.mxu0 0
    %5015 = vmatpush1.bf16.msra.mxu0 0
    %5016 = vmatprep.subr.bf16.mxu0 0
    %5017 = vmatpush1.bf16.msra.mxu0 0
    %5018 = vmatprep.subr.bf16.mxu0 0
    %5019 = vmatpush1.bf16.msra.mxu0 0
    %5020 = vmatprep.subr.bf16.mxu0 0
    %5021 = vmatpush1.bf16.msra.mxu0 0
    %5022 = vmatprep.subr.bf16.mxu0 0
    %5023 = vmatpush1.bf16.msra.mxu0 0
    %5024 = vmatprep.subr.bf16.mxu0 0
    %5025 = vmatpush1.bf16.msra.mxu0 0
    %5026 = vmatprep.subr.bf16.mxu0 0
    %5027 = vmatpush1.bf16.msra.mxu0 0
    %5028 = vmatprep.mubr.bf16.mxu0 0
    %5029 = vmatmul.mubr.bf16.gmra.mrb[0].mxu0 %v1729
    %v5030 = vpop.f32.mrb[0].mxu0
    %v5031 = vadd.f32 0.0, %v5030
    %v5032 = vpop.f32.mrb[0].mxu0
    %v5033 = vpop.f32.mrb[0].mxu0
    %v5034 = vadd.f32 0.0, %v5033
    %v5035 = vpop.f32.mrb[0].mxu0
    %5036 = vmatprep.mubr.bf16.mxu0 0
    %5037 = vmatmul.mubr.bf16.gmra.mrb[0].mxu0 %v1730
    %v5038 = vpop.f32.mrb[0].mxu0
    %v5039 = vadd.f32 0.0, %v5038
    %v5040 = vpop.f32.mrb[0].mxu0
    %v5041 = vpop.f32.mrb[0].mxu0
    %v5042 = vadd.f32 0.0, %v5041
    %v5043 = vpop.f32.mrb[0].mxu0
    %5044 = vmatprep.mubr.bf16.mxu0 0
    %5045 = vmatmul.mubr.bf16.gmra.mrb[0].mxu0 %v1731
    %v5046 = vpop.f32.mrb[0].mxu0
    %v5047 = vadd.f32 0.0, %v5046
    %v5048 = vpop.f32.mrb[0].mxu0
    %v5049 = vpop.f32.mrb[0].mxu0
    %v5050 = vadd.f32 0.0, %v5049
    %v5051 = vpop.f32.mrb[0].mxu0
    %5052 = vmatprep.mubr.bf16.mxu0 0
    %5053 = vmatmul.mubr.bf16.gmra.mrb[0].mxu0 %v1732
    %v5054 = vpop.f32.mrb[0].mxu0
    %v5055 = vadd.f32 0.0, %v5054
    %v5056 = vpop.f32.mrb[0].mxu0
    %v5057 = vpop.f32.mrb[0].mxu0
    %v5058 = vadd.f32 0.0, %v5057
    %v5059 = vpop.f32.mrb[0].mxu0
    %5060 = vmatprep.mubr.bf16.mxu0 0
    %5061 = vmatmul.mubr.bf16.gmra.mrb[0].mxu0 %v1733
    %v5062 = vpop.f32.mrb[0].mxu0
    %v5063 = vadd.f32 0.0, %v5062
    %v5064 = vpop.f32.mrb[0].mxu0
    %v5065 = vpop.f32.mrb[0].mxu0
    %v5066 = vadd.f32 0.0, %v5065
    %v5067 = vpop.f32.mrb[0].mxu0
    %5068 = vmatprep.mubr.bf16.mxu0 0
    %5069 = vmatmul.mubr.bf16.gmra.mrb[0].mxu0 %v1734
    %v5070 = vpop.f32.mrb[0].mxu0
    %v5071 = vadd.f32 0.0, %v5070
    %v5072 = vpop.f32.mrb[0].mxu0
    %v5073 = vpop.f32.mrb[0].mxu0
    %v5074 = vadd.f32 0.0, %v5073
    %v5075 = vpop.f32.mrb[0].mxu0
    %5076 = vmatprep.mubr.bf16.mxu0 0
    %5077 = vmatmul.mubr.bf16.gmra.mrb[0].mxu0 %v1735
    %v5078 = vpop.f32.mrb[0].mxu0
    %v5079 = vadd.f32 0.0, %v5078
    %v5080 = vpop.f32.mrb[0].mxu0
    %v5081 = vpop.f32.mrb[0].mxu0
    %v5082 = vadd.f32 0.0, %v5081
    %v5083 = vpop.f32.mrb[0].mxu0
    %5084 = vmatprep.mubr.bf16.mxu0 0
    %5085 = vmatmul.mubr.bf16.gmra.mrb[0].mxu0 %v1736
    %v5086 = vpop.f32.mrb[0].mxu0
    %v5087 = vadd.f32 0.0, %v5086
    %v5088 = vpop.f32.mrb[0].mxu0
    %v5089 = vpop.f32.mrb[0].mxu0
    %v5090 = vadd.f32 0.0, %v5089
    %v5091 = vpop.f32.mrb[0].mxu0
    %5092 = vmatprep.mubr.bf16.mxu0 0
    %5093 = vmatmul.mubr.bf16.gmra.mrb[0].mxu0 %v1737
    %v5094 = vpop.f32.mrb[0].mxu0
    %v5095 = vadd.f32 0.0, %v5094
    %v5096 = vpop.f32.mrb[0].mxu0
    %v5097 = vpop.f32.mrb[0].mxu0
    %v5098 = vadd.f32 0.0, %v5097
    %v5099 = vpop.f32.mrb[0].mxu0
    %5100 = vmatprep.mubr.bf16.mxu0 0
    %5101 = vmatmul.mubr.bf16.gmra.mrb[0].mxu0 %v1738
    %v5102 = vpop.f32.mrb[0].mxu0
    %v5103 = vadd.f32 0.0, %v5102
    %v5104 = vpop.f32.mrb[0].mxu0
    %v5105 = vpop.f32.mrb[0].mxu0
    %v5106 = vadd.f32 0.0, %v5105
    %v5107 = vpop.f32.mrb[0].mxu0
    %5108 = vmatprep.mubr.bf16.mxu0 0
    %5109 = vmatmul.mubr.bf16.gmra.mrb[0].mxu0 %v1739
    %v5110 = vpop.f32.mrb[0].mxu0
    %v5111 = vadd.f32 0.0, %v5110
    %v5112 = vpop.f32.mrb[0].mxu0
    %v5113 = vpop.f32.mrb[0].mxu0
    %v5114 = vadd.f32 0.0, %v5113
    %v5115 = vpop.f32.mrb[0].mxu0
    %5116 = vmatprep.mubr.bf16.mxu0 0
    %5117 = vmatmul.mubr.bf16.gmra.mrb[0].mxu0 %v1740
    %v5118 = vpop.f32.mrb[0].mxu0
    %v5119 = vadd.f32 0.0, %v5118
    %v5120 = vpop.f32.mrb[0].mxu0
    %v5121 = vpop.f32.mrb[0].mxu0
    %v5122 = vadd.f32 0.0, %v5121
    %v5123 = vpop.f32.mrb[0].mxu0
    %5124 = vmatprep.mubr.bf16.mxu0 0
    %5125 = vmatmul.mubr.bf16.gmra.mrb[0].mxu0 %v1741
    %v5126 = vpop.f32.mrb[0].mxu0
    %v5127 = vadd.f32 0.0, %v5126
    %v5128 = vpop.f32.mrb[0].mxu0
    %v5129 = vpop.f32.mrb[0].mxu0
    %v5130 = vadd.f32 0.0, %v5129
    %v5131 = vpop.f32.mrb[0].mxu0
    %5132 = vmatprep.mubr.bf16.mxu0 0
    %5133 = vmatmul.mubr.bf16.gmra.mrb[0].mxu0 %v1742
    %v5134 = vpop.f32.mrb[0].mxu0
    %v5135 = vadd.f32 0.0, %v5134
    %v5136 = vpop.f32.mrb[0].mxu0
    %v5137 = vpop.f32.mrb[0].mxu0
    %v5138 = vadd.f32 0.0, %v5137
    %v5139 = vpop.f32.mrb[0].mxu0
    %5140 = vmatprep.mubr.bf16.mxu0 0
    %5141 = vmatmul.mubr.bf16.gmra.mrb[0].mxu0 %v1743
    %v5142 = vpop.f32.mrb[0].mxu0
    %v5143 = vadd.f32 0.0, %v5142
    %v5144 = vpop.f32.mrb[0].mxu0
    %v5145 = vpop.f32.mrb[0].mxu0
    %v5146 = vadd.f32 0.0, %v5145
    %v5147 = vpop.f32.mrb[0].mxu0
    %5148 = vmatprep.mubr.bf16.mxu0 0
    %5149 = vmatmul.mubr.bf16.gmra.mrb[0].mxu0 %v1744
    %v5150 = vpop.f32.mrb[0].mxu0
    %v5151 = vadd.f32 0.0, %v5150
    %v5152 = vpop.f32.mrb[0].mxu0
    %v5153 = vpop.f32.mrb[0].mxu0
    %v5154 = vadd.f32 0.0, %v5153
    %v5155 = vpop.f32.mrb[0].mxu0
    %5156 = vdwg.mxu0
    %v5173 = vunpack.c.l.b16 %v4916
    %v5174 = vunpack.c.l.b16 %v4917
    %v5175 = vunpack.c.l.b16 %v4918
    %v5176 = vunpack.c.l.b16 %v4919
    %v5177 = vunpack.c.l.b16 %v4920
    %v5178 = vunpack.c.l.b16 %v4921
    %v5179 = vunpack.c.l.b16 %v4922
    %v5180 = vunpack.c.l.b16 %v4923
    %v5181 = vunpack.c.l.b16 %v4924
    %v5182 = vunpack.c.l.b16 %v4925
    %v5183 = vunpack.c.l.b16 %v4926
    %v5184 = vunpack.c.l.b16 %v4927
    %v5185 = vunpack.c.l.b16 %v4928
    %v5186 = vunpack.c.l.b16 %v4929
    %v5187 = vunpack.c.l.b16 %v4930
    %v5188 = vunpack.c.l.b16 %v4931
    %v5189 = vpack.c.b16 %v5174, %v5173
    %v5190 = vpack.c.b16 %v5176, %v5175
    %v5191 = vpack.c.b16 %v5178, %v5177
    %v5192 = vpack.c.b16 %v5180, %v5179
    %v5193 = vpack.c.b16 %v5182, %v5181
    %v5194 = vpack.c.b16 %v5184, %v5183
    %v5195 = vpack.c.b16 %v5186, %v5185
    %v5196 = vpack.c.b16 %v5188, %v5187
    %5205 = vmatprep.subr.bf16.mxu0 0
    %5206 = vmatpush1.bf16.msra.mxu0 %v5189
    %5207 = vmatprep.subr.bf16.mxu0 0
    %5208 = vmatpush1.bf16.msra.mxu0 %v5190
    %5209 = vmatprep.subr.bf16.mxu0 0
    %5210 = vmatpush1.bf16.msra.mxu0 %v5191
    %5211 = vmatprep.subr.bf16.mxu0 0
    %5212 = vmatpush1.bf16.msra.mxu0 %v5192
    %5213 = vmatprep.subr.bf16.mxu0 0
    %5214 = vmatpush1.bf16.msra.mxu0 %v5193
    %5215 = vmatprep.subr.bf16.mxu0 0
    %5216 = vmatpush1.bf16.msra.mxu0 %v5194
    %5217 = vmatprep.subr.bf16.mxu0 0
    %5218 = vmatpush1.bf16.msra.mxu0 %v5195
    %5219 = vmatprep.subr.bf16.mxu0 0
    %5220 = vmatpush1.bf16.msra.mxu0 %v5196
    %5221 = vmatprep.subr.bf16.mxu0 0
    %5222 = vmatpush1.bf16.msra.mxu0 0
    %5223 = vmatprep.subr.bf16.mxu0 0
    %5224 = vmatpush1.bf16.msra.mxu0 0
    %5225 = vmatprep.subr.bf16.mxu0 0
    %5226 = vmatpush1.bf16.msra.mxu0 0
    %5227 = vmatprep.subr.bf16.mxu0 0
    %5228 = vmatpush1.bf16.msra.mxu0 0
    %5229 = vmatprep.subr.bf16.mxu0 0
    %5230 = vmatpush1.bf16.msra.mxu0 0
    %5231 = vmatprep.subr.bf16.mxu0 0
    %5232 = vmatpush1.bf16.msra.mxu0 0
    %5233 = vmatprep.subr.bf16.mxu0 0
    %5234 = vmatpush1.bf16.msra.mxu0 0
    %5235 = vmatprep.subr.bf16.mxu0 0
    %5236 = vmatpush1.bf16.msra.mxu0 0
    %5237 = vmatprep.mubr.bf16.mxu0 0
    %5238 = vmatmul.mubr.bf16.gmra.mrb[0].mxu0 %v1231
    %v5239 = vpop.f32.mrb[0].mxu0
    %v5240 = vadd.f32 %v5031, %v5239
    %v5241 = vpop.f32.mrb[0].mxu0
    %v5242 = vpop.f32.mrb[0].mxu0
    %v5243 = vadd.f32 %v5034, %v5242
    %v5244 = vpop.f32.mrb[0].mxu0
    %5245 = vmatprep.mubr.bf16.mxu0 0
    %5246 = vmatmul.mubr.bf16.gmra.mrb[0].mxu0 %v1232
    %v5247 = vpop.f32.mrb[0].mxu0
    %v5248 = vadd.f32 %v5039, %v5247
    %v5249 = vpop.f32.mrb[0].mxu0
    %v5250 = vpop.f32.mrb[0].mxu0
    %v5251 = vadd.f32 %v5042, %v5250
    %v5252 = vpop.f32.mrb[0].mxu0
    %5253 = vmatprep.mubr.bf16.mxu0 0
    %5254 = vmatmul.mubr.bf16.gmra.mrb[0].mxu0 %v1233
    %v5255 = vpop.f32.mrb[0].mxu0
    %v5256 = vadd.f32 %v5047, %v5255
    %v5257 = vpop.f32.mrb[0].mxu0
    %v5258 = vpop.f32.mrb[0].mxu0
    %v5259 = vadd.f32 %v5050, %v5258
    %v5260 = vpop.f32.mrb[0].mxu0
    %5261 = vmatprep.mubr.bf16.mxu0 0
    %5262 = vmatmul.mubr.bf16.gmra.mrb[0].mxu0 %v1234
    %v5263 = vpop.f32.mrb[0].mxu0
    %v5264 = vadd.f32 %v5055, %v5263
    %v5265 = vpop.f32.mrb[0].mxu0
    %v5266 = vpop.f32.mrb[0].mxu0
    %v5267 = vadd.f32 %v5058, %v5266
    %v5268 = vpop.f32.mrb[0].mxu0
    %5269 = vmatprep.mubr.bf16.mxu0 0
    %5270 = vmatmul.mubr.bf16.gmra.mrb[0].mxu0 %v1235
    %v5271 = vpop.f32.mrb[0].mxu0
    %v5272 = vadd.f32 %v5063, %v5271
    %v5273 = vpop.f32.mrb[0].mxu0
    %v5274 = vpop.f32.mrb[0].mxu0
    %v5275 = vadd.f32 %v5066, %v5274
    %v5276 = vpop.f32.mrb[0].mxu0
    %5277 = vmatprep.mubr.bf16.mxu0 0
    %5278 = vmatmul.mubr.bf16.gmra.mrb[0].mxu0 %v1236
    %v5279 = vpop.f32.mrb[0].mxu0
    %v5280 = vadd.f32 %v5071, %v5279
    %v5281 = vpop.f32.mrb[0].mxu0
    %v5282 = vpop.f32.mrb[0].mxu0
    %v5283 = vadd.f32 %v5074, %v5282
    %v5284 = vpop.f32.mrb[0].mxu0
    %5285 = vmatprep.mubr.bf16.mxu0 0
    %5286 = vmatmul.mubr.bf16.gmra.mrb[0].mxu0 %v1237
    %v5287 = vpop.f32.mrb[0].mxu0
    %v5288 = vadd.f32 %v5079, %v5287
    %v5289 = vpop.f32.mrb[0].mxu0
    %v5290 = vpop.f32.mrb[0].mxu0
    %v5291 = vadd.f32 %v5082, %v5290
    %v5292 = vpop.f32.mrb[0].mxu0
    %5293 = vmatprep.mubr.bf16.mxu0 0
    %5294 = vmatmul.mubr.bf16.gmra.mrb[0].mxu0 %v1238
    %v5295 = vpop.f32.mrb[0].mxu0
    %v5296 = vadd.f32 %v5087, %v5295
    %v5297 = vpop.f32.mrb[0].mxu0
    %v5298 = vpop.f32.mrb[0].mxu0
    %v5299 = vadd.f32 %v5090, %v5298
    %v5300 = vpop.f32.mrb[0].mxu0
    %5301 = vmatprep.mubr.bf16.mxu0 0
    %5302 = vmatmul.mubr.bf16.gmra.mrb[0].mxu0 %v1239
    %v5303 = vpop.f32.mrb[0].mxu0
    %v5304 = vadd.f32 %v5095, %v5303
    %v5305 = vpop.f32.mrb[0].mxu0
    %v5306 = vpop.f32.mrb[0].mxu0
    %v5307 = vadd.f32 %v5098, %v5306
    %v5308 = vpop.f32.mrb[0].mxu0
    %5309 = vmatprep.mubr.bf16.mxu0 0
    %5310 = vmatmul.mubr.bf16.gmra.mrb[0].mxu0 %v1240
    %v5311 = vpop.f32.mrb[0].mxu0
    %v5312 = vadd.f32 %v5103, %v5311
    %v5313 = vpop.f32.mrb[0].mxu0
    %v5314 = vpop.f32.mrb[0].mxu0
    %v5315 = vadd.f32 %v5106, %v5314
    %v5316 = vpop.f32.mrb[0].mxu0
    %5317 = vmatprep.mubr.bf16.mxu0 0
    %5318 = vmatmul.mubr.bf16.gmra.mrb[0].mxu0 %v1241
    %v5319 = vpop.f32.mrb[0].mxu0
    %v5320 = vadd.f32 %v5111, %v5319
    %v5321 = vpop.f32.mrb[0].mxu0
    %v5322 = vpop.f32.mrb[0].mxu0
    %v5323 = vadd.f32 %v5114, %v5322
    %v5324 = vpop.f32.mrb[0].mxu0
    %5325 = vmatprep.mubr.bf16.mxu0 0
    %5326 = vmatmul.mubr.bf16.gmra.mrb[0].mxu0 %v1242
    %v5327 = vpop.f32.mrb[0].mxu0
    %v5328 = vadd.f32 %v5119, %v5327
    %v5329 = vpop.f32.mrb[0].mxu0
    %v5330 = vpop.f32.mrb[0].mxu0
    %v5331 = vadd.f32 %v5122, %v5330
    %v5332 = vpop.f32.mrb[0].mxu0
    %5333 = vmatprep.mubr.bf16.mxu0 0
    %5334 = vmatmul.mubr.bf16.gmra.mrb[0].mxu0 %v1243
    %v5335 = vpop.f32.mrb[0].mxu0
    %v5336 = vadd.f32 %v5127, %v5335
    %v5337 = vpop.f32.mrb[0].mxu0
    %v5338 = vpop.f32.mrb[0].mxu0
    %v5339 = vadd.f32 %v5130, %v5338
    %v5340 = vpop.f32.mrb[0].mxu0
    %5341 = vmatprep.mubr.bf16.mxu0 0
    %5342 = vmatmul.mubr.bf16.gmra.mrb[0].mxu0 %v1244
    %v5343 = vpop.f32.mrb[0].mxu0
    %v5344 = vadd.f32 %v5135, %v5343
    %v5345 = vpop.f32.mrb[0].mxu0
    %v5346 = vpop.f32.mrb[0].mxu0
    %v5347 = vadd.f32 %v5138, %v5346
    %v5348 = vpop.f32.mrb[0].mxu0
    %5349 = vmatprep.mubr.bf16.mxu0 0
    %5350 = vmatmul.mubr.bf16.gmra.mrb[0].mxu0 %v1245
    %v5351 = vpop.f32.mrb[0].mxu0
    %v5352 = vadd.f32 %v5143, %v5351
    %v5353 = vpop.f32.mrb[0].mxu0
    %v5354 = vpop.f32.mrb[0].mxu0
    %v5355 = vadd.f32 %v5146, %v5354
    %v5356 = vpop.f32.mrb[0].mxu0
    %5357 = vmatprep.mubr.bf16.mxu0 0
    %5358 = vmatmul.mubr.bf16.gmra.mrb[0].mxu0 %v1246
    %v5359 = vpop.f32.mrb[0].mxu0
    %v5360 = vadd.f32 %v5151, %v5359
    %v5361 = vpop.f32.mrb[0].mxu0
    %v5362 = vpop.f32.mrb[0].mxu0
    %v5363 = vadd.f32 %v5154, %v5362
    %v5364 = vpop.f32.mrb[0].mxu0
    %5365 = vdwg.mxu0
    %v5366 = vld [vmem:[%s8 + $0x3] sm:$0x1]
    %v5367 = vld [vmem:[%s9 + $0x3] sm:$0x1]
    %v5368 = vadd.f32 %v5240, %v5243
    %v5369 = vadd.f32 %v5368, %v5248
    %v5370 = vadd.f32 %v5369, %v5251
    %v5371 = vadd.f32 %v5370, %v5256
    %v5372 = vadd.f32 %v5371, %v5259
    %v5373 = vadd.f32 %v5372, %v5264
    %v5374 = vadd.f32 %v5373, %v5267
    %v5375 = vadd.f32 %v5374, %v5272
    %v5376 = vadd.f32 %v5375, %v5275
    %v5377 = vadd.f32 %v5376, %v5280
    %v5378 = vadd.f32 %v5377, %v5283
    %v5379 = vadd.f32 %v5378, %v5288
    %v5380 = vadd.f32 %v5379, %v5291
    %v5381 = vadd.f32 %v5380, %v5296
    %v5382 = vadd.f32 %v5381, %v5299
    %v5383 = vadd.f32 %v5382, %v5304
    %v5384 = vadd.f32 %v5383, %v5307
    %v5385 = vadd.f32 %v5384, %v5312
    %v5386 = vadd.f32 %v5385, %v5315
    %v5387 = vadd.f32 %v5386, %v5320
    %v5388 = vadd.f32 %v5387, %v5323
    %v5389 = vadd.f32 %v5388, %v5328
    %v5390 = vadd.f32 %v5389, %v5331
    %v5391 = vadd.f32 %v5390, %v5336
    %v5392 = vadd.f32 %v5391, %v5339
    %v5393 = vadd.f32 %v5392, %v5344
    %v5394 = vadd.f32 %v5393, %v5347
    %v5395 = vadd.f32 %v5394, %v5352
    %v5396 = vadd.f32 %v5395, %v5355
    %v5397 = vadd.f32 %v5396, %v5360
    %v5398 = vadd.f32 %v5397, %v5363
    %v5399 = vrot.slane %v5398, 4
    %v5400 = vadd.f32 %v5398, %v5399
    %v5401 = vrot.slane %v5400, 2
    %v5402 = vadd.f32 %v5400, %v5401
    %v5403 = vrot.slane %v5402, 1
    %v5404 = vadd.f32 %v5402, %v5403
    %v5405 = vmul.f32 %v5404, 0.00390625
    %v5406 = vmul.f32 %v5240, %v5240
    %v5407 = vmul.f32 %v5243, %v5243
    %v5408 = vmul.f32 %v5248, %v5248
    %v5409 = vmul.f32 %v5251, %v5251
    %v5410 = vmul.f32 %v5256, %v5256
    %v5411 = vmul.f32 %v5259, %v5259
    %v5412 = vmul.f32 %v5264, %v5264
    %v5413 = vmul.f32 %v5267, %v5267
    %v5414 = vmul.f32 %v5272, %v5272
    %v5415 = vmul.f32 %v5275, %v5275
    %v5416 = vmul.f32 %v5280, %v5280
    %v5417 = vmul.f32 %v5283, %v5283
    %v5418 = vmul.f32 %v5288, %v5288
    %v5419 = vmul.f32 %v5291, %v5291
    %v5420 = vmul.f32 %v5296, %v5296
    %v5421 = vmul.f32 %v5299, %v5299
    %v5422 = vmul.f32 %v5304, %v5304
    %v5423 = vmul.f32 %v5307, %v5307
    %v5424 = vmul.f32 %v5312, %v5312
    %v5425 = vmul.f32 %v5315, %v5315
    %v5426 = vmul.f32 %v5320, %v5320
    %v5427 = vmul.f32 %v5323, %v5323
    %v5428 = vmul.f32 %v5328, %v5328
    %v5429 = vmul.f32 %v5331, %v5331
    %v5430 = vmul.f32 %v5336, %v5336
    %v5431 = vmul.f32 %v5339, %v5339
    %v5432 = vmul.f32 %v5344, %v5344
    %v5433 = vmul.f32 %v5347, %v5347
    %v5434 = vmul.f32 %v5352, %v5352
    %v5435 = vmul.f32 %v5355, %v5355
    %v5436 = vmul.f32 %v5360, %v5360
    %v5437 = vmul.f32 %v5363, %v5363
    %v5438 = vadd.f32 %v5406, %v5407
    %v5439 = vadd.f32 %v5438, %v5408
    %v5440 = vadd.f32 %v5439, %v5409
    %v5441 = vadd.f32 %v5440, %v5410
    %v5442 = vadd.f32 %v5441, %v5411
    %v5443 = vadd.f32 %v5442, %v5412
    %v5444 = vadd.f32 %v5443, %v5413
    %v5445 = vadd.f32 %v5444, %v5414
    %v5446 = vadd.f32 %v5445, %v5415
    %v5447 = vadd.f32 %v5446, %v5416
    %v5448 = vadd.f32 %v5447, %v5417
    %v5449 = vadd.f32 %v5448, %v5418
    %v5450 = vadd.f32 %v5449, %v5419
    %v5451 = vadd.f32 %v5450, %v5420
    %v5452 = vadd.f32 %v5451, %v5421
    %v5453 = vadd.f32 %v5452, %v5422
    %v5454 = vadd.f32 %v5453, %v5423
    %v5455 = vadd.f32 %v5454, %v5424
    %v5456 = vadd.f32 %v5455, %v5425
    %v5457 = vadd.f32 %v5456, %v5426
    %v5458 = vadd.f32 %v5457, %v5427
    %v5459 = vadd.f32 %v5458, %v5428
    %v5460 = vadd.f32 %v5459, %v5429
    %v5461 = vadd.f32 %v5460, %v5430
    %v5462 = vadd.f32 %v5461, %v5431
    %v5463 = vadd.f32 %v5462, %v5432
    %v5464 = vadd.f32 %v5463, %v5433
    %v5465 = vadd.f32 %v5464, %v5434
    %v5466 = vadd.f32 %v5465, %v5435
    %v5467 = vadd.f32 %v5466, %v5436
    %v5468 = vadd.f32 %v5467, %v5437
    %v5469 = vrot.slane %v5468, 4
    %v5470 = vadd.f32 %v5468, %v5469
    %v5471 = vrot.slane %v5470, 2
    %v5472 = vadd.f32 %v5470, %v5471
    %v5473 = vrot.slane %v5472, 1
    %v5474 = vadd.f32 %v5472, %v5473
    %v5475 = vmul.f32 %v5474, 0.00390625
    %v5476 = vmul.f32 %v5405, %v5405
    %v5477 = vsub.f32 %v5475, %v5476
    %v5478 = vadd.f32 %v5477, 1e-05
    %v5479 = vrsqrt.pop %v5478
    %v5480 = vmul.f32 %v5366, %v5479
    %v5481 = vmul.f32 %v5405, %v5480
    %v5482 = vsub.f32 %v5367, %v5481
    %v5484 = vlaneseq
    %v5485 = vshrl.u32 %v5484, 7
    %v5486 = vsub.s32 0, %v5485
    %v5487 = vrot.slane %v5480, %v5486
    %v5489 = vmul.f32 %v5240, %v5487
    %v5490 = vmul.f32 %v5243, %v5487
    %v5491 = vmul.f32 %v5248, %v5487
    %v5492 = vmul.f32 %v5251, %v5487
    %v5493 = vmul.f32 %v5256, %v5487
    %v5494 = vmul.f32 %v5259, %v5487
    %v5495 = vmul.f32 %v5264, %v5487
    %v5496 = vmul.f32 %v5267, %v5487
    %v5497 = vmul.f32 %v5272, %v5487
    %v5498 = vmul.f32 %v5275, %v5487
    %v5499 = vmul.f32 %v5280, %v5487
    %v5500 = vmul.f32 %v5283, %v5487
    %v5501 = vmul.f32 %v5288, %v5487
    %v5502 = vmul.f32 %v5291, %v5487
    %v5503 = vmul.f32 %v5296, %v5487
    %v5504 = vmul.f32 %v5299, %v5487
    %v5505 = vmul.f32 %v5304, %v5487
    %v5506 = vmul.f32 %v5307, %v5487
    %v5507 = vmul.f32 %v5312, %v5487
    %v5508 = vmul.f32 %v5315, %v5487
    %v5509 = vmul.f32 %v5320, %v5487
    %v5510 = vmul.f32 %v5323, %v5487
    %v5511 = vmul.f32 %v5328, %v5487
    %v5512 = vmul.f32 %v5331, %v5487
    %v5513 = vmul.f32 %v5336, %v5487
    %v5514 = vmul.f32 %v5339, %v5487
    %v5515 = vmul.f32 %v5344, %v5487
    %v5516 = vmul.f32 %v5347, %v5487
    %v5517 = vmul.f32 %v5352, %v5487
    %v5518 = vmul.f32 %v5355, %v5487
    %v5519 = vmul.f32 %v5360, %v5487
    %v5520 = vmul.f32 %v5363, %v5487
    %v5522 = vlaneseq
    %v5523 = vshrl.u32 %v5522, 7
    %v5524 = vsub.s32 0, %v5523
    %v5525 = vrot.slane %v5482, %v5524
    %v5527 = vadd.f32 %v5489, %v5525
    %v5528 = vadd.f32 %v5490, %v5525
    %v5529 = vadd.f32 %v5491, %v5525
    %v5530 = vadd.f32 %v5492, %v5525
    %v5531 = vadd.f32 %v5493, %v5525
    %v5532 = vadd.f32 %v5494, %v5525
    %v5533 = vadd.f32 %v5495, %v5525
    %v5534 = vadd.f32 %v5496, %v5525
    %v5535 = vadd.f32 %v5497, %v5525
    %v5536 = vadd.f32 %v5498, %v5525
    %v5537 = vadd.f32 %v5499, %v5525
    %v5538 = vadd.f32 %v5500, %v5525
    %v5539 = vadd.f32 %v5501, %v5525
    %v5540 = vadd.f32 %v5502, %v5525
    %v5541 = vadd.f32 %v5503, %v5525
    %v5542 = vadd.f32 %v5504, %v5525
    %v5543 = vadd.f32 %v5505, %v5525
    %v5544 = vadd.f32 %v5506, %v5525
    %v5545 = vadd.f32 %v5507, %v5525
    %v5546 = vadd.f32 %v5508, %v5525
    %v5547 = vadd.f32 %v5509, %v5525
    %v5548 = vadd.f32 %v5510, %v5525
    %v5549 = vadd.f32 %v5511, %v5525
    %v5550 = vadd.f32 %v5512, %v5525
    %v5551 = vadd.f32 %v5513, %v5525
    %v5552 = vadd.f32 %v5514, %v5525
    %v5553 = vadd.f32 %v5515, %v5525
    %v5554 = vadd.f32 %v5516, %v5525
    %v5555 = vadd.f32 %v5517, %v5525
    %v5556 = vadd.f32 %v5518, %v5525
    %v5557 = vadd.f32 %v5519, %v5525
    %v5558 = vadd.f32 %v5520, %v5525
    %v5559 = vmul.f32 %v5527, 0.2
    %v5560 = vmul.f32 %v5528, 0.2
    %v5561 = vmul.f32 %v5529, 0.2
    %v5562 = vmul.f32 %v5530, 0.2
    %v5563 = vmul.f32 %v5531, 0.2
    %v5564 = vmul.f32 %v5532, 0.2
    %v5565 = vmul.f32 %v5533, 0.2
    %v5566 = vmul.f32 %v5534, 0.2
    %v5567 = vmul.f32 %v5535, 0.2
    %v5568 = vmul.f32 %v5536, 0.2
    %v5569 = vmul.f32 %v5537, 0.2
    %v5570 = vmul.f32 %v5538, 0.2
    %v5571 = vmul.f32 %v5539, 0.2
    %v5572 = vmul.f32 %v5540, 0.2
    %v5573 = vmul.f32 %v5541, 0.2
    %v5574 = vmul.f32 %v5542, 0.2
    %v5575 = vmul.f32 %v5543, 0.2
    %v5576 = vmul.f32 %v5544, 0.2
    %v5577 = vmul.f32 %v5545, 0.2
    %v5578 = vmul.f32 %v5546, 0.2
    %v5579 = vmul.f32 %v5547, 0.2
    %v5580 = vmul.f32 %v5548, 0.2
    %v5581 = vmul.f32 %v5549, 0.2
    %v5582 = vmul.f32 %v5550, 0.2
    %v5583 = vmul.f32 %v5551, 0.2
    %v5584 = vmul.f32 %v5552, 0.2
    %v5585 = vmul.f32 %v5553, 0.2
    %v5586 = vmul.f32 %v5554, 0.2
    %v5587 = vmul.f32 %v5555, 0.2
    %v5588 = vmul.f32 %v5556, 0.2
    %v5589 = vmul.f32 %v5557, 0.2
    %v5590 = vmul.f32 %v5558, 0.2
    %v5591 = vmax.f32 %v5527, %v5559
    %v5592 = vmax.f32 %v5528, %v5560
    %v5593 = vmax.f32 %v5529, %v5561
    %v5594 = vmax.f32 %v5530, %v5562
    %v5595 = vmax.f32 %v5531, %v5563
    %v5596 = vmax.f32 %v5532, %v5564
    %v5597 = vmax.f32 %v5533, %v5565
    %v5598 = vmax.f32 %v5534, %v5566
    %v5599 = vmax.f32 %v5535, %v5567
    %v5600 = vmax.f32 %v5536, %v5568
    %v5601 = vmax.f32 %v5537, %v5569
    %v5602 = vmax.f32 %v5538, %v5570
    %v5603 = vmax.f32 %v5539, %v5571
    %v5604 = vmax.f32 %v5540, %v5572
    %v5605 = vmax.f32 %v5541, %v5573
    %v5606 = vmax.f32 %v5542, %v5574
    %v5607 = vmax.f32 %v5543, %v5575
    %v5608 = vmax.f32 %v5544, %v5576
    %v5609 = vmax.f32 %v5545, %v5577
    %v5610 = vmax.f32 %v5546, %v5578
    %v5611 = vmax.f32 %v5547, %v5579
    %v5612 = vmax.f32 %v5548, %v5580
    %v5613 = vmax.f32 %v5549, %v5581
    %v5614 = vmax.f32 %v5550, %v5582
    %v5615 = vmax.f32 %v5551, %v5583
    %v5616 = vmax.f32 %v5552, %v5584
    %v5617 = vmax.f32 %v5553, %v5585
    %v5618 = vmax.f32 %v5554, %v5586
    %v5619 = vmax.f32 %v5555, %v5587
    %v5620 = vmax.f32 %v5556, %v5588
    %v5621 = vmax.f32 %v5557, %v5589
    %v5622 = vmax.f32 %v5558, %v5590
    %v5623 = vpack.c.bf16 %v5592, %v5591
    %v5624 = vpack.c.bf16 %v5594, %v5593
    %v5625 = vpack.c.bf16 %v5596, %v5595
    %v5626 = vpack.c.bf16 %v5598, %v5597
    %v5627 = vpack.c.bf16 %v5600, %v5599
    %v5628 = vpack.c.bf16 %v5602, %v5601
    %v5629 = vpack.c.bf16 %v5604, %v5603
    %v5630 = vpack.c.bf16 %v5606, %v5605
    %v5631 = vpack.c.bf16 %v5608, %v5607
    %v5632 = vpack.c.bf16 %v5610, %v5609
    %v5633 = vpack.c.bf16 %v5612, %v5611
    %v5634 = vpack.c.bf16 %v5614, %v5613
    %v5635 = vpack.c.bf16 %v5616, %v5615
    %v5636 = vpack.c.bf16 %v5618, %v5617
    %v5637 = vpack.c.bf16 %v5620, %v5619
    %v5638 = vpack.c.bf16 %v5622, %v5621
    %v5639 = vld [vmem:[#allocation13] sm:$0xff]
    %v5640 = vld [vmem:[#allocation13 + $0x8] sm:$0xff]
    %v5641 = vld [vmem:[#allocation13 + $0x10] sm:$0xff]
    %v5642 = vld [vmem:[#allocation13 + $0x18] sm:$0xff]
    %v5643 = vld [vmem:[#allocation13 + $0x20] sm:$0xff]
    %v5644 = vld [vmem:[#allocation13 + $0x28] sm:$0xff]
    %v5645 = vld [vmem:[#allocation13 + $0x30] sm:$0xff]
    %v5646 = vld [vmem:[#allocation13 + $0x38] sm:$0xff]
    %v5647 = vld [vmem:[#allocation13 + $0x40] sm:$0xff]
    %v5648 = vld [vmem:[#allocation13 + $0x48] sm:$0xff]
    %v5649 = vld [vmem:[#allocation13 + $0x50] sm:$0xff]
    %v5650 = vld [vmem:[#allocation13 + $0x58] sm:$0xff]
    %v5651 = vld [vmem:[#allocation13 + $0x60] sm:$0xff]
    %v5652 = vld [vmem:[#allocation13 + $0x68] sm:$0xff]
    %v5653 = vld [vmem:[#allocation13 + $0x70] sm:$0xff]
    %v5654 = vld [vmem:[#allocation13 + $0x78] sm:$0xff]
    %v5655 = vld [vmem:[#allocation13 + $0x80] sm:$0xff]
    %v5656 = vld [vmem:[#allocation13 + $0x88] sm:$0xff]
    %v5657 = vld [vmem:[#allocation13 + $0x90] sm:$0xff]
    %v5658 = vld [vmem:[#allocation13 + $0x98] sm:$0xff]
    %v5659 = vld [vmem:[#allocation13 + $0xa0] sm:$0xff]
    %v5660 = vld [vmem:[#allocation13 + $0xa8] sm:$0xff]
    %v5661 = vld [vmem:[#allocation13 + $0xb0] sm:$0xff]
    %v5662 = vld [vmem:[#allocation13 + $0xb8] sm:$0xff]
    %v5663 = vld [vmem:[#allocation13 + $0xc0] sm:$0xff]
    %v5664 = vld [vmem:[#allocation13 + $0xc8] sm:$0xff]
    %v5665 = vld [vmem:[#allocation13 + $0xd0] sm:$0xff]
    %v5666 = vld [vmem:[#allocation13 + $0xd8] sm:$0xff]
    %v5667 = vld [vmem:[#allocation13 + $0xe0] sm:$0xff]
    %v5668 = vld [vmem:[#allocation13 + $0xe8] sm:$0xff]
    %v5669 = vld [vmem:[#allocation13 + $0xf0] sm:$0xff]
    %v5670 = vld [vmem:[#allocation13 + $0xf8] sm:$0xff]
    %v5671 = vld [vmem:[#allocation11 + $0xc0] sm:$0xf]
    %v5672 = vld [vmem:[#allocation11 + $0xc4] sm:$0xf]
    %v5673 = vld [vmem:[#allocation11 + $0xc8] sm:$0xf]
    %v5674 = vld [vmem:[#allocation11 + $0xcc] sm:$0xf]
    %v5675 = vld [vmem:[#allocation11 + $0xd0] sm:$0xf]
    %v5676 = vld [vmem:[#allocation11 + $0xd4] sm:$0xf]
    %v5677 = vld [vmem:[#allocation11 + $0xd8] sm:$0xf]
    %v5678 = vld [vmem:[#allocation11 + $0xdc] sm:$0xf]
    %v5679 = vld [vmem:[#allocation11 + $0xe0] sm:$0xf]
    %v5680 = vld [vmem:[#allocation11 + $0xe4] sm:$0xf]
    %v5681 = vld [vmem:[#allocation11 + $0xe8] sm:$0xf]
    %v5682 = vld [vmem:[#allocation11 + $0xec] sm:$0xf]
    %v5683 = vld [vmem:[#allocation11 + $0xf0] sm:$0xf]
    %v5684 = vld [vmem:[#allocation11 + $0xf4] sm:$0xf]
    %v5685 = vld [vmem:[#allocation11 + $0xf8] sm:$0xf]
    %v5686 = vld [vmem:[#allocation11 + $0xfc] sm:$0xf]
    %v5703 = vunpack.c.l.b16 %v5671
    %v5704 = vunpack.c.l.b16 %v5672
    %v5705 = vunpack.c.l.b16 %v5673
    %v5706 = vunpack.c.l.b16 %v5674
    %v5707 = vunpack.c.l.b16 %v5675
    %v5708 = vunpack.c.l.b16 %v5676
    %v5709 = vunpack.c.l.b16 %v5677
    %v5710 = vunpack.c.l.b16 %v5678
    %v5711 = vunpack.c.l.b16 %v5679
    %v5712 = vunpack.c.l.b16 %v5680
    %v5713 = vunpack.c.l.b16 %v5681
    %v5714 = vunpack.c.l.b16 %v5682
    %v5715 = vunpack.c.l.b16 %v5683
    %v5716 = vunpack.c.l.b16 %v5684
    %v5717 = vunpack.c.l.b16 %v5685
    %v5718 = vunpack.c.l.b16 %v5686
    %v5719 = vpack.c.b16 %v5704, %v5703
    %v5720 = vpack.c.b16 %v5706, %v5705
    %v5721 = vpack.c.b16 %v5708, %v5707
    %v5722 = vpack.c.b16 %v5710, %v5709
    %v5723 = vpack.c.b16 %v5712, %v5711
    %v5724 = vpack.c.b16 %v5714, %v5713
    %v5725 = vpack.c.b16 %v5716, %v5715
    %v5726 = vpack.c.b16 %v5718, %v5717
    %5735 = vmatprep.subr.bf16.mxu0 0
    %5736 = vmatpush1.bf16.msra.mxu0 %v5719
    %5737 = vmatprep.subr.bf16.mxu0 0
    %5738 = vmatpush1.bf16.msra.mxu0 %v5720
    %5739 = vmatprep.subr.bf16.mxu0 0
    %5740 = vmatpush1.bf16.msra.mxu0 %v5721
    %5741 = vmatprep.subr.bf16.mxu0 0
    %5742 = vmatpush1.bf16.msra.mxu0 %v5722
    %5743 = vmatprep.subr.bf16.mxu0 0
    %5744 = vmatpush1.bf16.msra.mxu0 %v5723
    %5745 = vmatprep.subr.bf16.mxu0 0
    %5746 = vmatpush1.bf16.msra.mxu0 %v5724
    %5747 = vmatprep.subr.bf16.mxu0 0
    %5748 = vmatpush1.bf16.msra.mxu0 %v5725
    %5749 = vmatprep.subr.bf16.mxu0 0
    %5750 = vmatpush1.bf16.msra.mxu0 %v5726
    %5751 = vmatprep.subr.bf16.mxu0 0
    %5752 = vmatpush1.bf16.msra.mxu0 0
    %5753 = vmatprep.subr.bf16.mxu0 0
    %5754 = vmatpush1.bf16.msra.mxu0 0
    %5755 = vmatprep.subr.bf16.mxu0 0
    %5756 = vmatpush1.bf16.msra.mxu0 0
    %5757 = vmatprep.subr.bf16.mxu0 0
    %5758 = vmatpush1.bf16.msra.mxu0 0
    %5759 = vmatprep.subr.bf16.mxu0 0
    %5760 = vmatpush1.bf16.msra.mxu0 0
    %5761 = vmatprep.subr.bf16.mxu0 0
    %5762 = vmatpush1.bf16.msra.mxu0 0
    %5763 = vmatprep.subr.bf16.mxu0 0
    %5764 = vmatpush1.bf16.msra.mxu0 0
    %5765 = vmatprep.subr.bf16.mxu0 0
    %5766 = vmatpush1.bf16.msra.mxu0 0
    %5767 = vmatprep.mubr.bf16.mxu0 0
    %5768 = vmatmul.mubr.bf16.gmra.mrb[0].mxu0 %v5623
    %v5769 = vpop.f32.mrb[0].mxu0
    %v5770 = vadd.f32 0.0, %v5769
    %v5771 = vpop.f32.mrb[0].mxu0
    %v5772 = vpop.f32.mrb[0].mxu0
    %v5773 = vadd.f32 0.0, %v5772
    %v5774 = vpop.f32.mrb[0].mxu0
    %5775 = vmatprep.mubr.bf16.mxu0 0
    %5776 = vmatmul.mubr.bf16.gmra.mrb[0].mxu0 %v5624
    %v5777 = vpop.f32.mrb[0].mxu0
    %v5778 = vadd.f32 0.0, %v5777
    %v5779 = vpop.f32.mrb[0].mxu0
    %v5780 = vpop.f32.mrb[0].mxu0
    %v5781 = vadd.f32 0.0, %v5780
    %v5782 = vpop.f32.mrb[0].mxu0
    %5783 = vmatprep.mubr.bf16.mxu0 0
    %5784 = vmatmul.mubr.bf16.gmra.mrb[0].mxu0 %v5625
    %v5785 = vpop.f32.mrb[0].mxu0
    %v5786 = vadd.f32 0.0, %v5785
    %v5787 = vpop.f32.mrb[0].mxu0
    %v5788 = vpop.f32.mrb[0].mxu0
    %v5789 = vadd.f32 0.0, %v5788
    %v5790 = vpop.f32.mrb[0].mxu0
    %5791 = vmatprep.mubr.bf16.mxu0 0
    %5792 = vmatmul.mubr.bf16.gmra.mrb[0].mxu0 %v5626
    %v5793 = vpop.f32.mrb[0].mxu0
    %v5794 = vadd.f32 0.0, %v5793
    %v5795 = vpop.f32.mrb[0].mxu0
    %v5796 = vpop.f32.mrb[0].mxu0
    %v5797 = vadd.f32 0.0, %v5796
    %v5798 = vpop.f32.mrb[0].mxu0
    %5799 = vmatprep.mubr.bf16.mxu0 0
    %5800 = vmatmul.mubr.bf16.gmra.mrb[0].mxu0 %v5627
    %v5801 = vpop.f32.mrb[0].mxu0
    %v5802 = vadd.f32 0.0, %v5801
    %v5803 = vpop.f32.mrb[0].mxu0
    %v5804 = vpop.f32.mrb[0].mxu0
    %v5805 = vadd.f32 0.0, %v5804
    %v5806 = vpop.f32.mrb[0].mxu0
    %5807 = vmatprep.mubr.bf16.mxu0 0
    %5808 = vmatmul.mubr.bf16.gmra.mrb[0].mxu0 %v5628
    %v5809 = vpop.f32.mrb[0].mxu0
    %v5810 = vadd.f32 0.0, %v5809
    %v5811 = vpop.f32.mrb[0].mxu0
    %v5812 = vpop.f32.mrb[0].mxu0
    %v5813 = vadd.f32 0.0, %v5812
    %v5814 = vpop.f32.mrb[0].mxu0
    %5815 = vmatprep.mubr.bf16.mxu0 0
    %5816 = vmatmul.mubr.bf16.gmra.mrb[0].mxu0 %v5629
    %v5817 = vpop.f32.mrb[0].mxu0
    %v5818 = vadd.f32 0.0, %v5817
    %v5819 = vpop.f32.mrb[0].mxu0
    %v5820 = vpop.f32.mrb[0].mxu0
    %v5821 = vadd.f32 0.0, %v5820
    %v5822 = vpop.f32.mrb[0].mxu0
    %5823 = vmatprep.mubr.bf16.mxu0 0
    %5824 = vmatmul.mubr.bf16.gmra.mrb[0].mxu0 %v5630
    %v5825 = vpop.f32.mrb[0].mxu0
    %v5826 = vadd.f32 0.0, %v5825
    %v5827 = vpop.f32.mrb[0].mxu0
    %v5828 = vpop.f32.mrb[0].mxu0
    %v5829 = vadd.f32 0.0, %v5828
    %v5830 = vpop.f32.mrb[0].mxu0
    %5831 = vmatprep.mubr.bf16.mxu0 0
    %5832 = vmatmul.mubr.bf16.gmra.mrb[0].mxu0 %v5631
    %v5833 = vpop.f32.mrb[0].mxu0
    %v5834 = vadd.f32 0.0, %v5833
    %v5835 = vpop.f32.mrb[0].mxu0
    %v5836 = vpop.f32.mrb[0].mxu0
    %v5837 = vadd.f32 0.0, %v5836
    %v5838 = vpop.f32.mrb[0].mxu0
    %5839 = vmatprep.mubr.bf16.mxu0 0
    %5840 = vmatmul.mubr.bf16.gmra.mrb[0].mxu0 %v5632
    %v5841 = vpop.f32.mrb[0].mxu0
    %v5842 = vadd.f32 0.0, %v5841
    %v5843 = vpop.f32.mrb[0].mxu0
    %v5844 = vpop.f32.mrb[0].mxu0
    %v5845 = vadd.f32 0.0, %v5844
    %v5846 = vpop.f32.mrb[0].mxu0
    %5847 = vmatprep.mubr.bf16.mxu0 0
    %5848 = vmatmul.mubr.bf16.gmra.mrb[0].mxu0 %v5633
    %v5849 = vpop.f32.mrb[0].mxu0
    %v5850 = vadd.f32 0.0, %v5849
    %v5851 = vpop.f32.mrb[0].mxu0
    %v5852 = vpop.f32.mrb[0].mxu0
    %v5853 = vadd.f32 0.0, %v5852
    %v5854 = vpop.f32.mrb[0].mxu0
    %5855 = vmatprep.mubr.bf16.mxu0 0
    %5856 = vmatmul.mubr.bf16.gmra.mrb[0].mxu0 %v5634
    %v5857 = vpop.f32.mrb[0].mxu0
    %v5858 = vadd.f32 0.0, %v5857
    %v5859 = vpop.f32.mrb[0].mxu0
    %v5860 = vpop.f32.mrb[0].mxu0
    %v5861 = vadd.f32 0.0, %v5860
    %v5862 = vpop.f32.mrb[0].mxu0
    %5863 = vmatprep.mubr.bf16.mxu0 0
    %5864 = vmatmul.mubr.bf16.gmra.mrb[0].mxu0 %v5635
    %v5865 = vpop.f32.mrb[0].mxu0
    %v5866 = vadd.f32 0.0, %v5865
    %v5867 = vpop.f32.mrb[0].mxu0
    %v5868 = vpop.f32.mrb[0].mxu0
    %v5869 = vadd.f32 0.0, %v5868
    %v5870 = vpop.f32.mrb[0].mxu0
    %5871 = vmatprep.mubr.bf16.mxu0 0
    %5872 = vmatmul.mubr.bf16.gmra.mrb[0].mxu0 %v5636
    %v5873 = vpop.f32.mrb[0].mxu0
    %v5874 = vadd.f32 0.0, %v5873
    %v5875 = vpop.f32.mrb[0].mxu0
    %v5876 = vpop.f32.mrb[0].mxu0
    %v5877 = vadd.f32 0.0, %v5876
    %v5878 = vpop.f32.mrb[0].mxu0
    %5879 = vmatprep.mubr.bf16.mxu0 0
    %5880 = vmatmul.mubr.bf16.gmra.mrb[0].mxu0 %v5637
    %v5881 = vpop.f32.mrb[0].mxu0
    %v5882 = vadd.f32 0.0, %v5881
    %v5883 = vpop.f32.mrb[0].mxu0
    %v5884 = vpop.f32.mrb[0].mxu0
    %v5885 = vadd.f32 0.0, %v5884
    %v5886 = vpop.f32.mrb[0].mxu0
    %5887 = vmatprep.mubr.bf16.mxu0 0
    %5888 = vmatmul.mubr.bf16.gmra.mrb[0].mxu0 %v5638
    %v5889 = vpop.f32.mrb[0].mxu0
    %v5890 = vadd.f32 0.0, %v5889
    %v5891 = vpop.f32.mrb[0].mxu0
    %v5892 = vpop.f32.mrb[0].mxu0
    %v5893 = vadd.f32 0.0, %v5892
    %v5894 = vpop.f32.mrb[0].mxu0
    %5895 = vdwg.mxu0
    %v5896 = vadd.f32 %v5639, %v5770
    %v5897 = vadd.f32 %v5640, %v5773
    %v5898 = vadd.f32 %v5641, %v5778
    %v5899 = vadd.f32 %v5642, %v5781
    %v5900 = vadd.f32 %v5643, %v5786
    %v5901 = vadd.f32 %v5644, %v5789
    %v5902 = vadd.f32 %v5645, %v5794
    %v5903 = vadd.f32 %v5646, %v5797
    %v5904 = vadd.f32 %v5647, %v5802
    %v5905 = vadd.f32 %v5648, %v5805
    %v5906 = vadd.f32 %v5649, %v5810
    %v5907 = vadd.f32 %v5650, %v5813
    %v5908 = vadd.f32 %v5651, %v5818
    %v5909 = vadd.f32 %v5652, %v5821
    %v5910 = vadd.f32 %v5653, %v5826
    %v5911 = vadd.f32 %v5654, %v5829
    %v5912 = vadd.f32 %v5655, %v5834
    %v5913 = vadd.f32 %v5656, %v5837
    %v5914 = vadd.f32 %v5657, %v5842
    %v5915 = vadd.f32 %v5658, %v5845
    %v5916 = vadd.f32 %v5659, %v5850
    %v5917 = vadd.f32 %v5660, %v5853
    %v5918 = vadd.f32 %v5661, %v5858
    %v5919 = vadd.f32 %v5662, %v5861
    %v5920 = vadd.f32 %v5663, %v5866
    %v5921 = vadd.f32 %v5664, %v5869
    %v5922 = vadd.f32 %v5665, %v5874
    %v5923 = vadd.f32 %v5666, %v5877
    %v5924 = vadd.f32 %v5667, %v5882
    %v5925 = vadd.f32 %v5668, %v5885
    %v5926 = vadd.f32 %v5669, %v5890
    %v5927 = vadd.f32 %v5670, %v5893
    %5928 = vst [vmem:[#allocation13] sm:$0xff] %v5896
    %5929 = vst [vmem:[#allocation13 + $0x8] sm:$0xff] %v5897
    %5930 = vst [vmem:[#allocation13 + $0x10] sm:$0xff] %v5898
    %5931 = vst [vmem:[#allocation13 + $0x18] sm:$0xff] %v5899
    %5932 = vst [vmem:[#allocation13 + $0x20] sm:$0xff] %v5900
    %5933 = vst [vmem:[#allocation13 + $0x28] sm:$0xff] %v5901
    %5934 = vst [vmem:[#allocation13 + $0x30] sm:$0xff] %v5902
    %5935 = vst [vmem:[#allocation13 + $0x38] sm:$0xff] %v5903
    %5936 = vst [vmem:[#allocation13 + $0x40] sm:$0xff] %v5904
    %5937 = vst [vmem:[#allocation13 + $0x48] sm:$0xff] %v5905
    %5938 = vst [vmem:[#allocation13 + $0x50] sm:$0xff] %v5906
    %5939 = vst [vmem:[#allocation13 + $0x58] sm:$0xff] %v5907
    %5940 = vst [vmem:[#allocation13 + $0x60] sm:$0xff] %v5908
    %5941 = vst [vmem:[#allocation13 + $0x68] sm:$0xff] %v5909
    %5942 = vst [vmem:[#allocation13 + $0x70] sm:$0xff] %v5910
    %5943 = vst [vmem:[#allocation13 + $0x78] sm:$0xff] %v5911
    %5944 = vst [vmem:[#allocation13 + $0x80] sm:$0xff] %v5912
    %5945 = vst [vmem:[#allocation13 + $0x88] sm:$0xff] %v5913
    %5946 = vst [vmem:[#allocation13 + $0x90] sm:$0xff] %v5914
    %5947 = vst [vmem:[#allocation13 + $0x98] sm:$0xff] %v5915
    %5948 = vst [vmem:[#allocation13 + $0xa0] sm:$0xff] %v5916
    %5949 = vst [vmem:[#allocation13 + $0xa8] sm:$0xff] %v5917
    %5950 = vst [vmem:[#allocation13 + $0xb0] sm:$0xff] %v5918
    %5951 = vst [vmem:[#allocation13 + $0xb8] sm:$0xff] %v5919
    %5952 = vst [vmem:[#allocation13 + $0xc0] sm:$0xff] %v5920
    %5953 = vst [vmem:[#allocation13 + $0xc8] sm:$0xff] %v5921
    %5954 = vst [vmem:[#allocation13 + $0xd0] sm:$0xff] %v5922
    %5955 = vst [vmem:[#allocation13 + $0xd8] sm:$0xff] %v5923
    %5956 = vst [vmem:[#allocation13 + $0xe0] sm:$0xff] %v5924
    %5957 = vst [vmem:[#allocation13 + $0xe8] sm:$0xff] %v5925
    %5958 = vst [vmem:[#allocation13 + $0xf0] sm:$0xff] %v5926
    %5959 = vst [vmem:[#allocation13 + $0xf8] sm:$0xff] %v5927
    // Predicated region
    $region74: #{tpu_custom_call.1} parent=1 // pred_check
      _
    $region75: #{tpu_custom_call.1} parent=1 // pred_check_branch
      %5961 = sbr.rel (0) target = $region77
    $region76: #{tpu_custom_call.1} parent=1 // pred_region
      %s5963 = ssub.s32 4096, 4096
      %5964 = vsyncadd [#allocation4], %s5963
      %s5965 = sshll.u32 [#allocation13], 4
      %s5966 = int_to_ptr.vmem [resolvable:$true] %s5965
      %5971 = dma.vmem_to_hbm [thread:$0]  %s5966, 4096, %s12, [#allocation4], 128, 128, 8
    $region77: #{tpu_custom_call.1} parent=1 // pred_fallthru
      _
    // Predicated region
    $region78: #{tpu_custom_call.1} parent=1 // pred_check
      _
    $region79: #{tpu_custom_call.1} parent=1 // pred_check_branch
      %5973 = sbr.rel (0) target = $region81
    $region80: #{tpu_custom_call.1} parent=1 // pred_region
      %5974 = dma.done [#allocation4], 4096
    $region81: #{tpu_custom_call.1} parent=1 // pred_fallthru
      _
    %5975 = vsyncpa [#allocation3], 1
    %5976 = vsyncpa [#allocation6], 1
    %5977 = vsyncpa [#allocation9], 1
    %5978 = vsyncpa [#allocation12], 1
    %5979 = vsyncpa [#allocation4], 1

</llo_original>
